<compile_context>
chip_gen: v5e
topology: v5e:2x2
jax: 0.10.0
libtpu: 0.0.40
codegen_flags: <defaults>
</compile_context>

<pallas_src>
import functools

import jax
import jax.numpy as jnp
from jax.experimental import pallas as pl
from jax.experimental.pallas import tpu as pltpu


# ----------------------------------------------------------------------------
# Pallas kernels
# ----------------------------------------------------------------------------
def _mm_bias_relu_kernel(x_ref, w_ref, b_ref, o_ref):
    """o = relu(x @ w + b).  Single full-array block; bf16 in, f32 accumulate."""
    acc = jnp.dot(x_ref[...], w_ref[...], preferred_element_type=jnp.float32)
    acc = jnp.maximum(acc + b_ref[...], 0.0)          # (1, N) bias broadcast
    o_ref[...] = acc.astype(o_ref.dtype)


def _head_kernel(x_ref, w1_ref, b1_ref, w2_ref, b2_ref, wml_ref, bml_ref,
                 eps_ref, m_ref, kl_ref, *, dim_m):
    """Fused MLP head: linear1+relu -> linear2+relu -> [mu|logvar] -> reparam + KL."""
    h = jnp.dot(x_ref[...], w1_ref[...], preferred_element_type=jnp.float32)
    h = jnp.maximum(h + b1_ref[...], 0.0).astype(jnp.bfloat16)
    h = jnp.dot(h, w2_ref[...], preferred_element_type=jnp.float32)
    h = jnp.maximum(h + b2_ref[...], 0.0).astype(jnp.bfloat16)
    # mu and logvar from a single matmul over the concatenated weight.
    ml = jnp.dot(h, wml_ref[...], preferred_element_type=jnp.float32) + bml_ref[...]
    mu = ml[:, :dim_m]
    lv = ml[:, dim_m:]
    sigma = jnp.exp(0.5 * lv)
    m_ref[...] = (mu + sigma * eps_ref[...]).astype(m_ref.dtype)
    # kl = sigma^2/2 + mu^2/2 - log(sigma) - 1/2  ==  0.5*(exp(lv) + mu^2 - lv - 1)
    kl = 0.5 * (jnp.exp(lv) + mu * mu - lv - 1.0)
    kl_ref[0, 0] = jnp.sum(kl)                        # scalar KL -> SMEM


# ----------------------------------------------------------------------------
# Pallas wrappers
# ----------------------------------------------------------------------------
def _full_spec(shape):
    """Full-array block: no (8,128) divisibility requirement, no padding copies."""
    return pl.BlockSpec(shape, lambda i: (0,) * len(shape))


def pallas_matmul_bias_relu(x, w, b_row, out_dtype=jnp.bfloat16):
    """relu(x @ w + b) on the MXU.  x:(M,K) bf16, w:(K,N) bf16, b_row:(1,N) f32."""
    M, _ = x.shape
    N = w.shape[1]
    return pl.pallas_call(
        _mm_bias_relu_kernel,
        out_shape=jax.ShapeDtypeStruct((M, N), out_dtype),
        grid=(1,),
        in_specs=[_full_spec(x.shape), _full_spec(w.shape), _full_spec(b_row.shape)],
        out_specs=_full_spec((M, N)),
    )(x, w, b_row)


def pallas_head(x, eps, kp):
    """Single fused pallas_call for the whole MLP head + reparameterisation/KL."""
    B = x.shape[0]
    dim_m = eps.shape[1]
    m, kl = pl.pallas_call(
        functools.partial(_head_kernel, dim_m=dim_m),
        out_shape=(
            jax.ShapeDtypeStruct((B, dim_m), jnp.float32),
            jax.ShapeDtypeStruct((1, 1), jnp.float32),
        ),
        grid=(1,),
        in_specs=[
            _full_spec(x.shape),
            _full_spec(kp["l1_w"].shape), _full_spec(kp["l1_b"].shape),
            _full_spec(kp["l2_w"].shape), _full_spec(kp["l2_b"].shape),
            _full_spec(kp["mulv_w"].shape), _full_spec(kp["mulv_b"].shape),
            _full_spec(eps.shape),
        ],
        out_specs=(
            _full_spec((B, dim_m)),
            pl.BlockSpec(memory_space=pltpu.MemorySpace.SMEM),   # scalar KL
        ),
        compiler_params=pltpu.CompilerParams(
            # grid=(1,): one TensorCore handles everything at this batch size.
            # For batch >> 128, tile M over a leading grid axis marked
            # "parallel" so v7x's two TensorCores both run.
            dimension_semantics=("arbitrary",),
            vmem_limit_bytes=32 * 1024 * 1024,
        ),
    )(x, kp["l1_w"], kp["l1_b"], kp["l2_w"], kp["l2_b"],
      kp["mulv_w"], kp["mulv_b"], eps)
    return m, kl[0, 0]


# ----------------------------------------------------------------------------
# Conv (im2col glue -> Pallas matmul)
# ----------------------------------------------------------------------------
def _im2col(x_nhwc, k=3, stride=2, pad=1):
    # XLA-side patch extraction (strided slices + concat, fused by XLA).
    # TODO(synk): could be folded into the Pallas kernel as a 9-tap K
    # accumulation to drop the last wrapper glue; negligible at these sizes.
    B, H, W, C = x_nhwc.shape
    xp = jnp.pad(x_nhwc, ((0, 0), (pad, pad), (pad, pad), (0, 0)))
    OH = (H + 2 * pad - k) // stride + 1
    OW = (W + 2 * pad - k) // stride + 1
    cols = []
    for kh in range(k):
        for kw in range(k):
            cols.append(xp[:, kh:kh + stride * OH:stride,
                           kw:kw + stride * OW:stride, :])
    patches = jnp.concatenate(cols, axis=-1)            # (B, OH, OW, k*k*C)
    return patches.reshape(B * OH * OW, k * k * C), (B, OH, OW)


def conv2d_s2_relu(x_nhwc, w2d, b_row):
    """Conv2d(3x3, stride=2, pad=1) + ReLU as im2col + one Pallas MXU matmul.
    w2d: (9*Cin, Cout) bf16 (pre-transposed at init), b_row: (1, Cout) f32."""
    patches, (B, OH, OW) = _im2col(x_nhwc)
    Cout = w2d.shape[1]
    out = pallas_matmul_bias_relu(patches, w2d, b_row, out_dtype=jnp.bfloat16)
    return out.reshape(B, OH, OW, Cout)


# ----------------------------------------------------------------------------
# Parameters
# ----------------------------------------------------------------------------
def init_params(key, dim_m):
    ks = jax.random.split(key, 7)

    def w(key, shape, fan_in):
        return jax.random.normal(key, shape, jnp.float32) / jnp.sqrt(fan_in)

    return {
        "c1_w": w(ks[0], (16, 3, 3, 3), 3 * 9),   "c1_b": jnp.zeros((16,), jnp.float32),
        "c2_w": w(ks[1], (32, 16, 3, 3), 16 * 9), "c2_b": jnp.zeros((32,), jnp.float32),
        "c3_w": w(ks[2], (64, 32, 3, 3), 32 * 9), "c3_b": jnp.zeros((64,), jnp.float32),
        "l1_w": w(ks[3], (1024, 1000), 1024),     "l1_b": jnp.zeros((1000,), jnp.float32),
        "l2_w": w(ks[4], (1000, 1000), 1000),     "l2_b": jnp.zeros((1000,), jnp.float32),
        "mu_w": w(ks[5], (1000, dim_m), 1000),    "mu_b": jnp.zeros((dim_m,), jnp.float32),
        "lv_w": w(ks[6], (1000, dim_m), 1000),    "lv_b": jnp.zeros((dim_m,), jnp.float32),
    }


def prepare_params(p):
    """One-time (outside the jitted forward): weight layout + dtype.
    Conv weights (Cout,Cin,3,3) -> (9*Cin,Cout) bf16, mu|logvar weights fused
    along N, biases as (1,N) f32 rows.  No per-step padding/transpose copies."""

    def conv_w(w_oikk):
        cout, cin, kh, kw = w_oikk.shape
        return (jnp.transpose(w_oikk, (2, 3, 1, 0))
                .reshape(kh * kw * cin, cout).astype(jnp.bfloat16))

    def brow(b):
        return b.reshape(1, -1).astype(jnp.float32)

    return {
        "c1_w": conv_w(p["c1_w"]), "c1_b": brow(p["c1_b"]),
        "c2_w": conv_w(p["c2_w"]), "c2_b": brow(p["c2_b"]),
        "c3_w": conv_w(p["c3_w"]), "c3_b": brow(p["c3_b"]),
        "l1_w": p["l1_w"].astype(jnp.bfloat16), "l1_b": brow(p["l1_b"]),
        "l2_w": p["l2_w"].astype(jnp.bfloat16), "l2_b": brow(p["l2_b"]),
        "mulv_w": jnp.concatenate([p["mu_w"], p["lv_w"]], axis=1).astype(jnp.bfloat16),
        "mulv_b": brow(jnp.concatenate([p["mu_b"], p["lv_b"]])),
    }


# ----------------------------------------------------------------------------
# Full QMCIFAR forward
# ----------------------------------------------------------------------------
def qmcifar_forward(kp, x_nchw, eps):
    # NCHW -> NHWC, bf16 feeds the MXU (f32 accumulation inside the kernels).
    x = jnp.transpose(x_nchw, (0, 2, 3, 1)).astype(jnp.bfloat16)
    x = conv2d_s2_relu(x, kp["c1_w"], kp["c1_b"])   # (B,16,16,16)
    x = conv2d_s2_relu(x, kp["c2_w"], kp["c2_b"])   # (B, 8, 8,32)
    x = conv2d_s2_relu(x, kp["c3_w"], kp["c3_b"])   # (B, 4, 4,64)

    # torch.flatten(x, 1) on NCHW ordering -> back to NCHW before flattening.
    B = x.shape[0]
    x = jnp.transpose(x, (0, 3, 1, 2)).reshape(B, 4 * 4 * 64)

    # Fused head: linear1 -> linear2 -> [mu|logvar] -> reparameterisation + KL.
    m, kl = pallas_head(x, eps, kp)
    return m, kl


if __name__ == "__main__":
    key = jax.random.PRNGKey(0)
    k_param, k_x, k_eps = jax.random.split(key, 3)

    B, dim_m = 2, 16
    params = prepare_params(init_params(k_param, dim_m))    # one-time, outside jit
    x = jax.random.normal(k_x, (B, 3, 32, 32), jnp.float32)  # CIFAR NCHW
    eps = jax.random.normal(k_eps, (B, dim_m), jnp.float32)  # std_normal.sample

    m, kl = jax.jit(qmcifar_forward)(params, x, eps)
    jax.block_until_ready((m, kl))
    assert m.shape == (B, dim_m) and kl.shape == ()
    print("KERNEL_OK")
</pallas_src>

<mosaic_0001>
module attributes {stable_mosaic.version = 11 : i64} {
  func.func @_mm_bias_relu_kernel(%arg0: i32, %arg1: memref<512x27xbf16, #tpu.memory_space<vmem>>, %arg2: memref<27x16xbf16, #tpu.memory_space<vmem>>, %arg3: memref<1x16xf32, #tpu.memory_space<vmem>>, %arg4: memref<512x16xbf16, #tpu.memory_space<vmem>>) attributes {dimension_semantics = [#tpu.dimension_semantics<arbitrary>], iteration_bounds = array<i64: 1>, scalar_prefetch = 0 : i64, scratch_operands = 0 : i64, tpu.core_type = #tpu.core_type<tc>, window_params = [{pipeline_mode = #tpu.pipeline_mode<synchronous>, transform_indices = @transform_0, window_bounds = array<i64: 512, 27>}, {pipeline_mode = #tpu.pipeline_mode<synchronous>, transform_indices = @transform_1, window_bounds = array<i64: 27, 16>}, {pipeline_mode = #tpu.pipeline_mode<synchronous>, transform_indices = @transform_2, window_bounds = array<i64: 1, 16>}, {pipeline_mode = #tpu.pipeline_mode<synchronous>, transform_indices = @transform_3, window_bounds = array<i64: 512, 16>}]} {
    %c0 = arith.constant 0 : index
    %c0_0 = arith.constant 0 : index
    %0 = vector.load %arg1[%c0, %c0_0] : memref<512x27xbf16, #tpu.memory_space<vmem>>, vector<512x27xbf16>
    %c0_1 = arith.constant 0 : index
    %c0_2 = arith.constant 0 : index
    %1 = vector.load %arg2[%c0_1, %c0_2] : memref<27x16xbf16, #tpu.memory_space<vmem>>, vector<27x16xbf16>
    %cst = arith.constant dense<0.000000e+00> : vector<512x16xf32>
    %2 = tpu.matmul %0, %1, %cst {dimension_numbers = #tpu.dot_dimension_numbers<[1], [0], [0], [1], [0, 0, 1, 1], [], []>} : vector<512x27xbf16>, vector<27x16xbf16>, vector<512x16xf32> -> vector<512x16xf32>
    %c0_3 = arith.constant 0 : index
    %c0_4 = arith.constant 0 : index
    %3 = vector.load %arg3[%c0_3, %c0_4] : memref<1x16xf32, #tpu.memory_space<vmem>>, vector<1x16xf32>
    %4 = vector.broadcast %3 : vector<1x16xf32> to vector<512x16xf32>
    %5 = arith.addf %2, %4 : vector<512x16xf32>
    %cst_5 = arith.constant 0.000000e+00 : f32
    %6 = vector.broadcast %cst_5 : f32 to vector<512x16xf32>
    %7 = arith.maximumf %5, %6 : vector<512x16xf32>
    %8 = arith.truncf %7 : vector<512x16xf32> to vector<512x16xbf16>
    %c0_6 = arith.constant 0 : index
    %c0_7 = arith.constant 0 : index
    %9 = vector.load %arg4[%c0_6, %c0_7] : memref<512x16xbf16, #tpu.memory_space<vmem>>, vector<512x16xbf16>
    tpu.vector_store %arg4[%c0_6, %c0_7], %8 {strides = array<i32>} : memref<512x16xbf16, #tpu.memory_space<vmem>>, vector<512x16xbf16>,
    return
  }
  func.func @transform_0(%arg0: i32) -> (i32, i32) {
    %c0_i32 = arith.constant 0 : i32
    %c0_i32_0 = arith.constant 0 : i32
    %c0_i32_1 = arith.constant 0 : i32
    return %c0_i32, %c0_i32_0 : i32, i32
  }
  func.func @transform_1(%arg0: i32) -> (i32, i32) {
    %c0_i32 = arith.constant 0 : i32
    %c0_i32_0 = arith.constant 0 : i32
    %c0_i32_1 = arith.constant 0 : i32
    return %c0_i32, %c0_i32_0 : i32, i32
  }
  func.func @transform_2(%arg0: i32) -> (i32, i32) {
    %c0_i32 = arith.constant 0 : i32
    %c0_i32_0 = arith.constant 0 : i32
    %c0_i32_1 = arith.constant 0 : i32
    return %c0_i32, %c0_i32_0 : i32, i32
  }
  func.func @transform_3(%arg0: i32) -> (i32, i32) {
    %c0_i32 = arith.constant 0 : i32
    %c0_i32_0 = arith.constant 0 : i32
    %c0_i32_1 = arith.constant 0 : i32
    return %c0_i32, %c0_i32_0 : i32, i32
  }
}

module attributes {stable_mosaic.version = 11 : i64} {
  func.func @_mm_bias_relu_kernel(%arg0: i32, %arg1: memref<128x144xbf16, #tpu.memory_space<vmem>>, %arg2: memref<144x32xbf16, #tpu.memory_space<vmem>>, %arg3: memref<1x32xf32, #tpu.memory_space<vmem>>, %arg4: memref<128x32xbf16, #tpu.memory_space<vmem>>) attributes {dimension_semantics = [#tpu.dimension_semantics<arbitrary>], iteration_bounds = array<i64: 1>, scalar_prefetch = 0 : i64, scratch_operands = 0 : i64, tpu.core_type = #tpu.core_type<tc>, window_params = [{pipeline_mode = #tpu.pipeline_mode<synchronous>, transform_indices = @transform_0, window_bounds = array<i64: 128, 144>}, {pipeline_mode = #tpu.pipeline_mode<synchronous>, transform_indices = @transform_1, window_bounds = array<i64: 144, 32>}, {pipeline_mode = #tpu.pipeline_mode<synchronous>, transform_indices = @transform_2, window_bounds = array<i64: 1, 32>}, {pipeline_mode = #tpu.pipeline_mode<synchronous>, transform_indices = @transform_3, window_bounds = array<i64: 128, 32>}]} {
    %c0 = arith.constant 0 : index
    %c0_0 = arith.constant 0 : index
    %0 = vector.load %arg1[%c0, %c0_0] : memref<128x144xbf16, #tpu.memory_space<vmem>>, vector<128x144xbf16>
    %c0_1 = arith.constant 0 : index
    %c0_2 = arith.constant 0 : index
    %1 = vector.load %arg2[%c0_1, %c0_2] : memref<144x32xbf16, #tpu.memory_space<vmem>>, vector<144x32xbf16>
    %cst = arith.constant dense<0.000000e+00> : vector<128x32xf32>
    %2 = tpu.matmul %0, %1, %cst {dimension_numbers = #tpu.dot_dimension_numbers<[1], [0], [0], [1], [0, 0, 1, 1], [], []>} : vector<128x144xbf16>, vector<144x32xbf16>, vector<128x32xf32> -> vector<128x32xf32>
    %c0_3 = arith.constant 0 : index
    %c0_4 = arith.constant 0 : index
    %3 = vector.load %arg3[%c0_3, %c0_4] : memref<1x32xf32, #tpu.memory_space<vmem>>, vector<1x32xf32>
    %4 = vector.broadcast %3 : vector<1x32xf32> to vector<128x32xf32>
    %5 = arith.addf %2, %4 : vector<128x32xf32>
    %cst_5 = arith.constant 0.000000e+00 : f32
    %6 = vector.broadcast %cst_5 : f32 to vector<128x32xf32>
    %7 = arith.maximumf %5, %6 : vector<128x32xf32>
    %8 = arith.truncf %7 : vector<128x32xf32> to vector<128x32xbf16>
    %c0_6 = arith.constant 0 : index
    %c0_7 = arith.constant 0 : index
    %9 = vector.load %arg4[%c0_6, %c0_7] : memref<128x32xbf16, #tpu.memory_space<vmem>>, vector<128x32xbf16>
    tpu.vector_store %arg4[%c0_6, %c0_7], %8 {strides = array<i32>} : memref<128x32xbf16, #tpu.memory_space<vmem>>, vector<128x32xbf16>,
    return
  }
  func.func @transform_0(%arg0: i32) -> (i32, i32) {
    %c0_i32 = arith.constant 0 : i32
    %c0_i32_0 = arith.constant 0 : i32
    %c0_i32_1 = arith.constant 0 : i32
    return %c0_i32, %c0_i32_0 : i32, i32
  }
  func.func @transform_1(%arg0: i32) -> (i32, i32) {
    %c0_i32 = arith.constant 0 : i32
    %c0_i32_0 = arith.constant 0 : i32
    %c0_i32_1 = arith.constant 0 : i32
    return %c0_i32, %c0_i32_0 : i32, i32
  }
  func.func @transform_2(%arg0: i32) -> (i32, i32) {
    %c0_i32 = arith.constant 0 : i32
    %c0_i32_0 = arith.constant 0 : i32
    %c0_i32_1 = arith.constant 0 : i32
    return %c0_i32, %c0_i32_0 : i32, i32
  }
  func.func @transform_3(%arg0: i32) -> (i32, i32) {
    %c0_i32 = arith.constant 0 : i32
    %c0_i32_0 = arith.constant 0 : i32
    %c0_i32_1 = arith.constant 0 : i32
    return %c0_i32, %c0_i32_0 : i32, i32
  }
}

module attributes {stable_mosaic.version = 11 : i64} {
  func.func @_mm_bias_relu_kernel(%arg0: i32, %arg1: memref<32x288xbf16, #tpu.memory_space<vmem>>, %arg2: memref<288x64xbf16, #tpu.memory_space<vmem>>, %arg3: memref<1x64xf32, #tpu.memory_space<vmem>>, %arg4: memref<32x64xbf16, #tpu.memory_space<vmem>>) attributes {dimension_semantics = [#tpu.dimension_semantics<arbitrary>], iteration_bounds = array<i64: 1>, scalar_prefetch = 0 : i64, scratch_operands = 0 : i64, tpu.core_type = #tpu.core_type<tc>, window_params = [{pipeline_mode = #tpu.pipeline_mode<synchronous>, transform_indices = @transform_0, window_bounds = array<i64: 32, 288>}, {pipeline_mode = #tpu.pipeline_mode<synchronous>, transform_indices = @transform_1, window_bounds = array<i64: 288, 64>}, {pipeline_mode = #tpu.pipeline_mode<synchronous>, transform_indices = @transform_2, window_bounds = array<i64: 1, 64>}, {pipeline_mode = #tpu.pipeline_mode<synchronous>, transform_indices = @transform_3, window_bounds = array<i64: 32, 64>}]} {
    %c0 = arith.constant 0 : index
    %c0_0 = arith.constant 0 : index
    %0 = vector.load %arg1[%c0, %c0_0] : memref<32x288xbf16, #tpu.memory_space<vmem>>, vector<32x288xbf16>
    %c0_1 = arith.constant 0 : index
    %c0_2 = arith.constant 0 : index
    %1 = vector.load %arg2[%c0_1, %c0_2] : memref<288x64xbf16, #tpu.memory_space<vmem>>, vector<288x64xbf16>
    %cst = arith.constant dense<0.000000e+00> : vector<32x64xf32>
    %2 = tpu.matmul %0, %1, %cst {dimension_numbers = #tpu.dot_dimension_numbers<[1], [0], [0], [1], [0, 0, 1, 1], [], []>} : vector<32x288xbf16>, vector<288x64xbf16>, vector<32x64xf32> -> vector<32x64xf32>
    %c0_3 = arith.constant 0 : index
    %c0_4 = arith.constant 0 : index
    %3 = vector.load %arg3[%c0_3, %c0_4] : memref<1x64xf32, #tpu.memory_space<vmem>>, vector<1x64xf32>
    %4 = vector.broadcast %3 : vector<1x64xf32> to vector<32x64xf32>
    %5 = arith.addf %2, %4 : vector<32x64xf32>
    %cst_5 = arith.constant 0.000000e+00 : f32
    %6 = vector.broadcast %cst_5 : f32 to vector<32x64xf32>
    %7 = arith.maximumf %5, %6 : vector<32x64xf32>
    %8 = arith.truncf %7 : vector<32x64xf32> to vector<32x64xbf16>
    %c0_6 = arith.constant 0 : index
    %c0_7 = arith.constant 0 : index
    %9 = vector.load %arg4[%c0_6, %c0_7] : memref<32x64xbf16, #tpu.memory_space<vmem>>, vector<32x64xbf16>
    tpu.vector_store %arg4[%c0_6, %c0_7], %8 {strides = array<i32>} : memref<32x64xbf16, #tpu.memory_space<vmem>>, vector<32x64xbf16>,
    return
  }
  func.func @transform_0(%arg0: i32) -> (i32, i32) {
    %c0_i32 = arith.constant 0 : i32
    %c0_i32_0 = arith.constant 0 : i32
    %c0_i32_1 = arith.constant 0 : i32
    return %c0_i32, %c0_i32_0 : i32, i32
  }
  func.func @transform_1(%arg0: i32) -> (i32, i32) {
    %c0_i32 = arith.constant 0 : i32
    %c0_i32_0 = arith.constant 0 : i32
    %c0_i32_1 = arith.constant 0 : i32
    return %c0_i32, %c0_i32_0 : i32, i32
  }
  func.func @transform_2(%arg0: i32) -> (i32, i32) {
    %c0_i32 = arith.constant 0 : i32
    %c0_i32_0 = arith.constant 0 : i32
    %c0_i32_1 = arith.constant 0 : i32
    return %c0_i32, %c0_i32_0 : i32, i32
  }
  func.func @transform_3(%arg0: i32) -> (i32, i32) {
    %c0_i32 = arith.constant 0 : i32
    %c0_i32_0 = arith.constant 0 : i32
    %c0_i32_1 = arith.constant 0 : i32
    return %c0_i32, %c0_i32_0 : i32, i32
  }
}

module attributes {stable_mosaic.version = 11 : i64} {
  func.func @_head_kernel(%arg0: i32, %arg1: memref<2x1024xbf16, #tpu.memory_space<vmem>>, %arg2: memref<1024x1000xbf16, #tpu.memory_space<vmem>>, %arg3: memref<1x1000xf32, #tpu.memory_space<vmem>>, %arg4: memref<1000x1000xbf16, #tpu.memory_space<vmem>>, %arg5: memref<1x1000xf32, #tpu.memory_space<vmem>>, %arg6: memref<1000x32xbf16, #tpu.memory_space<vmem>>, %arg7: memref<1x32xf32, #tpu.memory_space<vmem>>, %arg8: memref<2x16xf32, #tpu.memory_space<vmem>>, %arg9: memref<2x16xf32, #tpu.memory_space<vmem>>, %arg10: memref<1x1xf32, #tpu.memory_space<smem>>) attributes {dimension_semantics = [#tpu.dimension_semantics<arbitrary>], iteration_bounds = array<i64: 1>, scalar_prefetch = 0 : i64, scratch_operands = 0 : i64, tpu.core_type = #tpu.core_type<tc>, window_params = [{pipeline_mode = #tpu.pipeline_mode<synchronous>, transform_indices = @transform_0, window_bounds = array<i64: 2, 1024>}, {pipeline_mode = #tpu.pipeline_mode<synchronous>, transform_indices = @transform_1, window_bounds = array<i64: 1024, 1000>}, {pipeline_mode = #tpu.pipeline_mode<synchronous>, transform_indices = @transform_2, window_bounds = array<i64: 1, 1000>}, {pipeline_mode = #tpu.pipeline_mode<synchronous>, transform_indices = @transform_3, window_bounds = array<i64: 1000, 1000>}, {pipeline_mode = #tpu.pipeline_mode<synchronous>, transform_indices = @transform_4, window_bounds = array<i64: 1, 1000>}, {pipeline_mode = #tpu.pipeline_mode<synchronous>, transform_indices = @transform_5, window_bounds = array<i64: 1000, 32>}, {pipeline_mode = #tpu.pipeline_mode<synchronous>, transform_indices = @transform_6, window_bounds = array<i64: 1, 32>}, {pipeline_mode = #tpu.pipeline_mode<synchronous>, transform_indices = @transform_7, window_bounds = array<i64: 2, 16>}, {pipeline_mode = #tpu.pipeline_mode<synchronous>, transform_indices = @transform_8, window_bounds = array<i64: 2, 16>}, {transform_indices = @transform_9, window_bounds = array<i64: 1, 1>}]} {
    %c0 = arith.constant 0 : index
    %c0_0 = arith.constant 0 : index
    %0 = vector.load %arg1[%c0, %c0_0] : memref<2x1024xbf16, #tpu.memory_space<vmem>>, vector<2x1024xbf16>
    %c0_1 = arith.constant 0 : index
    %c0_2 = arith.constant 0 : index
    %1 = vector.load %arg2[%c0_1, %c0_2] : memref<1024x1000xbf16, #tpu.memory_space<vmem>>, vector<1024x1000xbf16>
    %cst = arith.constant dense<0.000000e+00> : vector<2x1000xf32>
    %2 = tpu.matmul %0, %1, %cst {dimension_numbers = #tpu.dot_dimension_numbers<[1], [0], [0], [1], [0, 0, 1, 1], [], []>} : vector<2x1024xbf16>, vector<1024x1000xbf16>, vector<2x1000xf32> -> vector<2x1000xf32>
    %c0_3 = arith.constant 0 : index
    %c0_4 = arith.constant 0 : index
    %3 = vector.load %arg3[%c0_3, %c0_4] : memref<1x1000xf32, #tpu.memory_space<vmem>>, vector<1x1000xf32>
    %4 = vector.broadcast %3 : vector<1x1000xf32> to vector<2x1000xf32>
    %5 = arith.addf %2, %4 : vector<2x1000xf32>
    %cst_5 = arith.constant 0.000000e+00 : f32
    %6 = vector.broadcast %cst_5 : f32 to vector<2x1000xf32>
    %7 = arith.maximumf %5, %6 : vector<2x1000xf32>
    %8 = arith.truncf %7 : vector<2x1000xf32> to vector<2x1000xbf16>
    %c0_6 = arith.constant 0 : index
    %c0_7 = arith.constant 0 : index
    %9 = vector.load %arg4[%c0_6, %c0_7] : memref<1000x1000xbf16, #tpu.memory_space<vmem>>, vector<1000x1000xbf16>
    %cst_8 = arith.constant dense<0.000000e+00> : vector<2x1000xf32>
    %10 = tpu.matmul %8, %9, %cst_8 {dimension_numbers = #tpu.dot_dimension_numbers<[1], [0], [0], [1], [0, 0, 1, 1], [], []>} : vector<2x1000xbf16>, vector<1000x1000xbf16>, vector<2x1000xf32> -> vector<2x1000xf32>
    %c0_9 = arith.constant 0 : index
    %c0_10 = arith.constant 0 : index
    %11 = vector.load %arg5[%c0_9, %c0_10] : memref<1x1000xf32, #tpu.memory_space<vmem>>, vector<1x1000xf32>
    %12 = vector.broadcast %11 : vector<1x1000xf32> to vector<2x1000xf32>
    %13 = arith.addf %10, %12 : vector<2x1000xf32>
    %cst_11 = arith.constant 0.000000e+00 : f32
    %14 = vector.broadcast %cst_11 : f32 to vector<2x1000xf32>
    %15 = arith.maximumf %13, %14 : vector<2x1000xf32>
    %16 = arith.truncf %15 : vector<2x1000xf32> to vector<2x1000xbf16>
    %c0_12 = arith.constant 0 : index
    %c0_13 = arith.constant 0 : index
    %17 = vector.load %arg6[%c0_12, %c0_13] : memref<1000x32xbf16, #tpu.memory_space<vmem>>, vector<1000x32xbf16>
    %cst_14 = arith.constant dense<0.000000e+00> : vector<2x32xf32>
    %18 = tpu.matmul %16, %17, %cst_14 {dimension_numbers = #tpu.dot_dimension_numbers<[1], [0], [0], [1], [0, 0, 1, 1], [], []>} : vector<2x1000xbf16>, vector<1000x32xbf16>, vector<2x32xf32> -> vector<2x32xf32>
    %c0_15 = arith.constant 0 : index
    %c0_16 = arith.constant 0 : index
    %19 = vector.load %arg7[%c0_15, %c0_16] : memref<1x32xf32, #tpu.memory_space<vmem>>, vector<1x32xf32>
    %20 = vector.broadcast %19 : vector<1x32xf32> to vector<2x32xf32>
    %21 = arith.addf %18, %20 : vector<2x32xf32>
    %22 = vector.extract_strided_slice %21 {offsets = [0, 0], sizes = [2, 16], strides = [1, 1]} : vector<2x32xf32> to vector<2x16xf32>
    %23 = vector.extract_strided_slice %21 {offsets = [0, 16], sizes = [2, 16], strides = [1, 1]} : vector<2x32xf32> to vector<2x16xf32>
    %cst_17 = arith.constant 5.000000e-01 : f32
    %24 = vector.broadcast %cst_17 : f32 to vector<2x16xf32>
    %25 = arith.mulf %24, %23 : vector<2x16xf32>
    %26 = math.exp %25 : vector<2x16xf32>
    %c0_18 = arith.constant 0 : index
    %c0_19 = arith.constant 0 : index
    %27 = vector.load %arg8[%c0_18, %c0_19] : memref<2x16xf32, #tpu.memory_space<vmem>>, vector<2x16xf32>
    %28 = arith.mulf %26, %27 : vector<2x16xf32>
    %29 = arith.addf %22, %28 : vector<2x16xf32>
    %c0_20 = arith.constant 0 : index
    %c0_21 = arith.constant 0 : index
    %30 = vector.load %arg9[%c0_20, %c0_21] : memref<2x16xf32, #tpu.memory_space<vmem>>, vector<2x16xf32>
    tpu.vector_store %arg9[%c0_20, %c0_21], %29 {strides = array<i32>} : memref<2x16xf32, #tpu.memory_space<vmem>>, vector<2x16xf32>,
    %31 = math.exp %23 : vector<2x16xf32>
    %32 = arith.mulf %22, %22 : vector<2x16xf32>
    %33 = arith.addf %31, %32 : vector<2x16xf32>
    %34 = arith.subf %33, %23 : vector<2x16xf32>
    %cst_22 = arith.constant 1.000000e+00 : f32
    %35 = vector.broadcast %cst_22 : f32 to vector<2x16xf32>
    %36 = arith.subf %34, %35 : vector<2x16xf32>
    %cst_23 = arith.constant 5.000000e-01 : f32
    %37 = vector.broadcast %cst_23 : f32 to vector<2x16xf32>
    %38 = arith.mulf %37, %36 : vector<2x16xf32>
    %39 = vector.shape_cast %38 : vector<2x16xf32> to vector<1x2x16xf32>
    %cst_24 = arith.constant dense<0.000000e+00> : vector<1xf32>
    %40 = vector.multi_reduction <add>, %39, %cst_24 [1, 2] : vector<1x2x16xf32> to vector<1xf32>
    %41 = vector.shape_cast %40 : vector<1xf32> to vector<1x1x1xf32>
    %42 = vector.extract %41[0, 0, 0] : f32 from vector<1x1x1xf32>
    %c0_25 = arith.constant 0 : index
    %c0_26 = arith.constant 0 : index
    %43 = memref.load %arg10[%c0_25, %c0_26] : memref<1x1xf32, #tpu.memory_space<smem>>
    memref.store %42, %arg10[%c0_25, %c0_26] : memref<1x1xf32, #tpu.memory_space<smem>>
    return
  }
  func.func @transform_0(%arg0: i32) -> (i32, i32) {
    %c0_i32 = arith.constant 0 : i32
    %c0_i32_0 = arith.constant 0 : i32
    %c0_i32_1 = arith.constant 0 : i32
    return %c0_i32, %c0_i32_0 : i32, i32
  }
  func.func @transform_1(%arg0: i32) -> (i32, i32) {
    %c0_i32 = arith.constant 0 : i32
    %c0_i32_0 = arith.constant 0 : i32
    %c0_i32_1 = arith.constant 0 : i32
    return %c0_i32, %c0_i32_0 : i32, i32
  }
  func.func @transform_2(%arg0: i32) -> (i32, i32) {
    %c0_i32 = arith.constant 0 : i32
    %c0_i32_0 = arith.constant 0 : i32
    %c0_i32_1 = arith.constant 0 : i32
    return %c0_i32, %c0_i32_0 : i32, i32
  }
  func.func @transform_3(%arg0: i32) -> (i32, i32) {
    %c0_i32 = arith.constant 0 : i32
    %c0_i32_0 = arith.constant 0 : i32
    %c0_i32_1 = arith.constant 0 : i32
    return %c0_i32, %c0_i32_0 : i32, i32
  }
  func.func @transform_4(%arg0: i32) -> (i32, i32) {
    %c0_i32 = arith.constant 0 : i32
    %c0_i32_0 = arith.constant 0 : i32
    %c0_i32_1 = arith.constant 0 : i32
    return %c0_i32, %c0_i32_0 : i32, i32
  }
  func.func @transform_5(%arg0: i32) -> (i32, i32) {
    %c0_i32 = arith.constant 0 : i32
    %c0_i32_0 = arith.constant 0 : i32
    %c0_i32_1 = arith.constant 0 : i32
    return %c0_i32, %c0_i32_0 : i32, i32
  }
  func.func @transform_6(%arg0: i32) -> (i32, i32) {
    %c0_i32 = arith.constant 0 : i32
    %c0_i32_0 = arith.constant 0 : i32
    %c0_i32_1 = arith.constant 0 : i32
    return %c0_i32, %c0_i32_0 : i32, i32
  }
  func.func @transform_7(%arg0: i32) -> (i32, i32) {
    %c0_i32 = arith.constant 0 : i32
    %c0_i32_0 = arith.constant 0 : i32
    %c0_i32_1 = arith.constant 0 : i32
    return %c0_i32, %c0_i32_0 : i32, i32
  }
  func.func @transform_8(%arg0: i32) -> (i32, i32) {
    %c0_i32 = arith.constant 0 : i32
    %c0_i32_0 = arith.constant 0 : i32
    %c0_i32_1 = arith.constant 0 : i32
    return %c0_i32, %c0_i32_0 : i32, i32
  }
  func.func @transform_9(%arg0: i32) -> (i32, i32) {
    %c0_i32 = arith.constant 0 : i32
    %c0_i32_0 = arith.constant 0 : i32
    %c0_i32_1 = arith.constant 0 : i32
    return %c0_i32, %c0_i32_0 : i32, i32
  }
}

</mosaic_0001>

<llo_original>
// kernel: qmcifar_forward.5
$region0: #{qmcifar_forward.5}
  #allocation0 [shape = 'u32[]', space=smem, size = 0x4, offset = 0x4, fixed_abs, tag = 'smem constant byte address 0x4 - core index']
  #allocation1 [shape = 'u32[72,128]{1,0:T(1,128)}', space=vmem, size = 0x9000, scoped, tag = 'internal scratch']
  %s0 = inlined_call_operand.vmem [shape: bf16[128,144], index: 0, kind: input, shape index: {}]
  %s1 = inlined_call_operand.vmem [shape: bf16[144,32], index: 1, kind: input, shape index: {}]
  %s2 = inlined_call_operand.vmem [shape: f32[1,32], index: 2, kind: input, shape index: {}]
  %s3 = inlined_call_operand.vmem [shape: bf16[128,32], index: 3, kind: output, shape index: {}]
  %s4 = sld [smem:[#allocation0]]
  $region22: #{qmcifar_forward.5} parent=0
    _
  %s6 = ssub.s32 1, %s4
  %s7 = scalar_select 0, %s6, %s4
  // Predicated region
  $region2: #{qmcifar_forward.5} parent=0 // pred_check
    _
  $region3: #{qmcifar_forward.5} parent=0 // pred_check_branch
    %9 = sbr.rel (0) target = $region5
  $region4: #{qmcifar_forward.5} parent=0 // pred_region
    _
  $region5: #{qmcifar_forward.5} parent=0 // pred_fallthru
    _
  // Predicated region
  $region6: #{qmcifar_forward.5} parent=0 // pred_check
    _
  $region7: #{qmcifar_forward.5} parent=0 // pred_check_branch
    %11 = sbr.rel (0) target = $region9
  $region8: #{qmcifar_forward.5} parent=0 // pred_region
    _
  $region9: #{qmcifar_forward.5} parent=0 // pred_fallthru
    _
  // Predicated region
  $region10: #{qmcifar_forward.5} parent=0 // pred_check
    _
  $region11: #{qmcifar_forward.5} parent=0 // pred_check_branch
    %13 = sbr.rel (0) target = $region13
  $region12: #{qmcifar_forward.5} parent=0 // pred_region
    _
  $region13: #{qmcifar_forward.5} parent=0 // pred_fallthru
    _
  %v15 = vld [vmem:[%s0] sm:$0xff]
  %v16 = vld [vmem:[%s0 + $0x8] sm:$0xff]
  %v17 = vld [vmem:[%s0 + $0x10] sm:$0xff]
  %v18 = vld [vmem:[%s0 + $0x18] sm:$0xff]
  %v19 = vld [vmem:[%s0 + $0x20] sm:$0xff]
  %v20 = vld [vmem:[%s0 + $0x28] sm:$0xff]
  %v21 = vld [vmem:[%s0 + $0x30] sm:$0xff]
  %v22 = vld [vmem:[%s0 + $0x38] sm:$0xff]
  %v23 = vld [vmem:[%s0 + $0x40] sm:$0xff]
  %v24 = vld [vmem:[%s0 + $0x48] sm:$0xff]
  %v25 = vld [vmem:[%s0 + $0x50] sm:$0xff]
  %v26 = vld [vmem:[%s0 + $0x58] sm:$0xff]
  %v27 = vld [vmem:[%s0 + $0x60] sm:$0xff]
  %v28 = vld [vmem:[%s0 + $0x68] sm:$0xff]
  %v29 = vld [vmem:[%s0 + $0x70] sm:$0xff]
  %v30 = vld [vmem:[%s0 + $0x78] sm:$0xff]
  %v31 = vld [vmem:[%s1] sm:$0xf]
  %v32 = vld [vmem:[%s1 + $0x4] sm:$0xf]
  %v33 = vld [vmem:[%s1 + $0x8] sm:$0xf]
  %v34 = vld [vmem:[%s1 + $0xc] sm:$0xf]
  %v35 = vld [vmem:[%s1 + $0x10] sm:$0xf]
  %v36 = vld [vmem:[%s1 + $0x14] sm:$0xf]
  %v37 = vld [vmem:[%s1 + $0x18] sm:$0xf]
  %v38 = vld [vmem:[%s1 + $0x1c] sm:$0xf]
  %v39 = vld [vmem:[%s1 + $0x20] sm:$0xf]
  %v40 = vld [vmem:[%s1 + $0x24] sm:$0xf]
  %v41 = vld [vmem:[%s1 + $0x28] sm:$0xf]
  %v42 = vld [vmem:[%s1 + $0x2c] sm:$0xf]
  %v43 = vld [vmem:[%s1 + $0x30] sm:$0xf]
  %v44 = vld [vmem:[%s1 + $0x34] sm:$0xf]
  %v45 = vld [vmem:[%s1 + $0x38] sm:$0xf]
  %v46 = vld [vmem:[%s1 + $0x3c] sm:$0xf]
  %v47 = vld [vmem:[%s1 + $0x40] sm:$0xf]
  %v48 = vld [vmem:[%s1 + $0x44] sm:$0xf]
  %v49 = vld [vmem:[%s2] sm:$0x1]
  %v51 = vperm.slane %v49, 0
  %v69 = vunpack.c.l.b16 %v15
  %v70 = vunpack.c.h.b16 %v15
  %v71 = vunpack.c.l.b16 %v16
  %v72 = vunpack.c.h.b16 %v16
  %v73 = vunpack.c.l.b16 %v17
  %v74 = vunpack.c.h.b16 %v17
  %v75 = vunpack.c.l.b16 %v18
  %v76 = vunpack.c.h.b16 %v18
  %v77 = vunpack.c.l.b16 %v19
  %v78 = vunpack.c.h.b16 %v19
  %v79 = vunpack.c.l.b16 %v20
  %v80 = vunpack.c.h.b16 %v20
  %v81 = vunpack.c.l.b16 %v21
  %v82 = vunpack.c.h.b16 %v21
  %v83 = vunpack.c.l.b16 %v22
  %v84 = vunpack.c.h.b16 %v22
  %v85 = vunpack.c.l.b16 %v23
  %v86 = vunpack.c.h.b16 %v23
  %v87 = vunpack.c.l.b16 %v24
  %v88 = vunpack.c.h.b16 %v24
  %v89 = vunpack.c.l.b16 %v25
  %v90 = vunpack.c.h.b16 %v25
  %v91 = vunpack.c.l.b16 %v26
  %v92 = vunpack.c.h.b16 %v26
  %v93 = vunpack.c.l.b16 %v27
  %v94 = vunpack.c.h.b16 %v27
  %v95 = vunpack.c.l.b16 %v28
  %v96 = vunpack.c.h.b16 %v28
  %v97 = vunpack.c.l.b16 %v29
  %v98 = vunpack.c.h.b16 %v29
  %v99 = vunpack.c.l.b16 %v30
  %v100 = vunpack.c.h.b16 %v30
  %v101 = vpack.c.b16 %v71, %v69
  %v102 = vpack.c.b16 %v72, %v70
  %v103 = vpack.c.b16 %v75, %v73
  %v104 = vpack.c.b16 %v76, %v74
  %v105 = vpack.c.b16 %v79, %v77
  %v106 = vpack.c.b16 %v80, %v78
  %v107 = vpack.c.b16 %v83, %v81
  %v108 = vpack.c.b16 %v84, %v82
  %v109 = vpack.c.b16 %v87, %v85
  %v110 = vpack.c.b16 %v88, %v86
  %v111 = vpack.c.b16 %v91, %v89
  %v112 = vpack.c.b16 %v92, %v90
  %v113 = vpack.c.b16 %v95, %v93
  %v114 = vpack.c.b16 %v96, %v94
  %v115 = vpack.c.b16 %v99, %v97
  %v116 = vpack.c.b16 %v100, %v98
  %v143 = vunpack.c.l.b16 %v31
  %v144 = vunpack.c.l.b16 %v32
  %v145 = vunpack.c.l.b16 %v33
  %v146 = vunpack.c.l.b16 %v34
  %v147 = vunpack.c.l.b16 %v35
  %v148 = vunpack.c.l.b16 %v36
  %v149 = vunpack.c.l.b16 %v37
  %v150 = vunpack.c.l.b16 %v38
  %v151 = vunpack.c.l.b16 %v39
  %v152 = vunpack.c.l.b16 %v40
  %v153 = vunpack.c.l.b16 %v41
  %v154 = vunpack.c.l.b16 %v42
  %v155 = vunpack.c.l.b16 %v43
  %v156 = vunpack.c.l.b16 %v44
  %v157 = vunpack.c.l.b16 %v45
  %v158 = vunpack.c.l.b16 %v46
  %v159 = vunpack.c.l.b16 %v47
  %v160 = vunpack.c.l.b16 %v48
  %v161 = vpack.c.b16 %v144, %v143
  %v162 = vpack.c.b16 %v146, %v145
  %v163 = vpack.c.b16 %v148, %v147
  %v164 = vpack.c.b16 %v150, %v149
  %v165 = vpack.c.b16 %v152, %v151
  %v166 = vpack.c.b16 %v154, %v153
  %v167 = vpack.c.b16 %v156, %v155
  %v168 = vpack.c.b16 %v158, %v157
  %v169 = vpack.c.b16 %v160, %v159
  %vm179 = vcmask 130048
  %v181 = vsel %vm179, %v102, 0
  %v184 = vsel %vm179, %v104, 0
  %v187 = vsel %vm179, %v106, 0
  %v190 = vsel %vm179, %v108, 0
  %v193 = vsel %vm179, %v110, 0
  %v196 = vsel %vm179, %v112, 0
  %v199 = vsel %vm179, %v114, 0
  %v202 = vsel %vm179, %v116, 0
  %204 = vmatpush.bf16.msra.mxu0 %v168
  %205 = vmatpush.bf16.msra.mxu0 %v167
  %206 = vmatpush.bf16.msra.mxu0 %v166
  %207 = vmatpush.bf16.msra.mxu0 %v165
  %208 = vmatpush.bf16.msra.mxu0 %v164
  %209 = vmatpush.bf16.msra.mxu0 %v163
  %210 = vmatpush.bf16.msra.mxu0 %v162
  %211 = vmatpush.bf16.msra.mxu0 %v161
  %212 = vmatmul.bf16.gmra.mxu0 %v101
  %v213 = vpop.f32.mrf.mxu0
  %v214 = vadd.f32 %v51, %v213
  %v215 = vpop.f32.mrf.mxu0
  %v216 = vadd.f32 %v51, %v215
  %217 = vmatmul.bf16.gmra.mxu0 %v103
  %v218 = vpop.f32.mrf.mxu0
  %v219 = vadd.f32 %v51, %v218
  %v220 = vpop.f32.mrf.mxu0
  %v221 = vadd.f32 %v51, %v220
  %222 = vmatmul.bf16.gmra.mxu0 %v105
  %v223 = vpop.f32.mrf.mxu0
  %v224 = vadd.f32 %v51, %v223
  %v225 = vpop.f32.mrf.mxu0
  %v226 = vadd.f32 %v51, %v225
  %227 = vmatmul.bf16.gmra.mxu0 %v107
  %v228 = vpop.f32.mrf.mxu0
  %v229 = vadd.f32 %v51, %v228
  %v230 = vpop.f32.mrf.mxu0
  %v231 = vadd.f32 %v51, %v230
  %232 = vmatmul.bf16.gmra.mxu0 %v109
  %v233 = vpop.f32.mrf.mxu0
  %v234 = vadd.f32 %v51, %v233
  %v235 = vpop.f32.mrf.mxu0
  %v236 = vadd.f32 %v51, %v235
  %237 = vmatmul.bf16.gmra.mxu0 %v111
  %v238 = vpop.f32.mrf.mxu0
  %v239 = vadd.f32 %v51, %v238
  %v240 = vpop.f32.mrf.mxu0
  %v241 = vadd.f32 %v51, %v240
  %242 = vmatmul.bf16.gmra.mxu0 %v113
  %v243 = vpop.f32.mrf.mxu0
  %v244 = vadd.f32 %v51, %v243
  %v245 = vpop.f32.mrf.mxu0
  %v246 = vadd.f32 %v51, %v245
  %247 = vmatmul.bf16.gmra.mxu0 %v115
  %v248 = vpop.f32.mrf.mxu0
  %v249 = vadd.f32 %v51, %v248
  %v250 = vpop.f32.mrf.mxu0
  %v251 = vadd.f32 %v51, %v250
  %252 = vdwg.mxu0
  %253 = vmatpush.bf16.msra.mxu0 0
  %254 = vmatpush.bf16.msra.mxu0 0
  %255 = vmatpush.bf16.msra.mxu0 0
  %256 = vmatpush.bf16.msra.mxu0 0
  %257 = vmatpush.bf16.msra.mxu0 0
  %258 = vmatpush.bf16.msra.mxu0 0
  %259 = vmatpush.bf16.msra.mxu0 0
  %260 = vmatpush.bf16.msra.mxu0 %v169
  %261 = vmatmul.bf16.gmra.mxu0 %v181
  %v262 = vpop.f32.mrf.mxu0
  %v263 = vadd.f32 %v214, %v262
  %v264 = vpop.f32.mrf.mxu0
  %v265 = vadd.f32 %v216, %v264
  %266 = vmatmul.bf16.gmra.mxu0 %v184
  %v267 = vpop.f32.mrf.mxu0
  %v268 = vadd.f32 %v219, %v267
  %v269 = vpop.f32.mrf.mxu0
  %v270 = vadd.f32 %v221, %v269
  %271 = vmatmul.bf16.gmra.mxu0 %v187
  %v272 = vpop.f32.mrf.mxu0
  %v273 = vadd.f32 %v224, %v272
  %v274 = vpop.f32.mrf.mxu0
  %v275 = vadd.f32 %v226, %v274
  %276 = vmatmul.bf16.gmra.mxu0 %v190
  %v277 = vpop.f32.mrf.mxu0
  %v278 = vadd.f32 %v229, %v277
  %v279 = vpop.f32.mrf.mxu0
  %v280 = vadd.f32 %v231, %v279
  %281 = vmatmul.bf16.gmra.mxu0 %v193
  %v282 = vpop.f32.mrf.mxu0
  %v283 = vadd.f32 %v234, %v282
  %v284 = vpop.f32.mrf.mxu0
  %v285 = vadd.f32 %v236, %v284
  %286 = vmatmul.bf16.gmra.mxu0 %v196
  %v287 = vpop.f32.mrf.mxu0
  %v288 = vadd.f32 %v239, %v287
  %v289 = vpop.f32.mrf.mxu0
  %v290 = vadd.f32 %v241, %v289
  %291 = vmatmul.bf16.gmra.mxu0 %v199
  %v292 = vpop.f32.mrf.mxu0
  %v293 = vadd.f32 %v244, %v292
  %v294 = vpop.f32.mrf.mxu0
  %v295 = vadd.f32 %v246, %v294
  %296 = vmatmul.bf16.gmra.mxu0 %v202
  %v297 = vpop.f32.mrf.mxu0
  %v298 = vadd.f32 %v249, %v297
  %v299 = vpop.f32.mrf.mxu0
  %v300 = vadd.f32 %v251, %v299
  %301 = vdwg.mxu0
  %v302 = vmax.f32 %v263, 0.0
  %v303 = vmax.f32 %v265, 0.0
  %v304 = vmax.f32 %v268, 0.0
  %v305 = vmax.f32 %v270, 0.0
  %v306 = vmax.f32 %v273, 0.0
  %v307 = vmax.f32 %v275, 0.0
  %v308 = vmax.f32 %v278, 0.0
  %v309 = vmax.f32 %v280, 0.0
  %v310 = vmax.f32 %v283, 0.0
  %v311 = vmax.f32 %v285, 0.0
  %v312 = vmax.f32 %v288, 0.0
  %v313 = vmax.f32 %v290, 0.0
  %v314 = vmax.f32 %v293, 0.0
  %v315 = vmax.f32 %v295, 0.0
  %v316 = vmax.f32 %v298, 0.0
  %v317 = vmax.f32 %v300, 0.0
  %v318 = vpack.c.bf16 %v302, %v302
  %v319 = vpack.c.bf16 %v303, %v303
  %v320 = vpack.c.bf16 %v304, %v304
  %v321 = vpack.c.bf16 %v305, %v305
  %v322 = vpack.c.bf16 %v306, %v306
  %v323 = vpack.c.bf16 %v307, %v307
  %v324 = vpack.c.bf16 %v308, %v308
  %v325 = vpack.c.bf16 %v309, %v309
  %v326 = vpack.c.bf16 %v310, %v310
  %v327 = vpack.c.bf16 %v311, %v311
  %v328 = vpack.c.bf16 %v312, %v312
  %v329 = vpack.c.bf16 %v313, %v313
  %v330 = vpack.c.bf16 %v314, %v314
  %v331 = vpack.c.bf16 %v315, %v315
  %v332 = vpack.c.bf16 %v316, %v316
  %v333 = vpack.c.bf16 %v317, %v317
  %vm334 = vcmask 257024
  %335 = vst.msk [vmem:[%s3] sm:$0xf] %vm334, %v318
  %336 = vst.msk [vmem:[%s3 + $0x4] sm:$0xf] %vm334, %v319
  %337 = vst.msk [vmem:[%s3 + $0x8] sm:$0xf] %vm334, %v320
  %338 = vst.msk [vmem:[%s3 + $0xc] sm:$0xf] %vm334, %v321
  %339 = vst.msk [vmem:[%s3 + $0x10] sm:$0xf] %vm334, %v322
  %340 = vst.msk [vmem:[%s3 + $0x14] sm:$0xf] %vm334, %v323
  %341 = vst.msk [vmem:[%s3 + $0x18] sm:$0xf] %vm334, %v324
  %342 = vst.msk [vmem:[%s3 + $0x1c] sm:$0xf] %vm334, %v325
  %343 = vst.msk [vmem:[%s3 + $0x20] sm:$0xf] %vm334, %v326
  %344 = vst.msk [vmem:[%s3 + $0x24] sm:$0xf] %vm334, %v327
  %345 = vst.msk [vmem:[%s3 + $0x28] sm:$0xf] %vm334, %v328
  %346 = vst.msk [vmem:[%s3 + $0x2c] sm:$0xf] %vm334, %v329
  %347 = vst.msk [vmem:[%s3 + $0x30] sm:$0xf] %vm334, %v330
  %348 = vst.msk [vmem:[%s3 + $0x34] sm:$0xf] %vm334, %v331
  %349 = vst.msk [vmem:[%s3 + $0x38] sm:$0xf] %vm334, %v332
  %350 = vst.msk [vmem:[%s3 + $0x3c] sm:$0xf] %vm334, %v333
  // Predicated region
  $region14: #{qmcifar_forward.5} parent=0 // pred_check
    _
  $region15: #{qmcifar_forward.5} parent=0 // pred_check_branch
    %352 = sbr.rel (0) target = $region17
  $region16: #{qmcifar_forward.5} parent=0 // pred_region
    _
  $region17: #{qmcifar_forward.5} parent=0 // pred_fallthru
    _
  // Predicated region
  $region18: #{qmcifar_forward.5} parent=0 // pred_check
    _
  $region19: #{qmcifar_forward.5} parent=0 // pred_check_branch
    %354 = sbr.rel (0) target = $region21
  $region20: #{qmcifar_forward.5} parent=0 // pred_region
    _
  $region21: #{qmcifar_forward.5} parent=0 // pred_fallthru
    _

// kernel: qmcifar_forward.4
$region0: #{qmcifar_forward.4}
  #allocation0 [shape = 'u32[]', space=smem, size = 0x4, offset = 0x4, fixed_abs, tag = 'smem constant byte address 0x4 - core index']
  #allocation1 [shape = 'u32[72,128]{1,0:T(1,128)}', space=vmem, size = 0x9000, scoped, tag = 'internal scratch']
  %s0 = inlined_call_operand.vmem [shape: bf16[512,27], index: 0, kind: input, shape index: {}]
  %s1 = inlined_call_operand.vmem [shape: bf16[27,16], index: 1, kind: input, shape index: {}]
  %s2 = inlined_call_operand.hbm [shape: f32[1,16], index: 2, kind: input, shape index: {}]
  %s3 = inlined_call_operand.vmem [shape: bf16[512,16], index: 3, kind: output, shape index: {}]
  %s4 = sld [smem:[#allocation0]]
  $region26: #{qmcifar_forward.4} parent=0
    _
  %s6 = ssub.s32 1, %s4
  %s7 = scalar_select 0, %s6, %s4
  $region1: #{qmcifar_forward.4} parent=0
    #allocation2 [shape = 'u8[512]{0}', space=vmem, size = 0x400, scoped, tag = 'input window, operand 2, single buffered']
    #allocation3 [shape = 's32[1]{0}', space=sflag, size = 0x4, scoped, tag = 'scoped memory for qmcifar_forward.4']
    %8 = vsyncpa [#allocation3], 0
    // Predicated region
    $region2: #{qmcifar_forward.4} parent=1 // pred_check
      _
    $region3: #{qmcifar_forward.4} parent=1 // pred_check_branch
      %10 = sbr.rel (0) target = $region5
    $region4: #{qmcifar_forward.4} parent=1 // pred_region
      _
    $region5: #{qmcifar_forward.4} parent=1 // pred_fallthru
      _
    // Predicated region
    $region6: #{qmcifar_forward.4} parent=1 // pred_check
      _
    $region7: #{qmcifar_forward.4} parent=1 // pred_check_branch
      %12 = sbr.rel (0) target = $region9
    $region8: #{qmcifar_forward.4} parent=1 // pred_region
      _
    $region9: #{qmcifar_forward.4} parent=1 // pred_fallthru
      _
    // Predicated region
    $region10: #{qmcifar_forward.4} parent=1 // pred_check
      _
    $region11: #{qmcifar_forward.4} parent=1 // pred_check_branch
      %14 = sbr.rel (0) target = $region13
    $region12: #{qmcifar_forward.4} parent=1 // pred_region
      %16 = vsyncadd [#allocation3], 0
      %s18 = sshll.u32 %s2, 4
      %s19 = int_to_ptr.hbm [resolvable:$true] %s18
      %s20 = sshll.u32 [#allocation2], 4
      %s21 = int_to_ptr.vmem [resolvable:$true] %s20
      %23 = dma.hbm_to_vmem [thread:$0]  %s19, 16, %s21, [#allocation3]
    $region13: #{qmcifar_forward.4} parent=1 // pred_fallthru
      _
    // Predicated region
    $region14: #{qmcifar_forward.4} parent=1 // pred_check
      _
    $region15: #{qmcifar_forward.4} parent=1 // pred_check_branch
      %25 = sbr.rel (0) target = $region17
    $region16: #{qmcifar_forward.4} parent=1 // pred_region
      %27 = dma.done [#allocation3], 16
    $region17: #{qmcifar_forward.4} parent=1 // pred_fallthru
      _
    %v29 = vld [vmem:[%s0] sm:$0xf]
    %v30 = vld [vmem:[%s0 + $0x4] sm:$0xf]
    %v31 = vld [vmem:[%s0 + $0x8] sm:$0xf]
    %v32 = vld [vmem:[%s0 + $0xc] sm:$0xf]
    %v33 = vld [vmem:[%s0 + $0x10] sm:$0xf]
    %v34 = vld [vmem:[%s0 + $0x14] sm:$0xf]
    %v35 = vld [vmem:[%s0 + $0x18] sm:$0xf]
    %v36 = vld [vmem:[%s0 + $0x1c] sm:$0xf]
    %v37 = vld [vmem:[%s0 + $0x20] sm:$0xf]
    %v38 = vld [vmem:[%s0 + $0x24] sm:$0xf]
    %v39 = vld [vmem:[%s0 + $0x28] sm:$0xf]
    %v40 = vld [vmem:[%s0 + $0x2c] sm:$0xf]
    %v41 = vld [vmem:[%s0 + $0x30] sm:$0xf]
    %v42 = vld [vmem:[%s0 + $0x34] sm:$0xf]
    %v43 = vld [vmem:[%s0 + $0x38] sm:$0xf]
    %v44 = vld [vmem:[%s0 + $0x3c] sm:$0xf]
    %v45 = vld [vmem:[%s0 + $0x40] sm:$0xf]
    %v46 = vld [vmem:[%s0 + $0x44] sm:$0xf]
    %v47 = vld [vmem:[%s0 + $0x48] sm:$0xf]
    %v48 = vld [vmem:[%s0 + $0x4c] sm:$0xf]
    %v49 = vld [vmem:[%s0 + $0x50] sm:$0xf]
    %v50 = vld [vmem:[%s0 + $0x54] sm:$0xf]
    %v51 = vld [vmem:[%s0 + $0x58] sm:$0xf]
    %v52 = vld [vmem:[%s0 + $0x5c] sm:$0xf]
    %v53 = vld [vmem:[%s0 + $0x60] sm:$0xf]
    %v54 = vld [vmem:[%s0 + $0x64] sm:$0xf]
    %v55 = vld [vmem:[%s0 + $0x68] sm:$0xf]
    %v56 = vld [vmem:[%s0 + $0x6c] sm:$0xf]
    %v57 = vld [vmem:[%s0 + $0x70] sm:$0xf]
    %v58 = vld [vmem:[%s0 + $0x74] sm:$0xf]
    %v59 = vld [vmem:[%s0 + $0x78] sm:$0xf]
    %v60 = vld [vmem:[%s0 + $0x7c] sm:$0xf]
    %v61 = vld [vmem:[%s0 + $0x80] sm:$0xf]
    %v62 = vld [vmem:[%s0 + $0x84] sm:$0xf]
    %v63 = vld [vmem:[%s0 + $0x88] sm:$0xf]
    %v64 = vld [vmem:[%s0 + $0x8c] sm:$0xf]
    %v65 = vld [vmem:[%s0 + $0x90] sm:$0xf]
    %v66 = vld [vmem:[%s0 + $0x94] sm:$0xf]
    %v67 = vld [vmem:[%s0 + $0x98] sm:$0xf]
    %v68 = vld [vmem:[%s0 + $0x9c] sm:$0xf]
    %v69 = vld [vmem:[%s0 + $0xa0] sm:$0xf]
    %v70 = vld [vmem:[%s0 + $0xa4] sm:$0xf]
    %v71 = vld [vmem:[%s0 + $0xa8] sm:$0xf]
    %v72 = vld [vmem:[%s0 + $0xac] sm:$0xf]
    %v73 = vld [vmem:[%s0 + $0xb0] sm:$0xf]
    %v74 = vld [vmem:[%s0 + $0xb4] sm:$0xf]
    %v75 = vld [vmem:[%s0 + $0xb8] sm:$0xf]
    %v76 = vld [vmem:[%s0 + $0xbc] sm:$0xf]
    %v77 = vld [vmem:[%s0 + $0xc0] sm:$0xf]
    %v78 = vld [vmem:[%s0 + $0xc4] sm:$0xf]
    %v79 = vld [vmem:[%s0 + $0xc8] sm:$0xf]
    %v80 = vld [vmem:[%s0 + $0xcc] sm:$0xf]
    %v81 = vld [vmem:[%s0 + $0xd0] sm:$0xf]
    %v82 = vld [vmem:[%s0 + $0xd4] sm:$0xf]
    %v83 = vld [vmem:[%s0 + $0xd8] sm:$0xf]
    %v84 = vld [vmem:[%s0 + $0xdc] sm:$0xf]
    %v85 = vld [vmem:[%s0 + $0xe0] sm:$0xf]
    %v86 = vld [vmem:[%s0 + $0xe4] sm:$0xf]
    %v87 = vld [vmem:[%s0 + $0xe8] sm:$0xf]
    %v88 = vld [vmem:[%s0 + $0xec] sm:$0xf]
    %v89 = vld [vmem:[%s0 + $0xf0] sm:$0xf]
    %v90 = vld [vmem:[%s0 + $0xf4] sm:$0xf]
    %v91 = vld [vmem:[%s0 + $0xf8] sm:$0xf]
    %v92 = vld [vmem:[%s0 + $0xfc] sm:$0xf]
    %v93 = vld [vmem:[%s1] sm:$0xf]
    %v94 = vld [vmem:[%s1 + $0x4] sm:$0xf]
    %v95 = vld [vmem:[%s1 + $0x8] sm:$0xf]
    %v96 = vld [vmem:[%s1 + $0xc] sm:$0x3]
    %v97 = vld [vmem:[#allocation2] sm:$0x1]
    %v99 = vperm.slane %v97, 0
    %v165 = vunpack.c.l.b16 %v29
    %v166 = vunpack.c.l.b16 %v30
    %v167 = vunpack.c.l.b16 %v31
    %v168 = vunpack.c.l.b16 %v32
    %v169 = vunpack.c.l.b16 %v33
    %v170 = vunpack.c.l.b16 %v34
    %v171 = vunpack.c.l.b16 %v35
    %v172 = vunpack.c.l.b16 %v36
    %v173 = vunpack.c.l.b16 %v37
    %v174 = vunpack.c.l.b16 %v38
    %v175 = vunpack.c.l.b16 %v39
    %v176 = vunpack.c.l.b16 %v40
    %v177 = vunpack.c.l.b16 %v41
    %v178 = vunpack.c.l.b16 %v42
    %v179 = vunpack.c.l.b16 %v43
    %v180 = vunpack.c.l.b16 %v44
    %v181 = vunpack.c.l.b16 %v45
    %v182 = vunpack.c.l.b16 %v46
    %v183 = vunpack.c.l.b16 %v47
    %v184 = vunpack.c.l.b16 %v48
    %v185 = vunpack.c.l.b16 %v49
    %v186 = vunpack.c.l.b16 %v50
    %v187 = vunpack.c.l.b16 %v51
    %v188 = vunpack.c.l.b16 %v52
    %v189 = vunpack.c.l.b16 %v53
    %v190 = vunpack.c.l.b16 %v54
    %v191 = vunpack.c.l.b16 %v55
    %v192 = vunpack.c.l.b16 %v56
    %v193 = vunpack.c.l.b16 %v57
    %v194 = vunpack.c.l.b16 %v58
    %v195 = vunpack.c.l.b16 %v59
    %v196 = vunpack.c.l.b16 %v60
    %v197 = vunpack.c.l.b16 %v61
    %v198 = vunpack.c.l.b16 %v62
    %v199 = vunpack.c.l.b16 %v63
    %v200 = vunpack.c.l.b16 %v64
    %v201 = vunpack.c.l.b16 %v65
    %v202 = vunpack.c.l.b16 %v66
    %v203 = vunpack.c.l.b16 %v67
    %v204 = vunpack.c.l.b16 %v68
    %v205 = vunpack.c.l.b16 %v69
    %v206 = vunpack.c.l.b16 %v70
    %v207 = vunpack.c.l.b16 %v71
    %v208 = vunpack.c.l.b16 %v72
    %v209 = vunpack.c.l.b16 %v73
    %v210 = vunpack.c.l.b16 %v74
    %v211 = vunpack.c.l.b16 %v75
    %v212 = vunpack.c.l.b16 %v76
    %v213 = vunpack.c.l.b16 %v77
    %v214 = vunpack.c.l.b16 %v78
    %v215 = vunpack.c.l.b16 %v79
    %v216 = vunpack.c.l.b16 %v80
    %v217 = vunpack.c.l.b16 %v81
    %v218 = vunpack.c.l.b16 %v82
    %v219 = vunpack.c.l.b16 %v83
    %v220 = vunpack.c.l.b16 %v84
    %v221 = vunpack.c.l.b16 %v85
    %v222 = vunpack.c.l.b16 %v86
    %v223 = vunpack.c.l.b16 %v87
    %v224 = vunpack.c.l.b16 %v88
    %v225 = vunpack.c.l.b16 %v89
    %v226 = vunpack.c.l.b16 %v90
    %v227 = vunpack.c.l.b16 %v91
    %v228 = vunpack.c.l.b16 %v92
    %v229 = vpack.c.b16 %v166, %v165
    %v230 = vpack.c.b16 %v168, %v167
    %v231 = vpack.c.b16 %v170, %v169
    %v232 = vpack.c.b16 %v172, %v171
    %v233 = vpack.c.b16 %v174, %v173
    %v234 = vpack.c.b16 %v176, %v175
    %v235 = vpack.c.b16 %v178, %v177
    %v236 = vpack.c.b16 %v180, %v179
    %v237 = vpack.c.b16 %v182, %v181
    %v238 = vpack.c.b16 %v184, %v183
    %v239 = vpack.c.b16 %v186, %v185
    %v240 = vpack.c.b16 %v188, %v187
    %v241 = vpack.c.b16 %v190, %v189
    %v242 = vpack.c.b16 %v192, %v191
    %v243 = vpack.c.b16 %v194, %v193
    %v244 = vpack.c.b16 %v196, %v195
    %v245 = vpack.c.b16 %v198, %v197
    %v246 = vpack.c.b16 %v200, %v199
    %v247 = vpack.c.b16 %v202, %v201
    %v248 = vpack.c.b16 %v204, %v203
    %v249 = vpack.c.b16 %v206, %v205
    %v250 = vpack.c.b16 %v208, %v207
    %v251 = vpack.c.b16 %v210, %v209
    %v252 = vpack.c.b16 %v212, %v211
    %v253 = vpack.c.b16 %v214, %v213
    %v254 = vpack.c.b16 %v216, %v215
    %v255 = vpack.c.b16 %v218, %v217
    %v256 = vpack.c.b16 %v220, %v219
    %v257 = vpack.c.b16 %v222, %v221
    %v258 = vpack.c.b16 %v224, %v223
    %v259 = vpack.c.b16 %v226, %v225
    %v260 = vpack.c.b16 %v228, %v227
    %v265 = vunpack.c.l.b16 %v93
    %v266 = vunpack.c.l.b16 %v94
    %v267 = vunpack.c.l.b16 %v95
    %v268 = vunpack.c.l.b16 %v96
    %v269 = vpack.c.b16 %v266, %v265
    %v270 = vpack.c.b16 %v268, %v267
    %vm272 = vcmask 220160
    %v274 = vsel %vm272, %v229, 0
    %v277 = vsel %vm272, %v230, 0
    %v280 = vsel %vm272, %v231, 0
    %v283 = vsel %vm272, %v232, 0
    %v286 = vsel %vm272, %v233, 0
    %v289 = vsel %vm272, %v234, 0
    %v292 = vsel %vm272, %v235, 0
    %v295 = vsel %vm272, %v236, 0
    %v298 = vsel %vm272, %v237, 0
    %v301 = vsel %vm272, %v238, 0
    %v304 = vsel %vm272, %v239, 0
    %v307 = vsel %vm272, %v240, 0
    %v310 = vsel %vm272, %v241, 0
    %v313 = vsel %vm272, %v242, 0
    %v316 = vsel %vm272, %v243, 0
    %v319 = vsel %vm272, %v244, 0
    %v322 = vsel %vm272, %v245, 0
    %v325 = vsel %vm272, %v246, 0
    %v328 = vsel %vm272, %v247, 0
    %v331 = vsel %vm272, %v248, 0
    %v334 = vsel %vm272, %v249, 0
    %v337 = vsel %vm272, %v250, 0
    %v340 = vsel %vm272, %v251, 0
    %v343 = vsel %vm272, %v252, 0
    %v346 = vsel %vm272, %v253, 0
    %v349 = vsel %vm272, %v254, 0
    %v352 = vsel %vm272, %v255, 0
    %v355 = vsel %vm272, %v256, 0
    %v358 = vsel %vm272, %v257, 0
    %v361 = vsel %vm272, %v258, 0
    %v364 = vsel %vm272, %v259, 0
    %v367 = vsel %vm272, %v260, 0
    %vm369 = vcmask 1044480
    %vm370 = vcmask 1045504
    %v371 = vsel %vm369, 4294967295, 65535
    %v372 = vsel %vm370, %v371, 0
    %v374 = vand.u32 %v270, %v372
    %376 = vmatpush.bf16.msra.mxu0 0
    %377 = vmatpush.bf16.msra.mxu0 0
    %378 = vmatpush.bf16.msra.mxu0 0
    %379 = vmatpush.bf16.msra.mxu0 0
    %380 = vmatpush.bf16.msra.mxu0 0
    %381 = vmatpush.bf16.msra.mxu0 0
    %382 = vmatpush.bf16.msra.mxu0 %v374
    %383 = vmatpush.bf16.msra.mxu0 %v269
    %384 = vmatmul.bf16.gmra.mxu0 %v274
    %v385 = vpop.f32.mrf.mxu0
    %v386 = vadd.f32 %v99, %v385
    %v387 = vpop.f32.mrf.mxu0
    %v388 = vadd.f32 %v99, %v387
    %389 = vmatmul.bf16.gmra.mxu0 %v277
    %v390 = vpop.f32.mrf.mxu0
    %v391 = vadd.f32 %v99, %v390
    %v392 = vpop.f32.mrf.mxu0
    %v393 = vadd.f32 %v99, %v392
    %394 = vmatmul.bf16.gmra.mxu0 %v280
    %v395 = vpop.f32.mrf.mxu0
    %v396 = vadd.f32 %v99, %v395
    %v397 = vpop.f32.mrf.mxu0
    %v398 = vadd.f32 %v99, %v397
    %399 = vmatmul.bf16.gmra.mxu0 %v283
    %v400 = vpop.f32.mrf.mxu0
    %v401 = vadd.f32 %v99, %v400
    %v402 = vpop.f32.mrf.mxu0
    %v403 = vadd.f32 %v99, %v402
    %404 = vmatmul.bf16.gmra.mxu0 %v286
    %v405 = vpop.f32.mrf.mxu0
    %v406 = vadd.f32 %v99, %v405
    %v407 = vpop.f32.mrf.mxu0
    %v408 = vadd.f32 %v99, %v407
    %409 = vmatmul.bf16.gmra.mxu0 %v289
    %v410 = vpop.f32.mrf.mxu0
    %v411 = vadd.f32 %v99, %v410
    %v412 = vpop.f32.mrf.mxu0
    %v413 = vadd.f32 %v99, %v412
    %414 = vmatmul.bf16.gmra.mxu0 %v292
    %v415 = vpop.f32.mrf.mxu0
    %v416 = vadd.f32 %v99, %v415
    %v417 = vpop.f32.mrf.mxu0
    %v418 = vadd.f32 %v99, %v417
    %419 = vmatmul.bf16.gmra.mxu0 %v295
    %v420 = vpop.f32.mrf.mxu0
    %v421 = vadd.f32 %v99, %v420
    %v422 = vpop.f32.mrf.mxu0
    %v423 = vadd.f32 %v99, %v422
    %424 = vmatmul.bf16.gmra.mxu0 %v298
    %v425 = vpop.f32.mrf.mxu0
    %v426 = vadd.f32 %v99, %v425
    %v427 = vpop.f32.mrf.mxu0
    %v428 = vadd.f32 %v99, %v427
    %429 = vmatmul.bf16.gmra.mxu0 %v301
    %v430 = vpop.f32.mrf.mxu0
    %v431 = vadd.f32 %v99, %v430
    %v432 = vpop.f32.mrf.mxu0
    %v433 = vadd.f32 %v99, %v432
    %434 = vmatmul.bf16.gmra.mxu0 %v304
    %v435 = vpop.f32.mrf.mxu0
    %v436 = vadd.f32 %v99, %v435
    %v437 = vpop.f32.mrf.mxu0
    %v438 = vadd.f32 %v99, %v437
    %439 = vmatmul.bf16.gmra.mxu0 %v307
    %v440 = vpop.f32.mrf.mxu0
    %v441 = vadd.f32 %v99, %v440
    %v442 = vpop.f32.mrf.mxu0
    %v443 = vadd.f32 %v99, %v442
    %444 = vmatmul.bf16.gmra.mxu0 %v310
    %v445 = vpop.f32.mrf.mxu0
    %v446 = vadd.f32 %v99, %v445
    %v447 = vpop.f32.mrf.mxu0
    %v448 = vadd.f32 %v99, %v447
    %449 = vmatmul.bf16.gmra.mxu0 %v313
    %v450 = vpop.f32.mrf.mxu0
    %v451 = vadd.f32 %v99, %v450
    %v452 = vpop.f32.mrf.mxu0
    %v453 = vadd.f32 %v99, %v452
    %454 = vmatmul.bf16.gmra.mxu0 %v316
    %v455 = vpop.f32.mrf.mxu0
    %v456 = vadd.f32 %v99, %v455
    %v457 = vpop.f32.mrf.mxu0
    %v458 = vadd.f32 %v99, %v457
    %459 = vmatmul.bf16.gmra.mxu0 %v319
    %v460 = vpop.f32.mrf.mxu0
    %v461 = vadd.f32 %v99, %v460
    %v462 = vpop.f32.mrf.mxu0
    %v463 = vadd.f32 %v99, %v462
    %464 = vmatmul.bf16.gmra.mxu0 %v322
    %v465 = vpop.f32.mrf.mxu0
    %v466 = vadd.f32 %v99, %v465
    %v467 = vpop.f32.mrf.mxu0
    %v468 = vadd.f32 %v99, %v467
    %469 = vmatmul.bf16.gmra.mxu0 %v325
    %v470 = vpop.f32.mrf.mxu0
    %v471 = vadd.f32 %v99, %v470
    %v472 = vpop.f32.mrf.mxu0
    %v473 = vadd.f32 %v99, %v472
    %474 = vmatmul.bf16.gmra.mxu0 %v328
    %v475 = vpop.f32.mrf.mxu0
    %v476 = vadd.f32 %v99, %v475
    %v477 = vpop.f32.mrf.mxu0
    %v478 = vadd.f32 %v99, %v477
    %479 = vmatmul.bf16.gmra.mxu0 %v331
    %v480 = vpop.f32.mrf.mxu0
    %v481 = vadd.f32 %v99, %v480
    %v482 = vpop.f32.mrf.mxu0
    %v483 = vadd.f32 %v99, %v482
    %484 = vmatmul.bf16.gmra.mxu0 %v334
    %v485 = vpop.f32.mrf.mxu0
    %v486 = vadd.f32 %v99, %v485
    %v487 = vpop.f32.mrf.mxu0
    %v488 = vadd.f32 %v99, %v487
    %489 = vmatmul.bf16.gmra.mxu0 %v337
    %v490 = vpop.f32.mrf.mxu0
    %v491 = vadd.f32 %v99, %v490
    %v492 = vpop.f32.mrf.mxu0
    %v493 = vadd.f32 %v99, %v492
    %494 = vmatmul.bf16.gmra.mxu0 %v340
    %v495 = vpop.f32.mrf.mxu0
    %v496 = vadd.f32 %v99, %v495
    %v497 = vpop.f32.mrf.mxu0
    %v498 = vadd.f32 %v99, %v497
    %499 = vmatmul.bf16.gmra.mxu0 %v343
    %v500 = vpop.f32.mrf.mxu0
    %v501 = vadd.f32 %v99, %v500
    %v502 = vpop.f32.mrf.mxu0
    %v503 = vadd.f32 %v99, %v502
    %504 = vmatmul.bf16.gmra.mxu0 %v346
    %v505 = vpop.f32.mrf.mxu0
    %v506 = vadd.f32 %v99, %v505
    %v507 = vpop.f32.mrf.mxu0
    %v508 = vadd.f32 %v99, %v507
    %509 = vmatmul.bf16.gmra.mxu0 %v349
    %v510 = vpop.f32.mrf.mxu0
    %v511 = vadd.f32 %v99, %v510
    %v512 = vpop.f32.mrf.mxu0
    %v513 = vadd.f32 %v99, %v512
    %514 = vmatmul.bf16.gmra.mxu0 %v352
    %v515 = vpop.f32.mrf.mxu0
    %v516 = vadd.f32 %v99, %v515
    %v517 = vpop.f32.mrf.mxu0
    %v518 = vadd.f32 %v99, %v517
    %519 = vmatmul.bf16.gmra.mxu0 %v355
    %v520 = vpop.f32.mrf.mxu0
    %v521 = vadd.f32 %v99, %v520
    %v522 = vpop.f32.mrf.mxu0
    %v523 = vadd.f32 %v99, %v522
    %524 = vmatmul.bf16.gmra.mxu0 %v358
    %v525 = vpop.f32.mrf.mxu0
    %v526 = vadd.f32 %v99, %v525
    %v527 = vpop.f32.mrf.mxu0
    %v528 = vadd.f32 %v99, %v527
    %529 = vmatmul.bf16.gmra.mxu0 %v361
    %v530 = vpop.f32.mrf.mxu0
    %v531 = vadd.f32 %v99, %v530
    %v532 = vpop.f32.mrf.mxu0
    %v533 = vadd.f32 %v99, %v532
    %534 = vmatmul.bf16.gmra.mxu0 %v364
    %v535 = vpop.f32.mrf.mxu0
    %v536 = vadd.f32 %v99, %v535
    %v537 = vpop.f32.mrf.mxu0
    %v538 = vadd.f32 %v99, %v537
    %539 = vmatmul.bf16.gmra.mxu0 %v367
    %v540 = vpop.f32.mrf.mxu0
    %v541 = vadd.f32 %v99, %v540
    %v542 = vpop.f32.mrf.mxu0
    %v543 = vadd.f32 %v99, %v542
    %544 = vdwg.mxu0
    %v545 = vmax.f32 %v386, 0.0
    %v546 = vmax.f32 %v388, 0.0
    %v547 = vmax.f32 %v391, 0.0
    %v548 = vmax.f32 %v393, 0.0
    %v549 = vmax.f32 %v396, 0.0
    %v550 = vmax.f32 %v398, 0.0
    %v551 = vmax.f32 %v401, 0.0
    %v552 = vmax.f32 %v403, 0.0
    %v553 = vmax.f32 %v406, 0.0
    %v554 = vmax.f32 %v408, 0.0
    %v555 = vmax.f32 %v411, 0.0
    %v556 = vmax.f32 %v413, 0.0
    %v557 = vmax.f32 %v416, 0.0
    %v558 = vmax.f32 %v418, 0.0
    %v559 = vmax.f32 %v421, 0.0
    %v560 = vmax.f32 %v423, 0.0
    %v561 = vmax.f32 %v426, 0.0
    %v562 = vmax.f32 %v428, 0.0
    %v563 = vmax.f32 %v431, 0.0
    %v564 = vmax.f32 %v433, 0.0
    %v565 = vmax.f32 %v436, 0.0
    %v566 = vmax.f32 %v438, 0.0
    %v567 = vmax.f32 %v441, 0.0
    %v568 = vmax.f32 %v443, 0.0
    %v569 = vmax.f32 %v446, 0.0
    %v570 = vmax.f32 %v448, 0.0
    %v571 = vmax.f32 %v451, 0.0
    %v572 = vmax.f32 %v453, 0.0
    %v573 = vmax.f32 %v456, 0.0
    %v574 = vmax.f32 %v458, 0.0
    %v575 = vmax.f32 %v461, 0.0
    %v576 = vmax.f32 %v463, 0.0
    %v577 = vmax.f32 %v466, 0.0
    %v578 = vmax.f32 %v468, 0.0
    %v579 = vmax.f32 %v471, 0.0
    %v580 = vmax.f32 %v473, 0.0
    %v581 = vmax.f32 %v476, 0.0
    %v582 = vmax.f32 %v478, 0.0
    %v583 = vmax.f32 %v481, 0.0
    %v584 = vmax.f32 %v483, 0.0
    %v585 = vmax.f32 %v486, 0.0
    %v586 = vmax.f32 %v488, 0.0
    %v587 = vmax.f32 %v491, 0.0
    %v588 = vmax.f32 %v493, 0.0
    %v589 = vmax.f32 %v496, 0.0
    %v590 = vmax.f32 %v498, 0.0
    %v591 = vmax.f32 %v501, 0.0
    %v592 = vmax.f32 %v503, 0.0
    %v593 = vmax.f32 %v506, 0.0
    %v594 = vmax.f32 %v508, 0.0
    %v595 = vmax.f32 %v511, 0.0
    %v596 = vmax.f32 %v513, 0.0
    %v597 = vmax.f32 %v516, 0.0
    %v598 = vmax.f32 %v518, 0.0
    %v599 = vmax.f32 %v521, 0.0
    %v600 = vmax.f32 %v523, 0.0
    %v601 = vmax.f32 %v526, 0.0
    %v602 = vmax.f32 %v528, 0.0
    %v603 = vmax.f32 %v531, 0.0
    %v604 = vmax.f32 %v533, 0.0
    %v605 = vmax.f32 %v536, 0.0
    %v606 = vmax.f32 %v538, 0.0
    %v607 = vmax.f32 %v541, 0.0
    %v608 = vmax.f32 %v543, 0.0
    %v609 = vpack.c.bf16 %v545, %v545
    %v610 = vpack.c.bf16 %v546, %v546
    %v611 = vpack.c.bf16 %v547, %v547
    %v612 = vpack.c.bf16 %v548, %v548
    %v613 = vpack.c.bf16 %v549, %v549
    %v614 = vpack.c.bf16 %v550, %v550
    %v615 = vpack.c.bf16 %v551, %v551
    %v616 = vpack.c.bf16 %v552, %v552
    %v617 = vpack.c.bf16 %v553, %v553
    %v618 = vpack.c.bf16 %v554, %v554
    %v619 = vpack.c.bf16 %v555, %v555
    %v620 = vpack.c.bf16 %v556, %v556
    %v621 = vpack.c.bf16 %v557, %v557
    %v622 = vpack.c.bf16 %v558, %v558
    %v623 = vpack.c.bf16 %v559, %v559
    %v624 = vpack.c.bf16 %v560, %v560
    %v625 = vpack.c.bf16 %v561, %v561
    %v626 = vpack.c.bf16 %v562, %v562
    %v627 = vpack.c.bf16 %v563, %v563
    %v628 = vpack.c.bf16 %v564, %v564
    %v629 = vpack.c.bf16 %v565, %v565
    %v630 = vpack.c.bf16 %v566, %v566
    %v631 = vpack.c.bf16 %v567, %v567
    %v632 = vpack.c.bf16 %v568, %v568
    %v633 = vpack.c.bf16 %v569, %v569
    %v634 = vpack.c.bf16 %v570, %v570
    %v635 = vpack.c.bf16 %v571, %v571
    %v636 = vpack.c.bf16 %v572, %v572
    %v637 = vpack.c.bf16 %v573, %v573
    %v638 = vpack.c.bf16 %v574, %v574
    %v639 = vpack.c.bf16 %v575, %v575
    %v640 = vpack.c.bf16 %v576, %v576
    %v641 = vpack.c.bf16 %v577, %v577
    %v642 = vpack.c.bf16 %v578, %v578
    %v643 = vpack.c.bf16 %v579, %v579
    %v644 = vpack.c.bf16 %v580, %v580
    %v645 = vpack.c.bf16 %v581, %v581
    %v646 = vpack.c.bf16 %v582, %v582
    %v647 = vpack.c.bf16 %v583, %v583
    %v648 = vpack.c.bf16 %v584, %v584
    %v649 = vpack.c.bf16 %v585, %v585
    %v650 = vpack.c.bf16 %v586, %v586
    %v651 = vpack.c.bf16 %v587, %v587
    %v652 = vpack.c.bf16 %v588, %v588
    %v653 = vpack.c.bf16 %v589, %v589
    %v654 = vpack.c.bf16 %v590, %v590
    %v655 = vpack.c.bf16 %v591, %v591
    %v656 = vpack.c.bf16 %v592, %v592
    %v657 = vpack.c.bf16 %v593, %v593
    %v658 = vpack.c.bf16 %v594, %v594
    %v659 = vpack.c.bf16 %v595, %v595
    %v660 = vpack.c.bf16 %v596, %v596
    %v661 = vpack.c.bf16 %v597, %v597
    %v662 = vpack.c.bf16 %v598, %v598
    %v663 = vpack.c.bf16 %v599, %v599
    %v664 = vpack.c.bf16 %v600, %v600
    %v665 = vpack.c.bf16 %v601, %v601
    %v666 = vpack.c.bf16 %v602, %v602
    %v667 = vpack.c.bf16 %v603, %v603
    %v668 = vpack.c.bf16 %v604, %v604
    %v669 = vpack.c.bf16 %v605, %v605
    %v670 = vpack.c.bf16 %v606, %v606
    %v671 = vpack.c.bf16 %v607, %v607
    %v672 = vpack.c.bf16 %v608, %v608
    %vm673 = vcmask 125952
    %674 = vst.msk [vmem:[%s3] sm:$0xf] %vm673, %v609
    %675 = vst.msk [vmem:[%s3 + $0x4] sm:$0xf] %vm673, %v610
    %676 = vst.msk [vmem:[%s3 + $0x8] sm:$0xf] %vm673, %v611
    %677 = vst.msk [vmem:[%s3 + $0xc] sm:$0xf] %vm673, %v612
    %678 = vst.msk [vmem:[%s3 + $0x10] sm:$0xf] %vm673, %v613
    %679 = vst.msk [vmem:[%s3 + $0x14] sm:$0xf] %vm673, %v614
    %680 = vst.msk [vmem:[%s3 + $0x18] sm:$0xf] %vm673, %v615
    %681 = vst.msk [vmem:[%s3 + $0x1c] sm:$0xf] %vm673, %v616
    %682 = vst.msk [vmem:[%s3 + $0x20] sm:$0xf] %vm673, %v617
    %683 = vst.msk [vmem:[%s3 + $0x24] sm:$0xf] %vm673, %v618
    %684 = vst.msk [vmem:[%s3 + $0x28] sm:$0xf] %vm673, %v619
    %685 = vst.msk [vmem:[%s3 + $0x2c] sm:$0xf] %vm673, %v620
    %686 = vst.msk [vmem:[%s3 + $0x30] sm:$0xf] %vm673, %v621
    %687 = vst.msk [vmem:[%s3 + $0x34] sm:$0xf] %vm673, %v622
    %688 = vst.msk [vmem:[%s3 + $0x38] sm:$0xf] %vm673, %v623
    %689 = vst.msk [vmem:[%s3 + $0x3c] sm:$0xf] %vm673, %v624
    %690 = vst.msk [vmem:[%s3 + $0x40] sm:$0xf] %vm673, %v625
    %691 = vst.msk [vmem:[%s3 + $0x44] sm:$0xf] %vm673, %v626
    %692 = vst.msk [vmem:[%s3 + $0x48] sm:$0xf] %vm673, %v627
    %693 = vst.msk [vmem:[%s3 + $0x4c] sm:$0xf] %vm673, %v628
    %694 = vst.msk [vmem:[%s3 + $0x50] sm:$0xf] %vm673, %v629
    %695 = vst.msk [vmem:[%s3 + $0x54] sm:$0xf] %vm673, %v630
    %696 = vst.msk [vmem:[%s3 + $0x58] sm:$0xf] %vm673, %v631
    %697 = vst.msk [vmem:[%s3 + $0x5c] sm:$0xf] %vm673, %v632
    %698 = vst.msk [vmem:[%s3 + $0x60] sm:$0xf] %vm673, %v633
    %699 = vst.msk [vmem:[%s3 + $0x64] sm:$0xf] %vm673, %v634
    %700 = vst.msk [vmem:[%s3 + $0x68] sm:$0xf] %vm673, %v635
    %701 = vst.msk [vmem:[%s3 + $0x6c] sm:$0xf] %vm673, %v636
    %702 = vst.msk [vmem:[%s3 + $0x70] sm:$0xf] %vm673, %v637
    %703 = vst.msk [vmem:[%s3 + $0x74] sm:$0xf] %vm673, %v638
    %704 = vst.msk [vmem:[%s3 + $0x78] sm:$0xf] %vm673, %v639
    %705 = vst.msk [vmem:[%s3 + $0x7c] sm:$0xf] %vm673, %v640
    %706 = vst.msk [vmem:[%s3 + $0x80] sm:$0xf] %vm673, %v641
    %707 = vst.msk [vmem:[%s3 + $0x84] sm:$0xf] %vm673, %v642
    %708 = vst.msk [vmem:[%s3 + $0x88] sm:$0xf] %vm673, %v643
    %709 = vst.msk [vmem:[%s3 + $0x8c] sm:$0xf] %vm673, %v644
    %710 = vst.msk [vmem:[%s3 + $0x90] sm:$0xf] %vm673, %v645
    %711 = vst.msk [vmem:[%s3 + $0x94] sm:$0xf] %vm673, %v646
    %712 = vst.msk [vmem:[%s3 + $0x98] sm:$0xf] %vm673, %v647
    %713 = vst.msk [vmem:[%s3 + $0x9c] sm:$0xf] %vm673, %v648
    %714 = vst.msk [vmem:[%s3 + $0xa0] sm:$0xf] %vm673, %v649
    %715 = vst.msk [vmem:[%s3 + $0xa4] sm:$0xf] %vm673, %v650
    %716 = vst.msk [vmem:[%s3 + $0xa8] sm:$0xf] %vm673, %v651
    %717 = vst.msk [vmem:[%s3 + $0xac] sm:$0xf] %vm673, %v652
    %718 = vst.msk [vmem:[%s3 + $0xb0] sm:$0xf] %vm673, %v653
    %719 = vst.msk [vmem:[%s3 + $0xb4] sm:$0xf] %vm673, %v654
    %720 = vst.msk [vmem:[%s3 + $0xb8] sm:$0xf] %vm673, %v655
    %721 = vst.msk [vmem:[%s3 + $0xbc] sm:$0xf] %vm673, %v656
    %722 = vst.msk [vmem:[%s3 + $0xc0] sm:$0xf] %vm673, %v657
    %723 = vst.msk [vmem:[%s3 + $0xc4] sm:$0xf] %vm673, %v658
    %724 = vst.msk [vmem:[%s3 + $0xc8] sm:$0xf] %vm673, %v659
    %725 = vst.msk [vmem:[%s3 + $0xcc] sm:$0xf] %vm673, %v660
    %726 = vst.msk [vmem:[%s3 + $0xd0] sm:$0xf] %vm673, %v661
    %727 = vst.msk [vmem:[%s3 + $0xd4] sm:$0xf] %vm673, %v662
    %728 = vst.msk [vmem:[%s3 + $0xd8] sm:$0xf] %vm673, %v663
    %729 = vst.msk [vmem:[%s3 + $0xdc] sm:$0xf] %vm673, %v664
    %730 = vst.msk [vmem:[%s3 + $0xe0] sm:$0xf] %vm673, %v665
    %731 = vst.msk [vmem:[%s3 + $0xe4] sm:$0xf] %vm673, %v666
    %732 = vst.msk [vmem:[%s3 + $0xe8] sm:$0xf] %vm673, %v667
    %733 = vst.msk [vmem:[%s3 + $0xec] sm:$0xf] %vm673, %v668
    %734 = vst.msk [vmem:[%s3 + $0xf0] sm:$0xf] %vm673, %v669
    %735 = vst.msk [vmem:[%s3 + $0xf4] sm:$0xf] %vm673, %v670
    %736 = vst.msk [vmem:[%s3 + $0xf8] sm:$0xf] %vm673, %v671
    %737 = vst.msk [vmem:[%s3 + $0xfc] sm:$0xf] %vm673, %v672
    // Predicated region
    $region18: #{qmcifar_forward.4} parent=1 // pred_check
      _
    $region19: #{qmcifar_forward.4} parent=1 // pred_check_branch
      %739 = sbr.rel (0) target = $region21
    $region20: #{qmcifar_forward.4} parent=1 // pred_region
      _
    $region21: #{qmcifar_forward.4} parent=1 // pred_fallthru
      _
    // Predicated region
    $region22: #{qmcifar_forward.4} parent=1 // pred_check
      _
    $region23: #{qmcifar_forward.4} parent=1 // pred_check_branch
      %741 = sbr.rel (0) target = $region25
    $region24: #{qmcifar_forward.4} parent=1 // pred_region
      _
    $region25: #{qmcifar_forward.4} parent=1 // pred_fallthru
      _
    %742 = vsyncpa [#allocation3], 1

// kernel: qmcifar_forward.6
$region0: #{qmcifar_forward.6}
  #allocation0 [shape = 'u32[]', space=smem, size = 0x4, offset = 0x4, fixed_abs, tag = 'smem constant byte address 0x4 - core index']
  #allocation1 [shape = 'u32[72,128]{1,0:T(1,128)}', space=vmem, size = 0x9000, scoped, tag = 'internal scratch']
  %s0 = inlined_call_operand.vmem [shape: bf16[32,288], index: 0, kind: input, shape index: {}]
  %s1 = inlined_call_operand.vmem [shape: bf16[288,64], index: 1, kind: input, shape index: {}]
  %s2 = inlined_call_operand.vmem [shape: f32[1,64], index: 2, kind: input, shape index: {}]
  %s3 = inlined_call_operand.vmem [shape: bf16[32,64], index: 3, kind: output, shape index: {}]
  %s4 = sld [smem:[#allocation0]]
  $region22: #{qmcifar_forward.6} parent=0
    _
  %s6 = ssub.s32 1, %s4
  %s7 = scalar_select 0, %s6, %s4
  // Predicated region
  $region2: #{qmcifar_forward.6} parent=0 // pred_check
    _
  $region3: #{qmcifar_forward.6} parent=0 // pred_check_branch
    %9 = sbr.rel (0) target = $region5
  $region4: #{qmcifar_forward.6} parent=0 // pred_region
    _
  $region5: #{qmcifar_forward.6} parent=0 // pred_fallthru
    _
  // Predicated region
  $region6: #{qmcifar_forward.6} parent=0 // pred_check
    _
  $region7: #{qmcifar_forward.6} parent=0 // pred_check_branch
    %11 = sbr.rel (0) target = $region9
  $region8: #{qmcifar_forward.6} parent=0 // pred_region
    _
  $region9: #{qmcifar_forward.6} parent=0 // pred_fallthru
    _
  // Predicated region
  $region10: #{qmcifar_forward.6} parent=0 // pred_check
    _
  $region11: #{qmcifar_forward.6} parent=0 // pred_check_branch
    %13 = sbr.rel (0) target = $region13
  $region12: #{qmcifar_forward.6} parent=0 // pred_region
    _
  $region13: #{qmcifar_forward.6} parent=0 // pred_fallthru
    _
  %v15 = vld [vmem:[%s0] sm:$0xff]
  %v16 = vld [vmem:[%s0 + $0x8] sm:$0xf]
  %v17 = vld [vmem:[%s0 + $0xc] sm:$0xff]
  %v18 = vld [vmem:[%s0 + $0x14] sm:$0xf]
  %v19 = vld [vmem:[%s0 + $0x18] sm:$0xff]
  %v20 = vld [vmem:[%s0 + $0x20] sm:$0xf]
  %v21 = vld [vmem:[%s0 + $0x24] sm:$0xff]
  %v22 = vld [vmem:[%s0 + $0x2c] sm:$0xf]
  %v23 = vld [vmem:[%s1] sm:$0xf]
  %v24 = vld [vmem:[%s1 + $0x4] sm:$0xf]
  %v25 = vld [vmem:[%s1 + $0x8] sm:$0xf]
  %v26 = vld [vmem:[%s1 + $0xc] sm:$0xf]
  %v27 = vld [vmem:[%s1 + $0x10] sm:$0xf]
  %v28 = vld [vmem:[%s1 + $0x14] sm:$0xf]
  %v29 = vld [vmem:[%s1 + $0x18] sm:$0xf]
  %v30 = vld [vmem:[%s1 + $0x1c] sm:$0xf]
  %v31 = vld [vmem:[%s1 + $0x20] sm:$0xf]
  %v32 = vld [vmem:[%s1 + $0x24] sm:$0xf]
  %v33 = vld [vmem:[%s1 + $0x28] sm:$0xf]
  %v34 = vld [vmem:[%s1 + $0x2c] sm:$0xf]
  %v35 = vld [vmem:[%s1 + $0x30] sm:$0xf]
  %v36 = vld [vmem:[%s1 + $0x34] sm:$0xf]
  %v37 = vld [vmem:[%s1 + $0x38] sm:$0xf]
  %v38 = vld [vmem:[%s1 + $0x3c] sm:$0xf]
  %v39 = vld [vmem:[%s1 + $0x40] sm:$0xf]
  %v40 = vld [vmem:[%s1 + $0x44] sm:$0xf]
  %v41 = vld [vmem:[%s1 + $0x48] sm:$0xf]
  %v42 = vld [vmem:[%s1 + $0x4c] sm:$0xf]
  %v43 = vld [vmem:[%s1 + $0x50] sm:$0xf]
  %v44 = vld [vmem:[%s1 + $0x54] sm:$0xf]
  %v45 = vld [vmem:[%s1 + $0x58] sm:$0xf]
  %v46 = vld [vmem:[%s1 + $0x5c] sm:$0xf]
  %v47 = vld [vmem:[%s1 + $0x60] sm:$0xf]
  %v48 = vld [vmem:[%s1 + $0x64] sm:$0xf]
  %v49 = vld [vmem:[%s1 + $0x68] sm:$0xf]
  %v50 = vld [vmem:[%s1 + $0x6c] sm:$0xf]
  %v51 = vld [vmem:[%s1 + $0x70] sm:$0xf]
  %v52 = vld [vmem:[%s1 + $0x74] sm:$0xf]
  %v53 = vld [vmem:[%s1 + $0x78] sm:$0xf]
  %v54 = vld [vmem:[%s1 + $0x7c] sm:$0xf]
  %v55 = vld [vmem:[%s1 + $0x80] sm:$0xf]
  %v56 = vld [vmem:[%s1 + $0x84] sm:$0xf]
  %v57 = vld [vmem:[%s1 + $0x88] sm:$0xf]
  %v58 = vld [vmem:[%s1 + $0x8c] sm:$0xf]
  %v59 = vld [vmem:[%s2] sm:$0x1]
  %v61 = vperm.slane %v59, 0
  %v71 = vunpack.c.l.b16 %v15
  %v72 = vunpack.c.h.b16 %v15
  %v73 = vunpack.c.l.b16 %v16
  %v74 = vunpack.c.l.b16 %v17
  %v75 = vunpack.c.h.b16 %v17
  %v76 = vunpack.c.l.b16 %v18
  %v77 = vunpack.c.l.b16 %v19
  %v78 = vunpack.c.h.b16 %v19
  %v79 = vunpack.c.l.b16 %v20
  %v80 = vunpack.c.l.b16 %v21
  %v81 = vunpack.c.h.b16 %v21
  %v82 = vunpack.c.l.b16 %v22
  %v83 = vpack.c.b16 %v74, %v71
  %v84 = vpack.c.b16 %v75, %v72
  %v85 = vpack.c.b16 %v76, %v73
  %v86 = vpack.c.b16 %v80, %v77
  %v87 = vpack.c.b16 %v81, %v78
  %v88 = vpack.c.b16 %v82, %v79
  %v129 = vunpack.c.l.b16 %v23
  %v130 = vunpack.c.l.b16 %v24
  %v131 = vunpack.c.l.b16 %v25
  %v132 = vunpack.c.l.b16 %v26
  %v133 = vunpack.c.l.b16 %v27
  %v134 = vunpack.c.l.b16 %v28
  %v135 = vunpack.c.l.b16 %v29
  %v136 = vunpack.c.l.b16 %v30
  %v137 = vunpack.c.l.b16 %v31
  %v138 = vunpack.c.l.b16 %v32
  %v139 = vunpack.c.l.b16 %v33
  %v140 = vunpack.c.l.b16 %v34
  %v141 = vunpack.c.l.b16 %v35
  %v142 = vunpack.c.l.b16 %v36
  %v143 = vunpack.c.l.b16 %v37
  %v144 = vunpack.c.l.b16 %v38
  %v145 = vunpack.c.l.b16 %v39
  %v146 = vunpack.c.l.b16 %v40
  %v147 = vunpack.c.l.b16 %v41
  %v148 = vunpack.c.l.b16 %v42
  %v149 = vunpack.c.l.b16 %v43
  %v150 = vunpack.c.l.b16 %v44
  %v151 = vunpack.c.l.b16 %v45
  %v152 = vunpack.c.l.b16 %v46
  %v153 = vunpack.c.l.b16 %v47
  %v154 = vunpack.c.l.b16 %v48
  %v155 = vunpack.c.l.b16 %v49
  %v156 = vunpack.c.l.b16 %v50
  %v157 = vunpack.c.l.b16 %v51
  %v158 = vunpack.c.l.b16 %v52
  %v159 = vunpack.c.l.b16 %v53
  %v160 = vunpack.c.l.b16 %v54
  %v161 = vunpack.c.l.b16 %v55
  %v162 = vunpack.c.l.b16 %v56
  %v163 = vunpack.c.l.b16 %v57
  %v164 = vunpack.c.l.b16 %v58
  %v165 = vpack.c.b16 %v130, %v129
  %v166 = vpack.c.b16 %v132, %v131
  %v167 = vpack.c.b16 %v134, %v133
  %v168 = vpack.c.b16 %v136, %v135
  %v169 = vpack.c.b16 %v138, %v137
  %v170 = vpack.c.b16 %v140, %v139
  %v171 = vpack.c.b16 %v142, %v141
  %v172 = vpack.c.b16 %v144, %v143
  %v173 = vpack.c.b16 %v146, %v145
  %v174 = vpack.c.b16 %v148, %v147
  %v175 = vpack.c.b16 %v150, %v149
  %v176 = vpack.c.b16 %v152, %v151
  %v177 = vpack.c.b16 %v154, %v153
  %v178 = vpack.c.b16 %v156, %v155
  %v179 = vpack.c.b16 %v158, %v157
  %v180 = vpack.c.b16 %v160, %v159
  %v181 = vpack.c.b16 %v162, %v161
  %v182 = vpack.c.b16 %v164, %v163
  %vm201 = vcmask 261120
  %v203 = vsel %vm201, %v85, 0
  %v206 = vsel %vm201, %v88, 0
  %208 = vmatpush.bf16.msra.mxu0 %v172
  %209 = vmatpush.bf16.msra.mxu0 %v171
  %210 = vmatpush.bf16.msra.mxu0 %v170
  %211 = vmatpush.bf16.msra.mxu0 %v169
  %212 = vmatpush.bf16.msra.mxu0 %v168
  %213 = vmatpush.bf16.msra.mxu0 %v167
  %214 = vmatpush.bf16.msra.mxu0 %v166
  %215 = vmatpush.bf16.msra.mxu0 %v165
  %216 = vmatmul.bf16.gmra.mxu0 %v83
  %v217 = vpop.f32.mrf.mxu0
  %v218 = vadd.f32 %v61, %v217
  %v219 = vpop.f32.mrf.mxu0
  %v220 = vadd.f32 %v61, %v219
  %221 = vmatmul.bf16.gmra.mxu0 %v86
  %v222 = vpop.f32.mrf.mxu0
  %v223 = vadd.f32 %v61, %v222
  %v224 = vpop.f32.mrf.mxu0
  %v225 = vadd.f32 %v61, %v224
  %226 = vdwg.mxu0
  %227 = vmatpush.bf16.msra.mxu0 %v180
  %228 = vmatpush.bf16.msra.mxu0 %v179
  %229 = vmatpush.bf16.msra.mxu0 %v178
  %230 = vmatpush.bf16.msra.mxu0 %v177
  %231 = vmatpush.bf16.msra.mxu0 %v176
  %232 = vmatpush.bf16.msra.mxu0 %v175
  %233 = vmatpush.bf16.msra.mxu0 %v174
  %234 = vmatpush.bf16.msra.mxu0 %v173
  %235 = vmatmul.bf16.gmra.mxu0 %v84
  %v236 = vpop.f32.mrf.mxu0
  %v237 = vadd.f32 %v218, %v236
  %v238 = vpop.f32.mrf.mxu0
  %v239 = vadd.f32 %v220, %v238
  %240 = vmatmul.bf16.gmra.mxu0 %v87
  %v241 = vpop.f32.mrf.mxu0
  %v242 = vadd.f32 %v223, %v241
  %v243 = vpop.f32.mrf.mxu0
  %v244 = vadd.f32 %v225, %v243
  %245 = vdwg.mxu0
  %246 = vmatpush.bf16.msra.mxu0 0
  %247 = vmatpush.bf16.msra.mxu0 0
  %248 = vmatpush.bf16.msra.mxu0 0
  %249 = vmatpush.bf16.msra.mxu0 0
  %250 = vmatpush.bf16.msra.mxu0 0
  %251 = vmatpush.bf16.msra.mxu0 0
  %252 = vmatpush.bf16.msra.mxu0 %v182
  %253 = vmatpush.bf16.msra.mxu0 %v181
  %254 = vmatmul.bf16.gmra.mxu0 %v203
  %v255 = vpop.f32.mrf.mxu0
  %v256 = vadd.f32 %v237, %v255
  %v257 = vpop.f32.mrf.mxu0
  %v258 = vadd.f32 %v239, %v257
  %259 = vmatmul.bf16.gmra.mxu0 %v206
  %v260 = vpop.f32.mrf.mxu0
  %v261 = vadd.f32 %v242, %v260
  %v262 = vpop.f32.mrf.mxu0
  %v263 = vadd.f32 %v244, %v262
  %264 = vdwg.mxu0
  %v265 = vmax.f32 %v256, 0.0
  %v266 = vmax.f32 %v258, 0.0
  %v267 = vmax.f32 %v261, 0.0
  %v268 = vmax.f32 %v263, 0.0
  %v269 = vpack.c.bf16 %v265, %v265
  %v270 = vpack.c.bf16 %v266, %v266
  %v271 = vpack.c.bf16 %v267, %v267
  %v272 = vpack.c.bf16 %v268, %v268
  %vm273 = vcmask 519168
  %274 = vst.msk [vmem:[%s3] sm:$0xf] %vm273, %v269
  %275 = vst.msk [vmem:[%s3 + $0x4] sm:$0xf] %vm273, %v270
  %276 = vst.msk [vmem:[%s3 + $0x8] sm:$0xf] %vm273, %v271
  %277 = vst.msk [vmem:[%s3 + $0xc] sm:$0xf] %vm273, %v272
  // Predicated region
  $region14: #{qmcifar_forward.6} parent=0 // pred_check
    _
  $region15: #{qmcifar_forward.6} parent=0 // pred_check_branch
    %279 = sbr.rel (0) target = $region17
  $region16: #{qmcifar_forward.6} parent=0 // pred_region
    _
  $region17: #{qmcifar_forward.6} parent=0 // pred_fallthru
    _
  // Predicated region
  $region18: #{qmcifar_forward.6} parent=0 // pred_check
    _
  $region19: #{qmcifar_forward.6} parent=0 // pred_check_branch
    %281 = sbr.rel (0) target = $region21
  $region20: #{qmcifar_forward.6} parent=0 // pred_region
    _
  $region21: #{qmcifar_forward.6} parent=0 // pred_fallthru
    _

// kernel: qmcifar_forward.7
$region0: #{qmcifar_forward.7}
  #allocation0 [shape = 'u32[]', space=smem, size = 0x4, offset = 0x4, fixed_abs, tag = 'smem constant byte address 0x4 - core index']
  #allocation1 [shape = 'u32[72,128]{1,0:T(1,128)}', space=vmem, size = 0x9000, scoped, tag = 'internal scratch']
  %s0 = inlined_call_operand.vmem [shape: bf16[2,1024], index: 0, kind: input, shape index: {}]
  %s1 = inlined_call_operand.vmem [shape: bf16[1024,1000], index: 1, kind: input, shape index: {}]
  %s2 = inlined_call_operand.vmem [shape: f32[1,1000], index: 2, kind: input, shape index: {}]
  %s3 = inlined_call_operand.vmem [shape: bf16[1000,1000], index: 3, kind: input, shape index: {}]
  %s4 = inlined_call_operand.vmem [shape: f32[1,1000], index: 4, kind: input, shape index: {}]
  %s5 = inlined_call_operand.vmem [shape: bf16[1000,32], index: 5, kind: input, shape index: {}]
  %s6 = inlined_call_operand.vmem [shape: f32[1,32], index: 6, kind: input, shape index: {}]
  %s7 = inlined_call_operand.vmem [shape: f32[2,16], index: 7, kind: input, shape index: {}]
  %s8 = inlined_call_operand.hbm [shape: f32[2,16], index: 8, kind: output, shape index: {0}]
  %s9 = inlined_call_operand.hbm [shape: f32[1,1], index: 9, kind: output, shape index: {1}]
  %10 = xla_tuple %s8, %s9
  %s11 = sld [smem:[#allocation0]]
  $region50: #{qmcifar_forward.7} parent=0
    _
  %s13 = ssub.s32 1, %s11
  %s14 = scalar_select 0, %s13, %s11
  $region1: #{qmcifar_forward.7} parent=0
    #allocation2 [shape = 'u8[1024]{0}', space=vmem, size = 0x400, scoped, tag = 'output window, operand 0, single buffered']
    #allocation3 [shape = 's32[1]{0}', space=sflag, size = 0x4, scoped, tag = 'scoped memory for qmcifar_forward.7']
    #allocation4 [shape = 's32[1]{0}', space=sflag, size = 0x4, scoped, tag = 'scoped memory for qmcifar_forward.7']
    #allocation5 [shape = 'u8[512]{0}', space=smem, size = 0x200, scoped, tag = 'output window, operand 1, single buffered']
    %15 = vsyncpa [#allocation3], 0
    %16 = vsyncpa [#allocation4], 0
    // Predicated region
    $region2: #{qmcifar_forward.7} parent=1 // pred_check
      _
    $region3: #{qmcifar_forward.7} parent=1 // pred_check_branch
      %18 = sbr.rel (0) target = $region5
    $region4: #{qmcifar_forward.7} parent=1 // pred_region
      _
    $region5: #{qmcifar_forward.7} parent=1 // pred_fallthru
      _
    // Predicated region
    $region6: #{qmcifar_forward.7} parent=1 // pred_check
      _
    $region7: #{qmcifar_forward.7} parent=1 // pred_check_branch
      %20 = sbr.rel (0) target = $region9
    $region8: #{qmcifar_forward.7} parent=1 // pred_region
      _
    $region9: #{qmcifar_forward.7} parent=1 // pred_fallthru
      _
    // Predicated region
    $region10: #{qmcifar_forward.7} parent=1 // pred_check
      _
    $region11: #{qmcifar_forward.7} parent=1 // pred_check_branch
      %22 = sbr.rel (0) target = $region13
    $region12: #{qmcifar_forward.7} parent=1 // pred_region
      _
    $region13: #{qmcifar_forward.7} parent=1 // pred_fallthru
      _
    // Predicated region
    $region14: #{qmcifar_forward.7} parent=1 // pred_check
      _
    $region15: #{qmcifar_forward.7} parent=1 // pred_check_branch
      %24 = sbr.rel (0) target = $region17
    $region16: #{qmcifar_forward.7} parent=1 // pred_region
      _
    $region17: #{qmcifar_forward.7} parent=1 // pred_fallthru
      _
    // Predicated region
    $region18: #{qmcifar_forward.7} parent=1 // pred_check
      _
    $region19: #{qmcifar_forward.7} parent=1 // pred_check_branch
      %26 = sbr.rel (0) target = $region21
    $region20: #{qmcifar_forward.7} parent=1 // pred_region
      _
    $region21: #{qmcifar_forward.7} parent=1 // pred_fallthru
      _
    // Predicated region
    $region22: #{qmcifar_forward.7} parent=1 // pred_check
      _
    $region23: #{qmcifar_forward.7} parent=1 // pred_check_branch
      %28 = sbr.rel (0) target = $region25
    $region24: #{qmcifar_forward.7} parent=1 // pred_region
      _
    $region25: #{qmcifar_forward.7} parent=1 // pred_fallthru
      _
    // Predicated region
    $region26: #{qmcifar_forward.7} parent=1 // pred_check
      _
    $region27: #{qmcifar_forward.7} parent=1 // pred_check_branch
      %30 = sbr.rel (0) target = $region29
    $region28: #{qmcifar_forward.7} parent=1 // pred_region
      _
    $region29: #{qmcifar_forward.7} parent=1 // pred_fallthru
      _
    // Predicated region
    $region30: #{qmcifar_forward.7} parent=1 // pred_check
      _
    $region31: #{qmcifar_forward.7} parent=1 // pred_check_branch
      %32 = sbr.rel (0) target = $region33
    $region32: #{qmcifar_forward.7} parent=1 // pred_region
      _
    $region33: #{qmcifar_forward.7} parent=1 // pred_fallthru
      _
    %v34 = vld [vmem:[%s0] sm:$0xff]
    %v35 = vld [vmem:[%s1] sm:$0xff]
    %v36 = vld [vmem:[%s1 + $0x8] sm:$0xff]
    %v37 = vld [vmem:[%s1 + $0x10] sm:$0xff]
    %v38 = vld [vmem:[%s1 + $0x18] sm:$0xff]
    %v39 = vld [vmem:[%s1 + $0x20] sm:$0xff]
    %v40 = vld [vmem:[%s1 + $0x28] sm:$0xff]
    %v41 = vld [vmem:[%s1 + $0x30] sm:$0xff]
    %v42 = vld [vmem:[%s1 + $0x38] sm:$0xff]
    %v43 = vld [vmem:[%s1 + $0x40] sm:$0xff]
    %v44 = vld [vmem:[%s1 + $0x48] sm:$0xff]
    %v45 = vld [vmem:[%s1 + $0x50] sm:$0xff]
    %v46 = vld [vmem:[%s1 + $0x58] sm:$0xff]
    %v47 = vld [vmem:[%s1 + $0x60] sm:$0xff]
    %v48 = vld [vmem:[%s1 + $0x68] sm:$0xff]
    %v49 = vld [vmem:[%s1 + $0x70] sm:$0xff]
    %v50 = vld [vmem:[%s1 + $0x78] sm:$0xff]
    %v51 = vld [vmem:[%s1 + $0x80] sm:$0xff]
    %v52 = vld [vmem:[%s1 + $0x88] sm:$0xff]
    %v53 = vld [vmem:[%s1 + $0x90] sm:$0xff]
    %v54 = vld [vmem:[%s1 + $0x98] sm:$0xff]
    %v55 = vld [vmem:[%s1 + $0xa0] sm:$0xff]
    %v56 = vld [vmem:[%s1 + $0xa8] sm:$0xff]
    %v57 = vld [vmem:[%s1 + $0xb0] sm:$0xff]
    %v58 = vld [vmem:[%s1 + $0xb8] sm:$0xff]
    %v59 = vld [vmem:[%s1 + $0xc0] sm:$0xff]
    %v60 = vld [vmem:[%s1 + $0xc8] sm:$0xff]
    %v61 = vld [vmem:[%s1 + $0xd0] sm:$0xff]
    %v62 = vld [vmem:[%s1 + $0xd8] sm:$0xff]
    %v63 = vld [vmem:[%s1 + $0xe0] sm:$0xff]
    %v64 = vld [vmem:[%s1 + $0xe8] sm:$0xff]
    %v65 = vld [vmem:[%s1 + $0xf0] sm:$0xff]
    %v66 = vld [vmem:[%s1 + $0xf8] sm:$0xff]
    %v67 = vld [vmem:[%s1 + $0x100] sm:$0xff]
    %v68 = vld [vmem:[%s1 + $0x108] sm:$0xff]
    %v69 = vld [vmem:[%s1 + $0x110] sm:$0xff]
    %v70 = vld [vmem:[%s1 + $0x118] sm:$0xff]
    %v71 = vld [vmem:[%s1 + $0x120] sm:$0xff]
    %v72 = vld [vmem:[%s1 + $0x128] sm:$0xff]
    %v73 = vld [vmem:[%s1 + $0x130] sm:$0xff]
    %v74 = vld [vmem:[%s1 + $0x138] sm:$0xff]
    %v75 = vld [vmem:[%s1 + $0x140] sm:$0xff]
    %v76 = vld [vmem:[%s1 + $0x148] sm:$0xff]
    %v77 = vld [vmem:[%s1 + $0x150] sm:$0xff]
    %v78 = vld [vmem:[%s1 + $0x158] sm:$0xff]
    %v79 = vld [vmem:[%s1 + $0x160] sm:$0xff]
    %v80 = vld [vmem:[%s1 + $0x168] sm:$0xff]
    %v81 = vld [vmem:[%s1 + $0x170] sm:$0xff]
    %v82 = vld [vmem:[%s1 + $0x178] sm:$0xff]
    %v83 = vld [vmem:[%s1 + $0x180] sm:$0xff]
    %v84 = vld [vmem:[%s1 + $0x188] sm:$0xff]
    %v85 = vld [vmem:[%s1 + $0x190] sm:$0xff]
    %v86 = vld [vmem:[%s1 + $0x198] sm:$0xff]
    %v87 = vld [vmem:[%s1 + $0x1a0] sm:$0xff]
    %v88 = vld [vmem:[%s1 + $0x1a8] sm:$0xff]
    %v89 = vld [vmem:[%s1 + $0x1b0] sm:$0xff]
    %v90 = vld [vmem:[%s1 + $0x1b8] sm:$0xff]
    %v91 = vld [vmem:[%s1 + $0x1c0] sm:$0xff]
    %v92 = vld [vmem:[%s1 + $0x1c8] sm:$0xff]
    %v93 = vld [vmem:[%s1 + $0x1d0] sm:$0xff]
    %v94 = vld [vmem:[%s1 + $0x1d8] sm:$0xff]
    %v95 = vld [vmem:[%s1 + $0x1e0] sm:$0xff]
    %v96 = vld [vmem:[%s1 + $0x1e8] sm:$0xff]
    %v97 = vld [vmem:[%s1 + $0x1f0] sm:$0xff]
    %v98 = vld [vmem:[%s1 + $0x1f8] sm:$0xff]
    %v99 = vld [vmem:[%s1 + $0x200] sm:$0xff]
    %v100 = vld [vmem:[%s1 + $0x208] sm:$0xff]
    %v101 = vld [vmem:[%s1 + $0x210] sm:$0xff]
    %v102 = vld [vmem:[%s1 + $0x218] sm:$0xff]
    %v103 = vld [vmem:[%s1 + $0x220] sm:$0xff]
    %v104 = vld [vmem:[%s1 + $0x228] sm:$0xff]
    %v105 = vld [vmem:[%s1 + $0x230] sm:$0xff]
    %v106 = vld [vmem:[%s1 + $0x238] sm:$0xff]
    %v107 = vld [vmem:[%s1 + $0x240] sm:$0xff]
    %v108 = vld [vmem:[%s1 + $0x248] sm:$0xff]
    %v109 = vld [vmem:[%s1 + $0x250] sm:$0xff]
    %v110 = vld [vmem:[%s1 + $0x258] sm:$0xff]
    %v111 = vld [vmem:[%s1 + $0x260] sm:$0xff]
    %v112 = vld [vmem:[%s1 + $0x268] sm:$0xff]
    %v113 = vld [vmem:[%s1 + $0x270] sm:$0xff]
    %v114 = vld [vmem:[%s1 + $0x278] sm:$0xff]
    %v115 = vld [vmem:[%s1 + $0x280] sm:$0xff]
    %v116 = vld [vmem:[%s1 + $0x288] sm:$0xff]
    %v117 = vld [vmem:[%s1 + $0x290] sm:$0xff]
    %v118 = vld [vmem:[%s1 + $0x298] sm:$0xff]
    %v119 = vld [vmem:[%s1 + $0x2a0] sm:$0xff]
    %v120 = vld [vmem:[%s1 + $0x2a8] sm:$0xff]
    %v121 = vld [vmem:[%s1 + $0x2b0] sm:$0xff]
    %v122 = vld [vmem:[%s1 + $0x2b8] sm:$0xff]
    %v123 = vld [vmem:[%s1 + $0x2c0] sm:$0xff]
    %v124 = vld [vmem:[%s1 + $0x2c8] sm:$0xff]
    %v125 = vld [vmem:[%s1 + $0x2d0] sm:$0xff]
    %v126 = vld [vmem:[%s1 + $0x2d8] sm:$0xff]
    %v127 = vld [vmem:[%s1 + $0x2e0] sm:$0xff]
    %v128 = vld [vmem:[%s1 + $0x2e8] sm:$0xff]
    %v129 = vld [vmem:[%s1 + $0x2f0] sm:$0xff]
    %v130 = vld [vmem:[%s1 + $0x2f8] sm:$0xff]
    %v131 = vld [vmem:[%s1 + $0x300] sm:$0xff]
    %v132 = vld [vmem:[%s1 + $0x308] sm:$0xff]
    %v133 = vld [vmem:[%s1 + $0x310] sm:$0xff]
    %v134 = vld [vmem:[%s1 + $0x318] sm:$0xff]
    %v135 = vld [vmem:[%s1 + $0x320] sm:$0xff]
    %v136 = vld [vmem:[%s1 + $0x328] sm:$0xff]
    %v137 = vld [vmem:[%s1 + $0x330] sm:$0xff]
    %v138 = vld [vmem:[%s1 + $0x338] sm:$0xff]
    %v139 = vld [vmem:[%s1 + $0x340] sm:$0xff]
    %v140 = vld [vmem:[%s1 + $0x348] sm:$0xff]
    %v141 = vld [vmem:[%s1 + $0x350] sm:$0xff]
    %v142 = vld [vmem:[%s1 + $0x358] sm:$0xff]
    %v143 = vld [vmem:[%s1 + $0x360] sm:$0xff]
    %v144 = vld [vmem:[%s1 + $0x368] sm:$0xff]
    %v145 = vld [vmem:[%s1 + $0x370] sm:$0xff]
    %v146 = vld [vmem:[%s1 + $0x378] sm:$0xff]
    %v147 = vld [vmem:[%s1 + $0x380] sm:$0xff]
    %v148 = vld [vmem:[%s1 + $0x388] sm:$0xff]
    %v149 = vld [vmem:[%s1 + $0x390] sm:$0xff]
    %v150 = vld [vmem:[%s1 + $0x398] sm:$0xff]
    %v151 = vld [vmem:[%s1 + $0x3a0] sm:$0xff]
    %v152 = vld [vmem:[%s1 + $0x3a8] sm:$0xff]
    %v153 = vld [vmem:[%s1 + $0x3b0] sm:$0xff]
    %v154 = vld [vmem:[%s1 + $0x3b8] sm:$0xff]
    %v155 = vld [vmem:[%s1 + $0x3c0] sm:$0xff]
    %v156 = vld [vmem:[%s1 + $0x3c8] sm:$0xff]
    %v157 = vld [vmem:[%s1 + $0x3d0] sm:$0xff]
    %v158 = vld [vmem:[%s1 + $0x3d8] sm:$0xff]
    %v159 = vld [vmem:[%s1 + $0x3e0] sm:$0xff]
    %v160 = vld [vmem:[%s1 + $0x3e8] sm:$0xff]
    %v161 = vld [vmem:[%s1 + $0x3f0] sm:$0xff]
    %v162 = vld [vmem:[%s1 + $0x3f8] sm:$0xff]
    %v163 = vld [vmem:[%s1 + $0x400] sm:$0xff]
    %v164 = vld [vmem:[%s1 + $0x408] sm:$0xff]
    %v165 = vld [vmem:[%s1 + $0x410] sm:$0xff]
    %v166 = vld [vmem:[%s1 + $0x418] sm:$0xff]
    %v167 = vld [vmem:[%s1 + $0x420] sm:$0xff]
    %v168 = vld [vmem:[%s1 + $0x428] sm:$0xff]
    %v169 = vld [vmem:[%s1 + $0x430] sm:$0xff]
    %v170 = vld [vmem:[%s1 + $0x438] sm:$0xff]
    %v171 = vld [vmem:[%s1 + $0x440] sm:$0xff]
    %v172 = vld [vmem:[%s1 + $0x448] sm:$0xff]
    %v173 = vld [vmem:[%s1 + $0x450] sm:$0xff]
    %v174 = vld [vmem:[%s1 + $0x458] sm:$0xff]
    %v175 = vld [vmem:[%s1 + $0x460] sm:$0xff]
    %v176 = vld [vmem:[%s1 + $0x468] sm:$0xff]
    %v177 = vld [vmem:[%s1 + $0x470] sm:$0xff]
    %v178 = vld [vmem:[%s1 + $0x478] sm:$0xff]
    %v179 = vld [vmem:[%s1 + $0x480] sm:$0xff]
    %v180 = vld [vmem:[%s1 + $0x488] sm:$0xff]
    %v181 = vld [vmem:[%s1 + $0x490] sm:$0xff]
    %v182 = vld [vmem:[%s1 + $0x498] sm:$0xff]
    %v183 = vld [vmem:[%s1 + $0x4a0] sm:$0xff]
    %v184 = vld [vmem:[%s1 + $0x4a8] sm:$0xff]
    %v185 = vld [vmem:[%s1 + $0x4b0] sm:$0xff]
    %v186 = vld [vmem:[%s1 + $0x4b8] sm:$0xff]
    %v187 = vld [vmem:[%s1 + $0x4c0] sm:$0xff]
    %v188 = vld [vmem:[%s1 + $0x4c8] sm:$0xff]
    %v189 = vld [vmem:[%s1 + $0x4d0] sm:$0xff]
    %v190 = vld [vmem:[%s1 + $0x4d8] sm:$0xff]
    %v191 = vld [vmem:[%s1 + $0x4e0] sm:$0xff]
    %v192 = vld [vmem:[%s1 + $0x4e8] sm:$0xff]
    %v193 = vld [vmem:[%s1 + $0x4f0] sm:$0xff]
    %v194 = vld [vmem:[%s1 + $0x4f8] sm:$0xff]
    %v195 = vld [vmem:[%s1 + $0x500] sm:$0xff]
    %v196 = vld [vmem:[%s1 + $0x508] sm:$0xff]
    %v197 = vld [vmem:[%s1 + $0x510] sm:$0xff]
    %v198 = vld [vmem:[%s1 + $0x518] sm:$0xff]
    %v199 = vld [vmem:[%s1 + $0x520] sm:$0xff]
    %v200 = vld [vmem:[%s1 + $0x528] sm:$0xff]
    %v201 = vld [vmem:[%s1 + $0x530] sm:$0xff]
    %v202 = vld [vmem:[%s1 + $0x538] sm:$0xff]
    %v203 = vld [vmem:[%s1 + $0x540] sm:$0xff]
    %v204 = vld [vmem:[%s1 + $0x548] sm:$0xff]
    %v205 = vld [vmem:[%s1 + $0x550] sm:$0xff]
    %v206 = vld [vmem:[%s1 + $0x558] sm:$0xff]
    %v207 = vld [vmem:[%s1 + $0x560] sm:$0xff]
    %v208 = vld [vmem:[%s1 + $0x568] sm:$0xff]
    %v209 = vld [vmem:[%s1 + $0x570] sm:$0xff]
    %v210 = vld [vmem:[%s1 + $0x578] sm:$0xff]
    %v211 = vld [vmem:[%s1 + $0x580] sm:$0xff]
    %v212 = vld [vmem:[%s1 + $0x588] sm:$0xff]
    %v213 = vld [vmem:[%s1 + $0x590] sm:$0xff]
    %v214 = vld [vmem:[%s1 + $0x598] sm:$0xff]
    %v215 = vld [vmem:[%s1 + $0x5a0] sm:$0xff]
    %v216 = vld [vmem:[%s1 + $0x5a8] sm:$0xff]
    %v217 = vld [vmem:[%s1 + $0x5b0] sm:$0xff]
    %v218 = vld [vmem:[%s1 + $0x5b8] sm:$0xff]
    %v219 = vld [vmem:[%s1 + $0x5c0] sm:$0xff]
    %v220 = vld [vmem:[%s1 + $0x5c8] sm:$0xff]
    %v221 = vld [vmem:[%s1 + $0x5d0] sm:$0xff]
    %v222 = vld [vmem:[%s1 + $0x5d8] sm:$0xff]
    %v223 = vld [vmem:[%s1 + $0x5e0] sm:$0xff]
    %v224 = vld [vmem:[%s1 + $0x5e8] sm:$0xff]
    %v225 = vld [vmem:[%s1 + $0x5f0] sm:$0xff]
    %v226 = vld [vmem:[%s1 + $0x5f8] sm:$0xff]
    %v227 = vld [vmem:[%s1 + $0x600] sm:$0xff]
    %v228 = vld [vmem:[%s1 + $0x608] sm:$0xff]
    %v229 = vld [vmem:[%s1 + $0x610] sm:$0xff]
    %v230 = vld [vmem:[%s1 + $0x618] sm:$0xff]
    %v231 = vld [vmem:[%s1 + $0x620] sm:$0xff]
    %v232 = vld [vmem:[%s1 + $0x628] sm:$0xff]
    %v233 = vld [vmem:[%s1 + $0x630] sm:$0xff]
    %v234 = vld [vmem:[%s1 + $0x638] sm:$0xff]
    %v235 = vld [vmem:[%s1 + $0x640] sm:$0xff]
    %v236 = vld [vmem:[%s1 + $0x648] sm:$0xff]
    %v237 = vld [vmem:[%s1 + $0x650] sm:$0xff]
    %v238 = vld [vmem:[%s1 + $0x658] sm:$0xff]
    %v239 = vld [vmem:[%s1 + $0x660] sm:$0xff]
    %v240 = vld [vmem:[%s1 + $0x668] sm:$0xff]
    %v241 = vld [vmem:[%s1 + $0x670] sm:$0xff]
    %v242 = vld [vmem:[%s1 + $0x678] sm:$0xff]
    %v243 = vld [vmem:[%s1 + $0x680] sm:$0xff]
    %v244 = vld [vmem:[%s1 + $0x688] sm:$0xff]
    %v245 = vld [vmem:[%s1 + $0x690] sm:$0xff]
    %v246 = vld [vmem:[%s1 + $0x698] sm:$0xff]
    %v247 = vld [vmem:[%s1 + $0x6a0] sm:$0xff]
    %v248 = vld [vmem:[%s1 + $0x6a8] sm:$0xff]
    %v249 = vld [vmem:[%s1 + $0x6b0] sm:$0xff]
    %v250 = vld [vmem:[%s1 + $0x6b8] sm:$0xff]
    %v251 = vld [vmem:[%s1 + $0x6c0] sm:$0xff]
    %v252 = vld [vmem:[%s1 + $0x6c8] sm:$0xff]
    %v253 = vld [vmem:[%s1 + $0x6d0] sm:$0xff]
    %v254 = vld [vmem:[%s1 + $0x6d8] sm:$0xff]
    %v255 = vld [vmem:[%s1 + $0x6e0] sm:$0xff]
    %v256 = vld [vmem:[%s1 + $0x6e8] sm:$0xff]
    %v257 = vld [vmem:[%s1 + $0x6f0] sm:$0xff]
    %v258 = vld [vmem:[%s1 + $0x6f8] sm:$0xff]
    %v259 = vld [vmem:[%s1 + $0x700] sm:$0xff]
    %v260 = vld [vmem:[%s1 + $0x708] sm:$0xff]
    %v261 = vld [vmem:[%s1 + $0x710] sm:$0xff]
    %v262 = vld [vmem:[%s1 + $0x718] sm:$0xff]
    %v263 = vld [vmem:[%s1 + $0x720] sm:$0xff]
    %v264 = vld [vmem:[%s1 + $0x728] sm:$0xff]
    %v265 = vld [vmem:[%s1 + $0x730] sm:$0xff]
    %v266 = vld [vmem:[%s1 + $0x738] sm:$0xff]
    %v267 = vld [vmem:[%s1 + $0x740] sm:$0xff]
    %v268 = vld [vmem:[%s1 + $0x748] sm:$0xff]
    %v269 = vld [vmem:[%s1 + $0x750] sm:$0xff]
    %v270 = vld [vmem:[%s1 + $0x758] sm:$0xff]
    %v271 = vld [vmem:[%s1 + $0x760] sm:$0xff]
    %v272 = vld [vmem:[%s1 + $0x768] sm:$0xff]
    %v273 = vld [vmem:[%s1 + $0x770] sm:$0xff]
    %v274 = vld [vmem:[%s1 + $0x778] sm:$0xff]
    %v275 = vld [vmem:[%s1 + $0x780] sm:$0xff]
    %v276 = vld [vmem:[%s1 + $0x788] sm:$0xff]
    %v277 = vld [vmem:[%s1 + $0x790] sm:$0xff]
    %v278 = vld [vmem:[%s1 + $0x798] sm:$0xff]
    %v279 = vld [vmem:[%s1 + $0x7a0] sm:$0xff]
    %v280 = vld [vmem:[%s1 + $0x7a8] sm:$0xff]
    %v281 = vld [vmem:[%s1 + $0x7b0] sm:$0xff]
    %v282 = vld [vmem:[%s1 + $0x7b8] sm:$0xff]
    %v283 = vld [vmem:[%s1 + $0x7c0] sm:$0xff]
    %v284 = vld [vmem:[%s1 + $0x7c8] sm:$0xff]
    %v285 = vld [vmem:[%s1 + $0x7d0] sm:$0xff]
    %v286 = vld [vmem:[%s1 + $0x7d8] sm:$0xff]
    %v287 = vld [vmem:[%s1 + $0x7e0] sm:$0xff]
    %v288 = vld [vmem:[%s1 + $0x7e8] sm:$0xff]
    %v289 = vld [vmem:[%s1 + $0x7f0] sm:$0xff]
    %v290 = vld [vmem:[%s1 + $0x7f8] sm:$0xff]
    %v291 = vld [vmem:[%s1 + $0x800] sm:$0xff]
    %v292 = vld [vmem:[%s1 + $0x808] sm:$0xff]
    %v293 = vld [vmem:[%s1 + $0x810] sm:$0xff]
    %v294 = vld [vmem:[%s1 + $0x818] sm:$0xff]
    %v295 = vld [vmem:[%s1 + $0x820] sm:$0xff]
    %v296 = vld [vmem:[%s1 + $0x828] sm:$0xff]
    %v297 = vld [vmem:[%s1 + $0x830] sm:$0xff]
    %v298 = vld [vmem:[%s1 + $0x838] sm:$0xff]
    %v299 = vld [vmem:[%s1 + $0x840] sm:$0xff]
    %v300 = vld [vmem:[%s1 + $0x848] sm:$0xff]
    %v301 = vld [vmem:[%s1 + $0x850] sm:$0xff]
    %v302 = vld [vmem:[%s1 + $0x858] sm:$0xff]
    %v303 = vld [vmem:[%s1 + $0x860] sm:$0xff]
    %v304 = vld [vmem:[%s1 + $0x868] sm:$0xff]
    %v305 = vld [vmem:[%s1 + $0x870] sm:$0xff]
    %v306 = vld [vmem:[%s1 + $0x878] sm:$0xff]
    %v307 = vld [vmem:[%s1 + $0x880] sm:$0xff]
    %v308 = vld [vmem:[%s1 + $0x888] sm:$0xff]
    %v309 = vld [vmem:[%s1 + $0x890] sm:$0xff]
    %v310 = vld [vmem:[%s1 + $0x898] sm:$0xff]
    %v311 = vld [vmem:[%s1 + $0x8a0] sm:$0xff]
    %v312 = vld [vmem:[%s1 + $0x8a8] sm:$0xff]
    %v313 = vld [vmem:[%s1 + $0x8b0] sm:$0xff]
    %v314 = vld [vmem:[%s1 + $0x8b8] sm:$0xff]
    %v315 = vld [vmem:[%s1 + $0x8c0] sm:$0xff]
    %v316 = vld [vmem:[%s1 + $0x8c8] sm:$0xff]
    %v317 = vld [vmem:[%s1 + $0x8d0] sm:$0xff]
    %v318 = vld [vmem:[%s1 + $0x8d8] sm:$0xff]
    %v319 = vld [vmem:[%s1 + $0x8e0] sm:$0xff]
    %v320 = vld [vmem:[%s1 + $0x8e8] sm:$0xff]
    %v321 = vld [vmem:[%s1 + $0x8f0] sm:$0xff]
    %v322 = vld [vmem:[%s1 + $0x8f8] sm:$0xff]
    %v323 = vld [vmem:[%s1 + $0x900] sm:$0xff]
    %v324 = vld [vmem:[%s1 + $0x908] sm:$0xff]
    %v325 = vld [vmem:[%s1 + $0x910] sm:$0xff]
    %v326 = vld [vmem:[%s1 + $0x918] sm:$0xff]
    %v327 = vld [vmem:[%s1 + $0x920] sm:$0xff]
    %v328 = vld [vmem:[%s1 + $0x928] sm:$0xff]
    %v329 = vld [vmem:[%s1 + $0x930] sm:$0xff]
    %v330 = vld [vmem:[%s1 + $0x938] sm:$0xff]
    %v331 = vld [vmem:[%s1 + $0x940] sm:$0xff]
    %v332 = vld [vmem:[%s1 + $0x948] sm:$0xff]
    %v333 = vld [vmem:[%s1 + $0x950] sm:$0xff]
    %v334 = vld [vmem:[%s1 + $0x958] sm:$0xff]
    %v335 = vld [vmem:[%s1 + $0x960] sm:$0xff]
    %v336 = vld [vmem:[%s1 + $0x968] sm:$0xff]
    %v337 = vld [vmem:[%s1 + $0x970] sm:$0xff]
    %v338 = vld [vmem:[%s1 + $0x978] sm:$0xff]
    %v339 = vld [vmem:[%s1 + $0x980] sm:$0xff]
    %v340 = vld [vmem:[%s1 + $0x988] sm:$0xff]
    %v341 = vld [vmem:[%s1 + $0x990] sm:$0xff]
    %v342 = vld [vmem:[%s1 + $0x998] sm:$0xff]
    %v343 = vld [vmem:[%s1 + $0x9a0] sm:$0xff]
    %v344 = vld [vmem:[%s1 + $0x9a8] sm:$0xff]
    %v345 = vld [vmem:[%s1 + $0x9b0] sm:$0xff]
    %v346 = vld [vmem:[%s1 + $0x9b8] sm:$0xff]
    %v347 = vld [vmem:[%s1 + $0x9c0] sm:$0xff]
    %v348 = vld [vmem:[%s1 + $0x9c8] sm:$0xff]
    %v349 = vld [vmem:[%s1 + $0x9d0] sm:$0xff]
    %v350 = vld [vmem:[%s1 + $0x9d8] sm:$0xff]
    %v351 = vld [vmem:[%s1 + $0x9e0] sm:$0xff]
    %v352 = vld [vmem:[%s1 + $0x9e8] sm:$0xff]
    %v353 = vld [vmem:[%s1 + $0x9f0] sm:$0xff]
    %v354 = vld [vmem:[%s1 + $0x9f8] sm:$0xff]
    %v355 = vld [vmem:[%s1 + $0xa00] sm:$0xff]
    %v356 = vld [vmem:[%s1 + $0xa08] sm:$0xff]
    %v357 = vld [vmem:[%s1 + $0xa10] sm:$0xff]
    %v358 = vld [vmem:[%s1 + $0xa18] sm:$0xff]
    %v359 = vld [vmem:[%s1 + $0xa20] sm:$0xff]
    %v360 = vld [vmem:[%s1 + $0xa28] sm:$0xff]
    %v361 = vld [vmem:[%s1 + $0xa30] sm:$0xff]
    %v362 = vld [vmem:[%s1 + $0xa38] sm:$0xff]
    %v363 = vld [vmem:[%s1 + $0xa40] sm:$0xff]
    %v364 = vld [vmem:[%s1 + $0xa48] sm:$0xff]
    %v365 = vld [vmem:[%s1 + $0xa50] sm:$0xff]
    %v366 = vld [vmem:[%s1 + $0xa58] sm:$0xff]
    %v367 = vld [vmem:[%s1 + $0xa60] sm:$0xff]
    %v368 = vld [vmem:[%s1 + $0xa68] sm:$0xff]
    %v369 = vld [vmem:[%s1 + $0xa70] sm:$0xff]
    %v370 = vld [vmem:[%s1 + $0xa78] sm:$0xff]
    %v371 = vld [vmem:[%s1 + $0xa80] sm:$0xff]
    %v372 = vld [vmem:[%s1 + $0xa88] sm:$0xff]
    %v373 = vld [vmem:[%s1 + $0xa90] sm:$0xff]
    %v374 = vld [vmem:[%s1 + $0xa98] sm:$0xff]
    %v375 = vld [vmem:[%s1 + $0xaa0] sm:$0xff]
    %v376 = vld [vmem:[%s1 + $0xaa8] sm:$0xff]
    %v377 = vld [vmem:[%s1 + $0xab0] sm:$0xff]
    %v378 = vld [vmem:[%s1 + $0xab8] sm:$0xff]
    %v379 = vld [vmem:[%s1 + $0xac0] sm:$0xff]
    %v380 = vld [vmem:[%s1 + $0xac8] sm:$0xff]
    %v381 = vld [vmem:[%s1 + $0xad0] sm:$0xff]
    %v382 = vld [vmem:[%s1 + $0xad8] sm:$0xff]
    %v383 = vld [vmem:[%s1 + $0xae0] sm:$0xff]
    %v384 = vld [vmem:[%s1 + $0xae8] sm:$0xff]
    %v385 = vld [vmem:[%s1 + $0xaf0] sm:$0xff]
    %v386 = vld [vmem:[%s1 + $0xaf8] sm:$0xff]
    %v387 = vld [vmem:[%s1 + $0xb00] sm:$0xff]
    %v388 = vld [vmem:[%s1 + $0xb08] sm:$0xff]
    %v389 = vld [vmem:[%s1 + $0xb10] sm:$0xff]
    %v390 = vld [vmem:[%s1 + $0xb18] sm:$0xff]
    %v391 = vld [vmem:[%s1 + $0xb20] sm:$0xff]
    %v392 = vld [vmem:[%s1 + $0xb28] sm:$0xff]
    %v393 = vld [vmem:[%s1 + $0xb30] sm:$0xff]
    %v394 = vld [vmem:[%s1 + $0xb38] sm:$0xff]
    %v395 = vld [vmem:[%s1 + $0xb40] sm:$0xff]
    %v396 = vld [vmem:[%s1 + $0xb48] sm:$0xff]
    %v397 = vld [vmem:[%s1 + $0xb50] sm:$0xff]
    %v398 = vld [vmem:[%s1 + $0xb58] sm:$0xff]
    %v399 = vld [vmem:[%s1 + $0xb60] sm:$0xff]
    %v400 = vld [vmem:[%s1 + $0xb68] sm:$0xff]
    %v401 = vld [vmem:[%s1 + $0xb70] sm:$0xff]
    %v402 = vld [vmem:[%s1 + $0xb78] sm:$0xff]
    %v403 = vld [vmem:[%s1 + $0xb80] sm:$0xff]
    %v404 = vld [vmem:[%s1 + $0xb88] sm:$0xff]
    %v405 = vld [vmem:[%s1 + $0xb90] sm:$0xff]
    %v406 = vld [vmem:[%s1 + $0xb98] sm:$0xff]
    %v407 = vld [vmem:[%s1 + $0xba0] sm:$0xff]
    %v408 = vld [vmem:[%s1 + $0xba8] sm:$0xff]
    %v409 = vld [vmem:[%s1 + $0xbb0] sm:$0xff]
    %v410 = vld [vmem:[%s1 + $0xbb8] sm:$0xff]
    %v411 = vld [vmem:[%s1 + $0xbc0] sm:$0xff]
    %v412 = vld [vmem:[%s1 + $0xbc8] sm:$0xff]
    %v413 = vld [vmem:[%s1 + $0xbd0] sm:$0xff]
    %v414 = vld [vmem:[%s1 + $0xbd8] sm:$0xff]
    %v415 = vld [vmem:[%s1 + $0xbe0] sm:$0xff]
    %v416 = vld [vmem:[%s1 + $0xbe8] sm:$0xff]
    %v417 = vld [vmem:[%s1 + $0xbf0] sm:$0xff]
    %v418 = vld [vmem:[%s1 + $0xbf8] sm:$0xff]
    %v419 = vld [vmem:[%s1 + $0xc00] sm:$0xff]
    %v420 = vld [vmem:[%s1 + $0xc08] sm:$0xff]
    %v421 = vld [vmem:[%s1 + $0xc10] sm:$0xff]
    %v422 = vld [vmem:[%s1 + $0xc18] sm:$0xff]
    %v423 = vld [vmem:[%s1 + $0xc20] sm:$0xff]
    %v424 = vld [vmem:[%s1 + $0xc28] sm:$0xff]
    %v425 = vld [vmem:[%s1 + $0xc30] sm:$0xff]
    %v426 = vld [vmem:[%s1 + $0xc38] sm:$0xff]
    %v427 = vld [vmem:[%s1 + $0xc40] sm:$0xff]
    %v428 = vld [vmem:[%s1 + $0xc48] sm:$0xff]
    %v429 = vld [vmem:[%s1 + $0xc50] sm:$0xff]
    %v430 = vld [vmem:[%s1 + $0xc58] sm:$0xff]
    %v431 = vld [vmem:[%s1 + $0xc60] sm:$0xff]
    %v432 = vld [vmem:[%s1 + $0xc68] sm:$0xff]
    %v433 = vld [vmem:[%s1 + $0xc70] sm:$0xff]
    %v434 = vld [vmem:[%s1 + $0xc78] sm:$0xff]
    %v435 = vld [vmem:[%s1 + $0xc80] sm:$0xff]
    %v436 = vld [vmem:[%s1 + $0xc88] sm:$0xff]
    %v437 = vld [vmem:[%s1 + $0xc90] sm:$0xff]
    %v438 = vld [vmem:[%s1 + $0xc98] sm:$0xff]
    %v439 = vld [vmem:[%s1 + $0xca0] sm:$0xff]
    %v440 = vld [vmem:[%s1 + $0xca8] sm:$0xff]
    %v441 = vld [vmem:[%s1 + $0xcb0] sm:$0xff]
    %v442 = vld [vmem:[%s1 + $0xcb8] sm:$0xff]
    %v443 = vld [vmem:[%s1 + $0xcc0] sm:$0xff]
    %v444 = vld [vmem:[%s1 + $0xcc8] sm:$0xff]
    %v445 = vld [vmem:[%s1 + $0xcd0] sm:$0xff]
    %v446 = vld [vmem:[%s1 + $0xcd8] sm:$0xff]
    %v447 = vld [vmem:[%s1 + $0xce0] sm:$0xff]
    %v448 = vld [vmem:[%s1 + $0xce8] sm:$0xff]
    %v449 = vld [vmem:[%s1 + $0xcf0] sm:$0xff]
    %v450 = vld [vmem:[%s1 + $0xcf8] sm:$0xff]
    %v451 = vld [vmem:[%s1 + $0xd00] sm:$0xff]
    %v452 = vld [vmem:[%s1 + $0xd08] sm:$0xff]
    %v453 = vld [vmem:[%s1 + $0xd10] sm:$0xff]
    %v454 = vld [vmem:[%s1 + $0xd18] sm:$0xff]
    %v455 = vld [vmem:[%s1 + $0xd20] sm:$0xff]
    %v456 = vld [vmem:[%s1 + $0xd28] sm:$0xff]
    %v457 = vld [vmem:[%s1 + $0xd30] sm:$0xff]
    %v458 = vld [vmem:[%s1 + $0xd38] sm:$0xff]
    %v459 = vld [vmem:[%s1 + $0xd40] sm:$0xff]
    %v460 = vld [vmem:[%s1 + $0xd48] sm:$0xff]
    %v461 = vld [vmem:[%s1 + $0xd50] sm:$0xff]
    %v462 = vld [vmem:[%s1 + $0xd58] sm:$0xff]
    %v463 = vld [vmem:[%s1 + $0xd60] sm:$0xff]
    %v464 = vld [vmem:[%s1 + $0xd68] sm:$0xff]
    %v465 = vld [vmem:[%s1 + $0xd70] sm:$0xff]
    %v466 = vld [vmem:[%s1 + $0xd78] sm:$0xff]
    %v467 = vld [vmem:[%s1 + $0xd80] sm:$0xff]
    %v468 = vld [vmem:[%s1 + $0xd88] sm:$0xff]
    %v469 = vld [vmem:[%s1 + $0xd90] sm:$0xff]
    %v470 = vld [vmem:[%s1 + $0xd98] sm:$0xff]
    %v471 = vld [vmem:[%s1 + $0xda0] sm:$0xff]
    %v472 = vld [vmem:[%s1 + $0xda8] sm:$0xff]
    %v473 = vld [vmem:[%s1 + $0xdb0] sm:$0xff]
    %v474 = vld [vmem:[%s1 + $0xdb8] sm:$0xff]
    %v475 = vld [vmem:[%s1 + $0xdc0] sm:$0xff]
    %v476 = vld [vmem:[%s1 + $0xdc8] sm:$0xff]
    %v477 = vld [vmem:[%s1 + $0xdd0] sm:$0xff]
    %v478 = vld [vmem:[%s1 + $0xdd8] sm:$0xff]
    %v479 = vld [vmem:[%s1 + $0xde0] sm:$0xff]
    %v480 = vld [vmem:[%s1 + $0xde8] sm:$0xff]
    %v481 = vld [vmem:[%s1 + $0xdf0] sm:$0xff]
    %v482 = vld [vmem:[%s1 + $0xdf8] sm:$0xff]
    %v483 = vld [vmem:[%s1 + $0xe00] sm:$0xff]
    %v484 = vld [vmem:[%s1 + $0xe08] sm:$0xff]
    %v485 = vld [vmem:[%s1 + $0xe10] sm:$0xff]
    %v486 = vld [vmem:[%s1 + $0xe18] sm:$0xff]
    %v487 = vld [vmem:[%s1 + $0xe20] sm:$0xff]
    %v488 = vld [vmem:[%s1 + $0xe28] sm:$0xff]
    %v489 = vld [vmem:[%s1 + $0xe30] sm:$0xff]
    %v490 = vld [vmem:[%s1 + $0xe38] sm:$0xff]
    %v491 = vld [vmem:[%s1 + $0xe40] sm:$0xff]
    %v492 = vld [vmem:[%s1 + $0xe48] sm:$0xff]
    %v493 = vld [vmem:[%s1 + $0xe50] sm:$0xff]
    %v494 = vld [vmem:[%s1 + $0xe58] sm:$0xff]
    %v495 = vld [vmem:[%s1 + $0xe60] sm:$0xff]
    %v496 = vld [vmem:[%s1 + $0xe68] sm:$0xff]
    %v497 = vld [vmem:[%s1 + $0xe70] sm:$0xff]
    %v498 = vld [vmem:[%s1 + $0xe78] sm:$0xff]
    %v499 = vld [vmem:[%s1 + $0xe80] sm:$0xff]
    %v500 = vld [vmem:[%s1 + $0xe88] sm:$0xff]
    %v501 = vld [vmem:[%s1 + $0xe90] sm:$0xff]
    %v502 = vld [vmem:[%s1 + $0xe98] sm:$0xff]
    %v503 = vld [vmem:[%s1 + $0xea0] sm:$0xff]
    %v504 = vld [vmem:[%s1 + $0xea8] sm:$0xff]
    %v505 = vld [vmem:[%s1 + $0xeb0] sm:$0xff]
    %v506 = vld [vmem:[%s1 + $0xeb8] sm:$0xff]
    %v507 = vld [vmem:[%s1 + $0xec0] sm:$0xff]
    %v508 = vld [vmem:[%s1 + $0xec8] sm:$0xff]
    %v509 = vld [vmem:[%s1 + $0xed0] sm:$0xff]
    %v510 = vld [vmem:[%s1 + $0xed8] sm:$0xff]
    %v511 = vld [vmem:[%s1 + $0xee0] sm:$0xff]
    %v512 = vld [vmem:[%s1 + $0xee8] sm:$0xff]
    %v513 = vld [vmem:[%s1 + $0xef0] sm:$0xff]
    %v514 = vld [vmem:[%s1 + $0xef8] sm:$0xff]
    %v515 = vld [vmem:[%s1 + $0xf00] sm:$0xff]
    %v516 = vld [vmem:[%s1 + $0xf08] sm:$0xff]
    %v517 = vld [vmem:[%s1 + $0xf10] sm:$0xff]
    %v518 = vld [vmem:[%s1 + $0xf18] sm:$0xff]
    %v519 = vld [vmem:[%s1 + $0xf20] sm:$0xff]
    %v520 = vld [vmem:[%s1 + $0xf28] sm:$0xff]
    %v521 = vld [vmem:[%s1 + $0xf30] sm:$0xff]
    %v522 = vld [vmem:[%s1 + $0xf38] sm:$0xff]
    %v523 = vld [vmem:[%s1 + $0xf40] sm:$0xff]
    %v524 = vld [vmem:[%s1 + $0xf48] sm:$0xff]
    %v525 = vld [vmem:[%s1 + $0xf50] sm:$0xff]
    %v526 = vld [vmem:[%s1 + $0xf58] sm:$0xff]
    %v527 = vld [vmem:[%s1 + $0xf60] sm:$0xff]
    %v528 = vld [vmem:[%s1 + $0xf68] sm:$0xff]
    %v529 = vld [vmem:[%s1 + $0xf70] sm:$0xff]
    %v530 = vld [vmem:[%s1 + $0xf78] sm:$0xff]
    %v531 = vld [vmem:[%s1 + $0xf80] sm:$0xff]
    %v532 = vld [vmem:[%s1 + $0xf88] sm:$0xff]
    %v533 = vld [vmem:[%s1 + $0xf90] sm:$0xff]
    %v534 = vld [vmem:[%s1 + $0xf98] sm:$0xff]
    %v535 = vld [vmem:[%s1 + $0xfa0] sm:$0xff]
    %v536 = vld [vmem:[%s1 + $0xfa8] sm:$0xff]
    %v537 = vld [vmem:[%s1 + $0xfb0] sm:$0xff]
    %v538 = vld [vmem:[%s1 + $0xfb8] sm:$0xff]
    %v539 = vld [vmem:[%s1 + $0xfc0] sm:$0xff]
    %v540 = vld [vmem:[%s1 + $0xfc8] sm:$0xff]
    %v541 = vld [vmem:[%s1 + $0xfd0] sm:$0xff]
    %v542 = vld [vmem:[%s1 + $0xfd8] sm:$0xff]
    %v543 = vld [vmem:[%s1 + $0xfe0] sm:$0xff]
    %v544 = vld [vmem:[%s1 + $0xfe8] sm:$0xff]
    %v545 = vld [vmem:[%s1 + $0xff0] sm:$0xff]
    %v546 = vld [vmem:[%s1 + $0xff8] sm:$0xff]
    %v547 = vld [vmem:[%s2] sm:$0xff]
    %v549 = vperm.slane %v547, 0
    %v550 = vperm.slane %v547, 1
    %v551 = vperm.slane %v547, 2
    %v552 = vperm.slane %v547, 3
    %v553 = vperm.slane %v547, 4
    %v554 = vperm.slane %v547, 5
    %v555 = vperm.slane %v547, 6
    %v556 = vperm.slane %v547, 7
    %566 = vst [vmem:[#allocation1] ss:$9 sm:$0xff] %v34
    %v567 = vld [vmem:[#allocation1] sm:$0xff]
    %v568 = vld [vmem:[#allocation1 + $0x9] sm:$0xff]
    %v569 = vld [vmem:[#allocation1 + $0x12] sm:$0xff]
    %v570 = vld [vmem:[#allocation1 + $0x1b] sm:$0xff]
    %v571 = vld [vmem:[#allocation1 + $0x24] sm:$0xff]
    %v572 = vld [vmem:[#allocation1 + $0x2d] sm:$0xff]
    %v573 = vld [vmem:[#allocation1 + $0x36] sm:$0xff]
    %v574 = vld [vmem:[#allocation1 + $0x3f] sm:$0xff]
    %v1095 = vunpack.c.l.b16 %v35
    %v1096 = vunpack.c.h.b16 %v35
    %v1097 = vunpack.c.l.b16 %v36
    %v1098 = vunpack.c.h.b16 %v36
    %v1099 = vunpack.c.l.b16 %v37
    %v1100 = vunpack.c.h.b16 %v37
    %v1101 = vunpack.c.l.b16 %v38
    %v1102 = vunpack.c.h.b16 %v38
    %v1103 = vunpack.c.l.b16 %v39
    %v1104 = vunpack.c.h.b16 %v39
    %v1105 = vunpack.c.l.b16 %v40
    %v1106 = vunpack.c.h.b16 %v40
    %v1107 = vunpack.c.l.b16 %v41
    %v1108 = vunpack.c.h.b16 %v41
    %v1109 = vunpack.c.l.b16 %v42
    %v1110 = vunpack.c.h.b16 %v42
    %v1111 = vunpack.c.l.b16 %v43
    %v1112 = vunpack.c.h.b16 %v43
    %v1113 = vunpack.c.l.b16 %v44
    %v1114 = vunpack.c.h.b16 %v44
    %v1115 = vunpack.c.l.b16 %v45
    %v1116 = vunpack.c.h.b16 %v45
    %v1117 = vunpack.c.l.b16 %v46
    %v1118 = vunpack.c.h.b16 %v46
    %v1119 = vunpack.c.l.b16 %v47
    %v1120 = vunpack.c.h.b16 %v47
    %v1121 = vunpack.c.l.b16 %v48
    %v1122 = vunpack.c.h.b16 %v48
    %v1123 = vunpack.c.l.b16 %v49
    %v1124 = vunpack.c.h.b16 %v49
    %v1125 = vunpack.c.l.b16 %v50
    %v1126 = vunpack.c.h.b16 %v50
    %v1127 = vunpack.c.l.b16 %v51
    %v1128 = vunpack.c.h.b16 %v51
    %v1129 = vunpack.c.l.b16 %v52
    %v1130 = vunpack.c.h.b16 %v52
    %v1131 = vunpack.c.l.b16 %v53
    %v1132 = vunpack.c.h.b16 %v53
    %v1133 = vunpack.c.l.b16 %v54
    %v1134 = vunpack.c.h.b16 %v54
    %v1135 = vunpack.c.l.b16 %v55
    %v1136 = vunpack.c.h.b16 %v55
    %v1137 = vunpack.c.l.b16 %v56
    %v1138 = vunpack.c.h.b16 %v56
    %v1139 = vunpack.c.l.b16 %v57
    %v1140 = vunpack.c.h.b16 %v57
    %v1141 = vunpack.c.l.b16 %v58
    %v1142 = vunpack.c.h.b16 %v58
    %v1143 = vunpack.c.l.b16 %v59
    %v1144 = vunpack.c.h.b16 %v59
    %v1145 = vunpack.c.l.b16 %v60
    %v1146 = vunpack.c.h.b16 %v60
    %v1147 = vunpack.c.l.b16 %v61
    %v1148 = vunpack.c.h.b16 %v61
    %v1149 = vunpack.c.l.b16 %v62
    %v1150 = vunpack.c.h.b16 %v62
    %v1151 = vunpack.c.l.b16 %v63
    %v1152 = vunpack.c.h.b16 %v63
    %v1153 = vunpack.c.l.b16 %v64
    %v1154 = vunpack.c.h.b16 %v64
    %v1155 = vunpack.c.l.b16 %v65
    %v1156 = vunpack.c.h.b16 %v65
    %v1157 = vunpack.c.l.b16 %v66
    %v1158 = vunpack.c.h.b16 %v66
    %v1159 = vunpack.c.l.b16 %v67
    %v1160 = vunpack.c.h.b16 %v67
    %v1161 = vunpack.c.l.b16 %v68
    %v1162 = vunpack.c.h.b16 %v68
    %v1163 = vunpack.c.l.b16 %v69
    %v1164 = vunpack.c.h.b16 %v69
    %v1165 = vunpack.c.l.b16 %v70
    %v1166 = vunpack.c.h.b16 %v70
    %v1167 = vunpack.c.l.b16 %v71
    %v1168 = vunpack.c.h.b16 %v71
    %v1169 = vunpack.c.l.b16 %v72
    %v1170 = vunpack.c.h.b16 %v72
    %v1171 = vunpack.c.l.b16 %v73
    %v1172 = vunpack.c.h.b16 %v73
    %v1173 = vunpack.c.l.b16 %v74
    %v1174 = vunpack.c.h.b16 %v74
    %v1175 = vunpack.c.l.b16 %v75
    %v1176 = vunpack.c.h.b16 %v75
    %v1177 = vunpack.c.l.b16 %v76
    %v1178 = vunpack.c.h.b16 %v76
    %v1179 = vunpack.c.l.b16 %v77
    %v1180 = vunpack.c.h.b16 %v77
    %v1181 = vunpack.c.l.b16 %v78
    %v1182 = vunpack.c.h.b16 %v78
    %v1183 = vunpack.c.l.b16 %v79
    %v1184 = vunpack.c.h.b16 %v79
    %v1185 = vunpack.c.l.b16 %v80
    %v1186 = vunpack.c.h.b16 %v80
    %v1187 = vunpack.c.l.b16 %v81
    %v1188 = vunpack.c.h.b16 %v81
    %v1189 = vunpack.c.l.b16 %v82
    %v1190 = vunpack.c.h.b16 %v82
    %v1191 = vunpack.c.l.b16 %v83
    %v1192 = vunpack.c.h.b16 %v83
    %v1193 = vunpack.c.l.b16 %v84
    %v1194 = vunpack.c.h.b16 %v84
    %v1195 = vunpack.c.l.b16 %v85
    %v1196 = vunpack.c.h.b16 %v85
    %v1197 = vunpack.c.l.b16 %v86
    %v1198 = vunpack.c.h.b16 %v86
    %v1199 = vunpack.c.l.b16 %v87
    %v1200 = vunpack.c.h.b16 %v87
    %v1201 = vunpack.c.l.b16 %v88
    %v1202 = vunpack.c.h.b16 %v88
    %v1203 = vunpack.c.l.b16 %v89
    %v1204 = vunpack.c.h.b16 %v89
    %v1205 = vunpack.c.l.b16 %v90
    %v1206 = vunpack.c.h.b16 %v90
    %v1207 = vunpack.c.l.b16 %v91
    %v1208 = vunpack.c.h.b16 %v91
    %v1209 = vunpack.c.l.b16 %v92
    %v1210 = vunpack.c.h.b16 %v92
    %v1211 = vunpack.c.l.b16 %v93
    %v1212 = vunpack.c.h.b16 %v93
    %v1213 = vunpack.c.l.b16 %v94
    %v1214 = vunpack.c.h.b16 %v94
    %v1215 = vunpack.c.l.b16 %v95
    %v1216 = vunpack.c.h.b16 %v95
    %v1217 = vunpack.c.l.b16 %v96
    %v1218 = vunpack.c.h.b16 %v96
    %v1219 = vunpack.c.l.b16 %v97
    %v1220 = vunpack.c.h.b16 %v97
    %v1221 = vunpack.c.l.b16 %v98
    %v1222 = vunpack.c.h.b16 %v98
    %v1223 = vunpack.c.l.b16 %v99
    %v1224 = vunpack.c.h.b16 %v99
    %v1225 = vunpack.c.l.b16 %v100
    %v1226 = vunpack.c.h.b16 %v100
    %v1227 = vunpack.c.l.b16 %v101
    %v1228 = vunpack.c.h.b16 %v101
    %v1229 = vunpack.c.l.b16 %v102
    %v1230 = vunpack.c.h.b16 %v102
    %v1231 = vunpack.c.l.b16 %v103
    %v1232 = vunpack.c.h.b16 %v103
    %v1233 = vunpack.c.l.b16 %v104
    %v1234 = vunpack.c.h.b16 %v104
    %v1235 = vunpack.c.l.b16 %v105
    %v1236 = vunpack.c.h.b16 %v105
    %v1237 = vunpack.c.l.b16 %v106
    %v1238 = vunpack.c.h.b16 %v106
    %v1239 = vunpack.c.l.b16 %v107
    %v1240 = vunpack.c.h.b16 %v107
    %v1241 = vunpack.c.l.b16 %v108
    %v1242 = vunpack.c.h.b16 %v108
    %v1243 = vunpack.c.l.b16 %v109
    %v1244 = vunpack.c.h.b16 %v109
    %v1245 = vunpack.c.l.b16 %v110
    %v1246 = vunpack.c.h.b16 %v110
    %v1247 = vunpack.c.l.b16 %v111
    %v1248 = vunpack.c.h.b16 %v111
    %v1249 = vunpack.c.l.b16 %v112
    %v1250 = vunpack.c.h.b16 %v112
    %v1251 = vunpack.c.l.b16 %v113
    %v1252 = vunpack.c.h.b16 %v113
    %v1253 = vunpack.c.l.b16 %v114
    %v1254 = vunpack.c.h.b16 %v114
    %v1255 = vunpack.c.l.b16 %v115
    %v1256 = vunpack.c.h.b16 %v115
    %v1257 = vunpack.c.l.b16 %v116
    %v1258 = vunpack.c.h.b16 %v116
    %v1259 = vunpack.c.l.b16 %v117
    %v1260 = vunpack.c.h.b16 %v117
    %v1261 = vunpack.c.l.b16 %v118
    %v1262 = vunpack.c.h.b16 %v118
    %v1263 = vunpack.c.l.b16 %v119
    %v1264 = vunpack.c.h.b16 %v119
    %v1265 = vunpack.c.l.b16 %v120
    %v1266 = vunpack.c.h.b16 %v120
    %v1267 = vunpack.c.l.b16 %v121
    %v1268 = vunpack.c.h.b16 %v121
    %v1269 = vunpack.c.l.b16 %v122
    %v1270 = vunpack.c.h.b16 %v122
    %v1271 = vunpack.c.l.b16 %v123
    %v1272 = vunpack.c.h.b16 %v123
    %v1273 = vunpack.c.l.b16 %v124
    %v1274 = vunpack.c.h.b16 %v124
    %v1275 = vunpack.c.l.b16 %v125
    %v1276 = vunpack.c.h.b16 %v125
    %v1277 = vunpack.c.l.b16 %v126
    %v1278 = vunpack.c.h.b16 %v126
    %v1279 = vunpack.c.l.b16 %v127
    %v1280 = vunpack.c.h.b16 %v127
    %v1281 = vunpack.c.l.b16 %v128
    %v1282 = vunpack.c.h.b16 %v128
    %v1283 = vunpack.c.l.b16 %v129
    %v1284 = vunpack.c.h.b16 %v129
    %v1285 = vunpack.c.l.b16 %v130
    %v1286 = vunpack.c.h.b16 %v130
    %v1287 = vunpack.c.l.b16 %v131
    %v1288 = vunpack.c.h.b16 %v131
    %v1289 = vunpack.c.l.b16 %v132
    %v1290 = vunpack.c.h.b16 %v132
    %v1291 = vunpack.c.l.b16 %v133
    %v1292 = vunpack.c.h.b16 %v133
    %v1293 = vunpack.c.l.b16 %v134
    %v1294 = vunpack.c.h.b16 %v134
    %v1295 = vunpack.c.l.b16 %v135
    %v1296 = vunpack.c.h.b16 %v135
    %v1297 = vunpack.c.l.b16 %v136
    %v1298 = vunpack.c.h.b16 %v136
    %v1299 = vunpack.c.l.b16 %v137
    %v1300 = vunpack.c.h.b16 %v137
    %v1301 = vunpack.c.l.b16 %v138
    %v1302 = vunpack.c.h.b16 %v138
    %v1303 = vunpack.c.l.b16 %v139
    %v1304 = vunpack.c.h.b16 %v139
    %v1305 = vunpack.c.l.b16 %v140
    %v1306 = vunpack.c.h.b16 %v140
    %v1307 = vunpack.c.l.b16 %v141
    %v1308 = vunpack.c.h.b16 %v141
    %v1309 = vunpack.c.l.b16 %v142
    %v1310 = vunpack.c.h.b16 %v142
    %v1311 = vunpack.c.l.b16 %v143
    %v1312 = vunpack.c.h.b16 %v143
    %v1313 = vunpack.c.l.b16 %v144
    %v1314 = vunpack.c.h.b16 %v144
    %v1315 = vunpack.c.l.b16 %v145
    %v1316 = vunpack.c.h.b16 %v145
    %v1317 = vunpack.c.l.b16 %v146
    %v1318 = vunpack.c.h.b16 %v146
    %v1319 = vunpack.c.l.b16 %v147
    %v1320 = vunpack.c.h.b16 %v147
    %v1321 = vunpack.c.l.b16 %v148
    %v1322 = vunpack.c.h.b16 %v148
    %v1323 = vunpack.c.l.b16 %v149
    %v1324 = vunpack.c.h.b16 %v149
    %v1325 = vunpack.c.l.b16 %v150
    %v1326 = vunpack.c.h.b16 %v150
    %v1327 = vunpack.c.l.b16 %v151
    %v1328 = vunpack.c.h.b16 %v151
    %v1329 = vunpack.c.l.b16 %v152
    %v1330 = vunpack.c.h.b16 %v152
    %v1331 = vunpack.c.l.b16 %v153
    %v1332 = vunpack.c.h.b16 %v153
    %v1333 = vunpack.c.l.b16 %v154
    %v1334 = vunpack.c.h.b16 %v154
    %v1335 = vunpack.c.l.b16 %v155
    %v1336 = vunpack.c.h.b16 %v155
    %v1337 = vunpack.c.l.b16 %v156
    %v1338 = vunpack.c.h.b16 %v156
    %v1339 = vunpack.c.l.b16 %v157
    %v1340 = vunpack.c.h.b16 %v157
    %v1341 = vunpack.c.l.b16 %v158
    %v1342 = vunpack.c.h.b16 %v158
    %v1343 = vunpack.c.l.b16 %v159
    %v1344 = vunpack.c.h.b16 %v159
    %v1345 = vunpack.c.l.b16 %v160
    %v1346 = vunpack.c.h.b16 %v160
    %v1347 = vunpack.c.l.b16 %v161
    %v1348 = vunpack.c.h.b16 %v161
    %v1349 = vunpack.c.l.b16 %v162
    %v1350 = vunpack.c.h.b16 %v162
    %v1351 = vunpack.c.l.b16 %v163
    %v1352 = vunpack.c.h.b16 %v163
    %v1353 = vunpack.c.l.b16 %v164
    %v1354 = vunpack.c.h.b16 %v164
    %v1355 = vunpack.c.l.b16 %v165
    %v1356 = vunpack.c.h.b16 %v165
    %v1357 = vunpack.c.l.b16 %v166
    %v1358 = vunpack.c.h.b16 %v166
    %v1359 = vunpack.c.l.b16 %v167
    %v1360 = vunpack.c.h.b16 %v167
    %v1361 = vunpack.c.l.b16 %v168
    %v1362 = vunpack.c.h.b16 %v168
    %v1363 = vunpack.c.l.b16 %v169
    %v1364 = vunpack.c.h.b16 %v169
    %v1365 = vunpack.c.l.b16 %v170
    %v1366 = vunpack.c.h.b16 %v170
    %v1367 = vunpack.c.l.b16 %v171
    %v1368 = vunpack.c.h.b16 %v171
    %v1369 = vunpack.c.l.b16 %v172
    %v1370 = vunpack.c.h.b16 %v172
    %v1371 = vunpack.c.l.b16 %v173
    %v1372 = vunpack.c.h.b16 %v173
    %v1373 = vunpack.c.l.b16 %v174
    %v1374 = vunpack.c.h.b16 %v174
    %v1375 = vunpack.c.l.b16 %v175
    %v1376 = vunpack.c.h.b16 %v175
    %v1377 = vunpack.c.l.b16 %v176
    %v1378 = vunpack.c.h.b16 %v176
    %v1379 = vunpack.c.l.b16 %v177
    %v1380 = vunpack.c.h.b16 %v177
    %v1381 = vunpack.c.l.b16 %v178
    %v1382 = vunpack.c.h.b16 %v178
    %v1383 = vunpack.c.l.b16 %v179
    %v1384 = vunpack.c.h.b16 %v179
    %v1385 = vunpack.c.l.b16 %v180
    %v1386 = vunpack.c.h.b16 %v180
    %v1387 = vunpack.c.l.b16 %v181
    %v1388 = vunpack.c.h.b16 %v181
    %v1389 = vunpack.c.l.b16 %v182
    %v1390 = vunpack.c.h.b16 %v182
    %v1391 = vunpack.c.l.b16 %v183
    %v1392 = vunpack.c.h.b16 %v183
    %v1393 = vunpack.c.l.b16 %v184
    %v1394 = vunpack.c.h.b16 %v184
    %v1395 = vunpack.c.l.b16 %v185
    %v1396 = vunpack.c.h.b16 %v185
    %v1397 = vunpack.c.l.b16 %v186
    %v1398 = vunpack.c.h.b16 %v186
    %v1399 = vunpack.c.l.b16 %v187
    %v1400 = vunpack.c.h.b16 %v187
    %v1401 = vunpack.c.l.b16 %v188
    %v1402 = vunpack.c.h.b16 %v188
    %v1403 = vunpack.c.l.b16 %v189
    %v1404 = vunpack.c.h.b16 %v189
    %v1405 = vunpack.c.l.b16 %v190
    %v1406 = vunpack.c.h.b16 %v190
    %v1407 = vunpack.c.l.b16 %v191
    %v1408 = vunpack.c.h.b16 %v191
    %v1409 = vunpack.c.l.b16 %v192
    %v1410 = vunpack.c.h.b16 %v192
    %v1411 = vunpack.c.l.b16 %v193
    %v1412 = vunpack.c.h.b16 %v193
    %v1413 = vunpack.c.l.b16 %v194
    %v1414 = vunpack.c.h.b16 %v194
    %v1415 = vunpack.c.l.b16 %v195
    %v1416 = vunpack.c.h.b16 %v195
    %v1417 = vunpack.c.l.b16 %v196
    %v1418 = vunpack.c.h.b16 %v196
    %v1419 = vunpack.c.l.b16 %v197
    %v1420 = vunpack.c.h.b16 %v197
    %v1421 = vunpack.c.l.b16 %v198
    %v1422 = vunpack.c.h.b16 %v198
    %v1423 = vunpack.c.l.b16 %v199
    %v1424 = vunpack.c.h.b16 %v199
    %v1425 = vunpack.c.l.b16 %v200
    %v1426 = vunpack.c.h.b16 %v200
    %v1427 = vunpack.c.l.b16 %v201
    %v1428 = vunpack.c.h.b16 %v201
    %v1429 = vunpack.c.l.b16 %v202
    %v1430 = vunpack.c.h.b16 %v202
    %v1431 = vunpack.c.l.b16 %v203
    %v1432 = vunpack.c.h.b16 %v203
    %v1433 = vunpack.c.l.b16 %v204
    %v1434 = vunpack.c.h.b16 %v204
    %v1435 = vunpack.c.l.b16 %v205
    %v1436 = vunpack.c.h.b16 %v205
    %v1437 = vunpack.c.l.b16 %v206
    %v1438 = vunpack.c.h.b16 %v206
    %v1439 = vunpack.c.l.b16 %v207
    %v1440 = vunpack.c.h.b16 %v207
    %v1441 = vunpack.c.l.b16 %v208
    %v1442 = vunpack.c.h.b16 %v208
    %v1443 = vunpack.c.l.b16 %v209
    %v1444 = vunpack.c.h.b16 %v209
    %v1445 = vunpack.c.l.b16 %v210
    %v1446 = vunpack.c.h.b16 %v210
    %v1447 = vunpack.c.l.b16 %v211
    %v1448 = vunpack.c.h.b16 %v211
    %v1449 = vunpack.c.l.b16 %v212
    %v1450 = vunpack.c.h.b16 %v212
    %v1451 = vunpack.c.l.b16 %v213
    %v1452 = vunpack.c.h.b16 %v213
    %v1453 = vunpack.c.l.b16 %v214
    %v1454 = vunpack.c.h.b16 %v214
    %v1455 = vunpack.c.l.b16 %v215
    %v1456 = vunpack.c.h.b16 %v215
    %v1457 = vunpack.c.l.b16 %v216
    %v1458 = vunpack.c.h.b16 %v216
    %v1459 = vunpack.c.l.b16 %v217
    %v1460 = vunpack.c.h.b16 %v217
    %v1461 = vunpack.c.l.b16 %v218
    %v1462 = vunpack.c.h.b16 %v218
    %v1463 = vunpack.c.l.b16 %v219
    %v1464 = vunpack.c.h.b16 %v219
    %v1465 = vunpack.c.l.b16 %v220
    %v1466 = vunpack.c.h.b16 %v220
    %v1467 = vunpack.c.l.b16 %v221
    %v1468 = vunpack.c.h.b16 %v221
    %v1469 = vunpack.c.l.b16 %v222
    %v1470 = vunpack.c.h.b16 %v222
    %v1471 = vunpack.c.l.b16 %v223
    %v1472 = vunpack.c.h.b16 %v223
    %v1473 = vunpack.c.l.b16 %v224
    %v1474 = vunpack.c.h.b16 %v224
    %v1475 = vunpack.c.l.b16 %v225
    %v1476 = vunpack.c.h.b16 %v225
    %v1477 = vunpack.c.l.b16 %v226
    %v1478 = vunpack.c.h.b16 %v226
    %v1479 = vunpack.c.l.b16 %v227
    %v1480 = vunpack.c.h.b16 %v227
    %v1481 = vunpack.c.l.b16 %v228
    %v1482 = vunpack.c.h.b16 %v228
    %v1483 = vunpack.c.l.b16 %v229
    %v1484 = vunpack.c.h.b16 %v229
    %v1485 = vunpack.c.l.b16 %v230
    %v1486 = vunpack.c.h.b16 %v230
    %v1487 = vunpack.c.l.b16 %v231
    %v1488 = vunpack.c.h.b16 %v231
    %v1489 = vunpack.c.l.b16 %v232
    %v1490 = vunpack.c.h.b16 %v232
    %v1491 = vunpack.c.l.b16 %v233
    %v1492 = vunpack.c.h.b16 %v233
    %v1493 = vunpack.c.l.b16 %v234
    %v1494 = vunpack.c.h.b16 %v234
    %v1495 = vunpack.c.l.b16 %v235
    %v1496 = vunpack.c.h.b16 %v235
    %v1497 = vunpack.c.l.b16 %v236
    %v1498 = vunpack.c.h.b16 %v236
    %v1499 = vunpack.c.l.b16 %v237
    %v1500 = vunpack.c.h.b16 %v237
    %v1501 = vunpack.c.l.b16 %v238
    %v1502 = vunpack.c.h.b16 %v238
    %v1503 = vunpack.c.l.b16 %v239
    %v1504 = vunpack.c.h.b16 %v239
    %v1505 = vunpack.c.l.b16 %v240
    %v1506 = vunpack.c.h.b16 %v240
    %v1507 = vunpack.c.l.b16 %v241
    %v1508 = vunpack.c.h.b16 %v241
    %v1509 = vunpack.c.l.b16 %v242
    %v1510 = vunpack.c.h.b16 %v242
    %v1511 = vunpack.c.l.b16 %v243
    %v1512 = vunpack.c.h.b16 %v243
    %v1513 = vunpack.c.l.b16 %v244
    %v1514 = vunpack.c.h.b16 %v244
    %v1515 = vunpack.c.l.b16 %v245
    %v1516 = vunpack.c.h.b16 %v245
    %v1517 = vunpack.c.l.b16 %v246
    %v1518 = vunpack.c.h.b16 %v246
    %v1519 = vunpack.c.l.b16 %v247
    %v1520 = vunpack.c.h.b16 %v247
    %v1521 = vunpack.c.l.b16 %v248
    %v1522 = vunpack.c.h.b16 %v248
    %v1523 = vunpack.c.l.b16 %v249
    %v1524 = vunpack.c.h.b16 %v249
    %v1525 = vunpack.c.l.b16 %v250
    %v1526 = vunpack.c.h.b16 %v250
    %v1527 = vunpack.c.l.b16 %v251
    %v1528 = vunpack.c.h.b16 %v251
    %v1529 = vunpack.c.l.b16 %v252
    %v1530 = vunpack.c.h.b16 %v252
    %v1531 = vunpack.c.l.b16 %v253
    %v1532 = vunpack.c.h.b16 %v253
    %v1533 = vunpack.c.l.b16 %v254
    %v1534 = vunpack.c.h.b16 %v254
    %v1535 = vunpack.c.l.b16 %v255
    %v1536 = vunpack.c.h.b16 %v255
    %v1537 = vunpack.c.l.b16 %v256
    %v1538 = vunpack.c.h.b16 %v256
    %v1539 = vunpack.c.l.b16 %v257
    %v1540 = vunpack.c.h.b16 %v257
    %v1541 = vunpack.c.l.b16 %v258
    %v1542 = vunpack.c.h.b16 %v258
    %v1543 = vunpack.c.l.b16 %v259
    %v1544 = vunpack.c.h.b16 %v259
    %v1545 = vunpack.c.l.b16 %v260
    %v1546 = vunpack.c.h.b16 %v260
    %v1547 = vunpack.c.l.b16 %v261
    %v1548 = vunpack.c.h.b16 %v261
    %v1549 = vunpack.c.l.b16 %v262
    %v1550 = vunpack.c.h.b16 %v262
    %v1551 = vunpack.c.l.b16 %v263
    %v1552 = vunpack.c.h.b16 %v263
    %v1553 = vunpack.c.l.b16 %v264
    %v1554 = vunpack.c.h.b16 %v264
    %v1555 = vunpack.c.l.b16 %v265
    %v1556 = vunpack.c.h.b16 %v265
    %v1557 = vunpack.c.l.b16 %v266
    %v1558 = vunpack.c.h.b16 %v266
    %v1559 = vunpack.c.l.b16 %v267
    %v1560 = vunpack.c.h.b16 %v267
    %v1561 = vunpack.c.l.b16 %v268
    %v1562 = vunpack.c.h.b16 %v268
    %v1563 = vunpack.c.l.b16 %v269
    %v1564 = vunpack.c.h.b16 %v269
    %v1565 = vunpack.c.l.b16 %v270
    %v1566 = vunpack.c.h.b16 %v270
    %v1567 = vunpack.c.l.b16 %v271
    %v1568 = vunpack.c.h.b16 %v271
    %v1569 = vunpack.c.l.b16 %v272
    %v1570 = vunpack.c.h.b16 %v272
    %v1571 = vunpack.c.l.b16 %v273
    %v1572 = vunpack.c.h.b16 %v273
    %v1573 = vunpack.c.l.b16 %v274
    %v1574 = vunpack.c.h.b16 %v274
    %v1575 = vunpack.c.l.b16 %v275
    %v1576 = vunpack.c.h.b16 %v275
    %v1577 = vunpack.c.l.b16 %v276
    %v1578 = vunpack.c.h.b16 %v276
    %v1579 = vunpack.c.l.b16 %v277
    %v1580 = vunpack.c.h.b16 %v277
    %v1581 = vunpack.c.l.b16 %v278
    %v1582 = vunpack.c.h.b16 %v278
    %v1583 = vunpack.c.l.b16 %v279
    %v1584 = vunpack.c.h.b16 %v279
    %v1585 = vunpack.c.l.b16 %v280
    %v1586 = vunpack.c.h.b16 %v280
    %v1587 = vunpack.c.l.b16 %v281
    %v1588 = vunpack.c.h.b16 %v281
    %v1589 = vunpack.c.l.b16 %v282
    %v1590 = vunpack.c.h.b16 %v282
    %v1591 = vunpack.c.l.b16 %v283
    %v1592 = vunpack.c.h.b16 %v283
    %v1593 = vunpack.c.l.b16 %v284
    %v1594 = vunpack.c.h.b16 %v284
    %v1595 = vunpack.c.l.b16 %v285
    %v1596 = vunpack.c.h.b16 %v285
    %v1597 = vunpack.c.l.b16 %v286
    %v1598 = vunpack.c.h.b16 %v286
    %v1599 = vunpack.c.l.b16 %v287
    %v1600 = vunpack.c.h.b16 %v287
    %v1601 = vunpack.c.l.b16 %v288
    %v1602 = vunpack.c.h.b16 %v288
    %v1603 = vunpack.c.l.b16 %v289
    %v1604 = vunpack.c.h.b16 %v289
    %v1605 = vunpack.c.l.b16 %v290
    %v1606 = vunpack.c.h.b16 %v290
    %v1607 = vunpack.c.l.b16 %v291
    %v1608 = vunpack.c.h.b16 %v291
    %v1609 = vunpack.c.l.b16 %v292
    %v1610 = vunpack.c.h.b16 %v292
    %v1611 = vunpack.c.l.b16 %v293
    %v1612 = vunpack.c.h.b16 %v293
    %v1613 = vunpack.c.l.b16 %v294
    %v1614 = vunpack.c.h.b16 %v294
    %v1615 = vunpack.c.l.b16 %v295
    %v1616 = vunpack.c.h.b16 %v295
    %v1617 = vunpack.c.l.b16 %v296
    %v1618 = vunpack.c.h.b16 %v296
    %v1619 = vunpack.c.l.b16 %v297
    %v1620 = vunpack.c.h.b16 %v297
    %v1621 = vunpack.c.l.b16 %v298
    %v1622 = vunpack.c.h.b16 %v298
    %v1623 = vunpack.c.l.b16 %v299
    %v1624 = vunpack.c.h.b16 %v299
    %v1625 = vunpack.c.l.b16 %v300
    %v1626 = vunpack.c.h.b16 %v300
    %v1627 = vunpack.c.l.b16 %v301
    %v1628 = vunpack.c.h.b16 %v301
    %v1629 = vunpack.c.l.b16 %v302
    %v1630 = vunpack.c.h.b16 %v302
    %v1631 = vunpack.c.l.b16 %v303
    %v1632 = vunpack.c.h.b16 %v303
    %v1633 = vunpack.c.l.b16 %v304
    %v1634 = vunpack.c.h.b16 %v304
    %v1635 = vunpack.c.l.b16 %v305
    %v1636 = vunpack.c.h.b16 %v305
    %v1637 = vunpack.c.l.b16 %v306
    %v1638 = vunpack.c.h.b16 %v306
    %v1639 = vunpack.c.l.b16 %v307
    %v1640 = vunpack.c.h.b16 %v307
    %v1641 = vunpack.c.l.b16 %v308
    %v1642 = vunpack.c.h.b16 %v308
    %v1643 = vunpack.c.l.b16 %v309
    %v1644 = vunpack.c.h.b16 %v309
    %v1645 = vunpack.c.l.b16 %v310
    %v1646 = vunpack.c.h.b16 %v310
    %v1647 = vunpack.c.l.b16 %v311
    %v1648 = vunpack.c.h.b16 %v311
    %v1649 = vunpack.c.l.b16 %v312
    %v1650 = vunpack.c.h.b16 %v312
    %v1651 = vunpack.c.l.b16 %v313
    %v1652 = vunpack.c.h.b16 %v313
    %v1653 = vunpack.c.l.b16 %v314
    %v1654 = vunpack.c.h.b16 %v314
    %v1655 = vunpack.c.l.b16 %v315
    %v1656 = vunpack.c.h.b16 %v315
    %v1657 = vunpack.c.l.b16 %v316
    %v1658 = vunpack.c.h.b16 %v316
    %v1659 = vunpack.c.l.b16 %v317
    %v1660 = vunpack.c.h.b16 %v317
    %v1661 = vunpack.c.l.b16 %v318
    %v1662 = vunpack.c.h.b16 %v318
    %v1663 = vunpack.c.l.b16 %v319
    %v1664 = vunpack.c.h.b16 %v319
    %v1665 = vunpack.c.l.b16 %v320
    %v1666 = vunpack.c.h.b16 %v320
    %v1667 = vunpack.c.l.b16 %v321
    %v1668 = vunpack.c.h.b16 %v321
    %v1669 = vunpack.c.l.b16 %v322
    %v1670 = vunpack.c.h.b16 %v322
    %v1671 = vunpack.c.l.b16 %v323
    %v1672 = vunpack.c.h.b16 %v323
    %v1673 = vunpack.c.l.b16 %v324
    %v1674 = vunpack.c.h.b16 %v324
    %v1675 = vunpack.c.l.b16 %v325
    %v1676 = vunpack.c.h.b16 %v325
    %v1677 = vunpack.c.l.b16 %v326
    %v1678 = vunpack.c.h.b16 %v326
    %v1679 = vunpack.c.l.b16 %v327
    %v1680 = vunpack.c.h.b16 %v327
    %v1681 = vunpack.c.l.b16 %v328
    %v1682 = vunpack.c.h.b16 %v328
    %v1683 = vunpack.c.l.b16 %v329
    %v1684 = vunpack.c.h.b16 %v329
    %v1685 = vunpack.c.l.b16 %v330
    %v1686 = vunpack.c.h.b16 %v330
    %v1687 = vunpack.c.l.b16 %v331
    %v1688 = vunpack.c.h.b16 %v331
    %v1689 = vunpack.c.l.b16 %v332
    %v1690 = vunpack.c.h.b16 %v332
    %v1691 = vunpack.c.l.b16 %v333
    %v1692 = vunpack.c.h.b16 %v333
    %v1693 = vunpack.c.l.b16 %v334
    %v1694 = vunpack.c.h.b16 %v334
    %v1695 = vunpack.c.l.b16 %v335
    %v1696 = vunpack.c.h.b16 %v335
    %v1697 = vunpack.c.l.b16 %v336
    %v1698 = vunpack.c.h.b16 %v336
    %v1699 = vunpack.c.l.b16 %v337
    %v1700 = vunpack.c.h.b16 %v337
    %v1701 = vunpack.c.l.b16 %v338
    %v1702 = vunpack.c.h.b16 %v338
    %v1703 = vunpack.c.l.b16 %v339
    %v1704 = vunpack.c.h.b16 %v339
    %v1705 = vunpack.c.l.b16 %v340
    %v1706 = vunpack.c.h.b16 %v340
    %v1707 = vunpack.c.l.b16 %v341
    %v1708 = vunpack.c.h.b16 %v341
    %v1709 = vunpack.c.l.b16 %v342
    %v1710 = vunpack.c.h.b16 %v342
    %v1711 = vunpack.c.l.b16 %v343
    %v1712 = vunpack.c.h.b16 %v343
    %v1713 = vunpack.c.l.b16 %v344
    %v1714 = vunpack.c.h.b16 %v344
    %v1715 = vunpack.c.l.b16 %v345
    %v1716 = vunpack.c.h.b16 %v345
    %v1717 = vunpack.c.l.b16 %v346
    %v1718 = vunpack.c.h.b16 %v346
    %v1719 = vunpack.c.l.b16 %v347
    %v1720 = vunpack.c.h.b16 %v347
    %v1721 = vunpack.c.l.b16 %v348
    %v1722 = vunpack.c.h.b16 %v348
    %v1723 = vunpack.c.l.b16 %v349
    %v1724 = vunpack.c.h.b16 %v349
    %v1725 = vunpack.c.l.b16 %v350
    %v1726 = vunpack.c.h.b16 %v350
    %v1727 = vunpack.c.l.b16 %v351
    %v1728 = vunpack.c.h.b16 %v351
    %v1729 = vunpack.c.l.b16 %v352
    %v1730 = vunpack.c.h.b16 %v352
    %v1731 = vunpack.c.l.b16 %v353
    %v1732 = vunpack.c.h.b16 %v353
    %v1733 = vunpack.c.l.b16 %v354
    %v1734 = vunpack.c.h.b16 %v354
    %v1735 = vunpack.c.l.b16 %v355
    %v1736 = vunpack.c.h.b16 %v355
    %v1737 = vunpack.c.l.b16 %v356
    %v1738 = vunpack.c.h.b16 %v356
    %v1739 = vunpack.c.l.b16 %v357
    %v1740 = vunpack.c.h.b16 %v357
    %v1741 = vunpack.c.l.b16 %v358
    %v1742 = vunpack.c.h.b16 %v358
    %v1743 = vunpack.c.l.b16 %v359
    %v1744 = vunpack.c.h.b16 %v359
    %v1745 = vunpack.c.l.b16 %v360
    %v1746 = vunpack.c.h.b16 %v360
    %v1747 = vunpack.c.l.b16 %v361
    %v1748 = vunpack.c.h.b16 %v361
    %v1749 = vunpack.c.l.b16 %v362
    %v1750 = vunpack.c.h.b16 %v362
    %v1751 = vunpack.c.l.b16 %v363
    %v1752 = vunpack.c.h.b16 %v363
    %v1753 = vunpack.c.l.b16 %v364
    %v1754 = vunpack.c.h.b16 %v364
    %v1755 = vunpack.c.l.b16 %v365
    %v1756 = vunpack.c.h.b16 %v365
    %v1757 = vunpack.c.l.b16 %v366
    %v1758 = vunpack.c.h.b16 %v366
    %v1759 = vunpack.c.l.b16 %v367
    %v1760 = vunpack.c.h.b16 %v367
    %v1761 = vunpack.c.l.b16 %v368
    %v1762 = vunpack.c.h.b16 %v368
    %v1763 = vunpack.c.l.b16 %v369
    %v1764 = vunpack.c.h.b16 %v369
    %v1765 = vunpack.c.l.b16 %v370
    %v1766 = vunpack.c.h.b16 %v370
    %v1767 = vunpack.c.l.b16 %v371
    %v1768 = vunpack.c.h.b16 %v371
    %v1769 = vunpack.c.l.b16 %v372
    %v1770 = vunpack.c.h.b16 %v372
    %v1771 = vunpack.c.l.b16 %v373
    %v1772 = vunpack.c.h.b16 %v373
    %v1773 = vunpack.c.l.b16 %v374
    %v1774 = vunpack.c.h.b16 %v374
    %v1775 = vunpack.c.l.b16 %v375
    %v1776 = vunpack.c.h.b16 %v375
    %v1777 = vunpack.c.l.b16 %v376
    %v1778 = vunpack.c.h.b16 %v376
    %v1779 = vunpack.c.l.b16 %v377
    %v1780 = vunpack.c.h.b16 %v377
    %v1781 = vunpack.c.l.b16 %v378
    %v1782 = vunpack.c.h.b16 %v378
    %v1783 = vunpack.c.l.b16 %v379
    %v1784 = vunpack.c.h.b16 %v379
    %v1785 = vunpack.c.l.b16 %v380
    %v1786 = vunpack.c.h.b16 %v380
    %v1787 = vunpack.c.l.b16 %v381
    %v1788 = vunpack.c.h.b16 %v381
    %v1789 = vunpack.c.l.b16 %v382
    %v1790 = vunpack.c.h.b16 %v382
    %v1791 = vunpack.c.l.b16 %v383
    %v1792 = vunpack.c.h.b16 %v383
    %v1793 = vunpack.c.l.b16 %v384
    %v1794 = vunpack.c.h.b16 %v384
    %v1795 = vunpack.c.l.b16 %v385
    %v1796 = vunpack.c.h.b16 %v385
    %v1797 = vunpack.c.l.b16 %v386
    %v1798 = vunpack.c.h.b16 %v386
    %v1799 = vunpack.c.l.b16 %v387
    %v1800 = vunpack.c.h.b16 %v387
    %v1801 = vunpack.c.l.b16 %v388
    %v1802 = vunpack.c.h.b16 %v388
    %v1803 = vunpack.c.l.b16 %v389
    %v1804 = vunpack.c.h.b16 %v389
    %v1805 = vunpack.c.l.b16 %v390
    %v1806 = vunpack.c.h.b16 %v390
    %v1807 = vunpack.c.l.b16 %v391
    %v1808 = vunpack.c.h.b16 %v391
    %v1809 = vunpack.c.l.b16 %v392
    %v1810 = vunpack.c.h.b16 %v392
    %v1811 = vunpack.c.l.b16 %v393
    %v1812 = vunpack.c.h.b16 %v393
    %v1813 = vunpack.c.l.b16 %v394
    %v1814 = vunpack.c.h.b16 %v394
    %v1815 = vunpack.c.l.b16 %v395
    %v1816 = vunpack.c.h.b16 %v395
    %v1817 = vunpack.c.l.b16 %v396
    %v1818 = vunpack.c.h.b16 %v396
    %v1819 = vunpack.c.l.b16 %v397
    %v1820 = vunpack.c.h.b16 %v397
    %v1821 = vunpack.c.l.b16 %v398
    %v1822 = vunpack.c.h.b16 %v398
    %v1823 = vunpack.c.l.b16 %v399
    %v1824 = vunpack.c.h.b16 %v399
    %v1825 = vunpack.c.l.b16 %v400
    %v1826 = vunpack.c.h.b16 %v400
    %v1827 = vunpack.c.l.b16 %v401
    %v1828 = vunpack.c.h.b16 %v401
    %v1829 = vunpack.c.l.b16 %v402
    %v1830 = vunpack.c.h.b16 %v402
    %v1831 = vunpack.c.l.b16 %v403
    %v1832 = vunpack.c.h.b16 %v403
    %v1833 = vunpack.c.l.b16 %v404
    %v1834 = vunpack.c.h.b16 %v404
    %v1835 = vunpack.c.l.b16 %v405
    %v1836 = vunpack.c.h.b16 %v405
    %v1837 = vunpack.c.l.b16 %v406
    %v1838 = vunpack.c.h.b16 %v406
    %v1839 = vunpack.c.l.b16 %v407
    %v1840 = vunpack.c.h.b16 %v407
    %v1841 = vunpack.c.l.b16 %v408
    %v1842 = vunpack.c.h.b16 %v408
    %v1843 = vunpack.c.l.b16 %v409
    %v1844 = vunpack.c.h.b16 %v409
    %v1845 = vunpack.c.l.b16 %v410
    %v1846 = vunpack.c.h.b16 %v410
    %v1847 = vunpack.c.l.b16 %v411
    %v1848 = vunpack.c.h.b16 %v411
    %v1849 = vunpack.c.l.b16 %v412
    %v1850 = vunpack.c.h.b16 %v412
    %v1851 = vunpack.c.l.b16 %v413
    %v1852 = vunpack.c.h.b16 %v413
    %v1853 = vunpack.c.l.b16 %v414
    %v1854 = vunpack.c.h.b16 %v414
    %v1855 = vunpack.c.l.b16 %v415
    %v1856 = vunpack.c.h.b16 %v415
    %v1857 = vunpack.c.l.b16 %v416
    %v1858 = vunpack.c.h.b16 %v416
    %v1859 = vunpack.c.l.b16 %v417
    %v1860 = vunpack.c.h.b16 %v417
    %v1861 = vunpack.c.l.b16 %v418
    %v1862 = vunpack.c.h.b16 %v418
    %v1863 = vunpack.c.l.b16 %v419
    %v1864 = vunpack.c.h.b16 %v419
    %v1865 = vunpack.c.l.b16 %v420
    %v1866 = vunpack.c.h.b16 %v420
    %v1867 = vunpack.c.l.b16 %v421
    %v1868 = vunpack.c.h.b16 %v421
    %v1869 = vunpack.c.l.b16 %v422
    %v1870 = vunpack.c.h.b16 %v422
    %v1871 = vunpack.c.l.b16 %v423
    %v1872 = vunpack.c.h.b16 %v423
    %v1873 = vunpack.c.l.b16 %v424
    %v1874 = vunpack.c.h.b16 %v424
    %v1875 = vunpack.c.l.b16 %v425
    %v1876 = vunpack.c.h.b16 %v425
    %v1877 = vunpack.c.l.b16 %v426
    %v1878 = vunpack.c.h.b16 %v426
    %v1879 = vunpack.c.l.b16 %v427
    %v1880 = vunpack.c.h.b16 %v427
    %v1881 = vunpack.c.l.b16 %v428
    %v1882 = vunpack.c.h.b16 %v428
    %v1883 = vunpack.c.l.b16 %v429
    %v1884 = vunpack.c.h.b16 %v429
    %v1885 = vunpack.c.l.b16 %v430
    %v1886 = vunpack.c.h.b16 %v430
    %v1887 = vunpack.c.l.b16 %v431
    %v1888 = vunpack.c.h.b16 %v431
    %v1889 = vunpack.c.l.b16 %v432
    %v1890 = vunpack.c.h.b16 %v432
    %v1891 = vunpack.c.l.b16 %v433
    %v1892 = vunpack.c.h.b16 %v433
    %v1893 = vunpack.c.l.b16 %v434
    %v1894 = vunpack.c.h.b16 %v434
    %v1895 = vunpack.c.l.b16 %v435
    %v1896 = vunpack.c.h.b16 %v435
    %v1897 = vunpack.c.l.b16 %v436
    %v1898 = vunpack.c.h.b16 %v436
    %v1899 = vunpack.c.l.b16 %v437
    %v1900 = vunpack.c.h.b16 %v437
    %v1901 = vunpack.c.l.b16 %v438
    %v1902 = vunpack.c.h.b16 %v438
    %v1903 = vunpack.c.l.b16 %v439
    %v1904 = vunpack.c.h.b16 %v439
    %v1905 = vunpack.c.l.b16 %v440
    %v1906 = vunpack.c.h.b16 %v440
    %v1907 = vunpack.c.l.b16 %v441
    %v1908 = vunpack.c.h.b16 %v441
    %v1909 = vunpack.c.l.b16 %v442
    %v1910 = vunpack.c.h.b16 %v442
    %v1911 = vunpack.c.l.b16 %v443
    %v1912 = vunpack.c.h.b16 %v443
    %v1913 = vunpack.c.l.b16 %v444
    %v1914 = vunpack.c.h.b16 %v444
    %v1915 = vunpack.c.l.b16 %v445
    %v1916 = vunpack.c.h.b16 %v445
    %v1917 = vunpack.c.l.b16 %v446
    %v1918 = vunpack.c.h.b16 %v446
    %v1919 = vunpack.c.l.b16 %v447
    %v1920 = vunpack.c.h.b16 %v447
    %v1921 = vunpack.c.l.b16 %v448
    %v1922 = vunpack.c.h.b16 %v448
    %v1923 = vunpack.c.l.b16 %v449
    %v1924 = vunpack.c.h.b16 %v449
    %v1925 = vunpack.c.l.b16 %v450
    %v1926 = vunpack.c.h.b16 %v450
    %v1927 = vunpack.c.l.b16 %v451
    %v1928 = vunpack.c.h.b16 %v451
    %v1929 = vunpack.c.l.b16 %v452
    %v1930 = vunpack.c.h.b16 %v452
    %v1931 = vunpack.c.l.b16 %v453
    %v1932 = vunpack.c.h.b16 %v453
    %v1933 = vunpack.c.l.b16 %v454
    %v1934 = vunpack.c.h.b16 %v454
    %v1935 = vunpack.c.l.b16 %v455
    %v1936 = vunpack.c.h.b16 %v455
    %v1937 = vunpack.c.l.b16 %v456
    %v1938 = vunpack.c.h.b16 %v456
    %v1939 = vunpack.c.l.b16 %v457
    %v1940 = vunpack.c.h.b16 %v457
    %v1941 = vunpack.c.l.b16 %v458
    %v1942 = vunpack.c.h.b16 %v458
    %v1943 = vunpack.c.l.b16 %v459
    %v1944 = vunpack.c.h.b16 %v459
    %v1945 = vunpack.c.l.b16 %v460
    %v1946 = vunpack.c.h.b16 %v460
    %v1947 = vunpack.c.l.b16 %v461
    %v1948 = vunpack.c.h.b16 %v461
    %v1949 = vunpack.c.l.b16 %v462
    %v1950 = vunpack.c.h.b16 %v462
    %v1951 = vunpack.c.l.b16 %v463
    %v1952 = vunpack.c.h.b16 %v463
    %v1953 = vunpack.c.l.b16 %v464
    %v1954 = vunpack.c.h.b16 %v464
    %v1955 = vunpack.c.l.b16 %v465
    %v1956 = vunpack.c.h.b16 %v465
    %v1957 = vunpack.c.l.b16 %v466
    %v1958 = vunpack.c.h.b16 %v466
    %v1959 = vunpack.c.l.b16 %v467
    %v1960 = vunpack.c.h.b16 %v467
    %v1961 = vunpack.c.l.b16 %v468
    %v1962 = vunpack.c.h.b16 %v468
    %v1963 = vunpack.c.l.b16 %v469
    %v1964 = vunpack.c.h.b16 %v469
    %v1965 = vunpack.c.l.b16 %v470
    %v1966 = vunpack.c.h.b16 %v470
    %v1967 = vunpack.c.l.b16 %v471
    %v1968 = vunpack.c.h.b16 %v471
    %v1969 = vunpack.c.l.b16 %v472
    %v1970 = vunpack.c.h.b16 %v472
    %v1971 = vunpack.c.l.b16 %v473
    %v1972 = vunpack.c.h.b16 %v473
    %v1973 = vunpack.c.l.b16 %v474
    %v1974 = vunpack.c.h.b16 %v474
    %v1975 = vunpack.c.l.b16 %v475
    %v1976 = vunpack.c.h.b16 %v475
    %v1977 = vunpack.c.l.b16 %v476
    %v1978 = vunpack.c.h.b16 %v476
    %v1979 = vunpack.c.l.b16 %v477
    %v1980 = vunpack.c.h.b16 %v477
    %v1981 = vunpack.c.l.b16 %v478
    %v1982 = vunpack.c.h.b16 %v478
    %v1983 = vunpack.c.l.b16 %v479
    %v1984 = vunpack.c.h.b16 %v479
    %v1985 = vunpack.c.l.b16 %v480
    %v1986 = vunpack.c.h.b16 %v480
    %v1987 = vunpack.c.l.b16 %v481
    %v1988 = vunpack.c.h.b16 %v481
    %v1989 = vunpack.c.l.b16 %v482
    %v1990 = vunpack.c.h.b16 %v482
    %v1991 = vunpack.c.l.b16 %v483
    %v1992 = vunpack.c.h.b16 %v483
    %v1993 = vunpack.c.l.b16 %v484
    %v1994 = vunpack.c.h.b16 %v484
    %v1995 = vunpack.c.l.b16 %v485
    %v1996 = vunpack.c.h.b16 %v485
    %v1997 = vunpack.c.l.b16 %v486
    %v1998 = vunpack.c.h.b16 %v486
    %v1999 = vunpack.c.l.b16 %v487
    %v2000 = vunpack.c.h.b16 %v487
    %v2001 = vunpack.c.l.b16 %v488
    %v2002 = vunpack.c.h.b16 %v488
    %v2003 = vunpack.c.l.b16 %v489
    %v2004 = vunpack.c.h.b16 %v489
    %v2005 = vunpack.c.l.b16 %v490
    %v2006 = vunpack.c.h.b16 %v490
    %v2007 = vunpack.c.l.b16 %v491
    %v2008 = vunpack.c.h.b16 %v491
    %v2009 = vunpack.c.l.b16 %v492
    %v2010 = vunpack.c.h.b16 %v492
    %v2011 = vunpack.c.l.b16 %v493
    %v2012 = vunpack.c.h.b16 %v493
    %v2013 = vunpack.c.l.b16 %v494
    %v2014 = vunpack.c.h.b16 %v494
    %v2015 = vunpack.c.l.b16 %v495
    %v2016 = vunpack.c.h.b16 %v495
    %v2017 = vunpack.c.l.b16 %v496
    %v2018 = vunpack.c.h.b16 %v496
    %v2019 = vunpack.c.l.b16 %v497
    %v2020 = vunpack.c.h.b16 %v497
    %v2021 = vunpack.c.l.b16 %v498
    %v2022 = vunpack.c.h.b16 %v498
    %v2023 = vunpack.c.l.b16 %v499
    %v2024 = vunpack.c.h.b16 %v499
    %v2025 = vunpack.c.l.b16 %v500
    %v2026 = vunpack.c.h.b16 %v500
    %v2027 = vunpack.c.l.b16 %v501
    %v2028 = vunpack.c.h.b16 %v501
    %v2029 = vunpack.c.l.b16 %v502
    %v2030 = vunpack.c.h.b16 %v502
    %v2031 = vunpack.c.l.b16 %v503
    %v2032 = vunpack.c.h.b16 %v503
    %v2033 = vunpack.c.l.b16 %v504
    %v2034 = vunpack.c.h.b16 %v504
    %v2035 = vunpack.c.l.b16 %v505
    %v2036 = vunpack.c.h.b16 %v505
    %v2037 = vunpack.c.l.b16 %v506
    %v2038 = vunpack.c.h.b16 %v506
    %v2039 = vunpack.c.l.b16 %v507
    %v2040 = vunpack.c.h.b16 %v507
    %v2041 = vunpack.c.l.b16 %v508
    %v2042 = vunpack.c.h.b16 %v508
    %v2043 = vunpack.c.l.b16 %v509
    %v2044 = vunpack.c.h.b16 %v509
    %v2045 = vunpack.c.l.b16 %v510
    %v2046 = vunpack.c.h.b16 %v510
    %v2047 = vunpack.c.l.b16 %v511
    %v2048 = vunpack.c.h.b16 %v511
    %v2049 = vunpack.c.l.b16 %v512
    %v2050 = vunpack.c.h.b16 %v512
    %v2051 = vunpack.c.l.b16 %v513
    %v2052 = vunpack.c.h.b16 %v513
    %v2053 = vunpack.c.l.b16 %v514
    %v2054 = vunpack.c.h.b16 %v514
    %v2055 = vunpack.c.l.b16 %v515
    %v2056 = vunpack.c.h.b16 %v515
    %v2057 = vunpack.c.l.b16 %v516
    %v2058 = vunpack.c.h.b16 %v516
    %v2059 = vunpack.c.l.b16 %v517
    %v2060 = vunpack.c.h.b16 %v517
    %v2061 = vunpack.c.l.b16 %v518
    %v2062 = vunpack.c.h.b16 %v518
    %v2063 = vunpack.c.l.b16 %v519
    %v2064 = vunpack.c.h.b16 %v519
    %v2065 = vunpack.c.l.b16 %v520
    %v2066 = vunpack.c.h.b16 %v520
    %v2067 = vunpack.c.l.b16 %v521
    %v2068 = vunpack.c.h.b16 %v521
    %v2069 = vunpack.c.l.b16 %v522
    %v2070 = vunpack.c.h.b16 %v522
    %v2071 = vunpack.c.l.b16 %v523
    %v2072 = vunpack.c.h.b16 %v523
    %v2073 = vunpack.c.l.b16 %v524
    %v2074 = vunpack.c.h.b16 %v524
    %v2075 = vunpack.c.l.b16 %v525
    %v2076 = vunpack.c.h.b16 %v525
    %v2077 = vunpack.c.l.b16 %v526
    %v2078 = vunpack.c.h.b16 %v526
    %v2079 = vunpack.c.l.b16 %v527
    %v2080 = vunpack.c.h.b16 %v527
    %v2081 = vunpack.c.l.b16 %v528
    %v2082 = vunpack.c.h.b16 %v528
    %v2083 = vunpack.c.l.b16 %v529
    %v2084 = vunpack.c.h.b16 %v529
    %v2085 = vunpack.c.l.b16 %v530
    %v2086 = vunpack.c.h.b16 %v530
    %v2087 = vunpack.c.l.b16 %v531
    %v2088 = vunpack.c.h.b16 %v531
    %v2089 = vunpack.c.l.b16 %v532
    %v2090 = vunpack.c.h.b16 %v532
    %v2091 = vunpack.c.l.b16 %v533
    %v2092 = vunpack.c.h.b16 %v533
    %v2093 = vunpack.c.l.b16 %v534
    %v2094 = vunpack.c.h.b16 %v534
    %v2095 = vunpack.c.l.b16 %v535
    %v2096 = vunpack.c.h.b16 %v535
    %v2097 = vunpack.c.l.b16 %v536
    %v2098 = vunpack.c.h.b16 %v536
    %v2099 = vunpack.c.l.b16 %v537
    %v2100 = vunpack.c.h.b16 %v537
    %v2101 = vunpack.c.l.b16 %v538
    %v2102 = vunpack.c.h.b16 %v538
    %v2103 = vunpack.c.l.b16 %v539
    %v2104 = vunpack.c.h.b16 %v539
    %v2105 = vunpack.c.l.b16 %v540
    %v2106 = vunpack.c.h.b16 %v540
    %v2107 = vunpack.c.l.b16 %v541
    %v2108 = vunpack.c.h.b16 %v541
    %v2109 = vunpack.c.l.b16 %v542
    %v2110 = vunpack.c.h.b16 %v542
    %v2111 = vunpack.c.l.b16 %v543
    %v2112 = vunpack.c.h.b16 %v543
    %v2113 = vunpack.c.l.b16 %v544
    %v2114 = vunpack.c.h.b16 %v544
    %v2115 = vunpack.c.l.b16 %v545
    %v2116 = vunpack.c.h.b16 %v545
    %v2117 = vunpack.c.l.b16 %v546
    %v2118 = vunpack.c.h.b16 %v546
    %v2119 = vpack.c.b16 %v1103, %v1095
    %v2120 = vpack.c.b16 %v1104, %v1096
    %v2121 = vpack.c.b16 %v1105, %v1097
    %v2122 = vpack.c.b16 %v1106, %v1098
    %v2123 = vpack.c.b16 %v1107, %v1099
    %v2124 = vpack.c.b16 %v1108, %v1100
    %v2125 = vpack.c.b16 %v1109, %v1101
    %v2126 = vpack.c.b16 %v1110, %v1102
    %v2127 = vpack.c.b16 %v1119, %v1111
    %v2128 = vpack.c.b16 %v1120, %v1112
    %v2129 = vpack.c.b16 %v1121, %v1113
    %v2130 = vpack.c.b16 %v1122, %v1114
    %v2131 = vpack.c.b16 %v1123, %v1115
    %v2132 = vpack.c.b16 %v1124, %v1116
    %v2133 = vpack.c.b16 %v1125, %v1117
    %v2134 = vpack.c.b16 %v1126, %v1118
    %v2135 = vpack.c.b16 %v1135, %v1127
    %v2136 = vpack.c.b16 %v1136, %v1128
    %v2137 = vpack.c.b16 %v1137, %v1129
    %v2138 = vpack.c.b16 %v1138, %v1130
    %v2139 = vpack.c.b16 %v1139, %v1131
    %v2140 = vpack.c.b16 %v1140, %v1132
    %v2141 = vpack.c.b16 %v1141, %v1133
    %v2142 = vpack.c.b16 %v1142, %v1134
    %v2143 = vpack.c.b16 %v1151, %v1143
    %v2144 = vpack.c.b16 %v1152, %v1144
    %v2145 = vpack.c.b16 %v1153, %v1145
    %v2146 = vpack.c.b16 %v1154, %v1146
    %v2147 = vpack.c.b16 %v1155, %v1147
    %v2148 = vpack.c.b16 %v1156, %v1148
    %v2149 = vpack.c.b16 %v1157, %v1149
    %v2150 = vpack.c.b16 %v1158, %v1150
    %v2151 = vpack.c.b16 %v1167, %v1159
    %v2152 = vpack.c.b16 %v1168, %v1160
    %v2153 = vpack.c.b16 %v1169, %v1161
    %v2154 = vpack.c.b16 %v1170, %v1162
    %v2155 = vpack.c.b16 %v1171, %v1163
    %v2156 = vpack.c.b16 %v1172, %v1164
    %v2157 = vpack.c.b16 %v1173, %v1165
    %v2158 = vpack.c.b16 %v1174, %v1166
    %v2159 = vpack.c.b16 %v1183, %v1175
    %v2160 = vpack.c.b16 %v1184, %v1176
    %v2161 = vpack.c.b16 %v1185, %v1177
    %v2162 = vpack.c.b16 %v1186, %v1178
    %v2163 = vpack.c.b16 %v1187, %v1179
    %v2164 = vpack.c.b16 %v1188, %v1180
    %v2165 = vpack.c.b16 %v1189, %v1181
    %v2166 = vpack.c.b16 %v1190, %v1182
    %v2167 = vpack.c.b16 %v1199, %v1191
    %v2168 = vpack.c.b16 %v1200, %v1192
    %v2169 = vpack.c.b16 %v1201, %v1193
    %v2170 = vpack.c.b16 %v1202, %v1194
    %v2171 = vpack.c.b16 %v1203, %v1195
    %v2172 = vpack.c.b16 %v1204, %v1196
    %v2173 = vpack.c.b16 %v1205, %v1197
    %v2174 = vpack.c.b16 %v1206, %v1198
    %v2175 = vpack.c.b16 %v1215, %v1207
    %v2176 = vpack.c.b16 %v1216, %v1208
    %v2177 = vpack.c.b16 %v1217, %v1209
    %v2178 = vpack.c.b16 %v1218, %v1210
    %v2179 = vpack.c.b16 %v1219, %v1211
    %v2180 = vpack.c.b16 %v1220, %v1212
    %v2181 = vpack.c.b16 %v1221, %v1213
    %v2182 = vpack.c.b16 %v1222, %v1214
    %v2183 = vpack.c.b16 %v1231, %v1223
    %v2184 = vpack.c.b16 %v1232, %v1224
    %v2185 = vpack.c.b16 %v1233, %v1225
    %v2186 = vpack.c.b16 %v1234, %v1226
    %v2187 = vpack.c.b16 %v1235, %v1227
    %v2188 = vpack.c.b16 %v1236, %v1228
    %v2189 = vpack.c.b16 %v1237, %v1229
    %v2190 = vpack.c.b16 %v1238, %v1230
    %v2191 = vpack.c.b16 %v1247, %v1239
    %v2192 = vpack.c.b16 %v1248, %v1240
    %v2193 = vpack.c.b16 %v1249, %v1241
    %v2194 = vpack.c.b16 %v1250, %v1242
    %v2195 = vpack.c.b16 %v1251, %v1243
    %v2196 = vpack.c.b16 %v1252, %v1244
    %v2197 = vpack.c.b16 %v1253, %v1245
    %v2198 = vpack.c.b16 %v1254, %v1246
    %v2199 = vpack.c.b16 %v1263, %v1255
    %v2200 = vpack.c.b16 %v1264, %v1256
    %v2201 = vpack.c.b16 %v1265, %v1257
    %v2202 = vpack.c.b16 %v1266, %v1258
    %v2203 = vpack.c.b16 %v1267, %v1259
    %v2204 = vpack.c.b16 %v1268, %v1260
    %v2205 = vpack.c.b16 %v1269, %v1261
    %v2206 = vpack.c.b16 %v1270, %v1262
    %v2207 = vpack.c.b16 %v1279, %v1271
    %v2208 = vpack.c.b16 %v1280, %v1272
    %v2209 = vpack.c.b16 %v1281, %v1273
    %v2210 = vpack.c.b16 %v1282, %v1274
    %v2211 = vpack.c.b16 %v1283, %v1275
    %v2212 = vpack.c.b16 %v1284, %v1276
    %v2213 = vpack.c.b16 %v1285, %v1277
    %v2214 = vpack.c.b16 %v1286, %v1278
    %v2215 = vpack.c.b16 %v1295, %v1287
    %v2216 = vpack.c.b16 %v1296, %v1288
    %v2217 = vpack.c.b16 %v1297, %v1289
    %v2218 = vpack.c.b16 %v1298, %v1290
    %v2219 = vpack.c.b16 %v1299, %v1291
    %v2220 = vpack.c.b16 %v1300, %v1292
    %v2221 = vpack.c.b16 %v1301, %v1293
    %v2222 = vpack.c.b16 %v1302, %v1294
    %v2223 = vpack.c.b16 %v1311, %v1303
    %v2224 = vpack.c.b16 %v1312, %v1304
    %v2225 = vpack.c.b16 %v1313, %v1305
    %v2226 = vpack.c.b16 %v1314, %v1306
    %v2227 = vpack.c.b16 %v1315, %v1307
    %v2228 = vpack.c.b16 %v1316, %v1308
    %v2229 = vpack.c.b16 %v1317, %v1309
    %v2230 = vpack.c.b16 %v1318, %v1310
    %v2231 = vpack.c.b16 %v1327, %v1319
    %v2232 = vpack.c.b16 %v1328, %v1320
    %v2233 = vpack.c.b16 %v1329, %v1321
    %v2234 = vpack.c.b16 %v1330, %v1322
    %v2235 = vpack.c.b16 %v1331, %v1323
    %v2236 = vpack.c.b16 %v1332, %v1324
    %v2237 = vpack.c.b16 %v1333, %v1325
    %v2238 = vpack.c.b16 %v1334, %v1326
    %v2239 = vpack.c.b16 %v1343, %v1335
    %v2240 = vpack.c.b16 %v1344, %v1336
    %v2241 = vpack.c.b16 %v1345, %v1337
    %v2242 = vpack.c.b16 %v1346, %v1338
    %v2243 = vpack.c.b16 %v1347, %v1339
    %v2244 = vpack.c.b16 %v1348, %v1340
    %v2245 = vpack.c.b16 %v1349, %v1341
    %v2246 = vpack.c.b16 %v1350, %v1342
    %v2247 = vpack.c.b16 %v1359, %v1351
    %v2248 = vpack.c.b16 %v1360, %v1352
    %v2249 = vpack.c.b16 %v1361, %v1353
    %v2250 = vpack.c.b16 %v1362, %v1354
    %v2251 = vpack.c.b16 %v1363, %v1355
    %v2252 = vpack.c.b16 %v1364, %v1356
    %v2253 = vpack.c.b16 %v1365, %v1357
    %v2254 = vpack.c.b16 %v1366, %v1358
    %v2255 = vpack.c.b16 %v1375, %v1367
    %v2256 = vpack.c.b16 %v1376, %v1368
    %v2257 = vpack.c.b16 %v1377, %v1369
    %v2258 = vpack.c.b16 %v1378, %v1370
    %v2259 = vpack.c.b16 %v1379, %v1371
    %v2260 = vpack.c.b16 %v1380, %v1372
    %v2261 = vpack.c.b16 %v1381, %v1373
    %v2262 = vpack.c.b16 %v1382, %v1374
    %v2263 = vpack.c.b16 %v1391, %v1383
    %v2264 = vpack.c.b16 %v1392, %v1384
    %v2265 = vpack.c.b16 %v1393, %v1385
    %v2266 = vpack.c.b16 %v1394, %v1386
    %v2267 = vpack.c.b16 %v1395, %v1387
    %v2268 = vpack.c.b16 %v1396, %v1388
    %v2269 = vpack.c.b16 %v1397, %v1389
    %v2270 = vpack.c.b16 %v1398, %v1390
    %v2271 = vpack.c.b16 %v1407, %v1399
    %v2272 = vpack.c.b16 %v1408, %v1400
    %v2273 = vpack.c.b16 %v1409, %v1401
    %v2274 = vpack.c.b16 %v1410, %v1402
    %v2275 = vpack.c.b16 %v1411, %v1403
    %v2276 = vpack.c.b16 %v1412, %v1404
    %v2277 = vpack.c.b16 %v1413, %v1405
    %v2278 = vpack.c.b16 %v1414, %v1406
    %v2279 = vpack.c.b16 %v1423, %v1415
    %v2280 = vpack.c.b16 %v1424, %v1416
    %v2281 = vpack.c.b16 %v1425, %v1417
    %v2282 = vpack.c.b16 %v1426, %v1418
    %v2283 = vpack.c.b16 %v1427, %v1419
    %v2284 = vpack.c.b16 %v1428, %v1420
    %v2285 = vpack.c.b16 %v1429, %v1421
    %v2286 = vpack.c.b16 %v1430, %v1422
    %v2287 = vpack.c.b16 %v1439, %v1431
    %v2288 = vpack.c.b16 %v1440, %v1432
    %v2289 = vpack.c.b16 %v1441, %v1433
    %v2290 = vpack.c.b16 %v1442, %v1434
    %v2291 = vpack.c.b16 %v1443, %v1435
    %v2292 = vpack.c.b16 %v1444, %v1436
    %v2293 = vpack.c.b16 %v1445, %v1437
    %v2294 = vpack.c.b16 %v1446, %v1438
    %v2295 = vpack.c.b16 %v1455, %v1447
    %v2296 = vpack.c.b16 %v1456, %v1448
    %v2297 = vpack.c.b16 %v1457, %v1449
    %v2298 = vpack.c.b16 %v1458, %v1450
    %v2299 = vpack.c.b16 %v1459, %v1451
    %v2300 = vpack.c.b16 %v1460, %v1452
    %v2301 = vpack.c.b16 %v1461, %v1453
    %v2302 = vpack.c.b16 %v1462, %v1454
    %v2303 = vpack.c.b16 %v1471, %v1463
    %v2304 = vpack.c.b16 %v1472, %v1464
    %v2305 = vpack.c.b16 %v1473, %v1465
    %v2306 = vpack.c.b16 %v1474, %v1466
    %v2307 = vpack.c.b16 %v1475, %v1467
    %v2308 = vpack.c.b16 %v1476, %v1468
    %v2309 = vpack.c.b16 %v1477, %v1469
    %v2310 = vpack.c.b16 %v1478, %v1470
    %v2311 = vpack.c.b16 %v1487, %v1479
    %v2312 = vpack.c.b16 %v1488, %v1480
    %v2313 = vpack.c.b16 %v1489, %v1481
    %v2314 = vpack.c.b16 %v1490, %v1482
    %v2315 = vpack.c.b16 %v1491, %v1483
    %v2316 = vpack.c.b16 %v1492, %v1484
    %v2317 = vpack.c.b16 %v1493, %v1485
    %v2318 = vpack.c.b16 %v1494, %v1486
    %v2319 = vpack.c.b16 %v1503, %v1495
    %v2320 = vpack.c.b16 %v1504, %v1496
    %v2321 = vpack.c.b16 %v1505, %v1497
    %v2322 = vpack.c.b16 %v1506, %v1498
    %v2323 = vpack.c.b16 %v1507, %v1499
    %v2324 = vpack.c.b16 %v1508, %v1500
    %v2325 = vpack.c.b16 %v1509, %v1501
    %v2326 = vpack.c.b16 %v1510, %v1502
    %v2327 = vpack.c.b16 %v1519, %v1511
    %v2328 = vpack.c.b16 %v1520, %v1512
    %v2329 = vpack.c.b16 %v1521, %v1513
    %v2330 = vpack.c.b16 %v1522, %v1514
    %v2331 = vpack.c.b16 %v1523, %v1515
    %v2332 = vpack.c.b16 %v1524, %v1516
    %v2333 = vpack.c.b16 %v1525, %v1517
    %v2334 = vpack.c.b16 %v1526, %v1518
    %v2335 = vpack.c.b16 %v1535, %v1527
    %v2336 = vpack.c.b16 %v1536, %v1528
    %v2337 = vpack.c.b16 %v1537, %v1529
    %v2338 = vpack.c.b16 %v1538, %v1530
    %v2339 = vpack.c.b16 %v1539, %v1531
    %v2340 = vpack.c.b16 %v1540, %v1532
    %v2341 = vpack.c.b16 %v1541, %v1533
    %v2342 = vpack.c.b16 %v1542, %v1534
    %v2343 = vpack.c.b16 %v1551, %v1543
    %v2344 = vpack.c.b16 %v1552, %v1544
    %v2345 = vpack.c.b16 %v1553, %v1545
    %v2346 = vpack.c.b16 %v1554, %v1546
    %v2347 = vpack.c.b16 %v1555, %v1547
    %v2348 = vpack.c.b16 %v1556, %v1548
    %v2349 = vpack.c.b16 %v1557, %v1549
    %v2350 = vpack.c.b16 %v1558, %v1550
    %v2351 = vpack.c.b16 %v1567, %v1559
    %v2352 = vpack.c.b16 %v1568, %v1560
    %v2353 = vpack.c.b16 %v1569, %v1561
    %v2354 = vpack.c.b16 %v1570, %v1562
    %v2355 = vpack.c.b16 %v1571, %v1563
    %v2356 = vpack.c.b16 %v1572, %v1564
    %v2357 = vpack.c.b16 %v1573, %v1565
    %v2358 = vpack.c.b16 %v1574, %v1566
    %v2359 = vpack.c.b16 %v1583, %v1575
    %v2360 = vpack.c.b16 %v1584, %v1576
    %v2361 = vpack.c.b16 %v1585, %v1577
    %v2362 = vpack.c.b16 %v1586, %v1578
    %v2363 = vpack.c.b16 %v1587, %v1579
    %v2364 = vpack.c.b16 %v1588, %v1580
    %v2365 = vpack.c.b16 %v1589, %v1581
    %v2366 = vpack.c.b16 %v1590, %v1582
    %v2367 = vpack.c.b16 %v1599, %v1591
    %v2368 = vpack.c.b16 %v1600, %v1592
    %v2369 = vpack.c.b16 %v1601, %v1593
    %v2370 = vpack.c.b16 %v1602, %v1594
    %v2371 = vpack.c.b16 %v1603, %v1595
    %v2372 = vpack.c.b16 %v1604, %v1596
    %v2373 = vpack.c.b16 %v1605, %v1597
    %v2374 = vpack.c.b16 %v1606, %v1598
    %v2375 = vpack.c.b16 %v1615, %v1607
    %v2376 = vpack.c.b16 %v1616, %v1608
    %v2377 = vpack.c.b16 %v1617, %v1609
    %v2378 = vpack.c.b16 %v1618, %v1610
    %v2379 = vpack.c.b16 %v1619, %v1611
    %v2380 = vpack.c.b16 %v1620, %v1612
    %v2381 = vpack.c.b16 %v1621, %v1613
    %v2382 = vpack.c.b16 %v1622, %v1614
    %v2383 = vpack.c.b16 %v1631, %v1623
    %v2384 = vpack.c.b16 %v1632, %v1624
    %v2385 = vpack.c.b16 %v1633, %v1625
    %v2386 = vpack.c.b16 %v1634, %v1626
    %v2387 = vpack.c.b16 %v1635, %v1627
    %v2388 = vpack.c.b16 %v1636, %v1628
    %v2389 = vpack.c.b16 %v1637, %v1629
    %v2390 = vpack.c.b16 %v1638, %v1630
    %v2391 = vpack.c.b16 %v1647, %v1639
    %v2392 = vpack.c.b16 %v1648, %v1640
    %v2393 = vpack.c.b16 %v1649, %v1641
    %v2394 = vpack.c.b16 %v1650, %v1642
    %v2395 = vpack.c.b16 %v1651, %v1643
    %v2396 = vpack.c.b16 %v1652, %v1644
    %v2397 = vpack.c.b16 %v1653, %v1645
    %v2398 = vpack.c.b16 %v1654, %v1646
    %v2399 = vpack.c.b16 %v1663, %v1655
    %v2400 = vpack.c.b16 %v1664, %v1656
    %v2401 = vpack.c.b16 %v1665, %v1657
    %v2402 = vpack.c.b16 %v1666, %v1658
    %v2403 = vpack.c.b16 %v1667, %v1659
    %v2404 = vpack.c.b16 %v1668, %v1660
    %v2405 = vpack.c.b16 %v1669, %v1661
    %v2406 = vpack.c.b16 %v1670, %v1662
    %v2407 = vpack.c.b16 %v1679, %v1671
    %v2408 = vpack.c.b16 %v1680, %v1672
    %v2409 = vpack.c.b16 %v1681, %v1673
    %v2410 = vpack.c.b16 %v1682, %v1674
    %v2411 = vpack.c.b16 %v1683, %v1675
    %v2412 = vpack.c.b16 %v1684, %v1676
    %v2413 = vpack.c.b16 %v1685, %v1677
    %v2414 = vpack.c.b16 %v1686, %v1678
    %v2415 = vpack.c.b16 %v1695, %v1687
    %v2416 = vpack.c.b16 %v1696, %v1688
    %v2417 = vpack.c.b16 %v1697, %v1689
    %v2418 = vpack.c.b16 %v1698, %v1690
    %v2419 = vpack.c.b16 %v1699, %v1691
    %v2420 = vpack.c.b16 %v1700, %v1692
    %v2421 = vpack.c.b16 %v1701, %v1693
    %v2422 = vpack.c.b16 %v1702, %v1694
    %v2423 = vpack.c.b16 %v1711, %v1703
    %v2424 = vpack.c.b16 %v1712, %v1704
    %v2425 = vpack.c.b16 %v1713, %v1705
    %v2426 = vpack.c.b16 %v1714, %v1706
    %v2427 = vpack.c.b16 %v1715, %v1707
    %v2428 = vpack.c.b16 %v1716, %v1708
    %v2429 = vpack.c.b16 %v1717, %v1709
    %v2430 = vpack.c.b16 %v1718, %v1710
    %v2431 = vpack.c.b16 %v1727, %v1719
    %v2432 = vpack.c.b16 %v1728, %v1720
    %v2433 = vpack.c.b16 %v1729, %v1721
    %v2434 = vpack.c.b16 %v1730, %v1722
    %v2435 = vpack.c.b16 %v1731, %v1723
    %v2436 = vpack.c.b16 %v1732, %v1724
    %v2437 = vpack.c.b16 %v1733, %v1725
    %v2438 = vpack.c.b16 %v1734, %v1726
    %v2439 = vpack.c.b16 %v1743, %v1735
    %v2440 = vpack.c.b16 %v1744, %v1736
    %v2441 = vpack.c.b16 %v1745, %v1737
    %v2442 = vpack.c.b16 %v1746, %v1738
    %v2443 = vpack.c.b16 %v1747, %v1739
    %v2444 = vpack.c.b16 %v1748, %v1740
    %v2445 = vpack.c.b16 %v1749, %v1741
    %v2446 = vpack.c.b16 %v1750, %v1742
    %v2447 = vpack.c.b16 %v1759, %v1751
    %v2448 = vpack.c.b16 %v1760, %v1752
    %v2449 = vpack.c.b16 %v1761, %v1753
    %v2450 = vpack.c.b16 %v1762, %v1754
    %v2451 = vpack.c.b16 %v1763, %v1755
    %v2452 = vpack.c.b16 %v1764, %v1756
    %v2453 = vpack.c.b16 %v1765, %v1757
    %v2454 = vpack.c.b16 %v1766, %v1758
    %v2455 = vpack.c.b16 %v1775, %v1767
    %v2456 = vpack.c.b16 %v1776, %v1768
    %v2457 = vpack.c.b16 %v1777, %v1769
    %v2458 = vpack.c.b16 %v1778, %v1770
    %v2459 = vpack.c.b16 %v1779, %v1771
    %v2460 = vpack.c.b16 %v1780, %v1772
    %v2461 = vpack.c.b16 %v1781, %v1773
    %v2462 = vpack.c.b16 %v1782, %v1774
    %v2463 = vpack.c.b16 %v1791, %v1783
    %v2464 = vpack.c.b16 %v1792, %v1784
    %v2465 = vpack.c.b16 %v1793, %v1785
    %v2466 = vpack.c.b16 %v1794, %v1786
    %v2467 = vpack.c.b16 %v1795, %v1787
    %v2468 = vpack.c.b16 %v1796, %v1788
    %v2469 = vpack.c.b16 %v1797, %v1789
    %v2470 = vpack.c.b16 %v1798, %v1790
    %v2471 = vpack.c.b16 %v1807, %v1799
    %v2472 = vpack.c.b16 %v1808, %v1800
    %v2473 = vpack.c.b16 %v1809, %v1801
    %v2474 = vpack.c.b16 %v1810, %v1802
    %v2475 = vpack.c.b16 %v1811, %v1803
    %v2476 = vpack.c.b16 %v1812, %v1804
    %v2477 = vpack.c.b16 %v1813, %v1805
    %v2478 = vpack.c.b16 %v1814, %v1806
    %v2479 = vpack.c.b16 %v1823, %v1815
    %v2480 = vpack.c.b16 %v1824, %v1816
    %v2481 = vpack.c.b16 %v1825, %v1817
    %v2482 = vpack.c.b16 %v1826, %v1818
    %v2483 = vpack.c.b16 %v1827, %v1819
    %v2484 = vpack.c.b16 %v1828, %v1820
    %v2485 = vpack.c.b16 %v1829, %v1821
    %v2486 = vpack.c.b16 %v1830, %v1822
    %v2487 = vpack.c.b16 %v1839, %v1831
    %v2488 = vpack.c.b16 %v1840, %v1832
    %v2489 = vpack.c.b16 %v1841, %v1833
    %v2490 = vpack.c.b16 %v1842, %v1834
    %v2491 = vpack.c.b16 %v1843, %v1835
    %v2492 = vpack.c.b16 %v1844, %v1836
    %v2493 = vpack.c.b16 %v1845, %v1837
    %v2494 = vpack.c.b16 %v1846, %v1838
    %v2495 = vpack.c.b16 %v1855, %v1847
    %v2496 = vpack.c.b16 %v1856, %v1848
    %v2497 = vpack.c.b16 %v1857, %v1849
    %v2498 = vpack.c.b16 %v1858, %v1850
    %v2499 = vpack.c.b16 %v1859, %v1851
    %v2500 = vpack.c.b16 %v1860, %v1852
    %v2501 = vpack.c.b16 %v1861, %v1853
    %v2502 = vpack.c.b16 %v1862, %v1854
    %v2503 = vpack.c.b16 %v1871, %v1863
    %v2504 = vpack.c.b16 %v1872, %v1864
    %v2505 = vpack.c.b16 %v1873, %v1865
    %v2506 = vpack.c.b16 %v1874, %v1866
    %v2507 = vpack.c.b16 %v1875, %v1867
    %v2508 = vpack.c.b16 %v1876, %v1868
    %v2509 = vpack.c.b16 %v1877, %v1869
    %v2510 = vpack.c.b16 %v1878, %v1870
    %v2511 = vpack.c.b16 %v1887, %v1879
    %v2512 = vpack.c.b16 %v1888, %v1880
    %v2513 = vpack.c.b16 %v1889, %v1881
    %v2514 = vpack.c.b16 %v1890, %v1882
    %v2515 = vpack.c.b16 %v1891, %v1883
    %v2516 = vpack.c.b16 %v1892, %v1884
    %v2517 = vpack.c.b16 %v1893, %v1885
    %v2518 = vpack.c.b16 %v1894, %v1886
    %v2519 = vpack.c.b16 %v1903, %v1895
    %v2520 = vpack.c.b16 %v1904, %v1896
    %v2521 = vpack.c.b16 %v1905, %v1897
    %v2522 = vpack.c.b16 %v1906, %v1898
    %v2523 = vpack.c.b16 %v1907, %v1899
    %v2524 = vpack.c.b16 %v1908, %v1900
    %v2525 = vpack.c.b16 %v1909, %v1901
    %v2526 = vpack.c.b16 %v1910, %v1902
    %v2527 = vpack.c.b16 %v1919, %v1911
    %v2528 = vpack.c.b16 %v1920, %v1912
    %v2529 = vpack.c.b16 %v1921, %v1913
    %v2530 = vpack.c.b16 %v1922, %v1914
    %v2531 = vpack.c.b16 %v1923, %v1915
    %v2532 = vpack.c.b16 %v1924, %v1916
    %v2533 = vpack.c.b16 %v1925, %v1917
    %v2534 = vpack.c.b16 %v1926, %v1918
    %v2535 = vpack.c.b16 %v1935, %v1927
    %v2536 = vpack.c.b16 %v1936, %v1928
    %v2537 = vpack.c.b16 %v1937, %v1929
    %v2538 = vpack.c.b16 %v1938, %v1930
    %v2539 = vpack.c.b16 %v1939, %v1931
    %v2540 = vpack.c.b16 %v1940, %v1932
    %v2541 = vpack.c.b16 %v1941, %v1933
    %v2542 = vpack.c.b16 %v1942, %v1934
    %v2543 = vpack.c.b16 %v1951, %v1943
    %v2544 = vpack.c.b16 %v1952, %v1944
    %v2545 = vpack.c.b16 %v1953, %v1945
    %v2546 = vpack.c.b16 %v1954, %v1946
    %v2547 = vpack.c.b16 %v1955, %v1947
    %v2548 = vpack.c.b16 %v1956, %v1948
    %v2549 = vpack.c.b16 %v1957, %v1949
    %v2550 = vpack.c.b16 %v1958, %v1950
    %v2551 = vpack.c.b16 %v1967, %v1959
    %v2552 = vpack.c.b16 %v1968, %v1960
    %v2553 = vpack.c.b16 %v1969, %v1961
    %v2554 = vpack.c.b16 %v1970, %v1962
    %v2555 = vpack.c.b16 %v1971, %v1963
    %v2556 = vpack.c.b16 %v1972, %v1964
    %v2557 = vpack.c.b16 %v1973, %v1965
    %v2558 = vpack.c.b16 %v1974, %v1966
    %v2559 = vpack.c.b16 %v1983, %v1975
    %v2560 = vpack.c.b16 %v1984, %v1976
    %v2561 = vpack.c.b16 %v1985, %v1977
    %v2562 = vpack.c.b16 %v1986, %v1978
    %v2563 = vpack.c.b16 %v1987, %v1979
    %v2564 = vpack.c.b16 %v1988, %v1980
    %v2565 = vpack.c.b16 %v1989, %v1981
    %v2566 = vpack.c.b16 %v1990, %v1982
    %v2567 = vpack.c.b16 %v1999, %v1991
    %v2568 = vpack.c.b16 %v2000, %v1992
    %v2569 = vpack.c.b16 %v2001, %v1993
    %v2570 = vpack.c.b16 %v2002, %v1994
    %v2571 = vpack.c.b16 %v2003, %v1995
    %v2572 = vpack.c.b16 %v2004, %v1996
    %v2573 = vpack.c.b16 %v2005, %v1997
    %v2574 = vpack.c.b16 %v2006, %v1998
    %v2575 = vpack.c.b16 %v2015, %v2007
    %v2576 = vpack.c.b16 %v2016, %v2008
    %v2577 = vpack.c.b16 %v2017, %v2009
    %v2578 = vpack.c.b16 %v2018, %v2010
    %v2579 = vpack.c.b16 %v2019, %v2011
    %v2580 = vpack.c.b16 %v2020, %v2012
    %v2581 = vpack.c.b16 %v2021, %v2013
    %v2582 = vpack.c.b16 %v2022, %v2014
    %v2583 = vpack.c.b16 %v2031, %v2023
    %v2584 = vpack.c.b16 %v2032, %v2024
    %v2585 = vpack.c.b16 %v2033, %v2025
    %v2586 = vpack.c.b16 %v2034, %v2026
    %v2587 = vpack.c.b16 %v2035, %v2027
    %v2588 = vpack.c.b16 %v2036, %v2028
    %v2589 = vpack.c.b16 %v2037, %v2029
    %v2590 = vpack.c.b16 %v2038, %v2030
    %v2591 = vpack.c.b16 %v2047, %v2039
    %v2592 = vpack.c.b16 %v2048, %v2040
    %v2593 = vpack.c.b16 %v2049, %v2041
    %v2594 = vpack.c.b16 %v2050, %v2042
    %v2595 = vpack.c.b16 %v2051, %v2043
    %v2596 = vpack.c.b16 %v2052, %v2044
    %v2597 = vpack.c.b16 %v2053, %v2045
    %v2598 = vpack.c.b16 %v2054, %v2046
    %v2599 = vpack.c.b16 %v2063, %v2055
    %v2600 = vpack.c.b16 %v2064, %v2056
    %v2601 = vpack.c.b16 %v2065, %v2057
    %v2602 = vpack.c.b16 %v2066, %v2058
    %v2603 = vpack.c.b16 %v2067, %v2059
    %v2604 = vpack.c.b16 %v2068, %v2060
    %v2605 = vpack.c.b16 %v2069, %v2061
    %v2606 = vpack.c.b16 %v2070, %v2062
    %v2607 = vpack.c.b16 %v2079, %v2071
    %v2608 = vpack.c.b16 %v2080, %v2072
    %v2609 = vpack.c.b16 %v2081, %v2073
    %v2610 = vpack.c.b16 %v2082, %v2074
    %v2611 = vpack.c.b16 %v2083, %v2075
    %v2612 = vpack.c.b16 %v2084, %v2076
    %v2613 = vpack.c.b16 %v2085, %v2077
    %v2614 = vpack.c.b16 %v2086, %v2078
    %v2615 = vpack.c.b16 %v2095, %v2087
    %v2616 = vpack.c.b16 %v2096, %v2088
    %v2617 = vpack.c.b16 %v2097, %v2089
    %v2618 = vpack.c.b16 %v2098, %v2090
    %v2619 = vpack.c.b16 %v2099, %v2091
    %v2620 = vpack.c.b16 %v2100, %v2092
    %v2621 = vpack.c.b16 %v2101, %v2093
    %v2622 = vpack.c.b16 %v2102, %v2094
    %v2623 = vpack.c.b16 %v2111, %v2103
    %v2624 = vpack.c.b16 %v2112, %v2104
    %v2625 = vpack.c.b16 %v2113, %v2105
    %v2626 = vpack.c.b16 %v2114, %v2106
    %v2627 = vpack.c.b16 %v2115, %v2107
    %v2628 = vpack.c.b16 %v2116, %v2108
    %v2629 = vpack.c.b16 %v2117, %v2109
    %v2630 = vpack.c.b16 %v2118, %v2110
    %3143 = vmatpush.bf16.msra.mxu0 %v2175
    %3144 = vmatpush.bf16.msra.mxu0 %v2167
    %3145 = vmatpush.bf16.msra.mxu0 %v2159
    %3146 = vmatpush.bf16.msra.mxu0 %v2151
    %3147 = vmatpush.bf16.msra.mxu0 %v2143
    %3148 = vmatpush.bf16.msra.mxu0 %v2135
    %3149 = vmatpush.bf16.msra.mxu0 %v2127
    %3150 = vmatpush.bf16.msra.mxu0 %v2119
    %3151 = vmatmul.bf16.gmra.mxu0 %v567
    %v3152 = vpop.f32.mrf.mxu0
    %v3153 = vadd.f32 %v549, %v3152
    %v3154 = vpop.f32.mrf.mxu0
    %3155 = vdwg.mxu0
    %3156 = vmatpush.bf16.msra.mxu0 %v2239
    %3157 = vmatpush.bf16.msra.mxu0 %v2231
    %3158 = vmatpush.bf16.msra.mxu0 %v2223
    %3159 = vmatpush.bf16.msra.mxu0 %v2215
    %3160 = vmatpush.bf16.msra.mxu0 %v2207
    %3161 = vmatpush.bf16.msra.mxu0 %v2199
    %3162 = vmatpush.bf16.msra.mxu0 %v2191
    %3163 = vmatpush.bf16.msra.mxu0 %v2183
    %3164 = vmatmul.bf16.gmra.mxu0 %v568
    %v3165 = vpop.f32.mrf.mxu0
    %v3166 = vadd.f32 %v3153, %v3165
    %v3167 = vpop.f32.mrf.mxu0
    %3168 = vdwg.mxu0
    %3169 = vmatpush.bf16.msra.mxu0 %v2303
    %3170 = vmatpush.bf16.msra.mxu0 %v2295
    %3171 = vmatpush.bf16.msra.mxu0 %v2287
    %3172 = vmatpush.bf16.msra.mxu0 %v2279
    %3173 = vmatpush.bf16.msra.mxu0 %v2271
    %3174 = vmatpush.bf16.msra.mxu0 %v2263
    %3175 = vmatpush.bf16.msra.mxu0 %v2255
    %3176 = vmatpush.bf16.msra.mxu0 %v2247
    %3177 = vmatmul.bf16.gmra.mxu0 %v569
    %v3178 = vpop.f32.mrf.mxu0
    %v3179 = vadd.f32 %v3166, %v3178
    %v3180 = vpop.f32.mrf.mxu0
    %3181 = vdwg.mxu0
    %3182 = vmatpush.bf16.msra.mxu0 %v2367
    %3183 = vmatpush.bf16.msra.mxu0 %v2359
    %3184 = vmatpush.bf16.msra.mxu0 %v2351
    %3185 = vmatpush.bf16.msra.mxu0 %v2343
    %3186 = vmatpush.bf16.msra.mxu0 %v2335
    %3187 = vmatpush.bf16.msra.mxu0 %v2327
    %3188 = vmatpush.bf16.msra.mxu0 %v2319
    %3189 = vmatpush.bf16.msra.mxu0 %v2311
    %3190 = vmatmul.bf16.gmra.mxu0 %v570
    %v3191 = vpop.f32.mrf.mxu0
    %v3192 = vadd.f32 %v3179, %v3191
    %v3193 = vpop.f32.mrf.mxu0
    %3194 = vdwg.mxu0
    %3195 = vmatpush.bf16.msra.mxu0 %v2431
    %3196 = vmatpush.bf16.msra.mxu0 %v2423
    %3197 = vmatpush.bf16.msra.mxu0 %v2415
    %3198 = vmatpush.bf16.msra.mxu0 %v2407
    %3199 = vmatpush.bf16.msra.mxu0 %v2399
    %3200 = vmatpush.bf16.msra.mxu0 %v2391
    %3201 = vmatpush.bf16.msra.mxu0 %v2383
    %3202 = vmatpush.bf16.msra.mxu0 %v2375
    %3203 = vmatmul.bf16.gmra.mxu0 %v571
    %v3204 = vpop.f32.mrf.mxu0
    %v3205 = vadd.f32 %v3192, %v3204
    %v3206 = vpop.f32.mrf.mxu0
    %3207 = vdwg.mxu0
    %3208 = vmatpush.bf16.msra.mxu0 %v2495
    %3209 = vmatpush.bf16.msra.mxu0 %v2487
    %3210 = vmatpush.bf16.msra.mxu0 %v2479
    %3211 = vmatpush.bf16.msra.mxu0 %v2471
    %3212 = vmatpush.bf16.msra.mxu0 %v2463
    %3213 = vmatpush.bf16.msra.mxu0 %v2455
    %3214 = vmatpush.bf16.msra.mxu0 %v2447
    %3215 = vmatpush.bf16.msra.mxu0 %v2439
    %3216 = vmatmul.bf16.gmra.mxu0 %v572
    %v3217 = vpop.f32.mrf.mxu0
    %v3218 = vadd.f32 %v3205, %v3217
    %v3219 = vpop.f32.mrf.mxu0
    %3220 = vdwg.mxu0
    %3221 = vmatpush.bf16.msra.mxu0 %v2559
    %3222 = vmatpush.bf16.msra.mxu0 %v2551
    %3223 = vmatpush.bf16.msra.mxu0 %v2543
    %3224 = vmatpush.bf16.msra.mxu0 %v2535
    %3225 = vmatpush.bf16.msra.mxu0 %v2527
    %3226 = vmatpush.bf16.msra.mxu0 %v2519
    %3227 = vmatpush.bf16.msra.mxu0 %v2511
    %3228 = vmatpush.bf16.msra.mxu0 %v2503
    %3229 = vmatmul.bf16.gmra.mxu0 %v573
    %v3230 = vpop.f32.mrf.mxu0
    %v3231 = vadd.f32 %v3218, %v3230
    %v3232 = vpop.f32.mrf.mxu0
    %3233 = vdwg.mxu0
    %3234 = vmatpush.bf16.msra.mxu0 %v2623
    %3235 = vmatpush.bf16.msra.mxu0 %v2615
    %3236 = vmatpush.bf16.msra.mxu0 %v2607
    %3237 = vmatpush.bf16.msra.mxu0 %v2599
    %3238 = vmatpush.bf16.msra.mxu0 %v2591
    %3239 = vmatpush.bf16.msra.mxu0 %v2583
    %3240 = vmatpush.bf16.msra.mxu0 %v2575
    %3241 = vmatpush.bf16.msra.mxu0 %v2567
    %3242 = vmatmul.bf16.gmra.mxu0 %v574
    %v3243 = vpop.f32.mrf.mxu0
    %v3244 = vadd.f32 %v3231, %v3243
    %v3245 = vpop.f32.mrf.mxu0
    %3246 = vdwg.mxu0
    %3247 = vmatpush.bf16.msra.mxu0 %v2176
    %3248 = vmatpush.bf16.msra.mxu0 %v2168
    %3249 = vmatpush.bf16.msra.mxu0 %v2160
    %3250 = vmatpush.bf16.msra.mxu0 %v2152
    %3251 = vmatpush.bf16.msra.mxu0 %v2144
    %3252 = vmatpush.bf16.msra.mxu0 %v2136
    %3253 = vmatpush.bf16.msra.mxu0 %v2128
    %3254 = vmatpush.bf16.msra.mxu0 %v2120
    %3255 = vmatmul.bf16.gmra.mxu0 %v567
    %v3256 = vpop.f32.mrf.mxu0
    %v3257 = vadd.f32 %v550, %v3256
    %v3258 = vpop.f32.mrf.mxu0
    %3259 = vdwg.mxu0
    %3260 = vmatpush.bf16.msra.mxu0 %v2240
    %3261 = vmatpush.bf16.msra.mxu0 %v2232
    %3262 = vmatpush.bf16.msra.mxu0 %v2224
    %3263 = vmatpush.bf16.msra.mxu0 %v2216
    %3264 = vmatpush.bf16.msra.mxu0 %v2208
    %3265 = vmatpush.bf16.msra.mxu0 %v2200
    %3266 = vmatpush.bf16.msra.mxu0 %v2192
    %3267 = vmatpush.bf16.msra.mxu0 %v2184
    %3268 = vmatmul.bf16.gmra.mxu0 %v568
    %v3269 = vpop.f32.mrf.mxu0
    %v3270 = vadd.f32 %v3257, %v3269
    %v3271 = vpop.f32.mrf.mxu0
    %3272 = vdwg.mxu0
    %3273 = vmatpush.bf16.msra.mxu0 %v2304
    %3274 = vmatpush.bf16.msra.mxu0 %v2296
    %3275 = vmatpush.bf16.msra.mxu0 %v2288
    %3276 = vmatpush.bf16.msra.mxu0 %v2280
    %3277 = vmatpush.bf16.msra.mxu0 %v2272
    %3278 = vmatpush.bf16.msra.mxu0 %v2264
    %3279 = vmatpush.bf16.msra.mxu0 %v2256
    %3280 = vmatpush.bf16.msra.mxu0 %v2248
    %3281 = vmatmul.bf16.gmra.mxu0 %v569
    %v3282 = vpop.f32.mrf.mxu0
    %v3283 = vadd.f32 %v3270, %v3282
    %v3284 = vpop.f32.mrf.mxu0
    %3285 = vdwg.mxu0
    %3286 = vmatpush.bf16.msra.mxu0 %v2368
    %3287 = vmatpush.bf16.msra.mxu0 %v2360
    %3288 = vmatpush.bf16.msra.mxu0 %v2352
    %3289 = vmatpush.bf16.msra.mxu0 %v2344
    %3290 = vmatpush.bf16.msra.mxu0 %v2336
    %3291 = vmatpush.bf16.msra.mxu0 %v2328
    %3292 = vmatpush.bf16.msra.mxu0 %v2320
    %3293 = vmatpush.bf16.msra.mxu0 %v2312
    %3294 = vmatmul.bf16.gmra.mxu0 %v570
    %v3295 = vpop.f32.mrf.mxu0
    %v3296 = vadd.f32 %v3283, %v3295
    %v3297 = vpop.f32.mrf.mxu0
    %3298 = vdwg.mxu0
    %3299 = vmatpush.bf16.msra.mxu0 %v2432
    %3300 = vmatpush.bf16.msra.mxu0 %v2424
    %3301 = vmatpush.bf16.msra.mxu0 %v2416
    %3302 = vmatpush.bf16.msra.mxu0 %v2408
    %3303 = vmatpush.bf16.msra.mxu0 %v2400
    %3304 = vmatpush.bf16.msra.mxu0 %v2392
    %3305 = vmatpush.bf16.msra.mxu0 %v2384
    %3306 = vmatpush.bf16.msra.mxu0 %v2376
    %3307 = vmatmul.bf16.gmra.mxu0 %v571
    %v3308 = vpop.f32.mrf.mxu0
    %v3309 = vadd.f32 %v3296, %v3308
    %v3310 = vpop.f32.mrf.mxu0
    %3311 = vdwg.mxu0
    %3312 = vmatpush.bf16.msra.mxu0 %v2496
    %3313 = vmatpush.bf16.msra.mxu0 %v2488
    %3314 = vmatpush.bf16.msra.mxu0 %v2480
    %3315 = vmatpush.bf16.msra.mxu0 %v2472
    %3316 = vmatpush.bf16.msra.mxu0 %v2464
    %3317 = vmatpush.bf16.msra.mxu0 %v2456
    %3318 = vmatpush.bf16.msra.mxu0 %v2448
    %3319 = vmatpush.bf16.msra.mxu0 %v2440
    %3320 = vmatmul.bf16.gmra.mxu0 %v572
    %v3321 = vpop.f32.mrf.mxu0
    %v3322 = vadd.f32 %v3309, %v3321
    %v3323 = vpop.f32.mrf.mxu0
    %3324 = vdwg.mxu0
    %3325 = vmatpush.bf16.msra.mxu0 %v2560
    %3326 = vmatpush.bf16.msra.mxu0 %v2552
    %3327 = vmatpush.bf16.msra.mxu0 %v2544
    %3328 = vmatpush.bf16.msra.mxu0 %v2536
    %3329 = vmatpush.bf16.msra.mxu0 %v2528
    %3330 = vmatpush.bf16.msra.mxu0 %v2520
    %3331 = vmatpush.bf16.msra.mxu0 %v2512
    %3332 = vmatpush.bf16.msra.mxu0 %v2504
    %3333 = vmatmul.bf16.gmra.mxu0 %v573
    %v3334 = vpop.f32.mrf.mxu0
    %v3335 = vadd.f32 %v3322, %v3334
    %v3336 = vpop.f32.mrf.mxu0
    %3337 = vdwg.mxu0
    %3338 = vmatpush.bf16.msra.mxu0 %v2624
    %3339 = vmatpush.bf16.msra.mxu0 %v2616
    %3340 = vmatpush.bf16.msra.mxu0 %v2608
    %3341 = vmatpush.bf16.msra.mxu0 %v2600
    %3342 = vmatpush.bf16.msra.mxu0 %v2592
    %3343 = vmatpush.bf16.msra.mxu0 %v2584
    %3344 = vmatpush.bf16.msra.mxu0 %v2576
    %3345 = vmatpush.bf16.msra.mxu0 %v2568
    %3346 = vmatmul.bf16.gmra.mxu0 %v574
    %v3347 = vpop.f32.mrf.mxu0
    %v3348 = vadd.f32 %v3335, %v3347
    %v3349 = vpop.f32.mrf.mxu0
    %3350 = vdwg.mxu0
    %3351 = vmatpush.bf16.msra.mxu0 %v2177
    %3352 = vmatpush.bf16.msra.mxu0 %v2169
    %3353 = vmatpush.bf16.msra.mxu0 %v2161
    %3354 = vmatpush.bf16.msra.mxu0 %v2153
    %3355 = vmatpush.bf16.msra.mxu0 %v2145
    %3356 = vmatpush.bf16.msra.mxu0 %v2137
    %3357 = vmatpush.bf16.msra.mxu0 %v2129
    %3358 = vmatpush.bf16.msra.mxu0 %v2121
    %3359 = vmatmul.bf16.gmra.mxu0 %v567
    %v3360 = vpop.f32.mrf.mxu0
    %v3361 = vadd.f32 %v551, %v3360
    %v3362 = vpop.f32.mrf.mxu0
    %3363 = vdwg.mxu0
    %3364 = vmatpush.bf16.msra.mxu0 %v2241
    %3365 = vmatpush.bf16.msra.mxu0 %v2233
    %3366 = vmatpush.bf16.msra.mxu0 %v2225
    %3367 = vmatpush.bf16.msra.mxu0 %v2217
    %3368 = vmatpush.bf16.msra.mxu0 %v2209
    %3369 = vmatpush.bf16.msra.mxu0 %v2201
    %3370 = vmatpush.bf16.msra.mxu0 %v2193
    %3371 = vmatpush.bf16.msra.mxu0 %v2185
    %3372 = vmatmul.bf16.gmra.mxu0 %v568
    %v3373 = vpop.f32.mrf.mxu0
    %v3374 = vadd.f32 %v3361, %v3373
    %v3375 = vpop.f32.mrf.mxu0
    %3376 = vdwg.mxu0
    %3377 = vmatpush.bf16.msra.mxu0 %v2305
    %3378 = vmatpush.bf16.msra.mxu0 %v2297
    %3379 = vmatpush.bf16.msra.mxu0 %v2289
    %3380 = vmatpush.bf16.msra.mxu0 %v2281
    %3381 = vmatpush.bf16.msra.mxu0 %v2273
    %3382 = vmatpush.bf16.msra.mxu0 %v2265
    %3383 = vmatpush.bf16.msra.mxu0 %v2257
    %3384 = vmatpush.bf16.msra.mxu0 %v2249
    %3385 = vmatmul.bf16.gmra.mxu0 %v569
    %v3386 = vpop.f32.mrf.mxu0
    %v3387 = vadd.f32 %v3374, %v3386
    %v3388 = vpop.f32.mrf.mxu0
    %3389 = vdwg.mxu0
    %3390 = vmatpush.bf16.msra.mxu0 %v2369
    %3391 = vmatpush.bf16.msra.mxu0 %v2361
    %3392 = vmatpush.bf16.msra.mxu0 %v2353
    %3393 = vmatpush.bf16.msra.mxu0 %v2345
    %3394 = vmatpush.bf16.msra.mxu0 %v2337
    %3395 = vmatpush.bf16.msra.mxu0 %v2329
    %3396 = vmatpush.bf16.msra.mxu0 %v2321
    %3397 = vmatpush.bf16.msra.mxu0 %v2313
    %3398 = vmatmul.bf16.gmra.mxu0 %v570
    %v3399 = vpop.f32.mrf.mxu0
    %v3400 = vadd.f32 %v3387, %v3399
    %v3401 = vpop.f32.mrf.mxu0
    %3402 = vdwg.mxu0
    %3403 = vmatpush.bf16.msra.mxu0 %v2433
    %3404 = vmatpush.bf16.msra.mxu0 %v2425
    %3405 = vmatpush.bf16.msra.mxu0 %v2417
    %3406 = vmatpush.bf16.msra.mxu0 %v2409
    %3407 = vmatpush.bf16.msra.mxu0 %v2401
    %3408 = vmatpush.bf16.msra.mxu0 %v2393
    %3409 = vmatpush.bf16.msra.mxu0 %v2385
    %3410 = vmatpush.bf16.msra.mxu0 %v2377
    %3411 = vmatmul.bf16.gmra.mxu0 %v571
    %v3412 = vpop.f32.mrf.mxu0
    %v3413 = vadd.f32 %v3400, %v3412
    %v3414 = vpop.f32.mrf.mxu0
    %3415 = vdwg.mxu0
    %3416 = vmatpush.bf16.msra.mxu0 %v2497
    %3417 = vmatpush.bf16.msra.mxu0 %v2489
    %3418 = vmatpush.bf16.msra.mxu0 %v2481
    %3419 = vmatpush.bf16.msra.mxu0 %v2473
    %3420 = vmatpush.bf16.msra.mxu0 %v2465
    %3421 = vmatpush.bf16.msra.mxu0 %v2457
    %3422 = vmatpush.bf16.msra.mxu0 %v2449
    %3423 = vmatpush.bf16.msra.mxu0 %v2441
    %3424 = vmatmul.bf16.gmra.mxu0 %v572
    %v3425 = vpop.f32.mrf.mxu0
    %v3426 = vadd.f32 %v3413, %v3425
    %v3427 = vpop.f32.mrf.mxu0
    %3428 = vdwg.mxu0
    %3429 = vmatpush.bf16.msra.mxu0 %v2561
    %3430 = vmatpush.bf16.msra.mxu0 %v2553
    %3431 = vmatpush.bf16.msra.mxu0 %v2545
    %3432 = vmatpush.bf16.msra.mxu0 %v2537
    %3433 = vmatpush.bf16.msra.mxu0 %v2529
    %3434 = vmatpush.bf16.msra.mxu0 %v2521
    %3435 = vmatpush.bf16.msra.mxu0 %v2513
    %3436 = vmatpush.bf16.msra.mxu0 %v2505
    %3437 = vmatmul.bf16.gmra.mxu0 %v573
    %v3438 = vpop.f32.mrf.mxu0
    %v3439 = vadd.f32 %v3426, %v3438
    %v3440 = vpop.f32.mrf.mxu0
    %3441 = vdwg.mxu0
    %3442 = vmatpush.bf16.msra.mxu0 %v2625
    %3443 = vmatpush.bf16.msra.mxu0 %v2617
    %3444 = vmatpush.bf16.msra.mxu0 %v2609
    %3445 = vmatpush.bf16.msra.mxu0 %v2601
    %3446 = vmatpush.bf16.msra.mxu0 %v2593
    %3447 = vmatpush.bf16.msra.mxu0 %v2585
    %3448 = vmatpush.bf16.msra.mxu0 %v2577
    %3449 = vmatpush.bf16.msra.mxu0 %v2569
    %3450 = vmatmul.bf16.gmra.mxu0 %v574
    %v3451 = vpop.f32.mrf.mxu0
    %v3452 = vadd.f32 %v3439, %v3451
    %v3453 = vpop.f32.mrf.mxu0
    %3454 = vdwg.mxu0
    %3455 = vmatpush.bf16.msra.mxu0 %v2178
    %3456 = vmatpush.bf16.msra.mxu0 %v2170
    %3457 = vmatpush.bf16.msra.mxu0 %v2162
    %3458 = vmatpush.bf16.msra.mxu0 %v2154
    %3459 = vmatpush.bf16.msra.mxu0 %v2146
    %3460 = vmatpush.bf16.msra.mxu0 %v2138
    %3461 = vmatpush.bf16.msra.mxu0 %v2130
    %3462 = vmatpush.bf16.msra.mxu0 %v2122
    %3463 = vmatmul.bf16.gmra.mxu0 %v567
    %v3464 = vpop.f32.mrf.mxu0
    %v3465 = vadd.f32 %v552, %v3464
    %v3466 = vpop.f32.mrf.mxu0
    %3467 = vdwg.mxu0
    %3468 = vmatpush.bf16.msra.mxu0 %v2242
    %3469 = vmatpush.bf16.msra.mxu0 %v2234
    %3470 = vmatpush.bf16.msra.mxu0 %v2226
    %3471 = vmatpush.bf16.msra.mxu0 %v2218
    %3472 = vmatpush.bf16.msra.mxu0 %v2210
    %3473 = vmatpush.bf16.msra.mxu0 %v2202
    %3474 = vmatpush.bf16.msra.mxu0 %v2194
    %3475 = vmatpush.bf16.msra.mxu0 %v2186
    %3476 = vmatmul.bf16.gmra.mxu0 %v568
    %v3477 = vpop.f32.mrf.mxu0
    %v3478 = vadd.f32 %v3465, %v3477
    %v3479 = vpop.f32.mrf.mxu0
    %3480 = vdwg.mxu0
    %3481 = vmatpush.bf16.msra.mxu0 %v2306
    %3482 = vmatpush.bf16.msra.mxu0 %v2298
    %3483 = vmatpush.bf16.msra.mxu0 %v2290
    %3484 = vmatpush.bf16.msra.mxu0 %v2282
    %3485 = vmatpush.bf16.msra.mxu0 %v2274
    %3486 = vmatpush.bf16.msra.mxu0 %v2266
    %3487 = vmatpush.bf16.msra.mxu0 %v2258
    %3488 = vmatpush.bf16.msra.mxu0 %v2250
    %3489 = vmatmul.bf16.gmra.mxu0 %v569
    %v3490 = vpop.f32.mrf.mxu0
    %v3491 = vadd.f32 %v3478, %v3490
    %v3492 = vpop.f32.mrf.mxu0
    %3493 = vdwg.mxu0
    %3494 = vmatpush.bf16.msra.mxu0 %v2370
    %3495 = vmatpush.bf16.msra.mxu0 %v2362
    %3496 = vmatpush.bf16.msra.mxu0 %v2354
    %3497 = vmatpush.bf16.msra.mxu0 %v2346
    %3498 = vmatpush.bf16.msra.mxu0 %v2338
    %3499 = vmatpush.bf16.msra.mxu0 %v2330
    %3500 = vmatpush.bf16.msra.mxu0 %v2322
    %3501 = vmatpush.bf16.msra.mxu0 %v2314
    %3502 = vmatmul.bf16.gmra.mxu0 %v570
    %v3503 = vpop.f32.mrf.mxu0
    %v3504 = vadd.f32 %v3491, %v3503
    %v3505 = vpop.f32.mrf.mxu0
    %3506 = vdwg.mxu0
    %3507 = vmatpush.bf16.msra.mxu0 %v2434
    %3508 = vmatpush.bf16.msra.mxu0 %v2426
    %3509 = vmatpush.bf16.msra.mxu0 %v2418
    %3510 = vmatpush.bf16.msra.mxu0 %v2410
    %3511 = vmatpush.bf16.msra.mxu0 %v2402
    %3512 = vmatpush.bf16.msra.mxu0 %v2394
    %3513 = vmatpush.bf16.msra.mxu0 %v2386
    %3514 = vmatpush.bf16.msra.mxu0 %v2378
    %3515 = vmatmul.bf16.gmra.mxu0 %v571
    %v3516 = vpop.f32.mrf.mxu0
    %v3517 = vadd.f32 %v3504, %v3516
    %v3518 = vpop.f32.mrf.mxu0
    %3519 = vdwg.mxu0
    %3520 = vmatpush.bf16.msra.mxu0 %v2498
    %3521 = vmatpush.bf16.msra.mxu0 %v2490
    %3522 = vmatpush.bf16.msra.mxu0 %v2482
    %3523 = vmatpush.bf16.msra.mxu0 %v2474
    %3524 = vmatpush.bf16.msra.mxu0 %v2466
    %3525 = vmatpush.bf16.msra.mxu0 %v2458
    %3526 = vmatpush.bf16.msra.mxu0 %v2450
    %3527 = vmatpush.bf16.msra.mxu0 %v2442
    %3528 = vmatmul.bf16.gmra.mxu0 %v572
    %v3529 = vpop.f32.mrf.mxu0
    %v3530 = vadd.f32 %v3517, %v3529
    %v3531 = vpop.f32.mrf.mxu0
    %3532 = vdwg.mxu0
    %3533 = vmatpush.bf16.msra.mxu0 %v2562
    %3534 = vmatpush.bf16.msra.mxu0 %v2554
    %3535 = vmatpush.bf16.msra.mxu0 %v2546
    %3536 = vmatpush.bf16.msra.mxu0 %v2538
    %3537 = vmatpush.bf16.msra.mxu0 %v2530
    %3538 = vmatpush.bf16.msra.mxu0 %v2522
    %3539 = vmatpush.bf16.msra.mxu0 %v2514
    %3540 = vmatpush.bf16.msra.mxu0 %v2506
    %3541 = vmatmul.bf16.gmra.mxu0 %v573
    %v3542 = vpop.f32.mrf.mxu0
    %v3543 = vadd.f32 %v3530, %v3542
    %v3544 = vpop.f32.mrf.mxu0
    %3545 = vdwg.mxu0
    %3546 = vmatpush.bf16.msra.mxu0 %v2626
    %3547 = vmatpush.bf16.msra.mxu0 %v2618
    %3548 = vmatpush.bf16.msra.mxu0 %v2610
    %3549 = vmatpush.bf16.msra.mxu0 %v2602
    %3550 = vmatpush.bf16.msra.mxu0 %v2594
    %3551 = vmatpush.bf16.msra.mxu0 %v2586
    %3552 = vmatpush.bf16.msra.mxu0 %v2578
    %3553 = vmatpush.bf16.msra.mxu0 %v2570
    %3554 = vmatmul.bf16.gmra.mxu0 %v574
    %v3555 = vpop.f32.mrf.mxu0
    %v3556 = vadd.f32 %v3543, %v3555
    %v3557 = vpop.f32.mrf.mxu0
    %3558 = vdwg.mxu0
    %3559 = vmatpush.bf16.msra.mxu0 %v2179
    %3560 = vmatpush.bf16.msra.mxu0 %v2171
    %3561 = vmatpush.bf16.msra.mxu0 %v2163
    %3562 = vmatpush.bf16.msra.mxu0 %v2155
    %3563 = vmatpush.bf16.msra.mxu0 %v2147
    %3564 = vmatpush.bf16.msra.mxu0 %v2139
    %3565 = vmatpush.bf16.msra.mxu0 %v2131
    %3566 = vmatpush.bf16.msra.mxu0 %v2123
    %3567 = vmatmul.bf16.gmra.mxu0 %v567
    %v3568 = vpop.f32.mrf.mxu0
    %v3569 = vadd.f32 %v553, %v3568
    %v3570 = vpop.f32.mrf.mxu0
    %3571 = vdwg.mxu0
    %3572 = vmatpush.bf16.msra.mxu0 %v2243
    %3573 = vmatpush.bf16.msra.mxu0 %v2235
    %3574 = vmatpush.bf16.msra.mxu0 %v2227
    %3575 = vmatpush.bf16.msra.mxu0 %v2219
    %3576 = vmatpush.bf16.msra.mxu0 %v2211
    %3577 = vmatpush.bf16.msra.mxu0 %v2203
    %3578 = vmatpush.bf16.msra.mxu0 %v2195
    %3579 = vmatpush.bf16.msra.mxu0 %v2187
    %3580 = vmatmul.bf16.gmra.mxu0 %v568
    %v3581 = vpop.f32.mrf.mxu0
    %v3582 = vadd.f32 %v3569, %v3581
    %v3583 = vpop.f32.mrf.mxu0
    %3584 = vdwg.mxu0
    %3585 = vmatpush.bf16.msra.mxu0 %v2307
    %3586 = vmatpush.bf16.msra.mxu0 %v2299
    %3587 = vmatpush.bf16.msra.mxu0 %v2291
    %3588 = vmatpush.bf16.msra.mxu0 %v2283
    %3589 = vmatpush.bf16.msra.mxu0 %v2275
    %3590 = vmatpush.bf16.msra.mxu0 %v2267
    %3591 = vmatpush.bf16.msra.mxu0 %v2259
    %3592 = vmatpush.bf16.msra.mxu0 %v2251
    %3593 = vmatmul.bf16.gmra.mxu0 %v569
    %v3594 = vpop.f32.mrf.mxu0
    %v3595 = vadd.f32 %v3582, %v3594
    %v3596 = vpop.f32.mrf.mxu0
    %3597 = vdwg.mxu0
    %3598 = vmatpush.bf16.msra.mxu0 %v2371
    %3599 = vmatpush.bf16.msra.mxu0 %v2363
    %3600 = vmatpush.bf16.msra.mxu0 %v2355
    %3601 = vmatpush.bf16.msra.mxu0 %v2347
    %3602 = vmatpush.bf16.msra.mxu0 %v2339
    %3603 = vmatpush.bf16.msra.mxu0 %v2331
    %3604 = vmatpush.bf16.msra.mxu0 %v2323
    %3605 = vmatpush.bf16.msra.mxu0 %v2315
    %3606 = vmatmul.bf16.gmra.mxu0 %v570
    %v3607 = vpop.f32.mrf.mxu0
    %v3608 = vadd.f32 %v3595, %v3607
    %v3609 = vpop.f32.mrf.mxu0
    %3610 = vdwg.mxu0
    %3611 = vmatpush.bf16.msra.mxu0 %v2435
    %3612 = vmatpush.bf16.msra.mxu0 %v2427
    %3613 = vmatpush.bf16.msra.mxu0 %v2419
    %3614 = vmatpush.bf16.msra.mxu0 %v2411
    %3615 = vmatpush.bf16.msra.mxu0 %v2403
    %3616 = vmatpush.bf16.msra.mxu0 %v2395
    %3617 = vmatpush.bf16.msra.mxu0 %v2387
    %3618 = vmatpush.bf16.msra.mxu0 %v2379
    %3619 = vmatmul.bf16.gmra.mxu0 %v571
    %v3620 = vpop.f32.mrf.mxu0
    %v3621 = vadd.f32 %v3608, %v3620
    %v3622 = vpop.f32.mrf.mxu0
    %3623 = vdwg.mxu0
    %3624 = vmatpush.bf16.msra.mxu0 %v2499
    %3625 = vmatpush.bf16.msra.mxu0 %v2491
    %3626 = vmatpush.bf16.msra.mxu0 %v2483
    %3627 = vmatpush.bf16.msra.mxu0 %v2475
    %3628 = vmatpush.bf16.msra.mxu0 %v2467
    %3629 = vmatpush.bf16.msra.mxu0 %v2459
    %3630 = vmatpush.bf16.msra.mxu0 %v2451
    %3631 = vmatpush.bf16.msra.mxu0 %v2443
    %3632 = vmatmul.bf16.gmra.mxu0 %v572
    %v3633 = vpop.f32.mrf.mxu0
    %v3634 = vadd.f32 %v3621, %v3633
    %v3635 = vpop.f32.mrf.mxu0
    %3636 = vdwg.mxu0
    %3637 = vmatpush.bf16.msra.mxu0 %v2563
    %3638 = vmatpush.bf16.msra.mxu0 %v2555
    %3639 = vmatpush.bf16.msra.mxu0 %v2547
    %3640 = vmatpush.bf16.msra.mxu0 %v2539
    %3641 = vmatpush.bf16.msra.mxu0 %v2531
    %3642 = vmatpush.bf16.msra.mxu0 %v2523
    %3643 = vmatpush.bf16.msra.mxu0 %v2515
    %3644 = vmatpush.bf16.msra.mxu0 %v2507
    %3645 = vmatmul.bf16.gmra.mxu0 %v573
    %v3646 = vpop.f32.mrf.mxu0
    %v3647 = vadd.f32 %v3634, %v3646
    %v3648 = vpop.f32.mrf.mxu0
    %3649 = vdwg.mxu0
    %3650 = vmatpush.bf16.msra.mxu0 %v2627
    %3651 = vmatpush.bf16.msra.mxu0 %v2619
    %3652 = vmatpush.bf16.msra.mxu0 %v2611
    %3653 = vmatpush.bf16.msra.mxu0 %v2603
    %3654 = vmatpush.bf16.msra.mxu0 %v2595
    %3655 = vmatpush.bf16.msra.mxu0 %v2587
    %3656 = vmatpush.bf16.msra.mxu0 %v2579
    %3657 = vmatpush.bf16.msra.mxu0 %v2571
    %3658 = vmatmul.bf16.gmra.mxu0 %v574
    %v3659 = vpop.f32.mrf.mxu0
    %v3660 = vadd.f32 %v3647, %v3659
    %v3661 = vpop.f32.mrf.mxu0
    %3662 = vdwg.mxu0
    %3663 = vmatpush.bf16.msra.mxu0 %v2180
    %3664 = vmatpush.bf16.msra.mxu0 %v2172
    %3665 = vmatpush.bf16.msra.mxu0 %v2164
    %3666 = vmatpush.bf16.msra.mxu0 %v2156
    %3667 = vmatpush.bf16.msra.mxu0 %v2148
    %3668 = vmatpush.bf16.msra.mxu0 %v2140
    %3669 = vmatpush.bf16.msra.mxu0 %v2132
    %3670 = vmatpush.bf16.msra.mxu0 %v2124
    %3671 = vmatmul.bf16.gmra.mxu0 %v567
    %v3672 = vpop.f32.mrf.mxu0
    %v3673 = vadd.f32 %v554, %v3672
    %v3674 = vpop.f32.mrf.mxu0
    %3675 = vdwg.mxu0
    %3676 = vmatpush.bf16.msra.mxu0 %v2244
    %3677 = vmatpush.bf16.msra.mxu0 %v2236
    %3678 = vmatpush.bf16.msra.mxu0 %v2228
    %3679 = vmatpush.bf16.msra.mxu0 %v2220
    %3680 = vmatpush.bf16.msra.mxu0 %v2212
    %3681 = vmatpush.bf16.msra.mxu0 %v2204
    %3682 = vmatpush.bf16.msra.mxu0 %v2196
    %3683 = vmatpush.bf16.msra.mxu0 %v2188
    %3684 = vmatmul.bf16.gmra.mxu0 %v568
    %v3685 = vpop.f32.mrf.mxu0
    %v3686 = vadd.f32 %v3673, %v3685
    %v3687 = vpop.f32.mrf.mxu0
    %3688 = vdwg.mxu0
    %3689 = vmatpush.bf16.msra.mxu0 %v2308
    %3690 = vmatpush.bf16.msra.mxu0 %v2300
    %3691 = vmatpush.bf16.msra.mxu0 %v2292
    %3692 = vmatpush.bf16.msra.mxu0 %v2284
    %3693 = vmatpush.bf16.msra.mxu0 %v2276
    %3694 = vmatpush.bf16.msra.mxu0 %v2268
    %3695 = vmatpush.bf16.msra.mxu0 %v2260
    %3696 = vmatpush.bf16.msra.mxu0 %v2252
    %3697 = vmatmul.bf16.gmra.mxu0 %v569
    %v3698 = vpop.f32.mrf.mxu0
    %v3699 = vadd.f32 %v3686, %v3698
    %v3700 = vpop.f32.mrf.mxu0
    %3701 = vdwg.mxu0
    %3702 = vmatpush.bf16.msra.mxu0 %v2372
    %3703 = vmatpush.bf16.msra.mxu0 %v2364
    %3704 = vmatpush.bf16.msra.mxu0 %v2356
    %3705 = vmatpush.bf16.msra.mxu0 %v2348
    %3706 = vmatpush.bf16.msra.mxu0 %v2340
    %3707 = vmatpush.bf16.msra.mxu0 %v2332
    %3708 = vmatpush.bf16.msra.mxu0 %v2324
    %3709 = vmatpush.bf16.msra.mxu0 %v2316
    %3710 = vmatmul.bf16.gmra.mxu0 %v570
    %v3711 = vpop.f32.mrf.mxu0
    %v3712 = vadd.f32 %v3699, %v3711
    %v3713 = vpop.f32.mrf.mxu0
    %3714 = vdwg.mxu0
    %3715 = vmatpush.bf16.msra.mxu0 %v2436
    %3716 = vmatpush.bf16.msra.mxu0 %v2428
    %3717 = vmatpush.bf16.msra.mxu0 %v2420
    %3718 = vmatpush.bf16.msra.mxu0 %v2412
    %3719 = vmatpush.bf16.msra.mxu0 %v2404
    %3720 = vmatpush.bf16.msra.mxu0 %v2396
    %3721 = vmatpush.bf16.msra.mxu0 %v2388
    %3722 = vmatpush.bf16.msra.mxu0 %v2380
    %3723 = vmatmul.bf16.gmra.mxu0 %v571
    %v3724 = vpop.f32.mrf.mxu0
    %v3725 = vadd.f32 %v3712, %v3724
    %v3726 = vpop.f32.mrf.mxu0
    %3727 = vdwg.mxu0
    %3728 = vmatpush.bf16.msra.mxu0 %v2500
    %3729 = vmatpush.bf16.msra.mxu0 %v2492
    %3730 = vmatpush.bf16.msra.mxu0 %v2484
    %3731 = vmatpush.bf16.msra.mxu0 %v2476
    %3732 = vmatpush.bf16.msra.mxu0 %v2468
    %3733 = vmatpush.bf16.msra.mxu0 %v2460
    %3734 = vmatpush.bf16.msra.mxu0 %v2452
    %3735 = vmatpush.bf16.msra.mxu0 %v2444
    %3736 = vmatmul.bf16.gmra.mxu0 %v572
    %v3737 = vpop.f32.mrf.mxu0
    %v3738 = vadd.f32 %v3725, %v3737
    %v3739 = vpop.f32.mrf.mxu0
    %3740 = vdwg.mxu0
    %3741 = vmatpush.bf16.msra.mxu0 %v2564
    %3742 = vmatpush.bf16.msra.mxu0 %v2556
    %3743 = vmatpush.bf16.msra.mxu0 %v2548
    %3744 = vmatpush.bf16.msra.mxu0 %v2540
    %3745 = vmatpush.bf16.msra.mxu0 %v2532
    %3746 = vmatpush.bf16.msra.mxu0 %v2524
    %3747 = vmatpush.bf16.msra.mxu0 %v2516
    %3748 = vmatpush.bf16.msra.mxu0 %v2508
    %3749 = vmatmul.bf16.gmra.mxu0 %v573
    %v3750 = vpop.f32.mrf.mxu0
    %v3751 = vadd.f32 %v3738, %v3750
    %v3752 = vpop.f32.mrf.mxu0
    %3753 = vdwg.mxu0
    %3754 = vmatpush.bf16.msra.mxu0 %v2628
    %3755 = vmatpush.bf16.msra.mxu0 %v2620
    %3756 = vmatpush.bf16.msra.mxu0 %v2612
    %3757 = vmatpush.bf16.msra.mxu0 %v2604
    %3758 = vmatpush.bf16.msra.mxu0 %v2596
    %3759 = vmatpush.bf16.msra.mxu0 %v2588
    %3760 = vmatpush.bf16.msra.mxu0 %v2580
    %3761 = vmatpush.bf16.msra.mxu0 %v2572
    %3762 = vmatmul.bf16.gmra.mxu0 %v574
    %v3763 = vpop.f32.mrf.mxu0
    %v3764 = vadd.f32 %v3751, %v3763
    %v3765 = vpop.f32.mrf.mxu0
    %3766 = vdwg.mxu0
    %3767 = vmatpush.bf16.msra.mxu0 %v2181
    %3768 = vmatpush.bf16.msra.mxu0 %v2173
    %3769 = vmatpush.bf16.msra.mxu0 %v2165
    %3770 = vmatpush.bf16.msra.mxu0 %v2157
    %3771 = vmatpush.bf16.msra.mxu0 %v2149
    %3772 = vmatpush.bf16.msra.mxu0 %v2141
    %3773 = vmatpush.bf16.msra.mxu0 %v2133
    %3774 = vmatpush.bf16.msra.mxu0 %v2125
    %3775 = vmatmul.bf16.gmra.mxu0 %v567
    %v3776 = vpop.f32.mrf.mxu0
    %v3777 = vadd.f32 %v555, %v3776
    %v3778 = vpop.f32.mrf.mxu0
    %3779 = vdwg.mxu0
    %3780 = vmatpush.bf16.msra.mxu0 %v2245
    %3781 = vmatpush.bf16.msra.mxu0 %v2237
    %3782 = vmatpush.bf16.msra.mxu0 %v2229
    %3783 = vmatpush.bf16.msra.mxu0 %v2221
    %3784 = vmatpush.bf16.msra.mxu0 %v2213
    %3785 = vmatpush.bf16.msra.mxu0 %v2205
    %3786 = vmatpush.bf16.msra.mxu0 %v2197
    %3787 = vmatpush.bf16.msra.mxu0 %v2189
    %3788 = vmatmul.bf16.gmra.mxu0 %v568
    %v3789 = vpop.f32.mrf.mxu0
    %v3790 = vadd.f32 %v3777, %v3789
    %v3791 = vpop.f32.mrf.mxu0
    %3792 = vdwg.mxu0
    %3793 = vmatpush.bf16.msra.mxu0 %v2309
    %3794 = vmatpush.bf16.msra.mxu0 %v2301
    %3795 = vmatpush.bf16.msra.mxu0 %v2293
    %3796 = vmatpush.bf16.msra.mxu0 %v2285
    %3797 = vmatpush.bf16.msra.mxu0 %v2277
    %3798 = vmatpush.bf16.msra.mxu0 %v2269
    %3799 = vmatpush.bf16.msra.mxu0 %v2261
    %3800 = vmatpush.bf16.msra.mxu0 %v2253
    %3801 = vmatmul.bf16.gmra.mxu0 %v569
    %v3802 = vpop.f32.mrf.mxu0
    %v3803 = vadd.f32 %v3790, %v3802
    %v3804 = vpop.f32.mrf.mxu0
    %3805 = vdwg.mxu0
    %3806 = vmatpush.bf16.msra.mxu0 %v2373
    %3807 = vmatpush.bf16.msra.mxu0 %v2365
    %3808 = vmatpush.bf16.msra.mxu0 %v2357
    %3809 = vmatpush.bf16.msra.mxu0 %v2349
    %3810 = vmatpush.bf16.msra.mxu0 %v2341
    %3811 = vmatpush.bf16.msra.mxu0 %v2333
    %3812 = vmatpush.bf16.msra.mxu0 %v2325
    %3813 = vmatpush.bf16.msra.mxu0 %v2317
    %3814 = vmatmul.bf16.gmra.mxu0 %v570
    %v3815 = vpop.f32.mrf.mxu0
    %v3816 = vadd.f32 %v3803, %v3815
    %v3817 = vpop.f32.mrf.mxu0
    %3818 = vdwg.mxu0
    %3819 = vmatpush.bf16.msra.mxu0 %v2437
    %3820 = vmatpush.bf16.msra.mxu0 %v2429
    %3821 = vmatpush.bf16.msra.mxu0 %v2421
    %3822 = vmatpush.bf16.msra.mxu0 %v2413
    %3823 = vmatpush.bf16.msra.mxu0 %v2405
    %3824 = vmatpush.bf16.msra.mxu0 %v2397
    %3825 = vmatpush.bf16.msra.mxu0 %v2389
    %3826 = vmatpush.bf16.msra.mxu0 %v2381
    %3827 = vmatmul.bf16.gmra.mxu0 %v571
    %v3828 = vpop.f32.mrf.mxu0
    %v3829 = vadd.f32 %v3816, %v3828
    %v3830 = vpop.f32.mrf.mxu0
    %3831 = vdwg.mxu0
    %3832 = vmatpush.bf16.msra.mxu0 %v2501
    %3833 = vmatpush.bf16.msra.mxu0 %v2493
    %3834 = vmatpush.bf16.msra.mxu0 %v2485
    %3835 = vmatpush.bf16.msra.mxu0 %v2477
    %3836 = vmatpush.bf16.msra.mxu0 %v2469
    %3837 = vmatpush.bf16.msra.mxu0 %v2461
    %3838 = vmatpush.bf16.msra.mxu0 %v2453
    %3839 = vmatpush.bf16.msra.mxu0 %v2445
    %3840 = vmatmul.bf16.gmra.mxu0 %v572
    %v3841 = vpop.f32.mrf.mxu0
    %v3842 = vadd.f32 %v3829, %v3841
    %v3843 = vpop.f32.mrf.mxu0
    %3844 = vdwg.mxu0
    %3845 = vmatpush.bf16.msra.mxu0 %v2565
    %3846 = vmatpush.bf16.msra.mxu0 %v2557
    %3847 = vmatpush.bf16.msra.mxu0 %v2549
    %3848 = vmatpush.bf16.msra.mxu0 %v2541
    %3849 = vmatpush.bf16.msra.mxu0 %v2533
    %3850 = vmatpush.bf16.msra.mxu0 %v2525
    %3851 = vmatpush.bf16.msra.mxu0 %v2517
    %3852 = vmatpush.bf16.msra.mxu0 %v2509
    %3853 = vmatmul.bf16.gmra.mxu0 %v573
    %v3854 = vpop.f32.mrf.mxu0
    %v3855 = vadd.f32 %v3842, %v3854
    %v3856 = vpop.f32.mrf.mxu0
    %3857 = vdwg.mxu0
    %3858 = vmatpush.bf16.msra.mxu0 %v2629
    %3859 = vmatpush.bf16.msra.mxu0 %v2621
    %3860 = vmatpush.bf16.msra.mxu0 %v2613
    %3861 = vmatpush.bf16.msra.mxu0 %v2605
    %3862 = vmatpush.bf16.msra.mxu0 %v2597
    %3863 = vmatpush.bf16.msra.mxu0 %v2589
    %3864 = vmatpush.bf16.msra.mxu0 %v2581
    %3865 = vmatpush.bf16.msra.mxu0 %v2573
    %3866 = vmatmul.bf16.gmra.mxu0 %v574
    %v3867 = vpop.f32.mrf.mxu0
    %v3868 = vadd.f32 %v3855, %v3867
    %v3869 = vpop.f32.mrf.mxu0
    %3870 = vdwg.mxu0
    %3871 = vmatpush.bf16.msra.mxu0 %v2182
    %3872 = vmatpush.bf16.msra.mxu0 %v2174
    %3873 = vmatpush.bf16.msra.mxu0 %v2166
    %3874 = vmatpush.bf16.msra.mxu0 %v2158
    %3875 = vmatpush.bf16.msra.mxu0 %v2150
    %3876 = vmatpush.bf16.msra.mxu0 %v2142
    %3877 = vmatpush.bf16.msra.mxu0 %v2134
    %3878 = vmatpush.bf16.msra.mxu0 %v2126
    %3879 = vmatmul.bf16.gmra.mxu0 %v567
    %v3880 = vpop.f32.mrf.mxu0
    %v3881 = vadd.f32 %v556, %v3880
    %v3882 = vpop.f32.mrf.mxu0
    %3883 = vdwg.mxu0
    %3884 = vmatpush.bf16.msra.mxu0 %v2246
    %3885 = vmatpush.bf16.msra.mxu0 %v2238
    %3886 = vmatpush.bf16.msra.mxu0 %v2230
    %3887 = vmatpush.bf16.msra.mxu0 %v2222
    %3888 = vmatpush.bf16.msra.mxu0 %v2214
    %3889 = vmatpush.bf16.msra.mxu0 %v2206
    %3890 = vmatpush.bf16.msra.mxu0 %v2198
    %3891 = vmatpush.bf16.msra.mxu0 %v2190
    %3892 = vmatmul.bf16.gmra.mxu0 %v568
    %v3893 = vpop.f32.mrf.mxu0
    %v3894 = vadd.f32 %v3881, %v3893
    %v3895 = vpop.f32.mrf.mxu0
    %3896 = vdwg.mxu0
    %3897 = vmatpush.bf16.msra.mxu0 %v2310
    %3898 = vmatpush.bf16.msra.mxu0 %v2302
    %3899 = vmatpush.bf16.msra.mxu0 %v2294
    %3900 = vmatpush.bf16.msra.mxu0 %v2286
    %3901 = vmatpush.bf16.msra.mxu0 %v2278
    %3902 = vmatpush.bf16.msra.mxu0 %v2270
    %3903 = vmatpush.bf16.msra.mxu0 %v2262
    %3904 = vmatpush.bf16.msra.mxu0 %v2254
    %3905 = vmatmul.bf16.gmra.mxu0 %v569
    %v3906 = vpop.f32.mrf.mxu0
    %v3907 = vadd.f32 %v3894, %v3906
    %v3908 = vpop.f32.mrf.mxu0
    %3909 = vdwg.mxu0
    %3910 = vmatpush.bf16.msra.mxu0 %v2374
    %3911 = vmatpush.bf16.msra.mxu0 %v2366
    %3912 = vmatpush.bf16.msra.mxu0 %v2358
    %3913 = vmatpush.bf16.msra.mxu0 %v2350
    %3914 = vmatpush.bf16.msra.mxu0 %v2342
    %3915 = vmatpush.bf16.msra.mxu0 %v2334
    %3916 = vmatpush.bf16.msra.mxu0 %v2326
    %3917 = vmatpush.bf16.msra.mxu0 %v2318
    %3918 = vmatmul.bf16.gmra.mxu0 %v570
    %v3919 = vpop.f32.mrf.mxu0
    %v3920 = vadd.f32 %v3907, %v3919
    %v3921 = vpop.f32.mrf.mxu0
    %3922 = vdwg.mxu0
    %3923 = vmatpush.bf16.msra.mxu0 %v2438
    %3924 = vmatpush.bf16.msra.mxu0 %v2430
    %3925 = vmatpush.bf16.msra.mxu0 %v2422
    %3926 = vmatpush.bf16.msra.mxu0 %v2414
    %3927 = vmatpush.bf16.msra.mxu0 %v2406
    %3928 = vmatpush.bf16.msra.mxu0 %v2398
    %3929 = vmatpush.bf16.msra.mxu0 %v2390
    %3930 = vmatpush.bf16.msra.mxu0 %v2382
    %3931 = vmatmul.bf16.gmra.mxu0 %v571
    %v3932 = vpop.f32.mrf.mxu0
    %v3933 = vadd.f32 %v3920, %v3932
    %v3934 = vpop.f32.mrf.mxu0
    %3935 = vdwg.mxu0
    %3936 = vmatpush.bf16.msra.mxu0 %v2502
    %3937 = vmatpush.bf16.msra.mxu0 %v2494
    %3938 = vmatpush.bf16.msra.mxu0 %v2486
    %3939 = vmatpush.bf16.msra.mxu0 %v2478
    %3940 = vmatpush.bf16.msra.mxu0 %v2470
    %3941 = vmatpush.bf16.msra.mxu0 %v2462
    %3942 = vmatpush.bf16.msra.mxu0 %v2454
    %3943 = vmatpush.bf16.msra.mxu0 %v2446
    %3944 = vmatmul.bf16.gmra.mxu0 %v572
    %v3945 = vpop.f32.mrf.mxu0
    %v3946 = vadd.f32 %v3933, %v3945
    %v3947 = vpop.f32.mrf.mxu0
    %3948 = vdwg.mxu0
    %3949 = vmatpush.bf16.msra.mxu0 %v2566
    %3950 = vmatpush.bf16.msra.mxu0 %v2558
    %3951 = vmatpush.bf16.msra.mxu0 %v2550
    %3952 = vmatpush.bf16.msra.mxu0 %v2542
    %3953 = vmatpush.bf16.msra.mxu0 %v2534
    %3954 = vmatpush.bf16.msra.mxu0 %v2526
    %3955 = vmatpush.bf16.msra.mxu0 %v2518
    %3956 = vmatpush.bf16.msra.mxu0 %v2510
    %3957 = vmatmul.bf16.gmra.mxu0 %v573
    %v3958 = vpop.f32.mrf.mxu0
    %v3959 = vadd.f32 %v3946, %v3958
    %v3960 = vpop.f32.mrf.mxu0
    %3961 = vdwg.mxu0
    %3962 = vmatpush.bf16.msra.mxu0 %v2630
    %3963 = vmatpush.bf16.msra.mxu0 %v2622
    %3964 = vmatpush.bf16.msra.mxu0 %v2614
    %3965 = vmatpush.bf16.msra.mxu0 %v2606
    %3966 = vmatpush.bf16.msra.mxu0 %v2598
    %3967 = vmatpush.bf16.msra.mxu0 %v2590
    %3968 = vmatpush.bf16.msra.mxu0 %v2582
    %3969 = vmatpush.bf16.msra.mxu0 %v2574
    %3970 = vmatmul.bf16.gmra.mxu0 %v574
    %v3971 = vpop.f32.mrf.mxu0
    %v3972 = vadd.f32 %v3959, %v3971
    %v3973 = vpop.f32.mrf.mxu0
    %3974 = vdwg.mxu0
    %v3975 = vmax.f32 %v3244, 0.0
    %v3976 = vmax.f32 %v3348, 0.0
    %v3977 = vmax.f32 %v3452, 0.0
    %v3978 = vmax.f32 %v3556, 0.0
    %v3979 = vmax.f32 %v3660, 0.0
    %v3980 = vmax.f32 %v3764, 0.0
    %v3981 = vmax.f32 %v3868, 0.0
    %v3982 = vmax.f32 %v3972, 0.0
    %v3983 = vpack.c.bf16 %v3975, %v3975
    %v3984 = vpack.c.bf16 %v3976, %v3976
    %v3985 = vpack.c.bf16 %v3977, %v3977
    %v3986 = vpack.c.bf16 %v3978, %v3978
    %v3987 = vpack.c.bf16 %v3979, %v3979
    %v3988 = vpack.c.bf16 %v3980, %v3980
    %v3989 = vpack.c.bf16 %v3981, %v3981
    %v3990 = vpack.c.bf16 %v3982, %v3982
    %v3991 = vld [vmem:[%s3] sm:$0xff]
    %v3992 = vld [vmem:[%s3 + $0x8] sm:$0xff]
    %v3993 = vld [vmem:[%s3 + $0x10] sm:$0xff]
    %v3994 = vld [vmem:[%s3 + $0x18] sm:$0xff]
    %v3995 = vld [vmem:[%s3 + $0x20] sm:$0xff]
    %v3996 = vld [vmem:[%s3 + $0x28] sm:$0xff]
    %v3997 = vld [vmem:[%s3 + $0x30] sm:$0xff]
    %v3998 = vld [vmem:[%s3 + $0x38] sm:$0xff]
    %v3999 = vld [vmem:[%s3 + $0x40] sm:$0xff]
    %v4000 = vld [vmem:[%s3 + $0x48] sm:$0xff]
    %v4001 = vld [vmem:[%s3 + $0x50] sm:$0xff]
    %v4002 = vld [vmem:[%s3 + $0x58] sm:$0xff]
    %v4003 = vld [vmem:[%s3 + $0x60] sm:$0xff]
    %v4004 = vld [vmem:[%s3 + $0x68] sm:$0xff]
    %v4005 = vld [vmem:[%s3 + $0x70] sm:$0xff]
    %v4006 = vld [vmem:[%s3 + $0x78] sm:$0xff]
    %v4007 = vld [vmem:[%s3 + $0x80] sm:$0xff]
    %v4008 = vld [vmem:[%s3 + $0x88] sm:$0xff]
    %v4009 = vld [vmem:[%s3 + $0x90] sm:$0xff]
    %v4010 = vld [vmem:[%s3 + $0x98] sm:$0xff]
    %v4011 = vld [vmem:[%s3 + $0xa0] sm:$0xff]
    %v4012 = vld [vmem:[%s3 + $0xa8] sm:$0xff]
    %v4013 = vld [vmem:[%s3 + $0xb0] sm:$0xff]
    %v4014 = vld [vmem:[%s3 + $0xb8] sm:$0xff]
    %v4015 = vld [vmem:[%s3 + $0xc0] sm:$0xff]
    %v4016 = vld [vmem:[%s3 + $0xc8] sm:$0xff]
    %v4017 = vld [vmem:[%s3 + $0xd0] sm:$0xff]
    %v4018 = vld [vmem:[%s3 + $0xd8] sm:$0xff]
    %v4019 = vld [vmem:[%s3 + $0xe0] sm:$0xff]
    %v4020 = vld [vmem:[%s3 + $0xe8] sm:$0xff]
    %v4021 = vld [vmem:[%s3 + $0xf0] sm:$0xff]
    %v4022 = vld [vmem:[%s3 + $0xf8] sm:$0xff]
    %v4023 = vld [vmem:[%s3 + $0x100] sm:$0xff]
    %v4024 = vld [vmem:[%s3 + $0x108] sm:$0xff]
    %v4025 = vld [vmem:[%s3 + $0x110] sm:$0xff]
    %v4026 = vld [vmem:[%s3 + $0x118] sm:$0xff]
    %v4027 = vld [vmem:[%s3 + $0x120] sm:$0xff]
    %v4028 = vld [vmem:[%s3 + $0x128] sm:$0xff]
    %v4029 = vld [vmem:[%s3 + $0x130] sm:$0xff]
    %v4030 = vld [vmem:[%s3 + $0x138] sm:$0xff]
    %v4031 = vld [vmem:[%s3 + $0x140] sm:$0xff]
    %v4032 = vld [vmem:[%s3 + $0x148] sm:$0xff]
    %v4033 = vld [vmem:[%s3 + $0x150] sm:$0xff]
    %v4034 = vld [vmem:[%s3 + $0x158] sm:$0xff]
    %v4035 = vld [vmem:[%s3 + $0x160] sm:$0xff]
    %v4036 = vld [vmem:[%s3 + $0x168] sm:$0xff]
    %v4037 = vld [vmem:[%s3 + $0x170] sm:$0xff]
    %v4038 = vld [vmem:[%s3 + $0x178] sm:$0xff]
    %v4039 = vld [vmem:[%s3 + $0x180] sm:$0xff]
    %v4040 = vld [vmem:[%s3 + $0x188] sm:$0xff]
    %v4041 = vld [vmem:[%s3 + $0x190] sm:$0xff]
    %v4042 = vld [vmem:[%s3 + $0x198] sm:$0xff]
    %v4043 = vld [vmem:[%s3 + $0x1a0] sm:$0xff]
    %v4044 = vld [vmem:[%s3 + $0x1a8] sm:$0xff]
    %v4045 = vld [vmem:[%s3 + $0x1b0] sm:$0xff]
    %v4046 = vld [vmem:[%s3 + $0x1b8] sm:$0xff]
    %v4047 = vld [vmem:[%s3 + $0x1c0] sm:$0xff]
    %v4048 = vld [vmem:[%s3 + $0x1c8] sm:$0xff]
    %v4049 = vld [vmem:[%s3 + $0x1d0] sm:$0xff]
    %v4050 = vld [vmem:[%s3 + $0x1d8] sm:$0xff]
    %v4051 = vld [vmem:[%s3 + $0x1e0] sm:$0xff]
    %v4052 = vld [vmem:[%s3 + $0x1e8] sm:$0xff]
    %v4053 = vld [vmem:[%s3 + $0x1f0] sm:$0xff]
    %v4054 = vld [vmem:[%s3 + $0x1f8] sm:$0xff]
    %v4055 = vld [vmem:[%s3 + $0x200] sm:$0xff]
    %v4056 = vld [vmem:[%s3 + $0x208] sm:$0xff]
    %v4057 = vld [vmem:[%s3 + $0x210] sm:$0xff]
    %v4058 = vld [vmem:[%s3 + $0x218] sm:$0xff]
    %v4059 = vld [vmem:[%s3 + $0x220] sm:$0xff]
    %v4060 = vld [vmem:[%s3 + $0x228] sm:$0xff]
    %v4061 = vld [vmem:[%s3 + $0x230] sm:$0xff]
    %v4062 = vld [vmem:[%s3 + $0x238] sm:$0xff]
    %v4063 = vld [vmem:[%s3 + $0x240] sm:$0xff]
    %v4064 = vld [vmem:[%s3 + $0x248] sm:$0xff]
    %v4065 = vld [vmem:[%s3 + $0x250] sm:$0xff]
    %v4066 = vld [vmem:[%s3 + $0x258] sm:$0xff]
    %v4067 = vld [vmem:[%s3 + $0x260] sm:$0xff]
    %v4068 = vld [vmem:[%s3 + $0x268] sm:$0xff]
    %v4069 = vld [vmem:[%s3 + $0x270] sm:$0xff]
    %v4070 = vld [vmem:[%s3 + $0x278] sm:$0xff]
    %v4071 = vld [vmem:[%s3 + $0x280] sm:$0xff]
    %v4072 = vld [vmem:[%s3 + $0x288] sm:$0xff]
    %v4073 = vld [vmem:[%s3 + $0x290] sm:$0xff]
    %v4074 = vld [vmem:[%s3 + $0x298] sm:$0xff]
    %v4075 = vld [vmem:[%s3 + $0x2a0] sm:$0xff]
    %v4076 = vld [vmem:[%s3 + $0x2a8] sm:$0xff]
    %v4077 = vld [vmem:[%s3 + $0x2b0] sm:$0xff]
    %v4078 = vld [vmem:[%s3 + $0x2b8] sm:$0xff]
    %v4079 = vld [vmem:[%s3 + $0x2c0] sm:$0xff]
    %v4080 = vld [vmem:[%s3 + $0x2c8] sm:$0xff]
    %v4081 = vld [vmem:[%s3 + $0x2d0] sm:$0xff]
    %v4082 = vld [vmem:[%s3 + $0x2d8] sm:$0xff]
    %v4083 = vld [vmem:[%s3 + $0x2e0] sm:$0xff]
    %v4084 = vld [vmem:[%s3 + $0x2e8] sm:$0xff]
    %v4085 = vld [vmem:[%s3 + $0x2f0] sm:$0xff]
    %v4086 = vld [vmem:[%s3 + $0x2f8] sm:$0xff]
    %v4087 = vld [vmem:[%s3 + $0x300] sm:$0xff]
    %v4088 = vld [vmem:[%s3 + $0x308] sm:$0xff]
    %v4089 = vld [vmem:[%s3 + $0x310] sm:$0xff]
    %v4090 = vld [vmem:[%s3 + $0x318] sm:$0xff]
    %v4091 = vld [vmem:[%s3 + $0x320] sm:$0xff]
    %v4092 = vld [vmem:[%s3 + $0x328] sm:$0xff]
    %v4093 = vld [vmem:[%s3 + $0x330] sm:$0xff]
    %v4094 = vld [vmem:[%s3 + $0x338] sm:$0xff]
    %v4095 = vld [vmem:[%s3 + $0x340] sm:$0xff]
    %v4096 = vld [vmem:[%s3 + $0x348] sm:$0xff]
    %v4097 = vld [vmem:[%s3 + $0x350] sm:$0xff]
    %v4098 = vld [vmem:[%s3 + $0x358] sm:$0xff]
    %v4099 = vld [vmem:[%s3 + $0x360] sm:$0xff]
    %v4100 = vld [vmem:[%s3 + $0x368] sm:$0xff]
    %v4101 = vld [vmem:[%s3 + $0x370] sm:$0xff]
    %v4102 = vld [vmem:[%s3 + $0x378] sm:$0xff]
    %v4103 = vld [vmem:[%s3 + $0x380] sm:$0xff]
    %v4104 = vld [vmem:[%s3 + $0x388] sm:$0xff]
    %v4105 = vld [vmem:[%s3 + $0x390] sm:$0xff]
    %v4106 = vld [vmem:[%s3 + $0x398] sm:$0xff]
    %v4107 = vld [vmem:[%s3 + $0x3a0] sm:$0xff]
    %v4108 = vld [vmem:[%s3 + $0x3a8] sm:$0xff]
    %v4109 = vld [vmem:[%s3 + $0x3b0] sm:$0xff]
    %v4110 = vld [vmem:[%s3 + $0x3b8] sm:$0xff]
    %v4111 = vld [vmem:[%s3 + $0x3c0] sm:$0xff]
    %v4112 = vld [vmem:[%s3 + $0x3c8] sm:$0xff]
    %v4113 = vld [vmem:[%s3 + $0x3d0] sm:$0xff]
    %v4114 = vld [vmem:[%s3 + $0x3d8] sm:$0xff]
    %v4115 = vld [vmem:[%s3 + $0x3e0] sm:$0xff]
    %v4116 = vld [vmem:[%s3 + $0x3e8] sm:$0xff]
    %v4117 = vld [vmem:[%s3 + $0x3f0] sm:$0xff]
    %v4118 = vld [vmem:[%s3 + $0x3f8] sm:$0xff]
    %v4119 = vld [vmem:[%s3 + $0x400] sm:$0xff]
    %v4120 = vld [vmem:[%s3 + $0x408] sm:$0xff]
    %v4121 = vld [vmem:[%s3 + $0x410] sm:$0xff]
    %v4122 = vld [vmem:[%s3 + $0x418] sm:$0xff]
    %v4123 = vld [vmem:[%s3 + $0x420] sm:$0xff]
    %v4124 = vld [vmem:[%s3 + $0x428] sm:$0xff]
    %v4125 = vld [vmem:[%s3 + $0x430] sm:$0xff]
    %v4126 = vld [vmem:[%s3 + $0x438] sm:$0xff]
    %v4127 = vld [vmem:[%s3 + $0x440] sm:$0xff]
    %v4128 = vld [vmem:[%s3 + $0x448] sm:$0xff]
    %v4129 = vld [vmem:[%s3 + $0x450] sm:$0xff]
    %v4130 = vld [vmem:[%s3 + $0x458] sm:$0xff]
    %v4131 = vld [vmem:[%s3 + $0x460] sm:$0xff]
    %v4132 = vld [vmem:[%s3 + $0x468] sm:$0xff]
    %v4133 = vld [vmem:[%s3 + $0x470] sm:$0xff]
    %v4134 = vld [vmem:[%s3 + $0x478] sm:$0xff]
    %v4135 = vld [vmem:[%s3 + $0x480] sm:$0xff]
    %v4136 = vld [vmem:[%s3 + $0x488] sm:$0xff]
    %v4137 = vld [vmem:[%s3 + $0x490] sm:$0xff]
    %v4138 = vld [vmem:[%s3 + $0x498] sm:$0xff]
    %v4139 = vld [vmem:[%s3 + $0x4a0] sm:$0xff]
    %v4140 = vld [vmem:[%s3 + $0x4a8] sm:$0xff]
    %v4141 = vld [vmem:[%s3 + $0x4b0] sm:$0xff]
    %v4142 = vld [vmem:[%s3 + $0x4b8] sm:$0xff]
    %v4143 = vld [vmem:[%s3 + $0x4c0] sm:$0xff]
    %v4144 = vld [vmem:[%s3 + $0x4c8] sm:$0xff]
    %v4145 = vld [vmem:[%s3 + $0x4d0] sm:$0xff]
    %v4146 = vld [vmem:[%s3 + $0x4d8] sm:$0xff]
    %v4147 = vld [vmem:[%s3 + $0x4e0] sm:$0xff]
    %v4148 = vld [vmem:[%s3 + $0x4e8] sm:$0xff]
    %v4149 = vld [vmem:[%s3 + $0x4f0] sm:$0xff]
    %v4150 = vld [vmem:[%s3 + $0x4f8] sm:$0xff]
    %v4151 = vld [vmem:[%s3 + $0x500] sm:$0xff]
    %v4152 = vld [vmem:[%s3 + $0x508] sm:$0xff]
    %v4153 = vld [vmem:[%s3 + $0x510] sm:$0xff]
    %v4154 = vld [vmem:[%s3 + $0x518] sm:$0xff]
    %v4155 = vld [vmem:[%s3 + $0x520] sm:$0xff]
    %v4156 = vld [vmem:[%s3 + $0x528] sm:$0xff]
    %v4157 = vld [vmem:[%s3 + $0x530] sm:$0xff]
    %v4158 = vld [vmem:[%s3 + $0x538] sm:$0xff]
    %v4159 = vld [vmem:[%s3 + $0x540] sm:$0xff]
    %v4160 = vld [vmem:[%s3 + $0x548] sm:$0xff]
    %v4161 = vld [vmem:[%s3 + $0x550] sm:$0xff]
    %v4162 = vld [vmem:[%s3 + $0x558] sm:$0xff]
    %v4163 = vld [vmem:[%s3 + $0x560] sm:$0xff]
    %v4164 = vld [vmem:[%s3 + $0x568] sm:$0xff]
    %v4165 = vld [vmem:[%s3 + $0x570] sm:$0xff]
    %v4166 = vld [vmem:[%s3 + $0x578] sm:$0xff]
    %v4167 = vld [vmem:[%s3 + $0x580] sm:$0xff]
    %v4168 = vld [vmem:[%s3 + $0x588] sm:$0xff]
    %v4169 = vld [vmem:[%s3 + $0x590] sm:$0xff]
    %v4170 = vld [vmem:[%s3 + $0x598] sm:$0xff]
    %v4171 = vld [vmem:[%s3 + $0x5a0] sm:$0xff]
    %v4172 = vld [vmem:[%s3 + $0x5a8] sm:$0xff]
    %v4173 = vld [vmem:[%s3 + $0x5b0] sm:$0xff]
    %v4174 = vld [vmem:[%s3 + $0x5b8] sm:$0xff]
    %v4175 = vld [vmem:[%s3 + $0x5c0] sm:$0xff]
    %v4176 = vld [vmem:[%s3 + $0x5c8] sm:$0xff]
    %v4177 = vld [vmem:[%s3 + $0x5d0] sm:$0xff]
    %v4178 = vld [vmem:[%s3 + $0x5d8] sm:$0xff]
    %v4179 = vld [vmem:[%s3 + $0x5e0] sm:$0xff]
    %v4180 = vld [vmem:[%s3 + $0x5e8] sm:$0xff]
    %v4181 = vld [vmem:[%s3 + $0x5f0] sm:$0xff]
    %v4182 = vld [vmem:[%s3 + $0x5f8] sm:$0xff]
    %v4183 = vld [vmem:[%s3 + $0x600] sm:$0xff]
    %v4184 = vld [vmem:[%s3 + $0x608] sm:$0xff]
    %v4185 = vld [vmem:[%s3 + $0x610] sm:$0xff]
    %v4186 = vld [vmem:[%s3 + $0x618] sm:$0xff]
    %v4187 = vld [vmem:[%s3 + $0x620] sm:$0xff]
    %v4188 = vld [vmem:[%s3 + $0x628] sm:$0xff]
    %v4189 = vld [vmem:[%s3 + $0x630] sm:$0xff]
    %v4190 = vld [vmem:[%s3 + $0x638] sm:$0xff]
    %v4191 = vld [vmem:[%s3 + $0x640] sm:$0xff]
    %v4192 = vld [vmem:[%s3 + $0x648] sm:$0xff]
    %v4193 = vld [vmem:[%s3 + $0x650] sm:$0xff]
    %v4194 = vld [vmem:[%s3 + $0x658] sm:$0xff]
    %v4195 = vld [vmem:[%s3 + $0x660] sm:$0xff]
    %v4196 = vld [vmem:[%s3 + $0x668] sm:$0xff]
    %v4197 = vld [vmem:[%s3 + $0x670] sm:$0xff]
    %v4198 = vld [vmem:[%s3 + $0x678] sm:$0xff]
    %v4199 = vld [vmem:[%s3 + $0x680] sm:$0xff]
    %v4200 = vld [vmem:[%s3 + $0x688] sm:$0xff]
    %v4201 = vld [vmem:[%s3 + $0x690] sm:$0xff]
    %v4202 = vld [vmem:[%s3 + $0x698] sm:$0xff]
    %v4203 = vld [vmem:[%s3 + $0x6a0] sm:$0xff]
    %v4204 = vld [vmem:[%s3 + $0x6a8] sm:$0xff]
    %v4205 = vld [vmem:[%s3 + $0x6b0] sm:$0xff]
    %v4206 = vld [vmem:[%s3 + $0x6b8] sm:$0xff]
    %v4207 = vld [vmem:[%s3 + $0x6c0] sm:$0xff]
    %v4208 = vld [vmem:[%s3 + $0x6c8] sm:$0xff]
    %v4209 = vld [vmem:[%s3 + $0x6d0] sm:$0xff]
    %v4210 = vld [vmem:[%s3 + $0x6d8] sm:$0xff]
    %v4211 = vld [vmem:[%s3 + $0x6e0] sm:$0xff]
    %v4212 = vld [vmem:[%s3 + $0x6e8] sm:$0xff]
    %v4213 = vld [vmem:[%s3 + $0x6f0] sm:$0xff]
    %v4214 = vld [vmem:[%s3 + $0x6f8] sm:$0xff]
    %v4215 = vld [vmem:[%s3 + $0x700] sm:$0xff]
    %v4216 = vld [vmem:[%s3 + $0x708] sm:$0xff]
    %v4217 = vld [vmem:[%s3 + $0x710] sm:$0xff]
    %v4218 = vld [vmem:[%s3 + $0x718] sm:$0xff]
    %v4219 = vld [vmem:[%s3 + $0x720] sm:$0xff]
    %v4220 = vld [vmem:[%s3 + $0x728] sm:$0xff]
    %v4221 = vld [vmem:[%s3 + $0x730] sm:$0xff]
    %v4222 = vld [vmem:[%s3 + $0x738] sm:$0xff]
    %v4223 = vld [vmem:[%s3 + $0x740] sm:$0xff]
    %v4224 = vld [vmem:[%s3 + $0x748] sm:$0xff]
    %v4225 = vld [vmem:[%s3 + $0x750] sm:$0xff]
    %v4226 = vld [vmem:[%s3 + $0x758] sm:$0xff]
    %v4227 = vld [vmem:[%s3 + $0x760] sm:$0xff]
    %v4228 = vld [vmem:[%s3 + $0x768] sm:$0xff]
    %v4229 = vld [vmem:[%s3 + $0x770] sm:$0xff]
    %v4230 = vld [vmem:[%s3 + $0x778] sm:$0xff]
    %v4231 = vld [vmem:[%s3 + $0x780] sm:$0xff]
    %v4232 = vld [vmem:[%s3 + $0x788] sm:$0xff]
    %v4233 = vld [vmem:[%s3 + $0x790] sm:$0xff]
    %v4234 = vld [vmem:[%s3 + $0x798] sm:$0xff]
    %v4235 = vld [vmem:[%s3 + $0x7a0] sm:$0xff]
    %v4236 = vld [vmem:[%s3 + $0x7a8] sm:$0xff]
    %v4237 = vld [vmem:[%s3 + $0x7b0] sm:$0xff]
    %v4238 = vld [vmem:[%s3 + $0x7b8] sm:$0xff]
    %v4239 = vld [vmem:[%s3 + $0x7c0] sm:$0xff]
    %v4240 = vld [vmem:[%s3 + $0x7c8] sm:$0xff]
    %v4241 = vld [vmem:[%s3 + $0x7d0] sm:$0xff]
    %v4242 = vld [vmem:[%s3 + $0x7d8] sm:$0xff]
    %v4243 = vld [vmem:[%s3 + $0x7e0] sm:$0xff]
    %v4244 = vld [vmem:[%s3 + $0x7e8] sm:$0xff]
    %v4245 = vld [vmem:[%s3 + $0x7f0] sm:$0xff]
    %v4246 = vld [vmem:[%s3 + $0x7f8] sm:$0xff]
    %v4247 = vld [vmem:[%s3 + $0x800] sm:$0xff]
    %v4248 = vld [vmem:[%s3 + $0x808] sm:$0xff]
    %v4249 = vld [vmem:[%s3 + $0x810] sm:$0xff]
    %v4250 = vld [vmem:[%s3 + $0x818] sm:$0xff]
    %v4251 = vld [vmem:[%s3 + $0x820] sm:$0xff]
    %v4252 = vld [vmem:[%s3 + $0x828] sm:$0xff]
    %v4253 = vld [vmem:[%s3 + $0x830] sm:$0xff]
    %v4254 = vld [vmem:[%s3 + $0x838] sm:$0xff]
    %v4255 = vld [vmem:[%s3 + $0x840] sm:$0xff]
    %v4256 = vld [vmem:[%s3 + $0x848] sm:$0xff]
    %v4257 = vld [vmem:[%s3 + $0x850] sm:$0xff]
    %v4258 = vld [vmem:[%s3 + $0x858] sm:$0xff]
    %v4259 = vld [vmem:[%s3 + $0x860] sm:$0xff]
    %v4260 = vld [vmem:[%s3 + $0x868] sm:$0xff]
    %v4261 = vld [vmem:[%s3 + $0x870] sm:$0xff]
    %v4262 = vld [vmem:[%s3 + $0x878] sm:$0xff]
    %v4263 = vld [vmem:[%s3 + $0x880] sm:$0xff]
    %v4264 = vld [vmem:[%s3 + $0x888] sm:$0xff]
    %v4265 = vld [vmem:[%s3 + $0x890] sm:$0xff]
    %v4266 = vld [vmem:[%s3 + $0x898] sm:$0xff]
    %v4267 = vld [vmem:[%s3 + $0x8a0] sm:$0xff]
    %v4268 = vld [vmem:[%s3 + $0x8a8] sm:$0xff]
    %v4269 = vld [vmem:[%s3 + $0x8b0] sm:$0xff]
    %v4270 = vld [vmem:[%s3 + $0x8b8] sm:$0xff]
    %v4271 = vld [vmem:[%s3 + $0x8c0] sm:$0xff]
    %v4272 = vld [vmem:[%s3 + $0x8c8] sm:$0xff]
    %v4273 = vld [vmem:[%s3 + $0x8d0] sm:$0xff]
    %v4274 = vld [vmem:[%s3 + $0x8d8] sm:$0xff]
    %v4275 = vld [vmem:[%s3 + $0x8e0] sm:$0xff]
    %v4276 = vld [vmem:[%s3 + $0x8e8] sm:$0xff]
    %v4277 = vld [vmem:[%s3 + $0x8f0] sm:$0xff]
    %v4278 = vld [vmem:[%s3 + $0x8f8] sm:$0xff]
    %v4279 = vld [vmem:[%s3 + $0x900] sm:$0xff]
    %v4280 = vld [vmem:[%s3 + $0x908] sm:$0xff]
    %v4281 = vld [vmem:[%s3 + $0x910] sm:$0xff]
    %v4282 = vld [vmem:[%s3 + $0x918] sm:$0xff]
    %v4283 = vld [vmem:[%s3 + $0x920] sm:$0xff]
    %v4284 = vld [vmem:[%s3 + $0x928] sm:$0xff]
    %v4285 = vld [vmem:[%s3 + $0x930] sm:$0xff]
    %v4286 = vld [vmem:[%s3 + $0x938] sm:$0xff]
    %v4287 = vld [vmem:[%s3 + $0x940] sm:$0xff]
    %v4288 = vld [vmem:[%s3 + $0x948] sm:$0xff]
    %v4289 = vld [vmem:[%s3 + $0x950] sm:$0xff]
    %v4290 = vld [vmem:[%s3 + $0x958] sm:$0xff]
    %v4291 = vld [vmem:[%s3 + $0x960] sm:$0xff]
    %v4292 = vld [vmem:[%s3 + $0x968] sm:$0xff]
    %v4293 = vld [vmem:[%s3 + $0x970] sm:$0xff]
    %v4294 = vld [vmem:[%s3 + $0x978] sm:$0xff]
    %v4295 = vld [vmem:[%s3 + $0x980] sm:$0xff]
    %v4296 = vld [vmem:[%s3 + $0x988] sm:$0xff]
    %v4297 = vld [vmem:[%s3 + $0x990] sm:$0xff]
    %v4298 = vld [vmem:[%s3 + $0x998] sm:$0xff]
    %v4299 = vld [vmem:[%s3 + $0x9a0] sm:$0xff]
    %v4300 = vld [vmem:[%s3 + $0x9a8] sm:$0xff]
    %v4301 = vld [vmem:[%s3 + $0x9b0] sm:$0xff]
    %v4302 = vld [vmem:[%s3 + $0x9b8] sm:$0xff]
    %v4303 = vld [vmem:[%s3 + $0x9c0] sm:$0xff]
    %v4304 = vld [vmem:[%s3 + $0x9c8] sm:$0xff]
    %v4305 = vld [vmem:[%s3 + $0x9d0] sm:$0xff]
    %v4306 = vld [vmem:[%s3 + $0x9d8] sm:$0xff]
    %v4307 = vld [vmem:[%s3 + $0x9e0] sm:$0xff]
    %v4308 = vld [vmem:[%s3 + $0x9e8] sm:$0xff]
    %v4309 = vld [vmem:[%s3 + $0x9f0] sm:$0xff]
    %v4310 = vld [vmem:[%s3 + $0x9f8] sm:$0xff]
    %v4311 = vld [vmem:[%s3 + $0xa00] sm:$0xff]
    %v4312 = vld [vmem:[%s3 + $0xa08] sm:$0xff]
    %v4313 = vld [vmem:[%s3 + $0xa10] sm:$0xff]
    %v4314 = vld [vmem:[%s3 + $0xa18] sm:$0xff]
    %v4315 = vld [vmem:[%s3 + $0xa20] sm:$0xff]
    %v4316 = vld [vmem:[%s3 + $0xa28] sm:$0xff]
    %v4317 = vld [vmem:[%s3 + $0xa30] sm:$0xff]
    %v4318 = vld [vmem:[%s3 + $0xa38] sm:$0xff]
    %v4319 = vld [vmem:[%s3 + $0xa40] sm:$0xff]
    %v4320 = vld [vmem:[%s3 + $0xa48] sm:$0xff]
    %v4321 = vld [vmem:[%s3 + $0xa50] sm:$0xff]
    %v4322 = vld [vmem:[%s3 + $0xa58] sm:$0xff]
    %v4323 = vld [vmem:[%s3 + $0xa60] sm:$0xff]
    %v4324 = vld [vmem:[%s3 + $0xa68] sm:$0xff]
    %v4325 = vld [vmem:[%s3 + $0xa70] sm:$0xff]
    %v4326 = vld [vmem:[%s3 + $0xa78] sm:$0xff]
    %v4327 = vld [vmem:[%s3 + $0xa80] sm:$0xff]
    %v4328 = vld [vmem:[%s3 + $0xa88] sm:$0xff]
    %v4329 = vld [vmem:[%s3 + $0xa90] sm:$0xff]
    %v4330 = vld [vmem:[%s3 + $0xa98] sm:$0xff]
    %v4331 = vld [vmem:[%s3 + $0xaa0] sm:$0xff]
    %v4332 = vld [vmem:[%s3 + $0xaa8] sm:$0xff]
    %v4333 = vld [vmem:[%s3 + $0xab0] sm:$0xff]
    %v4334 = vld [vmem:[%s3 + $0xab8] sm:$0xff]
    %v4335 = vld [vmem:[%s3 + $0xac0] sm:$0xff]
    %v4336 = vld [vmem:[%s3 + $0xac8] sm:$0xff]
    %v4337 = vld [vmem:[%s3 + $0xad0] sm:$0xff]
    %v4338 = vld [vmem:[%s3 + $0xad8] sm:$0xff]
    %v4339 = vld [vmem:[%s3 + $0xae0] sm:$0xff]
    %v4340 = vld [vmem:[%s3 + $0xae8] sm:$0xff]
    %v4341 = vld [vmem:[%s3 + $0xaf0] sm:$0xff]
    %v4342 = vld [vmem:[%s3 + $0xaf8] sm:$0xff]
    %v4343 = vld [vmem:[%s3 + $0xb00] sm:$0xff]
    %v4344 = vld [vmem:[%s3 + $0xb08] sm:$0xff]
    %v4345 = vld [vmem:[%s3 + $0xb10] sm:$0xff]
    %v4346 = vld [vmem:[%s3 + $0xb18] sm:$0xff]
    %v4347 = vld [vmem:[%s3 + $0xb20] sm:$0xff]
    %v4348 = vld [vmem:[%s3 + $0xb28] sm:$0xff]
    %v4349 = vld [vmem:[%s3 + $0xb30] sm:$0xff]
    %v4350 = vld [vmem:[%s3 + $0xb38] sm:$0xff]
    %v4351 = vld [vmem:[%s3 + $0xb40] sm:$0xff]
    %v4352 = vld [vmem:[%s3 + $0xb48] sm:$0xff]
    %v4353 = vld [vmem:[%s3 + $0xb50] sm:$0xff]
    %v4354 = vld [vmem:[%s3 + $0xb58] sm:$0xff]
    %v4355 = vld [vmem:[%s3 + $0xb60] sm:$0xff]
    %v4356 = vld [vmem:[%s3 + $0xb68] sm:$0xff]
    %v4357 = vld [vmem:[%s3 + $0xb70] sm:$0xff]
    %v4358 = vld [vmem:[%s3 + $0xb78] sm:$0xff]
    %v4359 = vld [vmem:[%s3 + $0xb80] sm:$0xff]
    %v4360 = vld [vmem:[%s3 + $0xb88] sm:$0xff]
    %v4361 = vld [vmem:[%s3 + $0xb90] sm:$0xff]
    %v4362 = vld [vmem:[%s3 + $0xb98] sm:$0xff]
    %v4363 = vld [vmem:[%s3 + $0xba0] sm:$0xff]
    %v4364 = vld [vmem:[%s3 + $0xba8] sm:$0xff]
    %v4365 = vld [vmem:[%s3 + $0xbb0] sm:$0xff]
    %v4366 = vld [vmem:[%s3 + $0xbb8] sm:$0xff]
    %v4367 = vld [vmem:[%s3 + $0xbc0] sm:$0xff]
    %v4368 = vld [vmem:[%s3 + $0xbc8] sm:$0xff]
    %v4369 = vld [vmem:[%s3 + $0xbd0] sm:$0xff]
    %v4370 = vld [vmem:[%s3 + $0xbd8] sm:$0xff]
    %v4371 = vld [vmem:[%s3 + $0xbe0] sm:$0xff]
    %v4372 = vld [vmem:[%s3 + $0xbe8] sm:$0xff]
    %v4373 = vld [vmem:[%s3 + $0xbf0] sm:$0xff]
    %v4374 = vld [vmem:[%s3 + $0xbf8] sm:$0xff]
    %v4375 = vld [vmem:[%s3 + $0xc00] sm:$0xff]
    %v4376 = vld [vmem:[%s3 + $0xc08] sm:$0xff]
    %v4377 = vld [vmem:[%s3 + $0xc10] sm:$0xff]
    %v4378 = vld [vmem:[%s3 + $0xc18] sm:$0xff]
    %v4379 = vld [vmem:[%s3 + $0xc20] sm:$0xff]
    %v4380 = vld [vmem:[%s3 + $0xc28] sm:$0xff]
    %v4381 = vld [vmem:[%s3 + $0xc30] sm:$0xff]
    %v4382 = vld [vmem:[%s3 + $0xc38] sm:$0xff]
    %v4383 = vld [vmem:[%s3 + $0xc40] sm:$0xff]
    %v4384 = vld [vmem:[%s3 + $0xc48] sm:$0xff]
    %v4385 = vld [vmem:[%s3 + $0xc50] sm:$0xff]
    %v4386 = vld [vmem:[%s3 + $0xc58] sm:$0xff]
    %v4387 = vld [vmem:[%s3 + $0xc60] sm:$0xff]
    %v4388 = vld [vmem:[%s3 + $0xc68] sm:$0xff]
    %v4389 = vld [vmem:[%s3 + $0xc70] sm:$0xff]
    %v4390 = vld [vmem:[%s3 + $0xc78] sm:$0xff]
    %v4391 = vld [vmem:[%s3 + $0xc80] sm:$0xff]
    %v4392 = vld [vmem:[%s3 + $0xc88] sm:$0xff]
    %v4393 = vld [vmem:[%s3 + $0xc90] sm:$0xff]
    %v4394 = vld [vmem:[%s3 + $0xc98] sm:$0xff]
    %v4395 = vld [vmem:[%s3 + $0xca0] sm:$0xff]
    %v4396 = vld [vmem:[%s3 + $0xca8] sm:$0xff]
    %v4397 = vld [vmem:[%s3 + $0xcb0] sm:$0xff]
    %v4398 = vld [vmem:[%s3 + $0xcb8] sm:$0xff]
    %v4399 = vld [vmem:[%s3 + $0xcc0] sm:$0xff]
    %v4400 = vld [vmem:[%s3 + $0xcc8] sm:$0xff]
    %v4401 = vld [vmem:[%s3 + $0xcd0] sm:$0xff]
    %v4402 = vld [vmem:[%s3 + $0xcd8] sm:$0xff]
    %v4403 = vld [vmem:[%s3 + $0xce0] sm:$0xff]
    %v4404 = vld [vmem:[%s3 + $0xce8] sm:$0xff]
    %v4405 = vld [vmem:[%s3 + $0xcf0] sm:$0xff]
    %v4406 = vld [vmem:[%s3 + $0xcf8] sm:$0xff]
    %v4407 = vld [vmem:[%s3 + $0xd00] sm:$0xff]
    %v4408 = vld [vmem:[%s3 + $0xd08] sm:$0xff]
    %v4409 = vld [vmem:[%s3 + $0xd10] sm:$0xff]
    %v4410 = vld [vmem:[%s3 + $0xd18] sm:$0xff]
    %v4411 = vld [vmem:[%s3 + $0xd20] sm:$0xff]
    %v4412 = vld [vmem:[%s3 + $0xd28] sm:$0xff]
    %v4413 = vld [vmem:[%s3 + $0xd30] sm:$0xff]
    %v4414 = vld [vmem:[%s3 + $0xd38] sm:$0xff]
    %v4415 = vld [vmem:[%s3 + $0xd40] sm:$0xff]
    %v4416 = vld [vmem:[%s3 + $0xd48] sm:$0xff]
    %v4417 = vld [vmem:[%s3 + $0xd50] sm:$0xff]
    %v4418 = vld [vmem:[%s3 + $0xd58] sm:$0xff]
    %v4419 = vld [vmem:[%s3 + $0xd60] sm:$0xff]
    %v4420 = vld [vmem:[%s3 + $0xd68] sm:$0xff]
    %v4421 = vld [vmem:[%s3 + $0xd70] sm:$0xff]
    %v4422 = vld [vmem:[%s3 + $0xd78] sm:$0xff]
    %v4423 = vld [vmem:[%s3 + $0xd80] sm:$0xff]
    %v4424 = vld [vmem:[%s3 + $0xd88] sm:$0xff]
    %v4425 = vld [vmem:[%s3 + $0xd90] sm:$0xff]
    %v4426 = vld [vmem:[%s3 + $0xd98] sm:$0xff]
    %v4427 = vld [vmem:[%s3 + $0xda0] sm:$0xff]
    %v4428 = vld [vmem:[%s3 + $0xda8] sm:$0xff]
    %v4429 = vld [vmem:[%s3 + $0xdb0] sm:$0xff]
    %v4430 = vld [vmem:[%s3 + $0xdb8] sm:$0xff]
    %v4431 = vld [vmem:[%s3 + $0xdc0] sm:$0xff]
    %v4432 = vld [vmem:[%s3 + $0xdc8] sm:$0xff]
    %v4433 = vld [vmem:[%s3 + $0xdd0] sm:$0xff]
    %v4434 = vld [vmem:[%s3 + $0xdd8] sm:$0xff]
    %v4435 = vld [vmem:[%s3 + $0xde0] sm:$0xff]
    %v4436 = vld [vmem:[%s3 + $0xde8] sm:$0xff]
    %v4437 = vld [vmem:[%s3 + $0xdf0] sm:$0xff]
    %v4438 = vld [vmem:[%s3 + $0xdf8] sm:$0xff]
    %v4439 = vld [vmem:[%s3 + $0xe00] sm:$0xff]
    %v4440 = vld [vmem:[%s3 + $0xe08] sm:$0xff]
    %v4441 = vld [vmem:[%s3 + $0xe10] sm:$0xff]
    %v4442 = vld [vmem:[%s3 + $0xe18] sm:$0xff]
    %v4443 = vld [vmem:[%s3 + $0xe20] sm:$0xff]
    %v4444 = vld [vmem:[%s3 + $0xe28] sm:$0xff]
    %v4445 = vld [vmem:[%s3 + $0xe30] sm:$0xff]
    %v4446 = vld [vmem:[%s3 + $0xe38] sm:$0xff]
    %v4447 = vld [vmem:[%s3 + $0xe40] sm:$0xff]
    %v4448 = vld [vmem:[%s3 + $0xe48] sm:$0xff]
    %v4449 = vld [vmem:[%s3 + $0xe50] sm:$0xff]
    %v4450 = vld [vmem:[%s3 + $0xe58] sm:$0xff]
    %v4451 = vld [vmem:[%s3 + $0xe60] sm:$0xff]
    %v4452 = vld [vmem:[%s3 + $0xe68] sm:$0xff]
    %v4453 = vld [vmem:[%s3 + $0xe70] sm:$0xff]
    %v4454 = vld [vmem:[%s3 + $0xe78] sm:$0xff]
    %v4455 = vld [vmem:[%s3 + $0xe80] sm:$0xff]
    %v4456 = vld [vmem:[%s3 + $0xe88] sm:$0xff]
    %v4457 = vld [vmem:[%s3 + $0xe90] sm:$0xff]
    %v4458 = vld [vmem:[%s3 + $0xe98] sm:$0xff]
    %v4459 = vld [vmem:[%s3 + $0xea0] sm:$0xff]
    %v4460 = vld [vmem:[%s3 + $0xea8] sm:$0xff]
    %v4461 = vld [vmem:[%s3 + $0xeb0] sm:$0xff]
    %v4462 = vld [vmem:[%s3 + $0xeb8] sm:$0xff]
    %v4463 = vld [vmem:[%s3 + $0xec0] sm:$0xff]
    %v4464 = vld [vmem:[%s3 + $0xec8] sm:$0xff]
    %v4465 = vld [vmem:[%s3 + $0xed0] sm:$0xff]
    %v4466 = vld [vmem:[%s3 + $0xed8] sm:$0xff]
    %v4467 = vld [vmem:[%s3 + $0xee0] sm:$0xff]
    %v4468 = vld [vmem:[%s3 + $0xee8] sm:$0xff]
    %v4469 = vld [vmem:[%s3 + $0xef0] sm:$0xff]
    %v4470 = vld [vmem:[%s3 + $0xef8] sm:$0xff]
    %v4471 = vld [vmem:[%s3 + $0xf00] sm:$0xff]
    %v4472 = vld [vmem:[%s3 + $0xf08] sm:$0xff]
    %v4473 = vld [vmem:[%s3 + $0xf10] sm:$0xff]
    %v4474 = vld [vmem:[%s3 + $0xf18] sm:$0xff]
    %v4475 = vld [vmem:[%s3 + $0xf20] sm:$0xff]
    %v4476 = vld [vmem:[%s3 + $0xf28] sm:$0xff]
    %v4477 = vld [vmem:[%s3 + $0xf30] sm:$0xff]
    %v4478 = vld [vmem:[%s3 + $0xf38] sm:$0xff]
    %v4479 = vld [vmem:[%s3 + $0xf40] sm:$0xff]
    %v4480 = vld [vmem:[%s3 + $0xf48] sm:$0xff]
    %v4481 = vld [vmem:[%s3 + $0xf50] sm:$0xff]
    %v4482 = vld [vmem:[%s3 + $0xf58] sm:$0xff]
    %v4483 = vld [vmem:[%s3 + $0xf60] sm:$0xff]
    %v4484 = vld [vmem:[%s3 + $0xf68] sm:$0xff]
    %v4485 = vld [vmem:[%s3 + $0xf70] sm:$0xff]
    %v4486 = vld [vmem:[%s3 + $0xf78] sm:$0xff]
    %v4487 = vld [vmem:[%s3 + $0xf80] sm:$0xff]
    %v4488 = vld [vmem:[%s3 + $0xf88] sm:$0xff]
    %v4489 = vld [vmem:[%s3 + $0xf90] sm:$0xff]
    %v4490 = vld [vmem:[%s3 + $0xf98] sm:$0xff]
    %v4491 = vld [vmem:[%s4] sm:$0xff]
    %v4493 = vperm.slane %v4491, 0
    %v4494 = vperm.slane %v4491, 1
    %v4495 = vperm.slane %v4491, 2
    %v4496 = vperm.slane %v4491, 3
    %v4497 = vperm.slane %v4491, 4
    %v4498 = vperm.slane %v4491, 5
    %v4499 = vperm.slane %v4491, 6
    %v4500 = vperm.slane %v4491, 7
    %v5009 = vunpack.c.l.b16 %v3991
    %v5010 = vunpack.c.h.b16 %v3991
    %v5011 = vunpack.c.l.b16 %v3992
    %v5012 = vunpack.c.h.b16 %v3992
    %v5013 = vunpack.c.l.b16 %v3993
    %v5014 = vunpack.c.h.b16 %v3993
    %v5015 = vunpack.c.l.b16 %v3994
    %v5016 = vunpack.c.h.b16 %v3994
    %v5017 = vunpack.c.l.b16 %v3995
    %v5018 = vunpack.c.h.b16 %v3995
    %v5019 = vunpack.c.l.b16 %v3996
    %v5020 = vunpack.c.h.b16 %v3996
    %v5021 = vunpack.c.l.b16 %v3997
    %v5022 = vunpack.c.h.b16 %v3997
    %v5023 = vunpack.c.l.b16 %v3998
    %v5024 = vunpack.c.h.b16 %v3998
    %v5025 = vunpack.c.l.b16 %v3999
    %v5026 = vunpack.c.h.b16 %v3999
    %v5027 = vunpack.c.l.b16 %v4000
    %v5028 = vunpack.c.h.b16 %v4000
    %v5029 = vunpack.c.l.b16 %v4001
    %v5030 = vunpack.c.h.b16 %v4001
    %v5031 = vunpack.c.l.b16 %v4002
    %v5032 = vunpack.c.h.b16 %v4002
    %v5033 = vunpack.c.l.b16 %v4003
    %v5034 = vunpack.c.h.b16 %v4003
    %v5035 = vunpack.c.l.b16 %v4004
    %v5036 = vunpack.c.h.b16 %v4004
    %v5037 = vunpack.c.l.b16 %v4005
    %v5038 = vunpack.c.h.b16 %v4005
    %v5039 = vunpack.c.l.b16 %v4006
    %v5040 = vunpack.c.h.b16 %v4006
    %v5041 = vunpack.c.l.b16 %v4007
    %v5042 = vunpack.c.h.b16 %v4007
    %v5043 = vunpack.c.l.b16 %v4008
    %v5044 = vunpack.c.h.b16 %v4008
    %v5045 = vunpack.c.l.b16 %v4009
    %v5046 = vunpack.c.h.b16 %v4009
    %v5047 = vunpack.c.l.b16 %v4010
    %v5048 = vunpack.c.h.b16 %v4010
    %v5049 = vunpack.c.l.b16 %v4011
    %v5050 = vunpack.c.h.b16 %v4011
    %v5051 = vunpack.c.l.b16 %v4012
    %v5052 = vunpack.c.h.b16 %v4012
    %v5053 = vunpack.c.l.b16 %v4013
    %v5054 = vunpack.c.h.b16 %v4013
    %v5055 = vunpack.c.l.b16 %v4014
    %v5056 = vunpack.c.h.b16 %v4014
    %v5057 = vunpack.c.l.b16 %v4015
    %v5058 = vunpack.c.h.b16 %v4015
    %v5059 = vunpack.c.l.b16 %v4016
    %v5060 = vunpack.c.h.b16 %v4016
    %v5061 = vunpack.c.l.b16 %v4017
    %v5062 = vunpack.c.h.b16 %v4017
    %v5063 = vunpack.c.l.b16 %v4018
    %v5064 = vunpack.c.h.b16 %v4018
    %v5065 = vunpack.c.l.b16 %v4019
    %v5066 = vunpack.c.h.b16 %v4019
    %v5067 = vunpack.c.l.b16 %v4020
    %v5068 = vunpack.c.h.b16 %v4020
    %v5069 = vunpack.c.l.b16 %v4021
    %v5070 = vunpack.c.h.b16 %v4021
    %v5071 = vunpack.c.l.b16 %v4022
    %v5072 = vunpack.c.h.b16 %v4022
    %v5073 = vunpack.c.l.b16 %v4023
    %v5074 = vunpack.c.h.b16 %v4023
    %v5075 = vunpack.c.l.b16 %v4024
    %v5076 = vunpack.c.h.b16 %v4024
    %v5077 = vunpack.c.l.b16 %v4025
    %v5078 = vunpack.c.h.b16 %v4025
    %v5079 = vunpack.c.l.b16 %v4026
    %v5080 = vunpack.c.h.b16 %v4026
    %v5081 = vunpack.c.l.b16 %v4027
    %v5082 = vunpack.c.h.b16 %v4027
    %v5083 = vunpack.c.l.b16 %v4028
    %v5084 = vunpack.c.h.b16 %v4028
    %v5085 = vunpack.c.l.b16 %v4029
    %v5086 = vunpack.c.h.b16 %v4029
    %v5087 = vunpack.c.l.b16 %v4030
    %v5088 = vunpack.c.h.b16 %v4030
    %v5089 = vunpack.c.l.b16 %v4031
    %v5090 = vunpack.c.h.b16 %v4031
    %v5091 = vunpack.c.l.b16 %v4032
    %v5092 = vunpack.c.h.b16 %v4032
    %v5093 = vunpack.c.l.b16 %v4033
    %v5094 = vunpack.c.h.b16 %v4033
    %v5095 = vunpack.c.l.b16 %v4034
    %v5096 = vunpack.c.h.b16 %v4034
    %v5097 = vunpack.c.l.b16 %v4035
    %v5098 = vunpack.c.h.b16 %v4035
    %v5099 = vunpack.c.l.b16 %v4036
    %v5100 = vunpack.c.h.b16 %v4036
    %v5101 = vunpack.c.l.b16 %v4037
    %v5102 = vunpack.c.h.b16 %v4037
    %v5103 = vunpack.c.l.b16 %v4038
    %v5104 = vunpack.c.h.b16 %v4038
    %v5105 = vunpack.c.l.b16 %v4039
    %v5106 = vunpack.c.h.b16 %v4039
    %v5107 = vunpack.c.l.b16 %v4040
    %v5108 = vunpack.c.h.b16 %v4040
    %v5109 = vunpack.c.l.b16 %v4041
    %v5110 = vunpack.c.h.b16 %v4041
    %v5111 = vunpack.c.l.b16 %v4042
    %v5112 = vunpack.c.h.b16 %v4042
    %v5113 = vunpack.c.l.b16 %v4043
    %v5114 = vunpack.c.h.b16 %v4043
    %v5115 = vunpack.c.l.b16 %v4044
    %v5116 = vunpack.c.h.b16 %v4044
    %v5117 = vunpack.c.l.b16 %v4045
    %v5118 = vunpack.c.h.b16 %v4045
    %v5119 = vunpack.c.l.b16 %v4046
    %v5120 = vunpack.c.h.b16 %v4046
    %v5121 = vunpack.c.l.b16 %v4047
    %v5122 = vunpack.c.h.b16 %v4047
    %v5123 = vunpack.c.l.b16 %v4048
    %v5124 = vunpack.c.h.b16 %v4048
    %v5125 = vunpack.c.l.b16 %v4049
    %v5126 = vunpack.c.h.b16 %v4049
    %v5127 = vunpack.c.l.b16 %v4050
    %v5128 = vunpack.c.h.b16 %v4050
    %v5129 = vunpack.c.l.b16 %v4051
    %v5130 = vunpack.c.h.b16 %v4051
    %v5131 = vunpack.c.l.b16 %v4052
    %v5132 = vunpack.c.h.b16 %v4052
    %v5133 = vunpack.c.l.b16 %v4053
    %v5134 = vunpack.c.h.b16 %v4053
    %v5135 = vunpack.c.l.b16 %v4054
    %v5136 = vunpack.c.h.b16 %v4054
    %v5137 = vunpack.c.l.b16 %v4055
    %v5138 = vunpack.c.h.b16 %v4055
    %v5139 = vunpack.c.l.b16 %v4056
    %v5140 = vunpack.c.h.b16 %v4056
    %v5141 = vunpack.c.l.b16 %v4057
    %v5142 = vunpack.c.h.b16 %v4057
    %v5143 = vunpack.c.l.b16 %v4058
    %v5144 = vunpack.c.h.b16 %v4058
    %v5145 = vunpack.c.l.b16 %v4059
    %v5146 = vunpack.c.h.b16 %v4059
    %v5147 = vunpack.c.l.b16 %v4060
    %v5148 = vunpack.c.h.b16 %v4060
    %v5149 = vunpack.c.l.b16 %v4061
    %v5150 = vunpack.c.h.b16 %v4061
    %v5151 = vunpack.c.l.b16 %v4062
    %v5152 = vunpack.c.h.b16 %v4062
    %v5153 = vunpack.c.l.b16 %v4063
    %v5154 = vunpack.c.h.b16 %v4063
    %v5155 = vunpack.c.l.b16 %v4064
    %v5156 = vunpack.c.h.b16 %v4064
    %v5157 = vunpack.c.l.b16 %v4065
    %v5158 = vunpack.c.h.b16 %v4065
    %v5159 = vunpack.c.l.b16 %v4066
    %v5160 = vunpack.c.h.b16 %v4066
    %v5161 = vunpack.c.l.b16 %v4067
    %v5162 = vunpack.c.h.b16 %v4067
    %v5163 = vunpack.c.l.b16 %v4068
    %v5164 = vunpack.c.h.b16 %v4068
    %v5165 = vunpack.c.l.b16 %v4069
    %v5166 = vunpack.c.h.b16 %v4069
    %v5167 = vunpack.c.l.b16 %v4070
    %v5168 = vunpack.c.h.b16 %v4070
    %v5169 = vunpack.c.l.b16 %v4071
    %v5170 = vunpack.c.h.b16 %v4071
    %v5171 = vunpack.c.l.b16 %v4072
    %v5172 = vunpack.c.h.b16 %v4072
    %v5173 = vunpack.c.l.b16 %v4073
    %v5174 = vunpack.c.h.b16 %v4073
    %v5175 = vunpack.c.l.b16 %v4074
    %v5176 = vunpack.c.h.b16 %v4074
    %v5177 = vunpack.c.l.b16 %v4075
    %v5178 = vunpack.c.h.b16 %v4075
    %v5179 = vunpack.c.l.b16 %v4076
    %v5180 = vunpack.c.h.b16 %v4076
    %v5181 = vunpack.c.l.b16 %v4077
    %v5182 = vunpack.c.h.b16 %v4077
    %v5183 = vunpack.c.l.b16 %v4078
    %v5184 = vunpack.c.h.b16 %v4078
    %v5185 = vunpack.c.l.b16 %v4079
    %v5186 = vunpack.c.h.b16 %v4079
    %v5187 = vunpack.c.l.b16 %v4080
    %v5188 = vunpack.c.h.b16 %v4080
    %v5189 = vunpack.c.l.b16 %v4081
    %v5190 = vunpack.c.h.b16 %v4081
    %v5191 = vunpack.c.l.b16 %v4082
    %v5192 = vunpack.c.h.b16 %v4082
    %v5193 = vunpack.c.l.b16 %v4083
    %v5194 = vunpack.c.h.b16 %v4083
    %v5195 = vunpack.c.l.b16 %v4084
    %v5196 = vunpack.c.h.b16 %v4084
    %v5197 = vunpack.c.l.b16 %v4085
    %v5198 = vunpack.c.h.b16 %v4085
    %v5199 = vunpack.c.l.b16 %v4086
    %v5200 = vunpack.c.h.b16 %v4086
    %v5201 = vunpack.c.l.b16 %v4087
    %v5202 = vunpack.c.h.b16 %v4087
    %v5203 = vunpack.c.l.b16 %v4088
    %v5204 = vunpack.c.h.b16 %v4088
    %v5205 = vunpack.c.l.b16 %v4089
    %v5206 = vunpack.c.h.b16 %v4089
    %v5207 = vunpack.c.l.b16 %v4090
    %v5208 = vunpack.c.h.b16 %v4090
    %v5209 = vunpack.c.l.b16 %v4091
    %v5210 = vunpack.c.h.b16 %v4091
    %v5211 = vunpack.c.l.b16 %v4092
    %v5212 = vunpack.c.h.b16 %v4092
    %v5213 = vunpack.c.l.b16 %v4093
    %v5214 = vunpack.c.h.b16 %v4093
    %v5215 = vunpack.c.l.b16 %v4094
    %v5216 = vunpack.c.h.b16 %v4094
    %v5217 = vunpack.c.l.b16 %v4095
    %v5218 = vunpack.c.h.b16 %v4095
    %v5219 = vunpack.c.l.b16 %v4096
    %v5220 = vunpack.c.h.b16 %v4096
    %v5221 = vunpack.c.l.b16 %v4097
    %v5222 = vunpack.c.h.b16 %v4097
    %v5223 = vunpack.c.l.b16 %v4098
    %v5224 = vunpack.c.h.b16 %v4098
    %v5225 = vunpack.c.l.b16 %v4099
    %v5226 = vunpack.c.h.b16 %v4099
    %v5227 = vunpack.c.l.b16 %v4100
    %v5228 = vunpack.c.h.b16 %v4100
    %v5229 = vunpack.c.l.b16 %v4101
    %v5230 = vunpack.c.h.b16 %v4101
    %v5231 = vunpack.c.l.b16 %v4102
    %v5232 = vunpack.c.h.b16 %v4102
    %v5233 = vunpack.c.l.b16 %v4103
    %v5234 = vunpack.c.h.b16 %v4103
    %v5235 = vunpack.c.l.b16 %v4104
    %v5236 = vunpack.c.h.b16 %v4104
    %v5237 = vunpack.c.l.b16 %v4105
    %v5238 = vunpack.c.h.b16 %v4105
    %v5239 = vunpack.c.l.b16 %v4106
    %v5240 = vunpack.c.h.b16 %v4106
    %v5241 = vunpack.c.l.b16 %v4107
    %v5242 = vunpack.c.h.b16 %v4107
    %v5243 = vunpack.c.l.b16 %v4108
    %v5244 = vunpack.c.h.b16 %v4108
    %v5245 = vunpack.c.l.b16 %v4109
    %v5246 = vunpack.c.h.b16 %v4109
    %v5247 = vunpack.c.l.b16 %v4110
    %v5248 = vunpack.c.h.b16 %v4110
    %v5249 = vunpack.c.l.b16 %v4111
    %v5250 = vunpack.c.h.b16 %v4111
    %v5251 = vunpack.c.l.b16 %v4112
    %v5252 = vunpack.c.h.b16 %v4112
    %v5253 = vunpack.c.l.b16 %v4113
    %v5254 = vunpack.c.h.b16 %v4113
    %v5255 = vunpack.c.l.b16 %v4114
    %v5256 = vunpack.c.h.b16 %v4114
    %v5257 = vunpack.c.l.b16 %v4115
    %v5258 = vunpack.c.h.b16 %v4115
    %v5259 = vunpack.c.l.b16 %v4116
    %v5260 = vunpack.c.h.b16 %v4116
    %v5261 = vunpack.c.l.b16 %v4117
    %v5262 = vunpack.c.h.b16 %v4117
    %v5263 = vunpack.c.l.b16 %v4118
    %v5264 = vunpack.c.h.b16 %v4118
    %v5265 = vunpack.c.l.b16 %v4119
    %v5266 = vunpack.c.h.b16 %v4119
    %v5267 = vunpack.c.l.b16 %v4120
    %v5268 = vunpack.c.h.b16 %v4120
    %v5269 = vunpack.c.l.b16 %v4121
    %v5270 = vunpack.c.h.b16 %v4121
    %v5271 = vunpack.c.l.b16 %v4122
    %v5272 = vunpack.c.h.b16 %v4122
    %v5273 = vunpack.c.l.b16 %v4123
    %v5274 = vunpack.c.h.b16 %v4123
    %v5275 = vunpack.c.l.b16 %v4124
    %v5276 = vunpack.c.h.b16 %v4124
    %v5277 = vunpack.c.l.b16 %v4125
    %v5278 = vunpack.c.h.b16 %v4125
    %v5279 = vunpack.c.l.b16 %v4126
    %v5280 = vunpack.c.h.b16 %v4126
    %v5281 = vunpack.c.l.b16 %v4127
    %v5282 = vunpack.c.h.b16 %v4127
    %v5283 = vunpack.c.l.b16 %v4128
    %v5284 = vunpack.c.h.b16 %v4128
    %v5285 = vunpack.c.l.b16 %v4129
    %v5286 = vunpack.c.h.b16 %v4129
    %v5287 = vunpack.c.l.b16 %v4130
    %v5288 = vunpack.c.h.b16 %v4130
    %v5289 = vunpack.c.l.b16 %v4131
    %v5290 = vunpack.c.h.b16 %v4131
    %v5291 = vunpack.c.l.b16 %v4132
    %v5292 = vunpack.c.h.b16 %v4132
    %v5293 = vunpack.c.l.b16 %v4133
    %v5294 = vunpack.c.h.b16 %v4133
    %v5295 = vunpack.c.l.b16 %v4134
    %v5296 = vunpack.c.h.b16 %v4134
    %v5297 = vunpack.c.l.b16 %v4135
    %v5298 = vunpack.c.h.b16 %v4135
    %v5299 = vunpack.c.l.b16 %v4136
    %v5300 = vunpack.c.h.b16 %v4136
    %v5301 = vunpack.c.l.b16 %v4137
    %v5302 = vunpack.c.h.b16 %v4137
    %v5303 = vunpack.c.l.b16 %v4138
    %v5304 = vunpack.c.h.b16 %v4138
    %v5305 = vunpack.c.l.b16 %v4139
    %v5306 = vunpack.c.h.b16 %v4139
    %v5307 = vunpack.c.l.b16 %v4140
    %v5308 = vunpack.c.h.b16 %v4140
    %v5309 = vunpack.c.l.b16 %v4141
    %v5310 = vunpack.c.h.b16 %v4141
    %v5311 = vunpack.c.l.b16 %v4142
    %v5312 = vunpack.c.h.b16 %v4142
    %v5313 = vunpack.c.l.b16 %v4143
    %v5314 = vunpack.c.h.b16 %v4143
    %v5315 = vunpack.c.l.b16 %v4144
    %v5316 = vunpack.c.h.b16 %v4144
    %v5317 = vunpack.c.l.b16 %v4145
    %v5318 = vunpack.c.h.b16 %v4145
    %v5319 = vunpack.c.l.b16 %v4146
    %v5320 = vunpack.c.h.b16 %v4146
    %v5321 = vunpack.c.l.b16 %v4147
    %v5322 = vunpack.c.h.b16 %v4147
    %v5323 = vunpack.c.l.b16 %v4148
    %v5324 = vunpack.c.h.b16 %v4148
    %v5325 = vunpack.c.l.b16 %v4149
    %v5326 = vunpack.c.h.b16 %v4149
    %v5327 = vunpack.c.l.b16 %v4150
    %v5328 = vunpack.c.h.b16 %v4150
    %v5329 = vunpack.c.l.b16 %v4151
    %v5330 = vunpack.c.h.b16 %v4151
    %v5331 = vunpack.c.l.b16 %v4152
    %v5332 = vunpack.c.h.b16 %v4152
    %v5333 = vunpack.c.l.b16 %v4153
    %v5334 = vunpack.c.h.b16 %v4153
    %v5335 = vunpack.c.l.b16 %v4154
    %v5336 = vunpack.c.h.b16 %v4154
    %v5337 = vunpack.c.l.b16 %v4155
    %v5338 = vunpack.c.h.b16 %v4155
    %v5339 = vunpack.c.l.b16 %v4156
    %v5340 = vunpack.c.h.b16 %v4156
    %v5341 = vunpack.c.l.b16 %v4157
    %v5342 = vunpack.c.h.b16 %v4157
    %v5343 = vunpack.c.l.b16 %v4158
    %v5344 = vunpack.c.h.b16 %v4158
    %v5345 = vunpack.c.l.b16 %v4159
    %v5346 = vunpack.c.h.b16 %v4159
    %v5347 = vunpack.c.l.b16 %v4160
    %v5348 = vunpack.c.h.b16 %v4160
    %v5349 = vunpack.c.l.b16 %v4161
    %v5350 = vunpack.c.h.b16 %v4161
    %v5351 = vunpack.c.l.b16 %v4162
    %v5352 = vunpack.c.h.b16 %v4162
    %v5353 = vunpack.c.l.b16 %v4163
    %v5354 = vunpack.c.h.b16 %v4163
    %v5355 = vunpack.c.l.b16 %v4164
    %v5356 = vunpack.c.h.b16 %v4164
    %v5357 = vunpack.c.l.b16 %v4165
    %v5358 = vunpack.c.h.b16 %v4165
    %v5359 = vunpack.c.l.b16 %v4166
    %v5360 = vunpack.c.h.b16 %v4166
    %v5361 = vunpack.c.l.b16 %v4167
    %v5362 = vunpack.c.h.b16 %v4167
    %v5363 = vunpack.c.l.b16 %v4168
    %v5364 = vunpack.c.h.b16 %v4168
    %v5365 = vunpack.c.l.b16 %v4169
    %v5366 = vunpack.c.h.b16 %v4169
    %v5367 = vunpack.c.l.b16 %v4170
    %v5368 = vunpack.c.h.b16 %v4170
    %v5369 = vunpack.c.l.b16 %v4171
    %v5370 = vunpack.c.h.b16 %v4171
    %v5371 = vunpack.c.l.b16 %v4172
    %v5372 = vunpack.c.h.b16 %v4172
    %v5373 = vunpack.c.l.b16 %v4173
    %v5374 = vunpack.c.h.b16 %v4173
    %v5375 = vunpack.c.l.b16 %v4174
    %v5376 = vunpack.c.h.b16 %v4174
    %v5377 = vunpack.c.l.b16 %v4175
    %v5378 = vunpack.c.h.b16 %v4175
    %v5379 = vunpack.c.l.b16 %v4176
    %v5380 = vunpack.c.h.b16 %v4176
    %v5381 = vunpack.c.l.b16 %v4177
    %v5382 = vunpack.c.h.b16 %v4177
    %v5383 = vunpack.c.l.b16 %v4178
    %v5384 = vunpack.c.h.b16 %v4178
    %v5385 = vunpack.c.l.b16 %v4179
    %v5386 = vunpack.c.h.b16 %v4179
    %v5387 = vunpack.c.l.b16 %v4180
    %v5388 = vunpack.c.h.b16 %v4180
    %v5389 = vunpack.c.l.b16 %v4181
    %v5390 = vunpack.c.h.b16 %v4181
    %v5391 = vunpack.c.l.b16 %v4182
    %v5392 = vunpack.c.h.b16 %v4182
    %v5393 = vunpack.c.l.b16 %v4183
    %v5394 = vunpack.c.h.b16 %v4183
    %v5395 = vunpack.c.l.b16 %v4184
    %v5396 = vunpack.c.h.b16 %v4184
    %v5397 = vunpack.c.l.b16 %v4185
    %v5398 = vunpack.c.h.b16 %v4185
    %v5399 = vunpack.c.l.b16 %v4186
    %v5400 = vunpack.c.h.b16 %v4186
    %v5401 = vunpack.c.l.b16 %v4187
    %v5402 = vunpack.c.h.b16 %v4187
    %v5403 = vunpack.c.l.b16 %v4188
    %v5404 = vunpack.c.h.b16 %v4188
    %v5405 = vunpack.c.l.b16 %v4189
    %v5406 = vunpack.c.h.b16 %v4189
    %v5407 = vunpack.c.l.b16 %v4190
    %v5408 = vunpack.c.h.b16 %v4190
    %v5409 = vunpack.c.l.b16 %v4191
    %v5410 = vunpack.c.h.b16 %v4191
    %v5411 = vunpack.c.l.b16 %v4192
    %v5412 = vunpack.c.h.b16 %v4192
    %v5413 = vunpack.c.l.b16 %v4193
    %v5414 = vunpack.c.h.b16 %v4193
    %v5415 = vunpack.c.l.b16 %v4194
    %v5416 = vunpack.c.h.b16 %v4194
    %v5417 = vunpack.c.l.b16 %v4195
    %v5418 = vunpack.c.h.b16 %v4195
    %v5419 = vunpack.c.l.b16 %v4196
    %v5420 = vunpack.c.h.b16 %v4196
    %v5421 = vunpack.c.l.b16 %v4197
    %v5422 = vunpack.c.h.b16 %v4197
    %v5423 = vunpack.c.l.b16 %v4198
    %v5424 = vunpack.c.h.b16 %v4198
    %v5425 = vunpack.c.l.b16 %v4199
    %v5426 = vunpack.c.h.b16 %v4199
    %v5427 = vunpack.c.l.b16 %v4200
    %v5428 = vunpack.c.h.b16 %v4200
    %v5429 = vunpack.c.l.b16 %v4201
    %v5430 = vunpack.c.h.b16 %v4201
    %v5431 = vunpack.c.l.b16 %v4202
    %v5432 = vunpack.c.h.b16 %v4202
    %v5433 = vunpack.c.l.b16 %v4203
    %v5434 = vunpack.c.h.b16 %v4203
    %v5435 = vunpack.c.l.b16 %v4204
    %v5436 = vunpack.c.h.b16 %v4204
    %v5437 = vunpack.c.l.b16 %v4205
    %v5438 = vunpack.c.h.b16 %v4205
    %v5439 = vunpack.c.l.b16 %v4206
    %v5440 = vunpack.c.h.b16 %v4206
    %v5441 = vunpack.c.l.b16 %v4207
    %v5442 = vunpack.c.h.b16 %v4207
    %v5443 = vunpack.c.l.b16 %v4208
    %v5444 = vunpack.c.h.b16 %v4208
    %v5445 = vunpack.c.l.b16 %v4209
    %v5446 = vunpack.c.h.b16 %v4209
    %v5447 = vunpack.c.l.b16 %v4210
    %v5448 = vunpack.c.h.b16 %v4210
    %v5449 = vunpack.c.l.b16 %v4211
    %v5450 = vunpack.c.h.b16 %v4211
    %v5451 = vunpack.c.l.b16 %v4212
    %v5452 = vunpack.c.h.b16 %v4212
    %v5453 = vunpack.c.l.b16 %v4213
    %v5454 = vunpack.c.h.b16 %v4213
    %v5455 = vunpack.c.l.b16 %v4214
    %v5456 = vunpack.c.h.b16 %v4214
    %v5457 = vunpack.c.l.b16 %v4215
    %v5458 = vunpack.c.h.b16 %v4215
    %v5459 = vunpack.c.l.b16 %v4216
    %v5460 = vunpack.c.h.b16 %v4216
    %v5461 = vunpack.c.l.b16 %v4217
    %v5462 = vunpack.c.h.b16 %v4217
    %v5463 = vunpack.c.l.b16 %v4218
    %v5464 = vunpack.c.h.b16 %v4218
    %v5465 = vunpack.c.l.b16 %v4219
    %v5466 = vunpack.c.h.b16 %v4219
    %v5467 = vunpack.c.l.b16 %v4220
    %v5468 = vunpack.c.h.b16 %v4220
    %v5469 = vunpack.c.l.b16 %v4221
    %v5470 = vunpack.c.h.b16 %v4221
    %v5471 = vunpack.c.l.b16 %v4222
    %v5472 = vunpack.c.h.b16 %v4222
    %v5473 = vunpack.c.l.b16 %v4223
    %v5474 = vunpack.c.h.b16 %v4223
    %v5475 = vunpack.c.l.b16 %v4224
    %v5476 = vunpack.c.h.b16 %v4224
    %v5477 = vunpack.c.l.b16 %v4225
    %v5478 = vunpack.c.h.b16 %v4225
    %v5479 = vunpack.c.l.b16 %v4226
    %v5480 = vunpack.c.h.b16 %v4226
    %v5481 = vunpack.c.l.b16 %v4227
    %v5482 = vunpack.c.h.b16 %v4227
    %v5483 = vunpack.c.l.b16 %v4228
    %v5484 = vunpack.c.h.b16 %v4228
    %v5485 = vunpack.c.l.b16 %v4229
    %v5486 = vunpack.c.h.b16 %v4229
    %v5487 = vunpack.c.l.b16 %v4230
    %v5488 = vunpack.c.h.b16 %v4230
    %v5489 = vunpack.c.l.b16 %v4231
    %v5490 = vunpack.c.h.b16 %v4231
    %v5491 = vunpack.c.l.b16 %v4232
    %v5492 = vunpack.c.h.b16 %v4232
    %v5493 = vunpack.c.l.b16 %v4233
    %v5494 = vunpack.c.h.b16 %v4233
    %v5495 = vunpack.c.l.b16 %v4234
    %v5496 = vunpack.c.h.b16 %v4234
    %v5497 = vunpack.c.l.b16 %v4235
    %v5498 = vunpack.c.h.b16 %v4235
    %v5499 = vunpack.c.l.b16 %v4236
    %v5500 = vunpack.c.h.b16 %v4236
    %v5501 = vunpack.c.l.b16 %v4237
    %v5502 = vunpack.c.h.b16 %v4237
    %v5503 = vunpack.c.l.b16 %v4238
    %v5504 = vunpack.c.h.b16 %v4238
    %v5505 = vunpack.c.l.b16 %v4239
    %v5506 = vunpack.c.h.b16 %v4239
    %v5507 = vunpack.c.l.b16 %v4240
    %v5508 = vunpack.c.h.b16 %v4240
    %v5509 = vunpack.c.l.b16 %v4241
    %v5510 = vunpack.c.h.b16 %v4241
    %v5511 = vunpack.c.l.b16 %v4242
    %v5512 = vunpack.c.h.b16 %v4242
    %v5513 = vunpack.c.l.b16 %v4243
    %v5514 = vunpack.c.h.b16 %v4243
    %v5515 = vunpack.c.l.b16 %v4244
    %v5516 = vunpack.c.h.b16 %v4244
    %v5517 = vunpack.c.l.b16 %v4245
    %v5518 = vunpack.c.h.b16 %v4245
    %v5519 = vunpack.c.l.b16 %v4246
    %v5520 = vunpack.c.h.b16 %v4246
    %v5521 = vunpack.c.l.b16 %v4247
    %v5522 = vunpack.c.h.b16 %v4247
    %v5523 = vunpack.c.l.b16 %v4248
    %v5524 = vunpack.c.h.b16 %v4248
    %v5525 = vunpack.c.l.b16 %v4249
    %v5526 = vunpack.c.h.b16 %v4249
    %v5527 = vunpack.c.l.b16 %v4250
    %v5528 = vunpack.c.h.b16 %v4250
    %v5529 = vunpack.c.l.b16 %v4251
    %v5530 = vunpack.c.h.b16 %v4251
    %v5531 = vunpack.c.l.b16 %v4252
    %v5532 = vunpack.c.h.b16 %v4252
    %v5533 = vunpack.c.l.b16 %v4253
    %v5534 = vunpack.c.h.b16 %v4253
    %v5535 = vunpack.c.l.b16 %v4254
    %v5536 = vunpack.c.h.b16 %v4254
    %v5537 = vunpack.c.l.b16 %v4255
    %v5538 = vunpack.c.h.b16 %v4255
    %v5539 = vunpack.c.l.b16 %v4256
    %v5540 = vunpack.c.h.b16 %v4256
    %v5541 = vunpack.c.l.b16 %v4257
    %v5542 = vunpack.c.h.b16 %v4257
    %v5543 = vunpack.c.l.b16 %v4258
    %v5544 = vunpack.c.h.b16 %v4258
    %v5545 = vunpack.c.l.b16 %v4259
    %v5546 = vunpack.c.h.b16 %v4259
    %v5547 = vunpack.c.l.b16 %v4260
    %v5548 = vunpack.c.h.b16 %v4260
    %v5549 = vunpack.c.l.b16 %v4261
    %v5550 = vunpack.c.h.b16 %v4261
    %v5551 = vunpack.c.l.b16 %v4262
    %v5552 = vunpack.c.h.b16 %v4262
    %v5553 = vunpack.c.l.b16 %v4263
    %v5554 = vunpack.c.h.b16 %v4263
    %v5555 = vunpack.c.l.b16 %v4264
    %v5556 = vunpack.c.h.b16 %v4264
    %v5557 = vunpack.c.l.b16 %v4265
    %v5558 = vunpack.c.h.b16 %v4265
    %v5559 = vunpack.c.l.b16 %v4266
    %v5560 = vunpack.c.h.b16 %v4266
    %v5561 = vunpack.c.l.b16 %v4267
    %v5562 = vunpack.c.h.b16 %v4267
    %v5563 = vunpack.c.l.b16 %v4268
    %v5564 = vunpack.c.h.b16 %v4268
    %v5565 = vunpack.c.l.b16 %v4269
    %v5566 = vunpack.c.h.b16 %v4269
    %v5567 = vunpack.c.l.b16 %v4270
    %v5568 = vunpack.c.h.b16 %v4270
    %v5569 = vunpack.c.l.b16 %v4271
    %v5570 = vunpack.c.h.b16 %v4271
    %v5571 = vunpack.c.l.b16 %v4272
    %v5572 = vunpack.c.h.b16 %v4272
    %v5573 = vunpack.c.l.b16 %v4273
    %v5574 = vunpack.c.h.b16 %v4273
    %v5575 = vunpack.c.l.b16 %v4274
    %v5576 = vunpack.c.h.b16 %v4274
    %v5577 = vunpack.c.l.b16 %v4275
    %v5578 = vunpack.c.h.b16 %v4275
    %v5579 = vunpack.c.l.b16 %v4276
    %v5580 = vunpack.c.h.b16 %v4276
    %v5581 = vunpack.c.l.b16 %v4277
    %v5582 = vunpack.c.h.b16 %v4277
    %v5583 = vunpack.c.l.b16 %v4278
    %v5584 = vunpack.c.h.b16 %v4278
    %v5585 = vunpack.c.l.b16 %v4279
    %v5586 = vunpack.c.h.b16 %v4279
    %v5587 = vunpack.c.l.b16 %v4280
    %v5588 = vunpack.c.h.b16 %v4280
    %v5589 = vunpack.c.l.b16 %v4281
    %v5590 = vunpack.c.h.b16 %v4281
    %v5591 = vunpack.c.l.b16 %v4282
    %v5592 = vunpack.c.h.b16 %v4282
    %v5593 = vunpack.c.l.b16 %v4283
    %v5594 = vunpack.c.h.b16 %v4283
    %v5595 = vunpack.c.l.b16 %v4284
    %v5596 = vunpack.c.h.b16 %v4284
    %v5597 = vunpack.c.l.b16 %v4285
    %v5598 = vunpack.c.h.b16 %v4285
    %v5599 = vunpack.c.l.b16 %v4286
    %v5600 = vunpack.c.h.b16 %v4286
    %v5601 = vunpack.c.l.b16 %v4287
    %v5602 = vunpack.c.h.b16 %v4287
    %v5603 = vunpack.c.l.b16 %v4288
    %v5604 = vunpack.c.h.b16 %v4288
    %v5605 = vunpack.c.l.b16 %v4289
    %v5606 = vunpack.c.h.b16 %v4289
    %v5607 = vunpack.c.l.b16 %v4290
    %v5608 = vunpack.c.h.b16 %v4290
    %v5609 = vunpack.c.l.b16 %v4291
    %v5610 = vunpack.c.h.b16 %v4291
    %v5611 = vunpack.c.l.b16 %v4292
    %v5612 = vunpack.c.h.b16 %v4292
    %v5613 = vunpack.c.l.b16 %v4293
    %v5614 = vunpack.c.h.b16 %v4293
    %v5615 = vunpack.c.l.b16 %v4294
    %v5616 = vunpack.c.h.b16 %v4294
    %v5617 = vunpack.c.l.b16 %v4295
    %v5618 = vunpack.c.h.b16 %v4295
    %v5619 = vunpack.c.l.b16 %v4296
    %v5620 = vunpack.c.h.b16 %v4296
    %v5621 = vunpack.c.l.b16 %v4297
    %v5622 = vunpack.c.h.b16 %v4297
    %v5623 = vunpack.c.l.b16 %v4298
    %v5624 = vunpack.c.h.b16 %v4298
    %v5625 = vunpack.c.l.b16 %v4299
    %v5626 = vunpack.c.h.b16 %v4299
    %v5627 = vunpack.c.l.b16 %v4300
    %v5628 = vunpack.c.h.b16 %v4300
    %v5629 = vunpack.c.l.b16 %v4301
    %v5630 = vunpack.c.h.b16 %v4301
    %v5631 = vunpack.c.l.b16 %v4302
    %v5632 = vunpack.c.h.b16 %v4302
    %v5633 = vunpack.c.l.b16 %v4303
    %v5634 = vunpack.c.h.b16 %v4303
    %v5635 = vunpack.c.l.b16 %v4304
    %v5636 = vunpack.c.h.b16 %v4304
    %v5637 = vunpack.c.l.b16 %v4305
    %v5638 = vunpack.c.h.b16 %v4305
    %v5639 = vunpack.c.l.b16 %v4306
    %v5640 = vunpack.c.h.b16 %v4306
    %v5641 = vunpack.c.l.b16 %v4307
    %v5642 = vunpack.c.h.b16 %v4307
    %v5643 = vunpack.c.l.b16 %v4308
    %v5644 = vunpack.c.h.b16 %v4308
    %v5645 = vunpack.c.l.b16 %v4309
    %v5646 = vunpack.c.h.b16 %v4309
    %v5647 = vunpack.c.l.b16 %v4310
    %v5648 = vunpack.c.h.b16 %v4310
    %v5649 = vunpack.c.l.b16 %v4311
    %v5650 = vunpack.c.h.b16 %v4311
    %v5651 = vunpack.c.l.b16 %v4312
    %v5652 = vunpack.c.h.b16 %v4312
    %v5653 = vunpack.c.l.b16 %v4313
    %v5654 = vunpack.c.h.b16 %v4313
    %v5655 = vunpack.c.l.b16 %v4314
    %v5656 = vunpack.c.h.b16 %v4314
    %v5657 = vunpack.c.l.b16 %v4315
    %v5658 = vunpack.c.h.b16 %v4315
    %v5659 = vunpack.c.l.b16 %v4316
    %v5660 = vunpack.c.h.b16 %v4316
    %v5661 = vunpack.c.l.b16 %v4317
    %v5662 = vunpack.c.h.b16 %v4317
    %v5663 = vunpack.c.l.b16 %v4318
    %v5664 = vunpack.c.h.b16 %v4318
    %v5665 = vunpack.c.l.b16 %v4319
    %v5666 = vunpack.c.h.b16 %v4319
    %v5667 = vunpack.c.l.b16 %v4320
    %v5668 = vunpack.c.h.b16 %v4320
    %v5669 = vunpack.c.l.b16 %v4321
    %v5670 = vunpack.c.h.b16 %v4321
    %v5671 = vunpack.c.l.b16 %v4322
    %v5672 = vunpack.c.h.b16 %v4322
    %v5673 = vunpack.c.l.b16 %v4323
    %v5674 = vunpack.c.h.b16 %v4323
    %v5675 = vunpack.c.l.b16 %v4324
    %v5676 = vunpack.c.h.b16 %v4324
    %v5677 = vunpack.c.l.b16 %v4325
    %v5678 = vunpack.c.h.b16 %v4325
    %v5679 = vunpack.c.l.b16 %v4326
    %v5680 = vunpack.c.h.b16 %v4326
    %v5681 = vunpack.c.l.b16 %v4327
    %v5682 = vunpack.c.h.b16 %v4327
    %v5683 = vunpack.c.l.b16 %v4328
    %v5684 = vunpack.c.h.b16 %v4328
    %v5685 = vunpack.c.l.b16 %v4329
    %v5686 = vunpack.c.h.b16 %v4329
    %v5687 = vunpack.c.l.b16 %v4330
    %v5688 = vunpack.c.h.b16 %v4330
    %v5689 = vunpack.c.l.b16 %v4331
    %v5690 = vunpack.c.h.b16 %v4331
    %v5691 = vunpack.c.l.b16 %v4332
    %v5692 = vunpack.c.h.b16 %v4332
    %v5693 = vunpack.c.l.b16 %v4333
    %v5694 = vunpack.c.h.b16 %v4333
    %v5695 = vunpack.c.l.b16 %v4334
    %v5696 = vunpack.c.h.b16 %v4334
    %v5697 = vunpack.c.l.b16 %v4335
    %v5698 = vunpack.c.h.b16 %v4335
    %v5699 = vunpack.c.l.b16 %v4336
    %v5700 = vunpack.c.h.b16 %v4336
    %v5701 = vunpack.c.l.b16 %v4337
    %v5702 = vunpack.c.h.b16 %v4337
    %v5703 = vunpack.c.l.b16 %v4338
    %v5704 = vunpack.c.h.b16 %v4338
    %v5705 = vunpack.c.l.b16 %v4339
    %v5706 = vunpack.c.h.b16 %v4339
    %v5707 = vunpack.c.l.b16 %v4340
    %v5708 = vunpack.c.h.b16 %v4340
    %v5709 = vunpack.c.l.b16 %v4341
    %v5710 = vunpack.c.h.b16 %v4341
    %v5711 = vunpack.c.l.b16 %v4342
    %v5712 = vunpack.c.h.b16 %v4342
    %v5713 = vunpack.c.l.b16 %v4343
    %v5714 = vunpack.c.h.b16 %v4343
    %v5715 = vunpack.c.l.b16 %v4344
    %v5716 = vunpack.c.h.b16 %v4344
    %v5717 = vunpack.c.l.b16 %v4345
    %v5718 = vunpack.c.h.b16 %v4345
    %v5719 = vunpack.c.l.b16 %v4346
    %v5720 = vunpack.c.h.b16 %v4346
    %v5721 = vunpack.c.l.b16 %v4347
    %v5722 = vunpack.c.h.b16 %v4347
    %v5723 = vunpack.c.l.b16 %v4348
    %v5724 = vunpack.c.h.b16 %v4348
    %v5725 = vunpack.c.l.b16 %v4349
    %v5726 = vunpack.c.h.b16 %v4349
    %v5727 = vunpack.c.l.b16 %v4350
    %v5728 = vunpack.c.h.b16 %v4350
    %v5729 = vunpack.c.l.b16 %v4351
    %v5730 = vunpack.c.h.b16 %v4351
    %v5731 = vunpack.c.l.b16 %v4352
    %v5732 = vunpack.c.h.b16 %v4352
    %v5733 = vunpack.c.l.b16 %v4353
    %v5734 = vunpack.c.h.b16 %v4353
    %v5735 = vunpack.c.l.b16 %v4354
    %v5736 = vunpack.c.h.b16 %v4354
    %v5737 = vunpack.c.l.b16 %v4355
    %v5738 = vunpack.c.h.b16 %v4355
    %v5739 = vunpack.c.l.b16 %v4356
    %v5740 = vunpack.c.h.b16 %v4356
    %v5741 = vunpack.c.l.b16 %v4357
    %v5742 = vunpack.c.h.b16 %v4357
    %v5743 = vunpack.c.l.b16 %v4358
    %v5744 = vunpack.c.h.b16 %v4358
    %v5745 = vunpack.c.l.b16 %v4359
    %v5746 = vunpack.c.h.b16 %v4359
    %v5747 = vunpack.c.l.b16 %v4360
    %v5748 = vunpack.c.h.b16 %v4360
    %v5749 = vunpack.c.l.b16 %v4361
    %v5750 = vunpack.c.h.b16 %v4361
    %v5751 = vunpack.c.l.b16 %v4362
    %v5752 = vunpack.c.h.b16 %v4362
    %v5753 = vunpack.c.l.b16 %v4363
    %v5754 = vunpack.c.h.b16 %v4363
    %v5755 = vunpack.c.l.b16 %v4364
    %v5756 = vunpack.c.h.b16 %v4364
    %v5757 = vunpack.c.l.b16 %v4365
    %v5758 = vunpack.c.h.b16 %v4365
    %v5759 = vunpack.c.l.b16 %v4366
    %v5760 = vunpack.c.h.b16 %v4366
    %v5761 = vunpack.c.l.b16 %v4367
    %v5762 = vunpack.c.h.b16 %v4367
    %v5763 = vunpack.c.l.b16 %v4368
    %v5764 = vunpack.c.h.b16 %v4368
    %v5765 = vunpack.c.l.b16 %v4369
    %v5766 = vunpack.c.h.b16 %v4369
    %v5767 = vunpack.c.l.b16 %v4370
    %v5768 = vunpack.c.h.b16 %v4370
    %v5769 = vunpack.c.l.b16 %v4371
    %v5770 = vunpack.c.h.b16 %v4371
    %v5771 = vunpack.c.l.b16 %v4372
    %v5772 = vunpack.c.h.b16 %v4372
    %v5773 = vunpack.c.l.b16 %v4373
    %v5774 = vunpack.c.h.b16 %v4373
    %v5775 = vunpack.c.l.b16 %v4374
    %v5776 = vunpack.c.h.b16 %v4374
    %v5777 = vunpack.c.l.b16 %v4375
    %v5778 = vunpack.c.h.b16 %v4375
    %v5779 = vunpack.c.l.b16 %v4376
    %v5780 = vunpack.c.h.b16 %v4376
    %v5781 = vunpack.c.l.b16 %v4377
    %v5782 = vunpack.c.h.b16 %v4377
    %v5783 = vunpack.c.l.b16 %v4378
    %v5784 = vunpack.c.h.b16 %v4378
    %v5785 = vunpack.c.l.b16 %v4379
    %v5786 = vunpack.c.h.b16 %v4379
    %v5787 = vunpack.c.l.b16 %v4380
    %v5788 = vunpack.c.h.b16 %v4380
    %v5789 = vunpack.c.l.b16 %v4381
    %v5790 = vunpack.c.h.b16 %v4381
    %v5791 = vunpack.c.l.b16 %v4382
    %v5792 = vunpack.c.h.b16 %v4382
    %v5793 = vunpack.c.l.b16 %v4383
    %v5794 = vunpack.c.h.b16 %v4383
    %v5795 = vunpack.c.l.b16 %v4384
    %v5796 = vunpack.c.h.b16 %v4384
    %v5797 = vunpack.c.l.b16 %v4385
    %v5798 = vunpack.c.h.b16 %v4385
    %v5799 = vunpack.c.l.b16 %v4386
    %v5800 = vunpack.c.h.b16 %v4386
    %v5801 = vunpack.c.l.b16 %v4387
    %v5802 = vunpack.c.h.b16 %v4387
    %v5803 = vunpack.c.l.b16 %v4388
    %v5804 = vunpack.c.h.b16 %v4388
    %v5805 = vunpack.c.l.b16 %v4389
    %v5806 = vunpack.c.h.b16 %v4389
    %v5807 = vunpack.c.l.b16 %v4390
    %v5808 = vunpack.c.h.b16 %v4390
    %v5809 = vunpack.c.l.b16 %v4391
    %v5810 = vunpack.c.h.b16 %v4391
    %v5811 = vunpack.c.l.b16 %v4392
    %v5812 = vunpack.c.h.b16 %v4392
    %v5813 = vunpack.c.l.b16 %v4393
    %v5814 = vunpack.c.h.b16 %v4393
    %v5815 = vunpack.c.l.b16 %v4394
    %v5816 = vunpack.c.h.b16 %v4394
    %v5817 = vunpack.c.l.b16 %v4395
    %v5818 = vunpack.c.h.b16 %v4395
    %v5819 = vunpack.c.l.b16 %v4396
    %v5820 = vunpack.c.h.b16 %v4396
    %v5821 = vunpack.c.l.b16 %v4397
    %v5822 = vunpack.c.h.b16 %v4397
    %v5823 = vunpack.c.l.b16 %v4398
    %v5824 = vunpack.c.h.b16 %v4398
    %v5825 = vunpack.c.l.b16 %v4399
    %v5826 = vunpack.c.h.b16 %v4399
    %v5827 = vunpack.c.l.b16 %v4400
    %v5828 = vunpack.c.h.b16 %v4400
    %v5829 = vunpack.c.l.b16 %v4401
    %v5830 = vunpack.c.h.b16 %v4401
    %v5831 = vunpack.c.l.b16 %v4402
    %v5832 = vunpack.c.h.b16 %v4402
    %v5833 = vunpack.c.l.b16 %v4403
    %v5834 = vunpack.c.h.b16 %v4403
    %v5835 = vunpack.c.l.b16 %v4404
    %v5836 = vunpack.c.h.b16 %v4404
    %v5837 = vunpack.c.l.b16 %v4405
    %v5838 = vunpack.c.h.b16 %v4405
    %v5839 = vunpack.c.l.b16 %v4406
    %v5840 = vunpack.c.h.b16 %v4406
    %v5841 = vunpack.c.l.b16 %v4407
    %v5842 = vunpack.c.h.b16 %v4407
    %v5843 = vunpack.c.l.b16 %v4408
    %v5844 = vunpack.c.h.b16 %v4408
    %v5845 = vunpack.c.l.b16 %v4409
    %v5846 = vunpack.c.h.b16 %v4409
    %v5847 = vunpack.c.l.b16 %v4410
    %v5848 = vunpack.c.h.b16 %v4410
    %v5849 = vunpack.c.l.b16 %v4411
    %v5850 = vunpack.c.h.b16 %v4411
    %v5851 = vunpack.c.l.b16 %v4412
    %v5852 = vunpack.c.h.b16 %v4412
    %v5853 = vunpack.c.l.b16 %v4413
    %v5854 = vunpack.c.h.b16 %v4413
    %v5855 = vunpack.c.l.b16 %v4414
    %v5856 = vunpack.c.h.b16 %v4414
    %v5857 = vunpack.c.l.b16 %v4415
    %v5858 = vunpack.c.h.b16 %v4415
    %v5859 = vunpack.c.l.b16 %v4416
    %v5860 = vunpack.c.h.b16 %v4416
    %v5861 = vunpack.c.l.b16 %v4417
    %v5862 = vunpack.c.h.b16 %v4417
    %v5863 = vunpack.c.l.b16 %v4418
    %v5864 = vunpack.c.h.b16 %v4418
    %v5865 = vunpack.c.l.b16 %v4419
    %v5866 = vunpack.c.h.b16 %v4419
    %v5867 = vunpack.c.l.b16 %v4420
    %v5868 = vunpack.c.h.b16 %v4420
    %v5869 = vunpack.c.l.b16 %v4421
    %v5870 = vunpack.c.h.b16 %v4421
    %v5871 = vunpack.c.l.b16 %v4422
    %v5872 = vunpack.c.h.b16 %v4422
    %v5873 = vunpack.c.l.b16 %v4423
    %v5874 = vunpack.c.h.b16 %v4423
    %v5875 = vunpack.c.l.b16 %v4424
    %v5876 = vunpack.c.h.b16 %v4424
    %v5877 = vunpack.c.l.b16 %v4425
    %v5878 = vunpack.c.h.b16 %v4425
    %v5879 = vunpack.c.l.b16 %v4426
    %v5880 = vunpack.c.h.b16 %v4426
    %v5881 = vunpack.c.l.b16 %v4427
    %v5882 = vunpack.c.h.b16 %v4427
    %v5883 = vunpack.c.l.b16 %v4428
    %v5884 = vunpack.c.h.b16 %v4428
    %v5885 = vunpack.c.l.b16 %v4429
    %v5886 = vunpack.c.h.b16 %v4429
    %v5887 = vunpack.c.l.b16 %v4430
    %v5888 = vunpack.c.h.b16 %v4430
    %v5889 = vunpack.c.l.b16 %v4431
    %v5890 = vunpack.c.h.b16 %v4431
    %v5891 = vunpack.c.l.b16 %v4432
    %v5892 = vunpack.c.h.b16 %v4432
    %v5893 = vunpack.c.l.b16 %v4433
    %v5894 = vunpack.c.h.b16 %v4433
    %v5895 = vunpack.c.l.b16 %v4434
    %v5896 = vunpack.c.h.b16 %v4434
    %v5897 = vunpack.c.l.b16 %v4435
    %v5898 = vunpack.c.h.b16 %v4435
    %v5899 = vunpack.c.l.b16 %v4436
    %v5900 = vunpack.c.h.b16 %v4436
    %v5901 = vunpack.c.l.b16 %v4437
    %v5902 = vunpack.c.h.b16 %v4437
    %v5903 = vunpack.c.l.b16 %v4438
    %v5904 = vunpack.c.h.b16 %v4438
    %v5905 = vunpack.c.l.b16 %v4439
    %v5906 = vunpack.c.h.b16 %v4439
    %v5907 = vunpack.c.l.b16 %v4440
    %v5908 = vunpack.c.h.b16 %v4440
    %v5909 = vunpack.c.l.b16 %v4441
    %v5910 = vunpack.c.h.b16 %v4441
    %v5911 = vunpack.c.l.b16 %v4442
    %v5912 = vunpack.c.h.b16 %v4442
    %v5913 = vunpack.c.l.b16 %v4443
    %v5914 = vunpack.c.h.b16 %v4443
    %v5915 = vunpack.c.l.b16 %v4444
    %v5916 = vunpack.c.h.b16 %v4444
    %v5917 = vunpack.c.l.b16 %v4445
    %v5918 = vunpack.c.h.b16 %v4445
    %v5919 = vunpack.c.l.b16 %v4446
    %v5920 = vunpack.c.h.b16 %v4446
    %v5921 = vunpack.c.l.b16 %v4447
    %v5922 = vunpack.c.h.b16 %v4447
    %v5923 = vunpack.c.l.b16 %v4448
    %v5924 = vunpack.c.h.b16 %v4448
    %v5925 = vunpack.c.l.b16 %v4449
    %v5926 = vunpack.c.h.b16 %v4449
    %v5927 = vunpack.c.l.b16 %v4450
    %v5928 = vunpack.c.h.b16 %v4450
    %v5929 = vunpack.c.l.b16 %v4451
    %v5930 = vunpack.c.h.b16 %v4451
    %v5931 = vunpack.c.l.b16 %v4452
    %v5932 = vunpack.c.h.b16 %v4452
    %v5933 = vunpack.c.l.b16 %v4453
    %v5934 = vunpack.c.h.b16 %v4453
    %v5935 = vunpack.c.l.b16 %v4454
    %v5936 = vunpack.c.h.b16 %v4454
    %v5937 = vunpack.c.l.b16 %v4455
    %v5938 = vunpack.c.h.b16 %v4455
    %v5939 = vunpack.c.l.b16 %v4456
    %v5940 = vunpack.c.h.b16 %v4456
    %v5941 = vunpack.c.l.b16 %v4457
    %v5942 = vunpack.c.h.b16 %v4457
    %v5943 = vunpack.c.l.b16 %v4458
    %v5944 = vunpack.c.h.b16 %v4458
    %v5945 = vunpack.c.l.b16 %v4459
    %v5946 = vunpack.c.h.b16 %v4459
    %v5947 = vunpack.c.l.b16 %v4460
    %v5948 = vunpack.c.h.b16 %v4460
    %v5949 = vunpack.c.l.b16 %v4461
    %v5950 = vunpack.c.h.b16 %v4461
    %v5951 = vunpack.c.l.b16 %v4462
    %v5952 = vunpack.c.h.b16 %v4462
    %v5953 = vunpack.c.l.b16 %v4463
    %v5954 = vunpack.c.h.b16 %v4463
    %v5955 = vunpack.c.l.b16 %v4464
    %v5956 = vunpack.c.h.b16 %v4464
    %v5957 = vunpack.c.l.b16 %v4465
    %v5958 = vunpack.c.h.b16 %v4465
    %v5959 = vunpack.c.l.b16 %v4466
    %v5960 = vunpack.c.h.b16 %v4466
    %v5961 = vunpack.c.l.b16 %v4467
    %v5962 = vunpack.c.h.b16 %v4467
    %v5963 = vunpack.c.l.b16 %v4468
    %v5964 = vunpack.c.h.b16 %v4468
    %v5965 = vunpack.c.l.b16 %v4469
    %v5966 = vunpack.c.h.b16 %v4469
    %v5967 = vunpack.c.l.b16 %v4470
    %v5968 = vunpack.c.h.b16 %v4470
    %v5969 = vunpack.c.l.b16 %v4471
    %v5970 = vunpack.c.h.b16 %v4471
    %v5971 = vunpack.c.l.b16 %v4472
    %v5972 = vunpack.c.h.b16 %v4472
    %v5973 = vunpack.c.l.b16 %v4473
    %v5974 = vunpack.c.h.b16 %v4473
    %v5975 = vunpack.c.l.b16 %v4474
    %v5976 = vunpack.c.h.b16 %v4474
    %v5977 = vunpack.c.l.b16 %v4475
    %v5978 = vunpack.c.h.b16 %v4475
    %v5979 = vunpack.c.l.b16 %v4476
    %v5980 = vunpack.c.h.b16 %v4476
    %v5981 = vunpack.c.l.b16 %v4477
    %v5982 = vunpack.c.h.b16 %v4477
    %v5983 = vunpack.c.l.b16 %v4478
    %v5984 = vunpack.c.h.b16 %v4478
    %v5985 = vunpack.c.l.b16 %v4479
    %v5986 = vunpack.c.h.b16 %v4479
    %v5987 = vunpack.c.l.b16 %v4480
    %v5988 = vunpack.c.h.b16 %v4480
    %v5989 = vunpack.c.l.b16 %v4481
    %v5990 = vunpack.c.h.b16 %v4481
    %v5991 = vunpack.c.l.b16 %v4482
    %v5992 = vunpack.c.h.b16 %v4482
    %v5993 = vunpack.c.l.b16 %v4483
    %v5994 = vunpack.c.h.b16 %v4483
    %v5995 = vunpack.c.l.b16 %v4484
    %v5996 = vunpack.c.h.b16 %v4484
    %v5997 = vunpack.c.l.b16 %v4485
    %v5998 = vunpack.c.h.b16 %v4485
    %v5999 = vunpack.c.l.b16 %v4486
    %v6000 = vunpack.c.h.b16 %v4486
    %v6001 = vunpack.c.l.b16 %v4487
    %v6002 = vunpack.c.h.b16 %v4487
    %v6003 = vunpack.c.l.b16 %v4488
    %v6004 = vunpack.c.h.b16 %v4488
    %v6005 = vunpack.c.l.b16 %v4489
    %v6006 = vunpack.c.h.b16 %v4489
    %v6007 = vunpack.c.l.b16 %v4490
    %v6008 = vunpack.c.h.b16 %v4490
    %v6009 = vpack.c.b16 %v5017, %v5009
    %v6010 = vpack.c.b16 %v5018, %v5010
    %v6011 = vpack.c.b16 %v5019, %v5011
    %v6012 = vpack.c.b16 %v5020, %v5012
    %v6013 = vpack.c.b16 %v5021, %v5013
    %v6014 = vpack.c.b16 %v5022, %v5014
    %v6015 = vpack.c.b16 %v5023, %v5015
    %v6016 = vpack.c.b16 %v5024, %v5016
    %v6017 = vpack.c.b16 %v5033, %v5025
    %v6018 = vpack.c.b16 %v5034, %v5026
    %v6019 = vpack.c.b16 %v5035, %v5027
    %v6020 = vpack.c.b16 %v5036, %v5028
    %v6021 = vpack.c.b16 %v5037, %v5029
    %v6022 = vpack.c.b16 %v5038, %v5030
    %v6023 = vpack.c.b16 %v5039, %v5031
    %v6024 = vpack.c.b16 %v5040, %v5032
    %v6025 = vpack.c.b16 %v5049, %v5041
    %v6026 = vpack.c.b16 %v5050, %v5042
    %v6027 = vpack.c.b16 %v5051, %v5043
    %v6028 = vpack.c.b16 %v5052, %v5044
    %v6029 = vpack.c.b16 %v5053, %v5045
    %v6030 = vpack.c.b16 %v5054, %v5046
    %v6031 = vpack.c.b16 %v5055, %v5047
    %v6032 = vpack.c.b16 %v5056, %v5048
    %v6033 = vpack.c.b16 %v5065, %v5057
    %v6034 = vpack.c.b16 %v5066, %v5058
    %v6035 = vpack.c.b16 %v5067, %v5059
    %v6036 = vpack.c.b16 %v5068, %v5060
    %v6037 = vpack.c.b16 %v5069, %v5061
    %v6038 = vpack.c.b16 %v5070, %v5062
    %v6039 = vpack.c.b16 %v5071, %v5063
    %v6040 = vpack.c.b16 %v5072, %v5064
    %v6041 = vpack.c.b16 %v5081, %v5073
    %v6042 = vpack.c.b16 %v5082, %v5074
    %v6043 = vpack.c.b16 %v5083, %v5075
    %v6044 = vpack.c.b16 %v5084, %v5076
    %v6045 = vpack.c.b16 %v5085, %v5077
    %v6046 = vpack.c.b16 %v5086, %v5078
    %v6047 = vpack.c.b16 %v5087, %v5079
    %v6048 = vpack.c.b16 %v5088, %v5080
    %v6049 = vpack.c.b16 %v5097, %v5089
    %v6050 = vpack.c.b16 %v5098, %v5090
    %v6051 = vpack.c.b16 %v5099, %v5091
    %v6052 = vpack.c.b16 %v5100, %v5092
    %v6053 = vpack.c.b16 %v5101, %v5093
    %v6054 = vpack.c.b16 %v5102, %v5094
    %v6055 = vpack.c.b16 %v5103, %v5095
    %v6056 = vpack.c.b16 %v5104, %v5096
    %v6057 = vpack.c.b16 %v5113, %v5105
    %v6058 = vpack.c.b16 %v5114, %v5106
    %v6059 = vpack.c.b16 %v5115, %v5107
    %v6060 = vpack.c.b16 %v5116, %v5108
    %v6061 = vpack.c.b16 %v5117, %v5109
    %v6062 = vpack.c.b16 %v5118, %v5110
    %v6063 = vpack.c.b16 %v5119, %v5111
    %v6064 = vpack.c.b16 %v5120, %v5112
    %v6065 = vpack.c.b16 %v5129, %v5121
    %v6066 = vpack.c.b16 %v5130, %v5122
    %v6067 = vpack.c.b16 %v5131, %v5123
    %v6068 = vpack.c.b16 %v5132, %v5124
    %v6069 = vpack.c.b16 %v5133, %v5125
    %v6070 = vpack.c.b16 %v5134, %v5126
    %v6071 = vpack.c.b16 %v5135, %v5127
    %v6072 = vpack.c.b16 %v5136, %v5128
    %v6073 = vpack.c.b16 %v5145, %v5137
    %v6074 = vpack.c.b16 %v5146, %v5138
    %v6075 = vpack.c.b16 %v5147, %v5139
    %v6076 = vpack.c.b16 %v5148, %v5140
    %v6077 = vpack.c.b16 %v5149, %v5141
    %v6078 = vpack.c.b16 %v5150, %v5142
    %v6079 = vpack.c.b16 %v5151, %v5143
    %v6080 = vpack.c.b16 %v5152, %v5144
    %v6081 = vpack.c.b16 %v5161, %v5153
    %v6082 = vpack.c.b16 %v5162, %v5154
    %v6083 = vpack.c.b16 %v5163, %v5155
    %v6084 = vpack.c.b16 %v5164, %v5156
    %v6085 = vpack.c.b16 %v5165, %v5157
    %v6086 = vpack.c.b16 %v5166, %v5158
    %v6087 = vpack.c.b16 %v5167, %v5159
    %v6088 = vpack.c.b16 %v5168, %v5160
    %v6089 = vpack.c.b16 %v5177, %v5169
    %v6090 = vpack.c.b16 %v5178, %v5170
    %v6091 = vpack.c.b16 %v5179, %v5171
    %v6092 = vpack.c.b16 %v5180, %v5172
    %v6093 = vpack.c.b16 %v5181, %v5173
    %v6094 = vpack.c.b16 %v5182, %v5174
    %v6095 = vpack.c.b16 %v5183, %v5175
    %v6096 = vpack.c.b16 %v5184, %v5176
    %v6097 = vpack.c.b16 %v5193, %v5185
    %v6098 = vpack.c.b16 %v5194, %v5186
    %v6099 = vpack.c.b16 %v5195, %v5187
    %v6100 = vpack.c.b16 %v5196, %v5188
    %v6101 = vpack.c.b16 %v5197, %v5189
    %v6102 = vpack.c.b16 %v5198, %v5190
    %v6103 = vpack.c.b16 %v5199, %v5191
    %v6104 = vpack.c.b16 %v5200, %v5192
    %v6105 = vpack.c.b16 %v5209, %v5201
    %v6106 = vpack.c.b16 %v5210, %v5202
    %v6107 = vpack.c.b16 %v5211, %v5203
    %v6108 = vpack.c.b16 %v5212, %v5204
    %v6109 = vpack.c.b16 %v5213, %v5205
    %v6110 = vpack.c.b16 %v5214, %v5206
    %v6111 = vpack.c.b16 %v5215, %v5207
    %v6112 = vpack.c.b16 %v5216, %v5208
    %v6113 = vpack.c.b16 %v5225, %v5217
    %v6114 = vpack.c.b16 %v5226, %v5218
    %v6115 = vpack.c.b16 %v5227, %v5219
    %v6116 = vpack.c.b16 %v5228, %v5220
    %v6117 = vpack.c.b16 %v5229, %v5221
    %v6118 = vpack.c.b16 %v5230, %v5222
    %v6119 = vpack.c.b16 %v5231, %v5223
    %v6120 = vpack.c.b16 %v5232, %v5224
    %v6121 = vpack.c.b16 %v5241, %v5233
    %v6122 = vpack.c.b16 %v5242, %v5234
    %v6123 = vpack.c.b16 %v5243, %v5235
    %v6124 = vpack.c.b16 %v5244, %v5236
    %v6125 = vpack.c.b16 %v5245, %v5237
    %v6126 = vpack.c.b16 %v5246, %v5238
    %v6127 = vpack.c.b16 %v5247, %v5239
    %v6128 = vpack.c.b16 %v5248, %v5240
    %v6129 = vpack.c.b16 %v5257, %v5249
    %v6130 = vpack.c.b16 %v5258, %v5250
    %v6131 = vpack.c.b16 %v5259, %v5251
    %v6132 = vpack.c.b16 %v5260, %v5252
    %v6133 = vpack.c.b16 %v5261, %v5253
    %v6134 = vpack.c.b16 %v5262, %v5254
    %v6135 = vpack.c.b16 %v5263, %v5255
    %v6136 = vpack.c.b16 %v5264, %v5256
    %v6137 = vpack.c.b16 %v5273, %v5265
    %v6138 = vpack.c.b16 %v5274, %v5266
    %v6139 = vpack.c.b16 %v5275, %v5267
    %v6140 = vpack.c.b16 %v5276, %v5268
    %v6141 = vpack.c.b16 %v5277, %v5269
    %v6142 = vpack.c.b16 %v5278, %v5270
    %v6143 = vpack.c.b16 %v5279, %v5271
    %v6144 = vpack.c.b16 %v5280, %v5272
    %v6145 = vpack.c.b16 %v5289, %v5281
    %v6146 = vpack.c.b16 %v5290, %v5282
    %v6147 = vpack.c.b16 %v5291, %v5283
    %v6148 = vpack.c.b16 %v5292, %v5284
    %v6149 = vpack.c.b16 %v5293, %v5285
    %v6150 = vpack.c.b16 %v5294, %v5286
    %v6151 = vpack.c.b16 %v5295, %v5287
    %v6152 = vpack.c.b16 %v5296, %v5288
    %v6153 = vpack.c.b16 %v5305, %v5297
    %v6154 = vpack.c.b16 %v5306, %v5298
    %v6155 = vpack.c.b16 %v5307, %v5299
    %v6156 = vpack.c.b16 %v5308, %v5300
    %v6157 = vpack.c.b16 %v5309, %v5301
    %v6158 = vpack.c.b16 %v5310, %v5302
    %v6159 = vpack.c.b16 %v5311, %v5303
    %v6160 = vpack.c.b16 %v5312, %v5304
    %v6161 = vpack.c.b16 %v5321, %v5313
    %v6162 = vpack.c.b16 %v5322, %v5314
    %v6163 = vpack.c.b16 %v5323, %v5315
    %v6164 = vpack.c.b16 %v5324, %v5316
    %v6165 = vpack.c.b16 %v5325, %v5317
    %v6166 = vpack.c.b16 %v5326, %v5318
    %v6167 = vpack.c.b16 %v5327, %v5319
    %v6168 = vpack.c.b16 %v5328, %v5320
    %v6169 = vpack.c.b16 %v5337, %v5329
    %v6170 = vpack.c.b16 %v5338, %v5330
    %v6171 = vpack.c.b16 %v5339, %v5331
    %v6172 = vpack.c.b16 %v5340, %v5332
    %v6173 = vpack.c.b16 %v5341, %v5333
    %v6174 = vpack.c.b16 %v5342, %v5334
    %v6175 = vpack.c.b16 %v5343, %v5335
    %v6176 = vpack.c.b16 %v5344, %v5336
    %v6177 = vpack.c.b16 %v5353, %v5345
    %v6178 = vpack.c.b16 %v5354, %v5346
    %v6179 = vpack.c.b16 %v5355, %v5347
    %v6180 = vpack.c.b16 %v5356, %v5348
    %v6181 = vpack.c.b16 %v5357, %v5349
    %v6182 = vpack.c.b16 %v5358, %v5350
    %v6183 = vpack.c.b16 %v5359, %v5351
    %v6184 = vpack.c.b16 %v5360, %v5352
    %v6185 = vpack.c.b16 %v5369, %v5361
    %v6186 = vpack.c.b16 %v5370, %v5362
    %v6187 = vpack.c.b16 %v5371, %v5363
    %v6188 = vpack.c.b16 %v5372, %v5364
    %v6189 = vpack.c.b16 %v5373, %v5365
    %v6190 = vpack.c.b16 %v5374, %v5366
    %v6191 = vpack.c.b16 %v5375, %v5367
    %v6192 = vpack.c.b16 %v5376, %v5368
    %v6193 = vpack.c.b16 %v5385, %v5377
    %v6194 = vpack.c.b16 %v5386, %v5378
    %v6195 = vpack.c.b16 %v5387, %v5379
    %v6196 = vpack.c.b16 %v5388, %v5380
    %v6197 = vpack.c.b16 %v5389, %v5381
    %v6198 = vpack.c.b16 %v5390, %v5382
    %v6199 = vpack.c.b16 %v5391, %v5383
    %v6200 = vpack.c.b16 %v5392, %v5384
    %v6201 = vpack.c.b16 %v5401, %v5393
    %v6202 = vpack.c.b16 %v5402, %v5394
    %v6203 = vpack.c.b16 %v5403, %v5395
    %v6204 = vpack.c.b16 %v5404, %v5396
    %v6205 = vpack.c.b16 %v5405, %v5397
    %v6206 = vpack.c.b16 %v5406, %v5398
    %v6207 = vpack.c.b16 %v5407, %v5399
    %v6208 = vpack.c.b16 %v5408, %v5400
    %v6209 = vpack.c.b16 %v5417, %v5409
    %v6210 = vpack.c.b16 %v5418, %v5410
    %v6211 = vpack.c.b16 %v5419, %v5411
    %v6212 = vpack.c.b16 %v5420, %v5412
    %v6213 = vpack.c.b16 %v5421, %v5413
    %v6214 = vpack.c.b16 %v5422, %v5414
    %v6215 = vpack.c.b16 %v5423, %v5415
    %v6216 = vpack.c.b16 %v5424, %v5416
    %v6217 = vpack.c.b16 %v5433, %v5425
    %v6218 = vpack.c.b16 %v5434, %v5426
    %v6219 = vpack.c.b16 %v5435, %v5427
    %v6220 = vpack.c.b16 %v5436, %v5428
    %v6221 = vpack.c.b16 %v5437, %v5429
    %v6222 = vpack.c.b16 %v5438, %v5430
    %v6223 = vpack.c.b16 %v5439, %v5431
    %v6224 = vpack.c.b16 %v5440, %v5432
    %v6225 = vpack.c.b16 %v5449, %v5441
    %v6226 = vpack.c.b16 %v5450, %v5442
    %v6227 = vpack.c.b16 %v5451, %v5443
    %v6228 = vpack.c.b16 %v5452, %v5444
    %v6229 = vpack.c.b16 %v5453, %v5445
    %v6230 = vpack.c.b16 %v5454, %v5446
    %v6231 = vpack.c.b16 %v5455, %v5447
    %v6232 = vpack.c.b16 %v5456, %v5448
    %v6233 = vpack.c.b16 %v5465, %v5457
    %v6234 = vpack.c.b16 %v5466, %v5458
    %v6235 = vpack.c.b16 %v5467, %v5459
    %v6236 = vpack.c.b16 %v5468, %v5460
    %v6237 = vpack.c.b16 %v5469, %v5461
    %v6238 = vpack.c.b16 %v5470, %v5462
    %v6239 = vpack.c.b16 %v5471, %v5463
    %v6240 = vpack.c.b16 %v5472, %v5464
    %v6241 = vpack.c.b16 %v5481, %v5473
    %v6242 = vpack.c.b16 %v5482, %v5474
    %v6243 = vpack.c.b16 %v5483, %v5475
    %v6244 = vpack.c.b16 %v5484, %v5476
    %v6245 = vpack.c.b16 %v5485, %v5477
    %v6246 = vpack.c.b16 %v5486, %v5478
    %v6247 = vpack.c.b16 %v5487, %v5479
    %v6248 = vpack.c.b16 %v5488, %v5480
    %v6249 = vpack.c.b16 %v5497, %v5489
    %v6250 = vpack.c.b16 %v5498, %v5490
    %v6251 = vpack.c.b16 %v5499, %v5491
    %v6252 = vpack.c.b16 %v5500, %v5492
    %v6253 = vpack.c.b16 %v5501, %v5493
    %v6254 = vpack.c.b16 %v5502, %v5494
    %v6255 = vpack.c.b16 %v5503, %v5495
    %v6256 = vpack.c.b16 %v5504, %v5496
    %v6257 = vpack.c.b16 %v5513, %v5505
    %v6258 = vpack.c.b16 %v5514, %v5506
    %v6259 = vpack.c.b16 %v5515, %v5507
    %v6260 = vpack.c.b16 %v5516, %v5508
    %v6261 = vpack.c.b16 %v5517, %v5509
    %v6262 = vpack.c.b16 %v5518, %v5510
    %v6263 = vpack.c.b16 %v5519, %v5511
    %v6264 = vpack.c.b16 %v5520, %v5512
    %v6265 = vpack.c.b16 %v5529, %v5521
    %v6266 = vpack.c.b16 %v5530, %v5522
    %v6267 = vpack.c.b16 %v5531, %v5523
    %v6268 = vpack.c.b16 %v5532, %v5524
    %v6269 = vpack.c.b16 %v5533, %v5525
    %v6270 = vpack.c.b16 %v5534, %v5526
    %v6271 = vpack.c.b16 %v5535, %v5527
    %v6272 = vpack.c.b16 %v5536, %v5528
    %v6273 = vpack.c.b16 %v5545, %v5537
    %v6274 = vpack.c.b16 %v5546, %v5538
    %v6275 = vpack.c.b16 %v5547, %v5539
    %v6276 = vpack.c.b16 %v5548, %v5540
    %v6277 = vpack.c.b16 %v5549, %v5541
    %v6278 = vpack.c.b16 %v5550, %v5542
    %v6279 = vpack.c.b16 %v5551, %v5543
    %v6280 = vpack.c.b16 %v5552, %v5544
    %v6281 = vpack.c.b16 %v5561, %v5553
    %v6282 = vpack.c.b16 %v5562, %v5554
    %v6283 = vpack.c.b16 %v5563, %v5555
    %v6284 = vpack.c.b16 %v5564, %v5556
    %v6285 = vpack.c.b16 %v5565, %v5557
    %v6286 = vpack.c.b16 %v5566, %v5558
    %v6287 = vpack.c.b16 %v5567, %v5559
    %v6288 = vpack.c.b16 %v5568, %v5560
    %v6289 = vpack.c.b16 %v5577, %v5569
    %v6290 = vpack.c.b16 %v5578, %v5570
    %v6291 = vpack.c.b16 %v5579, %v5571
    %v6292 = vpack.c.b16 %v5580, %v5572
    %v6293 = vpack.c.b16 %v5581, %v5573
    %v6294 = vpack.c.b16 %v5582, %v5574
    %v6295 = vpack.c.b16 %v5583, %v5575
    %v6296 = vpack.c.b16 %v5584, %v5576
    %v6297 = vpack.c.b16 %v5593, %v5585
    %v6298 = vpack.c.b16 %v5594, %v5586
    %v6299 = vpack.c.b16 %v5595, %v5587
    %v6300 = vpack.c.b16 %v5596, %v5588
    %v6301 = vpack.c.b16 %v5597, %v5589
    %v6302 = vpack.c.b16 %v5598, %v5590
    %v6303 = vpack.c.b16 %v5599, %v5591
    %v6304 = vpack.c.b16 %v5600, %v5592
    %v6305 = vpack.c.b16 %v5609, %v5601
    %v6306 = vpack.c.b16 %v5610, %v5602
    %v6307 = vpack.c.b16 %v5611, %v5603
    %v6308 = vpack.c.b16 %v5612, %v5604
    %v6309 = vpack.c.b16 %v5613, %v5605
    %v6310 = vpack.c.b16 %v5614, %v5606
    %v6311 = vpack.c.b16 %v5615, %v5607
    %v6312 = vpack.c.b16 %v5616, %v5608
    %v6313 = vpack.c.b16 %v5625, %v5617
    %v6314 = vpack.c.b16 %v5626, %v5618
    %v6315 = vpack.c.b16 %v5627, %v5619
    %v6316 = vpack.c.b16 %v5628, %v5620
    %v6317 = vpack.c.b16 %v5629, %v5621
    %v6318 = vpack.c.b16 %v5630, %v5622
    %v6319 = vpack.c.b16 %v5631, %v5623
    %v6320 = vpack.c.b16 %v5632, %v5624
    %v6321 = vpack.c.b16 %v5641, %v5633
    %v6322 = vpack.c.b16 %v5642, %v5634
    %v6323 = vpack.c.b16 %v5643, %v5635
    %v6324 = vpack.c.b16 %v5644, %v5636
    %v6325 = vpack.c.b16 %v5645, %v5637
    %v6326 = vpack.c.b16 %v5646, %v5638
    %v6327 = vpack.c.b16 %v5647, %v5639
    %v6328 = vpack.c.b16 %v5648, %v5640
    %v6329 = vpack.c.b16 %v5657, %v5649
    %v6330 = vpack.c.b16 %v5658, %v5650
    %v6331 = vpack.c.b16 %v5659, %v5651
    %v6332 = vpack.c.b16 %v5660, %v5652
    %v6333 = vpack.c.b16 %v5661, %v5653
    %v6334 = vpack.c.b16 %v5662, %v5654
    %v6335 = vpack.c.b16 %v5663, %v5655
    %v6336 = vpack.c.b16 %v5664, %v5656
    %v6337 = vpack.c.b16 %v5673, %v5665
    %v6338 = vpack.c.b16 %v5674, %v5666
    %v6339 = vpack.c.b16 %v5675, %v5667
    %v6340 = vpack.c.b16 %v5676, %v5668
    %v6341 = vpack.c.b16 %v5677, %v5669
    %v6342 = vpack.c.b16 %v5678, %v5670
    %v6343 = vpack.c.b16 %v5679, %v5671
    %v6344 = vpack.c.b16 %v5680, %v5672
    %v6345 = vpack.c.b16 %v5689, %v5681
    %v6346 = vpack.c.b16 %v5690, %v5682
    %v6347 = vpack.c.b16 %v5691, %v5683
    %v6348 = vpack.c.b16 %v5692, %v5684
    %v6349 = vpack.c.b16 %v5693, %v5685
    %v6350 = vpack.c.b16 %v5694, %v5686
    %v6351 = vpack.c.b16 %v5695, %v5687
    %v6352 = vpack.c.b16 %v5696, %v5688
    %v6353 = vpack.c.b16 %v5705, %v5697
    %v6354 = vpack.c.b16 %v5706, %v5698
    %v6355 = vpack.c.b16 %v5707, %v5699
    %v6356 = vpack.c.b16 %v5708, %v5700
    %v6357 = vpack.c.b16 %v5709, %v5701
    %v6358 = vpack.c.b16 %v5710, %v5702
    %v6359 = vpack.c.b16 %v5711, %v5703
    %v6360 = vpack.c.b16 %v5712, %v5704
    %v6361 = vpack.c.b16 %v5721, %v5713
    %v6362 = vpack.c.b16 %v5722, %v5714
    %v6363 = vpack.c.b16 %v5723, %v5715
    %v6364 = vpack.c.b16 %v5724, %v5716
    %v6365 = vpack.c.b16 %v5725, %v5717
    %v6366 = vpack.c.b16 %v5726, %v5718
    %v6367 = vpack.c.b16 %v5727, %v5719
    %v6368 = vpack.c.b16 %v5728, %v5720
    %v6369 = vpack.c.b16 %v5737, %v5729
    %v6370 = vpack.c.b16 %v5738, %v5730
    %v6371 = vpack.c.b16 %v5739, %v5731
    %v6372 = vpack.c.b16 %v5740, %v5732
    %v6373 = vpack.c.b16 %v5741, %v5733
    %v6374 = vpack.c.b16 %v5742, %v5734
    %v6375 = vpack.c.b16 %v5743, %v5735
    %v6376 = vpack.c.b16 %v5744, %v5736
    %v6377 = vpack.c.b16 %v5753, %v5745
    %v6378 = vpack.c.b16 %v5754, %v5746
    %v6379 = vpack.c.b16 %v5755, %v5747
    %v6380 = vpack.c.b16 %v5756, %v5748
    %v6381 = vpack.c.b16 %v5757, %v5749
    %v6382 = vpack.c.b16 %v5758, %v5750
    %v6383 = vpack.c.b16 %v5759, %v5751
    %v6384 = vpack.c.b16 %v5760, %v5752
    %v6385 = vpack.c.b16 %v5769, %v5761
    %v6386 = vpack.c.b16 %v5770, %v5762
    %v6387 = vpack.c.b16 %v5771, %v5763
    %v6388 = vpack.c.b16 %v5772, %v5764
    %v6389 = vpack.c.b16 %v5773, %v5765
    %v6390 = vpack.c.b16 %v5774, %v5766
    %v6391 = vpack.c.b16 %v5775, %v5767
    %v6392 = vpack.c.b16 %v5776, %v5768
    %v6393 = vpack.c.b16 %v5785, %v5777
    %v6394 = vpack.c.b16 %v5786, %v5778
    %v6395 = vpack.c.b16 %v5787, %v5779
    %v6396 = vpack.c.b16 %v5788, %v5780
    %v6397 = vpack.c.b16 %v5789, %v5781
    %v6398 = vpack.c.b16 %v5790, %v5782
    %v6399 = vpack.c.b16 %v5791, %v5783
    %v6400 = vpack.c.b16 %v5792, %v5784
    %v6401 = vpack.c.b16 %v5801, %v5793
    %v6402 = vpack.c.b16 %v5802, %v5794
    %v6403 = vpack.c.b16 %v5803, %v5795
    %v6404 = vpack.c.b16 %v5804, %v5796
    %v6405 = vpack.c.b16 %v5805, %v5797
    %v6406 = vpack.c.b16 %v5806, %v5798
    %v6407 = vpack.c.b16 %v5807, %v5799
    %v6408 = vpack.c.b16 %v5808, %v5800
    %v6409 = vpack.c.b16 %v5817, %v5809
    %v6410 = vpack.c.b16 %v5818, %v5810
    %v6411 = vpack.c.b16 %v5819, %v5811
    %v6412 = vpack.c.b16 %v5820, %v5812
    %v6413 = vpack.c.b16 %v5821, %v5813
    %v6414 = vpack.c.b16 %v5822, %v5814
    %v6415 = vpack.c.b16 %v5823, %v5815
    %v6416 = vpack.c.b16 %v5824, %v5816
    %v6417 = vpack.c.b16 %v5833, %v5825
    %v6418 = vpack.c.b16 %v5834, %v5826
    %v6419 = vpack.c.b16 %v5835, %v5827
    %v6420 = vpack.c.b16 %v5836, %v5828
    %v6421 = vpack.c.b16 %v5837, %v5829
    %v6422 = vpack.c.b16 %v5838, %v5830
    %v6423 = vpack.c.b16 %v5839, %v5831
    %v6424 = vpack.c.b16 %v5840, %v5832
    %v6425 = vpack.c.b16 %v5849, %v5841
    %v6426 = vpack.c.b16 %v5850, %v5842
    %v6427 = vpack.c.b16 %v5851, %v5843
    %v6428 = vpack.c.b16 %v5852, %v5844
    %v6429 = vpack.c.b16 %v5853, %v5845
    %v6430 = vpack.c.b16 %v5854, %v5846
    %v6431 = vpack.c.b16 %v5855, %v5847
    %v6432 = vpack.c.b16 %v5856, %v5848
    %v6433 = vpack.c.b16 %v5865, %v5857
    %v6434 = vpack.c.b16 %v5866, %v5858
    %v6435 = vpack.c.b16 %v5867, %v5859
    %v6436 = vpack.c.b16 %v5868, %v5860
    %v6437 = vpack.c.b16 %v5869, %v5861
    %v6438 = vpack.c.b16 %v5870, %v5862
    %v6439 = vpack.c.b16 %v5871, %v5863
    %v6440 = vpack.c.b16 %v5872, %v5864
    %v6441 = vpack.c.b16 %v5881, %v5873
    %v6442 = vpack.c.b16 %v5882, %v5874
    %v6443 = vpack.c.b16 %v5883, %v5875
    %v6444 = vpack.c.b16 %v5884, %v5876
    %v6445 = vpack.c.b16 %v5885, %v5877
    %v6446 = vpack.c.b16 %v5886, %v5878
    %v6447 = vpack.c.b16 %v5887, %v5879
    %v6448 = vpack.c.b16 %v5888, %v5880
    %v6449 = vpack.c.b16 %v5897, %v5889
    %v6450 = vpack.c.b16 %v5898, %v5890
    %v6451 = vpack.c.b16 %v5899, %v5891
    %v6452 = vpack.c.b16 %v5900, %v5892
    %v6453 = vpack.c.b16 %v5901, %v5893
    %v6454 = vpack.c.b16 %v5902, %v5894
    %v6455 = vpack.c.b16 %v5903, %v5895
    %v6456 = vpack.c.b16 %v5904, %v5896
    %v6457 = vpack.c.b16 %v5913, %v5905
    %v6458 = vpack.c.b16 %v5914, %v5906
    %v6459 = vpack.c.b16 %v5915, %v5907
    %v6460 = vpack.c.b16 %v5916, %v5908
    %v6461 = vpack.c.b16 %v5917, %v5909
    %v6462 = vpack.c.b16 %v5918, %v5910
    %v6463 = vpack.c.b16 %v5919, %v5911
    %v6464 = vpack.c.b16 %v5920, %v5912
    %v6465 = vpack.c.b16 %v5929, %v5921
    %v6466 = vpack.c.b16 %v5930, %v5922
    %v6467 = vpack.c.b16 %v5931, %v5923
    %v6468 = vpack.c.b16 %v5932, %v5924
    %v6469 = vpack.c.b16 %v5933, %v5925
    %v6470 = vpack.c.b16 %v5934, %v5926
    %v6471 = vpack.c.b16 %v5935, %v5927
    %v6472 = vpack.c.b16 %v5936, %v5928
    %v6473 = vpack.c.b16 %v5945, %v5937
    %v6474 = vpack.c.b16 %v5946, %v5938
    %v6475 = vpack.c.b16 %v5947, %v5939
    %v6476 = vpack.c.b16 %v5948, %v5940
    %v6477 = vpack.c.b16 %v5949, %v5941
    %v6478 = vpack.c.b16 %v5950, %v5942
    %v6479 = vpack.c.b16 %v5951, %v5943
    %v6480 = vpack.c.b16 %v5952, %v5944
    %v6481 = vpack.c.b16 %v5961, %v5953
    %v6482 = vpack.c.b16 %v5962, %v5954
    %v6483 = vpack.c.b16 %v5963, %v5955
    %v6484 = vpack.c.b16 %v5964, %v5956
    %v6485 = vpack.c.b16 %v5965, %v5957
    %v6486 = vpack.c.b16 %v5966, %v5958
    %v6487 = vpack.c.b16 %v5967, %v5959
    %v6488 = vpack.c.b16 %v5968, %v5960
    %v6489 = vpack.c.b16 %v5977, %v5969
    %v6490 = vpack.c.b16 %v5978, %v5970
    %v6491 = vpack.c.b16 %v5979, %v5971
    %v6492 = vpack.c.b16 %v5980, %v5972
    %v6493 = vpack.c.b16 %v5981, %v5973
    %v6494 = vpack.c.b16 %v5982, %v5974
    %v6495 = vpack.c.b16 %v5983, %v5975
    %v6496 = vpack.c.b16 %v5984, %v5976
    %v6497 = vpack.c.b16 %v5993, %v5985
    %v6498 = vpack.c.b16 %v5994, %v5986
    %v6499 = vpack.c.b16 %v5995, %v5987
    %v6500 = vpack.c.b16 %v5996, %v5988
    %v6501 = vpack.c.b16 %v5997, %v5989
    %v6502 = vpack.c.b16 %v5998, %v5990
    %v6503 = vpack.c.b16 %v5999, %v5991
    %v6504 = vpack.c.b16 %v6000, %v5992
    %v6505 = vpack.c.b16 %v6001, %v6001
    %v6506 = vpack.c.b16 %v6002, %v6002
    %v6507 = vpack.c.b16 %v6003, %v6003
    %v6508 = vpack.c.b16 %v6004, %v6004
    %v6509 = vpack.c.b16 %v6005, %v6005
    %v6510 = vpack.c.b16 %v6006, %v6006
    %v6511 = vpack.c.b16 %v6007, %v6007
    %v6512 = vpack.c.b16 %v6008, %v6008
    %vm7009 = vcmask 850944
    %v7011 = vsel %vm7009, %v3990, 0
    %vm7013 = vcmask 1043456
    %v7015 = vsel %vm7013, %v6505, 0
    %v7018 = vsel %vm7013, %v6506, 0
    %v7021 = vsel %vm7013, %v6507, 0
    %v7024 = vsel %vm7013, %v6508, 0
    %v7027 = vsel %vm7013, %v6509, 0
    %v7030 = vsel %vm7013, %v6510, 0
    %v7033 = vsel %vm7013, %v6511, 0
    %v7036 = vsel %vm7013, %v6512, 0
    %7038 = vmatpush.bf16.msra.mxu0 %v6065
    %7039 = vmatpush.bf16.msra.mxu0 %v6057
    %7040 = vmatpush.bf16.msra.mxu0 %v6049
    %7041 = vmatpush.bf16.msra.mxu0 %v6041
    %7042 = vmatpush.bf16.msra.mxu0 %v6033
    %7043 = vmatpush.bf16.msra.mxu0 %v6025
    %7044 = vmatpush.bf16.msra.mxu0 %v6017
    %7045 = vmatpush.bf16.msra.mxu0 %v6009
    %7046 = vmatmul.bf16.gmra.mxu0 %v3983
    %v7047 = vpop.f32.mrf.mxu0
    %v7048 = vadd.f32 %v4493, %v7047
    %v7049 = vpop.f32.mrf.mxu0
    %7050 = vdwg.mxu0
    %7051 = vmatpush.bf16.msra.mxu0 %v6129
    %7052 = vmatpush.bf16.msra.mxu0 %v6121
    %7053 = vmatpush.bf16.msra.mxu0 %v6113
    %7054 = vmatpush.bf16.msra.mxu0 %v6105
    %7055 = vmatpush.bf16.msra.mxu0 %v6097
    %7056 = vmatpush.bf16.msra.mxu0 %v6089
    %7057 = vmatpush.bf16.msra.mxu0 %v6081
    %7058 = vmatpush.bf16.msra.mxu0 %v6073
    %7059 = vmatmul.bf16.gmra.mxu0 %v3984
    %v7060 = vpop.f32.mrf.mxu0
    %v7061 = vadd.f32 %v7048, %v7060
    %v7062 = vpop.f32.mrf.mxu0
    %7063 = vdwg.mxu0
    %7064 = vmatpush.bf16.msra.mxu0 %v6193
    %7065 = vmatpush.bf16.msra.mxu0 %v6185
    %7066 = vmatpush.bf16.msra.mxu0 %v6177
    %7067 = vmatpush.bf16.msra.mxu0 %v6169
    %7068 = vmatpush.bf16.msra.mxu0 %v6161
    %7069 = vmatpush.bf16.msra.mxu0 %v6153
    %7070 = vmatpush.bf16.msra.mxu0 %v6145
    %7071 = vmatpush.bf16.msra.mxu0 %v6137
    %7072 = vmatmul.bf16.gmra.mxu0 %v3985
    %v7073 = vpop.f32.mrf.mxu0
    %v7074 = vadd.f32 %v7061, %v7073
    %v7075 = vpop.f32.mrf.mxu0
    %7076 = vdwg.mxu0
    %7077 = vmatpush.bf16.msra.mxu0 %v6257
    %7078 = vmatpush.bf16.msra.mxu0 %v6249
    %7079 = vmatpush.bf16.msra.mxu0 %v6241
    %7080 = vmatpush.bf16.msra.mxu0 %v6233
    %7081 = vmatpush.bf16.msra.mxu0 %v6225
    %7082 = vmatpush.bf16.msra.mxu0 %v6217
    %7083 = vmatpush.bf16.msra.mxu0 %v6209
    %7084 = vmatpush.bf16.msra.mxu0 %v6201
    %7085 = vmatmul.bf16.gmra.mxu0 %v3986
    %v7086 = vpop.f32.mrf.mxu0
    %v7087 = vadd.f32 %v7074, %v7086
    %v7088 = vpop.f32.mrf.mxu0
    %7089 = vdwg.mxu0
    %7090 = vmatpush.bf16.msra.mxu0 %v6321
    %7091 = vmatpush.bf16.msra.mxu0 %v6313
    %7092 = vmatpush.bf16.msra.mxu0 %v6305
    %7093 = vmatpush.bf16.msra.mxu0 %v6297
    %7094 = vmatpush.bf16.msra.mxu0 %v6289
    %7095 = vmatpush.bf16.msra.mxu0 %v6281
    %7096 = vmatpush.bf16.msra.mxu0 %v6273
    %7097 = vmatpush.bf16.msra.mxu0 %v6265
    %7098 = vmatmul.bf16.gmra.mxu0 %v3987
    %v7099 = vpop.f32.mrf.mxu0
    %v7100 = vadd.f32 %v7087, %v7099
    %v7101 = vpop.f32.mrf.mxu0
    %7102 = vdwg.mxu0
    %7103 = vmatpush.bf16.msra.mxu0 %v6385
    %7104 = vmatpush.bf16.msra.mxu0 %v6377
    %7105 = vmatpush.bf16.msra.mxu0 %v6369
    %7106 = vmatpush.bf16.msra.mxu0 %v6361
    %7107 = vmatpush.bf16.msra.mxu0 %v6353
    %7108 = vmatpush.bf16.msra.mxu0 %v6345
    %7109 = vmatpush.bf16.msra.mxu0 %v6337
    %7110 = vmatpush.bf16.msra.mxu0 %v6329
    %7111 = vmatmul.bf16.gmra.mxu0 %v3988
    %v7112 = vpop.f32.mrf.mxu0
    %v7113 = vadd.f32 %v7100, %v7112
    %v7114 = vpop.f32.mrf.mxu0
    %7115 = vdwg.mxu0
    %7116 = vmatpush.bf16.msra.mxu0 %v6449
    %7117 = vmatpush.bf16.msra.mxu0 %v6441
    %7118 = vmatpush.bf16.msra.mxu0 %v6433
    %7119 = vmatpush.bf16.msra.mxu0 %v6425
    %7120 = vmatpush.bf16.msra.mxu0 %v6417
    %7121 = vmatpush.bf16.msra.mxu0 %v6409
    %7122 = vmatpush.bf16.msra.mxu0 %v6401
    %7123 = vmatpush.bf16.msra.mxu0 %v6393
    %7124 = vmatmul.bf16.gmra.mxu0 %v3989
    %v7125 = vpop.f32.mrf.mxu0
    %v7126 = vadd.f32 %v7113, %v7125
    %v7127 = vpop.f32.mrf.mxu0
    %7128 = vdwg.mxu0
    %7129 = vmatpush.bf16.msra.mxu0 0
    %7130 = vmatpush.bf16.msra.mxu0 %v7015
    %7131 = vmatpush.bf16.msra.mxu0 %v6497
    %7132 = vmatpush.bf16.msra.mxu0 %v6489
    %7133 = vmatpush.bf16.msra.mxu0 %v6481
    %7134 = vmatpush.bf16.msra.mxu0 %v6473
    %7135 = vmatpush.bf16.msra.mxu0 %v6465
    %7136 = vmatpush.bf16.msra.mxu0 %v6457
    %7137 = vmatmul.bf16.gmra.mxu0 %v7011
    %v7138 = vpop.f32.mrf.mxu0
    %v7139 = vadd.f32 %v7126, %v7138
    %v7140 = vpop.f32.mrf.mxu0
    %7141 = vdwg.mxu0
    %7142 = vmatpush.bf16.msra.mxu0 %v6066
    %7143 = vmatpush.bf16.msra.mxu0 %v6058
    %7144 = vmatpush.bf16.msra.mxu0 %v6050
    %7145 = vmatpush.bf16.msra.mxu0 %v6042
    %7146 = vmatpush.bf16.msra.mxu0 %v6034
    %7147 = vmatpush.bf16.msra.mxu0 %v6026
    %7148 = vmatpush.bf16.msra.mxu0 %v6018
    %7149 = vmatpush.bf16.msra.mxu0 %v6010
    %7150 = vmatmul.bf16.gmra.mxu0 %v3983
    %v7151 = vpop.f32.mrf.mxu0
    %v7152 = vadd.f32 %v4494, %v7151
    %v7153 = vpop.f32.mrf.mxu0
    %7154 = vdwg.mxu0
    %7155 = vmatpush.bf16.msra.mxu0 %v6130
    %7156 = vmatpush.bf16.msra.mxu0 %v6122
    %7157 = vmatpush.bf16.msra.mxu0 %v6114
    %7158 = vmatpush.bf16.msra.mxu0 %v6106
    %7159 = vmatpush.bf16.msra.mxu0 %v6098
    %7160 = vmatpush.bf16.msra.mxu0 %v6090
    %7161 = vmatpush.bf16.msra.mxu0 %v6082
    %7162 = vmatpush.bf16.msra.mxu0 %v6074
    %7163 = vmatmul.bf16.gmra.mxu0 %v3984
    %v7164 = vpop.f32.mrf.mxu0
    %v7165 = vadd.f32 %v7152, %v7164
    %v7166 = vpop.f32.mrf.mxu0
    %7167 = vdwg.mxu0
    %7168 = vmatpush.bf16.msra.mxu0 %v6194
    %7169 = vmatpush.bf16.msra.mxu0 %v6186
    %7170 = vmatpush.bf16.msra.mxu0 %v6178
    %7171 = vmatpush.bf16.msra.mxu0 %v6170
    %7172 = vmatpush.bf16.msra.mxu0 %v6162
    %7173 = vmatpush.bf16.msra.mxu0 %v6154
    %7174 = vmatpush.bf16.msra.mxu0 %v6146
    %7175 = vmatpush.bf16.msra.mxu0 %v6138
    %7176 = vmatmul.bf16.gmra.mxu0 %v3985
    %v7177 = vpop.f32.mrf.mxu0
    %v7178 = vadd.f32 %v7165, %v7177
    %v7179 = vpop.f32.mrf.mxu0
    %7180 = vdwg.mxu0
    %7181 = vmatpush.bf16.msra.mxu0 %v6258
    %7182 = vmatpush.bf16.msra.mxu0 %v6250
    %7183 = vmatpush.bf16.msra.mxu0 %v6242
    %7184 = vmatpush.bf16.msra.mxu0 %v6234
    %7185 = vmatpush.bf16.msra.mxu0 %v6226
    %7186 = vmatpush.bf16.msra.mxu0 %v6218
    %7187 = vmatpush.bf16.msra.mxu0 %v6210
    %7188 = vmatpush.bf16.msra.mxu0 %v6202
    %7189 = vmatmul.bf16.gmra.mxu0 %v3986
    %v7190 = vpop.f32.mrf.mxu0
    %v7191 = vadd.f32 %v7178, %v7190
    %v7192 = vpop.f32.mrf.mxu0
    %7193 = vdwg.mxu0
    %7194 = vmatpush.bf16.msra.mxu0 %v6322
    %7195 = vmatpush.bf16.msra.mxu0 %v6314
    %7196 = vmatpush.bf16.msra.mxu0 %v6306
    %7197 = vmatpush.bf16.msra.mxu0 %v6298
    %7198 = vmatpush.bf16.msra.mxu0 %v6290
    %7199 = vmatpush.bf16.msra.mxu0 %v6282
    %7200 = vmatpush.bf16.msra.mxu0 %v6274
    %7201 = vmatpush.bf16.msra.mxu0 %v6266
    %7202 = vmatmul.bf16.gmra.mxu0 %v3987
    %v7203 = vpop.f32.mrf.mxu0
    %v7204 = vadd.f32 %v7191, %v7203
    %v7205 = vpop.f32.mrf.mxu0
    %7206 = vdwg.mxu0
    %7207 = vmatpush.bf16.msra.mxu0 %v6386
    %7208 = vmatpush.bf16.msra.mxu0 %v6378
    %7209 = vmatpush.bf16.msra.mxu0 %v6370
    %7210 = vmatpush.bf16.msra.mxu0 %v6362
    %7211 = vmatpush.bf16.msra.mxu0 %v6354
    %7212 = vmatpush.bf16.msra.mxu0 %v6346
    %7213 = vmatpush.bf16.msra.mxu0 %v6338
    %7214 = vmatpush.bf16.msra.mxu0 %v6330
    %7215 = vmatmul.bf16.gmra.mxu0 %v3988
    %v7216 = vpop.f32.mrf.mxu0
    %v7217 = vadd.f32 %v7204, %v7216
    %v7218 = vpop.f32.mrf.mxu0
    %7219 = vdwg.mxu0
    %7220 = vmatpush.bf16.msra.mxu0 %v6450
    %7221 = vmatpush.bf16.msra.mxu0 %v6442
    %7222 = vmatpush.bf16.msra.mxu0 %v6434
    %7223 = vmatpush.bf16.msra.mxu0 %v6426
    %7224 = vmatpush.bf16.msra.mxu0 %v6418
    %7225 = vmatpush.bf16.msra.mxu0 %v6410
    %7226 = vmatpush.bf16.msra.mxu0 %v6402
    %7227 = vmatpush.bf16.msra.mxu0 %v6394
    %7228 = vmatmul.bf16.gmra.mxu0 %v3989
    %v7229 = vpop.f32.mrf.mxu0
    %v7230 = vadd.f32 %v7217, %v7229
    %v7231 = vpop.f32.mrf.mxu0
    %7232 = vdwg.mxu0
    %7233 = vmatpush.bf16.msra.mxu0 0
    %7234 = vmatpush.bf16.msra.mxu0 %v7018
    %7235 = vmatpush.bf16.msra.mxu0 %v6498
    %7236 = vmatpush.bf16.msra.mxu0 %v6490
    %7237 = vmatpush.bf16.msra.mxu0 %v6482
    %7238 = vmatpush.bf16.msra.mxu0 %v6474
    %7239 = vmatpush.bf16.msra.mxu0 %v6466
    %7240 = vmatpush.bf16.msra.mxu0 %v6458
    %7241 = vmatmul.bf16.gmra.mxu0 %v7011
    %v7242 = vpop.f32.mrf.mxu0
    %v7243 = vadd.f32 %v7230, %v7242
    %v7244 = vpop.f32.mrf.mxu0
    %7245 = vdwg.mxu0
    %7246 = vmatpush.bf16.msra.mxu0 %v6067
    %7247 = vmatpush.bf16.msra.mxu0 %v6059
    %7248 = vmatpush.bf16.msra.mxu0 %v6051
    %7249 = vmatpush.bf16.msra.mxu0 %v6043
    %7250 = vmatpush.bf16.msra.mxu0 %v6035
    %7251 = vmatpush.bf16.msra.mxu0 %v6027
    %7252 = vmatpush.bf16.msra.mxu0 %v6019
    %7253 = vmatpush.bf16.msra.mxu0 %v6011
    %7254 = vmatmul.bf16.gmra.mxu0 %v3983
    %v7255 = vpop.f32.mrf.mxu0
    %v7256 = vadd.f32 %v4495, %v7255
    %v7257 = vpop.f32.mrf.mxu0
    %7258 = vdwg.mxu0
    %7259 = vmatpush.bf16.msra.mxu0 %v6131
    %7260 = vmatpush.bf16.msra.mxu0 %v6123
    %7261 = vmatpush.bf16.msra.mxu0 %v6115
    %7262 = vmatpush.bf16.msra.mxu0 %v6107
    %7263 = vmatpush.bf16.msra.mxu0 %v6099
    %7264 = vmatpush.bf16.msra.mxu0 %v6091
    %7265 = vmatpush.bf16.msra.mxu0 %v6083
    %7266 = vmatpush.bf16.msra.mxu0 %v6075
    %7267 = vmatmul.bf16.gmra.mxu0 %v3984
    %v7268 = vpop.f32.mrf.mxu0
    %v7269 = vadd.f32 %v7256, %v7268
    %v7270 = vpop.f32.mrf.mxu0
    %7271 = vdwg.mxu0
    %7272 = vmatpush.bf16.msra.mxu0 %v6195
    %7273 = vmatpush.bf16.msra.mxu0 %v6187
    %7274 = vmatpush.bf16.msra.mxu0 %v6179
    %7275 = vmatpush.bf16.msra.mxu0 %v6171
    %7276 = vmatpush.bf16.msra.mxu0 %v6163
    %7277 = vmatpush.bf16.msra.mxu0 %v6155
    %7278 = vmatpush.bf16.msra.mxu0 %v6147
    %7279 = vmatpush.bf16.msra.mxu0 %v6139
    %7280 = vmatmul.bf16.gmra.mxu0 %v3985
    %v7281 = vpop.f32.mrf.mxu0
    %v7282 = vadd.f32 %v7269, %v7281
    %v7283 = vpop.f32.mrf.mxu0
    %7284 = vdwg.mxu0
    %7285 = vmatpush.bf16.msra.mxu0 %v6259
    %7286 = vmatpush.bf16.msra.mxu0 %v6251
    %7287 = vmatpush.bf16.msra.mxu0 %v6243
    %7288 = vmatpush.bf16.msra.mxu0 %v6235
    %7289 = vmatpush.bf16.msra.mxu0 %v6227
    %7290 = vmatpush.bf16.msra.mxu0 %v6219
    %7291 = vmatpush.bf16.msra.mxu0 %v6211
    %7292 = vmatpush.bf16.msra.mxu0 %v6203
    %7293 = vmatmul.bf16.gmra.mxu0 %v3986
    %v7294 = vpop.f32.mrf.mxu0
    %v7295 = vadd.f32 %v7282, %v7294
    %v7296 = vpop.f32.mrf.mxu0
    %7297 = vdwg.mxu0
    %7298 = vmatpush.bf16.msra.mxu0 %v6323
    %7299 = vmatpush.bf16.msra.mxu0 %v6315
    %7300 = vmatpush.bf16.msra.mxu0 %v6307
    %7301 = vmatpush.bf16.msra.mxu0 %v6299
    %7302 = vmatpush.bf16.msra.mxu0 %v6291
    %7303 = vmatpush.bf16.msra.mxu0 %v6283
    %7304 = vmatpush.bf16.msra.mxu0 %v6275
    %7305 = vmatpush.bf16.msra.mxu0 %v6267
    %7306 = vmatmul.bf16.gmra.mxu0 %v3987
    %v7307 = vpop.f32.mrf.mxu0
    %v7308 = vadd.f32 %v7295, %v7307
    %v7309 = vpop.f32.mrf.mxu0
    %7310 = vdwg.mxu0
    %7311 = vmatpush.bf16.msra.mxu0 %v6387
    %7312 = vmatpush.bf16.msra.mxu0 %v6379
    %7313 = vmatpush.bf16.msra.mxu0 %v6371
    %7314 = vmatpush.bf16.msra.mxu0 %v6363
    %7315 = vmatpush.bf16.msra.mxu0 %v6355
    %7316 = vmatpush.bf16.msra.mxu0 %v6347
    %7317 = vmatpush.bf16.msra.mxu0 %v6339
    %7318 = vmatpush.bf16.msra.mxu0 %v6331
    %7319 = vmatmul.bf16.gmra.mxu0 %v3988
    %v7320 = vpop.f32.mrf.mxu0
    %v7321 = vadd.f32 %v7308, %v7320
    %v7322 = vpop.f32.mrf.mxu0
    %7323 = vdwg.mxu0
    %7324 = vmatpush.bf16.msra.mxu0 %v6451
    %7325 = vmatpush.bf16.msra.mxu0 %v6443
    %7326 = vmatpush.bf16.msra.mxu0 %v6435
    %7327 = vmatpush.bf16.msra.mxu0 %v6427
    %7328 = vmatpush.bf16.msra.mxu0 %v6419
    %7329 = vmatpush.bf16.msra.mxu0 %v6411
    %7330 = vmatpush.bf16.msra.mxu0 %v6403
    %7331 = vmatpush.bf16.msra.mxu0 %v6395
    %7332 = vmatmul.bf16.gmra.mxu0 %v3989
    %v7333 = vpop.f32.mrf.mxu0
    %v7334 = vadd.f32 %v7321, %v7333
    %v7335 = vpop.f32.mrf.mxu0
    %7336 = vdwg.mxu0
    %7337 = vmatpush.bf16.msra.mxu0 0
    %7338 = vmatpush.bf16.msra.mxu0 %v7021
    %7339 = vmatpush.bf16.msra.mxu0 %v6499
    %7340 = vmatpush.bf16.msra.mxu0 %v6491
    %7341 = vmatpush.bf16.msra.mxu0 %v6483
    %7342 = vmatpush.bf16.msra.mxu0 %v6475
    %7343 = vmatpush.bf16.msra.mxu0 %v6467
    %7344 = vmatpush.bf16.msra.mxu0 %v6459
    %7345 = vmatmul.bf16.gmra.mxu0 %v7011
    %v7346 = vpop.f32.mrf.mxu0
    %v7347 = vadd.f32 %v7334, %v7346
    %v7348 = vpop.f32.mrf.mxu0
    %7349 = vdwg.mxu0
    %7350 = vmatpush.bf16.msra.mxu0 %v6068
    %7351 = vmatpush.bf16.msra.mxu0 %v6060
    %7352 = vmatpush.bf16.msra.mxu0 %v6052
    %7353 = vmatpush.bf16.msra.mxu0 %v6044
    %7354 = vmatpush.bf16.msra.mxu0 %v6036
    %7355 = vmatpush.bf16.msra.mxu0 %v6028
    %7356 = vmatpush.bf16.msra.mxu0 %v6020
    %7357 = vmatpush.bf16.msra.mxu0 %v6012
    %7358 = vmatmul.bf16.gmra.mxu0 %v3983
    %v7359 = vpop.f32.mrf.mxu0
    %v7360 = vadd.f32 %v4496, %v7359
    %v7361 = vpop.f32.mrf.mxu0
    %7362 = vdwg.mxu0
    %7363 = vmatpush.bf16.msra.mxu0 %v6132
    %7364 = vmatpush.bf16.msra.mxu0 %v6124
    %7365 = vmatpush.bf16.msra.mxu0 %v6116
    %7366 = vmatpush.bf16.msra.mxu0 %v6108
    %7367 = vmatpush.bf16.msra.mxu0 %v6100
    %7368 = vmatpush.bf16.msra.mxu0 %v6092
    %7369 = vmatpush.bf16.msra.mxu0 %v6084
    %7370 = vmatpush.bf16.msra.mxu0 %v6076
    %7371 = vmatmul.bf16.gmra.mxu0 %v3984
    %v7372 = vpop.f32.mrf.mxu0
    %v7373 = vadd.f32 %v7360, %v7372
    %v7374 = vpop.f32.mrf.mxu0
    %7375 = vdwg.mxu0
    %7376 = vmatpush.bf16.msra.mxu0 %v6196
    %7377 = vmatpush.bf16.msra.mxu0 %v6188
    %7378 = vmatpush.bf16.msra.mxu0 %v6180
    %7379 = vmatpush.bf16.msra.mxu0 %v6172
    %7380 = vmatpush.bf16.msra.mxu0 %v6164
    %7381 = vmatpush.bf16.msra.mxu0 %v6156
    %7382 = vmatpush.bf16.msra.mxu0 %v6148
    %7383 = vmatpush.bf16.msra.mxu0 %v6140
    %7384 = vmatmul.bf16.gmra.mxu0 %v3985
    %v7385 = vpop.f32.mrf.mxu0
    %v7386 = vadd.f32 %v7373, %v7385
    %v7387 = vpop.f32.mrf.mxu0
    %7388 = vdwg.mxu0
    %7389 = vmatpush.bf16.msra.mxu0 %v6260
    %7390 = vmatpush.bf16.msra.mxu0 %v6252
    %7391 = vmatpush.bf16.msra.mxu0 %v6244
    %7392 = vmatpush.bf16.msra.mxu0 %v6236
    %7393 = vmatpush.bf16.msra.mxu0 %v6228
    %7394 = vmatpush.bf16.msra.mxu0 %v6220
    %7395 = vmatpush.bf16.msra.mxu0 %v6212
    %7396 = vmatpush.bf16.msra.mxu0 %v6204
    %7397 = vmatmul.bf16.gmra.mxu0 %v3986
    %v7398 = vpop.f32.mrf.mxu0
    %v7399 = vadd.f32 %v7386, %v7398
    %v7400 = vpop.f32.mrf.mxu0
    %7401 = vdwg.mxu0
    %7402 = vmatpush.bf16.msra.mxu0 %v6324
    %7403 = vmatpush.bf16.msra.mxu0 %v6316
    %7404 = vmatpush.bf16.msra.mxu0 %v6308
    %7405 = vmatpush.bf16.msra.mxu0 %v6300
    %7406 = vmatpush.bf16.msra.mxu0 %v6292
    %7407 = vmatpush.bf16.msra.mxu0 %v6284
    %7408 = vmatpush.bf16.msra.mxu0 %v6276
    %7409 = vmatpush.bf16.msra.mxu0 %v6268
    %7410 = vmatmul.bf16.gmra.mxu0 %v3987
    %v7411 = vpop.f32.mrf.mxu0
    %v7412 = vadd.f32 %v7399, %v7411
    %v7413 = vpop.f32.mrf.mxu0
    %7414 = vdwg.mxu0
    %7415 = vmatpush.bf16.msra.mxu0 %v6388
    %7416 = vmatpush.bf16.msra.mxu0 %v6380
    %7417 = vmatpush.bf16.msra.mxu0 %v6372
    %7418 = vmatpush.bf16.msra.mxu0 %v6364
    %7419 = vmatpush.bf16.msra.mxu0 %v6356
    %7420 = vmatpush.bf16.msra.mxu0 %v6348
    %7421 = vmatpush.bf16.msra.mxu0 %v6340
    %7422 = vmatpush.bf16.msra.mxu0 %v6332
    %7423 = vmatmul.bf16.gmra.mxu0 %v3988
    %v7424 = vpop.f32.mrf.mxu0
    %v7425 = vadd.f32 %v7412, %v7424
    %v7426 = vpop.f32.mrf.mxu0
    %7427 = vdwg.mxu0
    %7428 = vmatpush.bf16.msra.mxu0 %v6452
    %7429 = vmatpush.bf16.msra.mxu0 %v6444
    %7430 = vmatpush.bf16.msra.mxu0 %v6436
    %7431 = vmatpush.bf16.msra.mxu0 %v6428
    %7432 = vmatpush.bf16.msra.mxu0 %v6420
    %7433 = vmatpush.bf16.msra.mxu0 %v6412
    %7434 = vmatpush.bf16.msra.mxu0 %v6404
    %7435 = vmatpush.bf16.msra.mxu0 %v6396
    %7436 = vmatmul.bf16.gmra.mxu0 %v3989
    %v7437 = vpop.f32.mrf.mxu0
    %v7438 = vadd.f32 %v7425, %v7437
    %v7439 = vpop.f32.mrf.mxu0
    %7440 = vdwg.mxu0
    %7441 = vmatpush.bf16.msra.mxu0 0
    %7442 = vmatpush.bf16.msra.mxu0 %v7024
    %7443 = vmatpush.bf16.msra.mxu0 %v6500
    %7444 = vmatpush.bf16.msra.mxu0 %v6492
    %7445 = vmatpush.bf16.msra.mxu0 %v6484
    %7446 = vmatpush.bf16.msra.mxu0 %v6476
    %7447 = vmatpush.bf16.msra.mxu0 %v6468
    %7448 = vmatpush.bf16.msra.mxu0 %v6460
    %7449 = vmatmul.bf16.gmra.mxu0 %v7011
    %v7450 = vpop.f32.mrf.mxu0
    %v7451 = vadd.f32 %v7438, %v7450
    %v7452 = vpop.f32.mrf.mxu0
    %7453 = vdwg.mxu0
    %7454 = vmatpush.bf16.msra.mxu0 %v6069
    %7455 = vmatpush.bf16.msra.mxu0 %v6061
    %7456 = vmatpush.bf16.msra.mxu0 %v6053
    %7457 = vmatpush.bf16.msra.mxu0 %v6045
    %7458 = vmatpush.bf16.msra.mxu0 %v6037
    %7459 = vmatpush.bf16.msra.mxu0 %v6029
    %7460 = vmatpush.bf16.msra.mxu0 %v6021
    %7461 = vmatpush.bf16.msra.mxu0 %v6013
    %7462 = vmatmul.bf16.gmra.mxu0 %v3983
    %v7463 = vpop.f32.mrf.mxu0
    %v7464 = vadd.f32 %v4497, %v7463
    %v7465 = vpop.f32.mrf.mxu0
    %7466 = vdwg.mxu0
    %7467 = vmatpush.bf16.msra.mxu0 %v6133
    %7468 = vmatpush.bf16.msra.mxu0 %v6125
    %7469 = vmatpush.bf16.msra.mxu0 %v6117
    %7470 = vmatpush.bf16.msra.mxu0 %v6109
    %7471 = vmatpush.bf16.msra.mxu0 %v6101
    %7472 = vmatpush.bf16.msra.mxu0 %v6093
    %7473 = vmatpush.bf16.msra.mxu0 %v6085
    %7474 = vmatpush.bf16.msra.mxu0 %v6077
    %7475 = vmatmul.bf16.gmra.mxu0 %v3984
    %v7476 = vpop.f32.mrf.mxu0
    %v7477 = vadd.f32 %v7464, %v7476
    %v7478 = vpop.f32.mrf.mxu0
    %7479 = vdwg.mxu0
    %7480 = vmatpush.bf16.msra.mxu0 %v6197
    %7481 = vmatpush.bf16.msra.mxu0 %v6189
    %7482 = vmatpush.bf16.msra.mxu0 %v6181
    %7483 = vmatpush.bf16.msra.mxu0 %v6173
    %7484 = vmatpush.bf16.msra.mxu0 %v6165
    %7485 = vmatpush.bf16.msra.mxu0 %v6157
    %7486 = vmatpush.bf16.msra.mxu0 %v6149
    %7487 = vmatpush.bf16.msra.mxu0 %v6141
    %7488 = vmatmul.bf16.gmra.mxu0 %v3985
    %v7489 = vpop.f32.mrf.mxu0
    %v7490 = vadd.f32 %v7477, %v7489
    %v7491 = vpop.f32.mrf.mxu0
    %7492 = vdwg.mxu0
    %7493 = vmatpush.bf16.msra.mxu0 %v6261
    %7494 = vmatpush.bf16.msra.mxu0 %v6253
    %7495 = vmatpush.bf16.msra.mxu0 %v6245
    %7496 = vmatpush.bf16.msra.mxu0 %v6237
    %7497 = vmatpush.bf16.msra.mxu0 %v6229
    %7498 = vmatpush.bf16.msra.mxu0 %v6221
    %7499 = vmatpush.bf16.msra.mxu0 %v6213
    %7500 = vmatpush.bf16.msra.mxu0 %v6205
    %7501 = vmatmul.bf16.gmra.mxu0 %v3986
    %v7502 = vpop.f32.mrf.mxu0
    %v7503 = vadd.f32 %v7490, %v7502
    %v7504 = vpop.f32.mrf.mxu0
    %7505 = vdwg.mxu0
    %7506 = vmatpush.bf16.msra.mxu0 %v6325
    %7507 = vmatpush.bf16.msra.mxu0 %v6317
    %7508 = vmatpush.bf16.msra.mxu0 %v6309
    %7509 = vmatpush.bf16.msra.mxu0 %v6301
    %7510 = vmatpush.bf16.msra.mxu0 %v6293
    %7511 = vmatpush.bf16.msra.mxu0 %v6285
    %7512 = vmatpush.bf16.msra.mxu0 %v6277
    %7513 = vmatpush.bf16.msra.mxu0 %v6269
    %7514 = vmatmul.bf16.gmra.mxu0 %v3987
    %v7515 = vpop.f32.mrf.mxu0
    %v7516 = vadd.f32 %v7503, %v7515
    %v7517 = vpop.f32.mrf.mxu0
    %7518 = vdwg.mxu0
    %7519 = vmatpush.bf16.msra.mxu0 %v6389
    %7520 = vmatpush.bf16.msra.mxu0 %v6381
    %7521 = vmatpush.bf16.msra.mxu0 %v6373
    %7522 = vmatpush.bf16.msra.mxu0 %v6365
    %7523 = vmatpush.bf16.msra.mxu0 %v6357
    %7524 = vmatpush.bf16.msra.mxu0 %v6349
    %7525 = vmatpush.bf16.msra.mxu0 %v6341
    %7526 = vmatpush.bf16.msra.mxu0 %v6333
    %7527 = vmatmul.bf16.gmra.mxu0 %v3988
    %v7528 = vpop.f32.mrf.mxu0
    %v7529 = vadd.f32 %v7516, %v7528
    %v7530 = vpop.f32.mrf.mxu0
    %7531 = vdwg.mxu0
    %7532 = vmatpush.bf16.msra.mxu0 %v6453
    %7533 = vmatpush.bf16.msra.mxu0 %v6445
    %7534 = vmatpush.bf16.msra.mxu0 %v6437
    %7535 = vmatpush.bf16.msra.mxu0 %v6429
    %7536 = vmatpush.bf16.msra.mxu0 %v6421
    %7537 = vmatpush.bf16.msra.mxu0 %v6413
    %7538 = vmatpush.bf16.msra.mxu0 %v6405
    %7539 = vmatpush.bf16.msra.mxu0 %v6397
    %7540 = vmatmul.bf16.gmra.mxu0 %v3989
    %v7541 = vpop.f32.mrf.mxu0
    %v7542 = vadd.f32 %v7529, %v7541
    %v7543 = vpop.f32.mrf.mxu0
    %7544 = vdwg.mxu0
    %7545 = vmatpush.bf16.msra.mxu0 0
    %7546 = vmatpush.bf16.msra.mxu0 %v7027
    %7547 = vmatpush.bf16.msra.mxu0 %v6501
    %7548 = vmatpush.bf16.msra.mxu0 %v6493
    %7549 = vmatpush.bf16.msra.mxu0 %v6485
    %7550 = vmatpush.bf16.msra.mxu0 %v6477
    %7551 = vmatpush.bf16.msra.mxu0 %v6469
    %7552 = vmatpush.bf16.msra.mxu0 %v6461
    %7553 = vmatmul.bf16.gmra.mxu0 %v7011
    %v7554 = vpop.f32.mrf.mxu0
    %v7555 = vadd.f32 %v7542, %v7554
    %v7556 = vpop.f32.mrf.mxu0
    %7557 = vdwg.mxu0
    %7558 = vmatpush.bf16.msra.mxu0 %v6070
    %7559 = vmatpush.bf16.msra.mxu0 %v6062
    %7560 = vmatpush.bf16.msra.mxu0 %v6054
    %7561 = vmatpush.bf16.msra.mxu0 %v6046
    %7562 = vmatpush.bf16.msra.mxu0 %v6038
    %7563 = vmatpush.bf16.msra.mxu0 %v6030
    %7564 = vmatpush.bf16.msra.mxu0 %v6022
    %7565 = vmatpush.bf16.msra.mxu0 %v6014
    %7566 = vmatmul.bf16.gmra.mxu0 %v3983
    %v7567 = vpop.f32.mrf.mxu0
    %v7568 = vadd.f32 %v4498, %v7567
    %v7569 = vpop.f32.mrf.mxu0
    %7570 = vdwg.mxu0
    %7571 = vmatpush.bf16.msra.mxu0 %v6134
    %7572 = vmatpush.bf16.msra.mxu0 %v6126
    %7573 = vmatpush.bf16.msra.mxu0 %v6118
    %7574 = vmatpush.bf16.msra.mxu0 %v6110
    %7575 = vmatpush.bf16.msra.mxu0 %v6102
    %7576 = vmatpush.bf16.msra.mxu0 %v6094
    %7577 = vmatpush.bf16.msra.mxu0 %v6086
    %7578 = vmatpush.bf16.msra.mxu0 %v6078
    %7579 = vmatmul.bf16.gmra.mxu0 %v3984
    %v7580 = vpop.f32.mrf.mxu0
    %v7581 = vadd.f32 %v7568, %v7580
    %v7582 = vpop.f32.mrf.mxu0
    %7583 = vdwg.mxu0
    %7584 = vmatpush.bf16.msra.mxu0 %v6198
    %7585 = vmatpush.bf16.msra.mxu0 %v6190
    %7586 = vmatpush.bf16.msra.mxu0 %v6182
    %7587 = vmatpush.bf16.msra.mxu0 %v6174
    %7588 = vmatpush.bf16.msra.mxu0 %v6166
    %7589 = vmatpush.bf16.msra.mxu0 %v6158
    %7590 = vmatpush.bf16.msra.mxu0 %v6150
    %7591 = vmatpush.bf16.msra.mxu0 %v6142
    %7592 = vmatmul.bf16.gmra.mxu0 %v3985
    %v7593 = vpop.f32.mrf.mxu0
    %v7594 = vadd.f32 %v7581, %v7593
    %v7595 = vpop.f32.mrf.mxu0
    %7596 = vdwg.mxu0
    %7597 = vmatpush.bf16.msra.mxu0 %v6262
    %7598 = vmatpush.bf16.msra.mxu0 %v6254
    %7599 = vmatpush.bf16.msra.mxu0 %v6246
    %7600 = vmatpush.bf16.msra.mxu0 %v6238
    %7601 = vmatpush.bf16.msra.mxu0 %v6230
    %7602 = vmatpush.bf16.msra.mxu0 %v6222
    %7603 = vmatpush.bf16.msra.mxu0 %v6214
    %7604 = vmatpush.bf16.msra.mxu0 %v6206
    %7605 = vmatmul.bf16.gmra.mxu0 %v3986
    %v7606 = vpop.f32.mrf.mxu0
    %v7607 = vadd.f32 %v7594, %v7606
    %v7608 = vpop.f32.mrf.mxu0
    %7609 = vdwg.mxu0
    %7610 = vmatpush.bf16.msra.mxu0 %v6326
    %7611 = vmatpush.bf16.msra.mxu0 %v6318
    %7612 = vmatpush.bf16.msra.mxu0 %v6310
    %7613 = vmatpush.bf16.msra.mxu0 %v6302
    %7614 = vmatpush.bf16.msra.mxu0 %v6294
    %7615 = vmatpush.bf16.msra.mxu0 %v6286
    %7616 = vmatpush.bf16.msra.mxu0 %v6278
    %7617 = vmatpush.bf16.msra.mxu0 %v6270
    %7618 = vmatmul.bf16.gmra.mxu0 %v3987
    %v7619 = vpop.f32.mrf.mxu0
    %v7620 = vadd.f32 %v7607, %v7619
    %v7621 = vpop.f32.mrf.mxu0
    %7622 = vdwg.mxu0
    %7623 = vmatpush.bf16.msra.mxu0 %v6390
    %7624 = vmatpush.bf16.msra.mxu0 %v6382
    %7625 = vmatpush.bf16.msra.mxu0 %v6374
    %7626 = vmatpush.bf16.msra.mxu0 %v6366
    %7627 = vmatpush.bf16.msra.mxu0 %v6358
    %7628 = vmatpush.bf16.msra.mxu0 %v6350
    %7629 = vmatpush.bf16.msra.mxu0 %v6342
    %7630 = vmatpush.bf16.msra.mxu0 %v6334
    %7631 = vmatmul.bf16.gmra.mxu0 %v3988
    %v7632 = vpop.f32.mrf.mxu0
    %v7633 = vadd.f32 %v7620, %v7632
    %v7634 = vpop.f32.mrf.mxu0
    %7635 = vdwg.mxu0
    %7636 = vmatpush.bf16.msra.mxu0 %v6454
    %7637 = vmatpush.bf16.msra.mxu0 %v6446
    %7638 = vmatpush.bf16.msra.mxu0 %v6438
    %7639 = vmatpush.bf16.msra.mxu0 %v6430
    %7640 = vmatpush.bf16.msra.mxu0 %v6422
    %7641 = vmatpush.bf16.msra.mxu0 %v6414
    %7642 = vmatpush.bf16.msra.mxu0 %v6406
    %7643 = vmatpush.bf16.msra.mxu0 %v6398
    %7644 = vmatmul.bf16.gmra.mxu0 %v3989
    %v7645 = vpop.f32.mrf.mxu0
    %v7646 = vadd.f32 %v7633, %v7645
    %v7647 = vpop.f32.mrf.mxu0
    %7648 = vdwg.mxu0
    %7649 = vmatpush.bf16.msra.mxu0 0
    %7650 = vmatpush.bf16.msra.mxu0 %v7030
    %7651 = vmatpush.bf16.msra.mxu0 %v6502
    %7652 = vmatpush.bf16.msra.mxu0 %v6494
    %7653 = vmatpush.bf16.msra.mxu0 %v6486
    %7654 = vmatpush.bf16.msra.mxu0 %v6478
    %7655 = vmatpush.bf16.msra.mxu0 %v6470
    %7656 = vmatpush.bf16.msra.mxu0 %v6462
    %7657 = vmatmul.bf16.gmra.mxu0 %v7011
    %v7658 = vpop.f32.mrf.mxu0
    %v7659 = vadd.f32 %v7646, %v7658
    %v7660 = vpop.f32.mrf.mxu0
    %7661 = vdwg.mxu0
    %7662 = vmatpush.bf16.msra.mxu0 %v6071
    %7663 = vmatpush.bf16.msra.mxu0 %v6063
    %7664 = vmatpush.bf16.msra.mxu0 %v6055
    %7665 = vmatpush.bf16.msra.mxu0 %v6047
    %7666 = vmatpush.bf16.msra.mxu0 %v6039
    %7667 = vmatpush.bf16.msra.mxu0 %v6031
    %7668 = vmatpush.bf16.msra.mxu0 %v6023
    %7669 = vmatpush.bf16.msra.mxu0 %v6015
    %7670 = vmatmul.bf16.gmra.mxu0 %v3983
    %v7671 = vpop.f32.mrf.mxu0
    %v7672 = vadd.f32 %v4499, %v7671
    %v7673 = vpop.f32.mrf.mxu0
    %7674 = vdwg.mxu0
    %7675 = vmatpush.bf16.msra.mxu0 %v6135
    %7676 = vmatpush.bf16.msra.mxu0 %v6127
    %7677 = vmatpush.bf16.msra.mxu0 %v6119
    %7678 = vmatpush.bf16.msra.mxu0 %v6111
    %7679 = vmatpush.bf16.msra.mxu0 %v6103
    %7680 = vmatpush.bf16.msra.mxu0 %v6095
    %7681 = vmatpush.bf16.msra.mxu0 %v6087
    %7682 = vmatpush.bf16.msra.mxu0 %v6079
    %7683 = vmatmul.bf16.gmra.mxu0 %v3984
    %v7684 = vpop.f32.mrf.mxu0
    %v7685 = vadd.f32 %v7672, %v7684
    %v7686 = vpop.f32.mrf.mxu0
    %7687 = vdwg.mxu0
    %7688 = vmatpush.bf16.msra.mxu0 %v6199
    %7689 = vmatpush.bf16.msra.mxu0 %v6191
    %7690 = vmatpush.bf16.msra.mxu0 %v6183
    %7691 = vmatpush.bf16.msra.mxu0 %v6175
    %7692 = vmatpush.bf16.msra.mxu0 %v6167
    %7693 = vmatpush.bf16.msra.mxu0 %v6159
    %7694 = vmatpush.bf16.msra.mxu0 %v6151
    %7695 = vmatpush.bf16.msra.mxu0 %v6143
    %7696 = vmatmul.bf16.gmra.mxu0 %v3985
    %v7697 = vpop.f32.mrf.mxu0
    %v7698 = vadd.f32 %v7685, %v7697
    %v7699 = vpop.f32.mrf.mxu0
    %7700 = vdwg.mxu0
    %7701 = vmatpush.bf16.msra.mxu0 %v6263
    %7702 = vmatpush.bf16.msra.mxu0 %v6255
    %7703 = vmatpush.bf16.msra.mxu0 %v6247
    %7704 = vmatpush.bf16.msra.mxu0 %v6239
    %7705 = vmatpush.bf16.msra.mxu0 %v6231
    %7706 = vmatpush.bf16.msra.mxu0 %v6223
    %7707 = vmatpush.bf16.msra.mxu0 %v6215
    %7708 = vmatpush.bf16.msra.mxu0 %v6207
    %7709 = vmatmul.bf16.gmra.mxu0 %v3986
    %v7710 = vpop.f32.mrf.mxu0
    %v7711 = vadd.f32 %v7698, %v7710
    %v7712 = vpop.f32.mrf.mxu0
    %7713 = vdwg.mxu0
    %7714 = vmatpush.bf16.msra.mxu0 %v6327
    %7715 = vmatpush.bf16.msra.mxu0 %v6319
    %7716 = vmatpush.bf16.msra.mxu0 %v6311
    %7717 = vmatpush.bf16.msra.mxu0 %v6303
    %7718 = vmatpush.bf16.msra.mxu0 %v6295
    %7719 = vmatpush.bf16.msra.mxu0 %v6287
    %7720 = vmatpush.bf16.msra.mxu0 %v6279
    %7721 = vmatpush.bf16.msra.mxu0 %v6271
    %7722 = vmatmul.bf16.gmra.mxu0 %v3987
    %v7723 = vpop.f32.mrf.mxu0
    %v7724 = vadd.f32 %v7711, %v7723
    %v7725 = vpop.f32.mrf.mxu0
    %7726 = vdwg.mxu0
    %7727 = vmatpush.bf16.msra.mxu0 %v6391
    %7728 = vmatpush.bf16.msra.mxu0 %v6383
    %7729 = vmatpush.bf16.msra.mxu0 %v6375
    %7730 = vmatpush.bf16.msra.mxu0 %v6367
    %7731 = vmatpush.bf16.msra.mxu0 %v6359
    %7732 = vmatpush.bf16.msra.mxu0 %v6351
    %7733 = vmatpush.bf16.msra.mxu0 %v6343
    %7734 = vmatpush.bf16.msra.mxu0 %v6335
    %7735 = vmatmul.bf16.gmra.mxu0 %v3988
    %v7736 = vpop.f32.mrf.mxu0
    %v7737 = vadd.f32 %v7724, %v7736
    %v7738 = vpop.f32.mrf.mxu0
    %7739 = vdwg.mxu0
    %7740 = vmatpush.bf16.msra.mxu0 %v6455
    %7741 = vmatpush.bf16.msra.mxu0 %v6447
    %7742 = vmatpush.bf16.msra.mxu0 %v6439
    %7743 = vmatpush.bf16.msra.mxu0 %v6431
    %7744 = vmatpush.bf16.msra.mxu0 %v6423
    %7745 = vmatpush.bf16.msra.mxu0 %v6415
    %7746 = vmatpush.bf16.msra.mxu0 %v6407
    %7747 = vmatpush.bf16.msra.mxu0 %v6399
    %7748 = vmatmul.bf16.gmra.mxu0 %v3989
    %v7749 = vpop.f32.mrf.mxu0
    %v7750 = vadd.f32 %v7737, %v7749
    %v7751 = vpop.f32.mrf.mxu0
    %7752 = vdwg.mxu0
    %7753 = vmatpush.bf16.msra.mxu0 0
    %7754 = vmatpush.bf16.msra.mxu0 %v7033
    %7755 = vmatpush.bf16.msra.mxu0 %v6503
    %7756 = vmatpush.bf16.msra.mxu0 %v6495
    %7757 = vmatpush.bf16.msra.mxu0 %v6487
    %7758 = vmatpush.bf16.msra.mxu0 %v6479
    %7759 = vmatpush.bf16.msra.mxu0 %v6471
    %7760 = vmatpush.bf16.msra.mxu0 %v6463
    %7761 = vmatmul.bf16.gmra.mxu0 %v7011
    %v7762 = vpop.f32.mrf.mxu0
    %v7763 = vadd.f32 %v7750, %v7762
    %v7764 = vpop.f32.mrf.mxu0
    %7765 = vdwg.mxu0
    %7766 = vmatpush.bf16.msra.mxu0 %v6072
    %7767 = vmatpush.bf16.msra.mxu0 %v6064
    %7768 = vmatpush.bf16.msra.mxu0 %v6056
    %7769 = vmatpush.bf16.msra.mxu0 %v6048
    %7770 = vmatpush.bf16.msra.mxu0 %v6040
    %7771 = vmatpush.bf16.msra.mxu0 %v6032
    %7772 = vmatpush.bf16.msra.mxu0 %v6024
    %7773 = vmatpush.bf16.msra.mxu0 %v6016
    %7774 = vmatmul.bf16.gmra.mxu0 %v3983
    %v7775 = vpop.f32.mrf.mxu0
    %v7776 = vadd.f32 %v4500, %v7775
    %v7777 = vpop.f32.mrf.mxu0
    %7778 = vdwg.mxu0
    %7779 = vmatpush.bf16.msra.mxu0 %v6136
    %7780 = vmatpush.bf16.msra.mxu0 %v6128
    %7781 = vmatpush.bf16.msra.mxu0 %v6120
    %7782 = vmatpush.bf16.msra.mxu0 %v6112
    %7783 = vmatpush.bf16.msra.mxu0 %v6104
    %7784 = vmatpush.bf16.msra.mxu0 %v6096
    %7785 = vmatpush.bf16.msra.mxu0 %v6088
    %7786 = vmatpush.bf16.msra.mxu0 %v6080
    %7787 = vmatmul.bf16.gmra.mxu0 %v3984
    %v7788 = vpop.f32.mrf.mxu0
    %v7789 = vadd.f32 %v7776, %v7788
    %v7790 = vpop.f32.mrf.mxu0
    %7791 = vdwg.mxu0
    %7792 = vmatpush.bf16.msra.mxu0 %v6200
    %7793 = vmatpush.bf16.msra.mxu0 %v6192
    %7794 = vmatpush.bf16.msra.mxu0 %v6184
    %7795 = vmatpush.bf16.msra.mxu0 %v6176
    %7796 = vmatpush.bf16.msra.mxu0 %v6168
    %7797 = vmatpush.bf16.msra.mxu0 %v6160
    %7798 = vmatpush.bf16.msra.mxu0 %v6152
    %7799 = vmatpush.bf16.msra.mxu0 %v6144
    %7800 = vmatmul.bf16.gmra.mxu0 %v3985
    %v7801 = vpop.f32.mrf.mxu0
    %v7802 = vadd.f32 %v7789, %v7801
    %v7803 = vpop.f32.mrf.mxu0
    %7804 = vdwg.mxu0
    %7805 = vmatpush.bf16.msra.mxu0 %v6264
    %7806 = vmatpush.bf16.msra.mxu0 %v6256
    %7807 = vmatpush.bf16.msra.mxu0 %v6248
    %7808 = vmatpush.bf16.msra.mxu0 %v6240
    %7809 = vmatpush.bf16.msra.mxu0 %v6232
    %7810 = vmatpush.bf16.msra.mxu0 %v6224
    %7811 = vmatpush.bf16.msra.mxu0 %v6216
    %7812 = vmatpush.bf16.msra.mxu0 %v6208
    %7813 = vmatmul.bf16.gmra.mxu0 %v3986
    %v7814 = vpop.f32.mrf.mxu0
    %v7815 = vadd.f32 %v7802, %v7814
    %v7816 = vpop.f32.mrf.mxu0
    %7817 = vdwg.mxu0
    %7818 = vmatpush.bf16.msra.mxu0 %v6328
    %7819 = vmatpush.bf16.msra.mxu0 %v6320
    %7820 = vmatpush.bf16.msra.mxu0 %v6312
    %7821 = vmatpush.bf16.msra.mxu0 %v6304
    %7822 = vmatpush.bf16.msra.mxu0 %v6296
    %7823 = vmatpush.bf16.msra.mxu0 %v6288
    %7824 = vmatpush.bf16.msra.mxu0 %v6280
    %7825 = vmatpush.bf16.msra.mxu0 %v6272
    %7826 = vmatmul.bf16.gmra.mxu0 %v3987
    %v7827 = vpop.f32.mrf.mxu0
    %v7828 = vadd.f32 %v7815, %v7827
    %v7829 = vpop.f32.mrf.mxu0
    %7830 = vdwg.mxu0
    %7831 = vmatpush.bf16.msra.mxu0 %v6392
    %7832 = vmatpush.bf16.msra.mxu0 %v6384
    %7833 = vmatpush.bf16.msra.mxu0 %v6376
    %7834 = vmatpush.bf16.msra.mxu0 %v6368
    %7835 = vmatpush.bf16.msra.mxu0 %v6360
    %7836 = vmatpush.bf16.msra.mxu0 %v6352
    %7837 = vmatpush.bf16.msra.mxu0 %v6344
    %7838 = vmatpush.bf16.msra.mxu0 %v6336
    %7839 = vmatmul.bf16.gmra.mxu0 %v3988
    %v7840 = vpop.f32.mrf.mxu0
    %v7841 = vadd.f32 %v7828, %v7840
    %v7842 = vpop.f32.mrf.mxu0
    %7843 = vdwg.mxu0
    %7844 = vmatpush.bf16.msra.mxu0 %v6456
    %7845 = vmatpush.bf16.msra.mxu0 %v6448
    %7846 = vmatpush.bf16.msra.mxu0 %v6440
    %7847 = vmatpush.bf16.msra.mxu0 %v6432
    %7848 = vmatpush.bf16.msra.mxu0 %v6424
    %7849 = vmatpush.bf16.msra.mxu0 %v6416
    %7850 = vmatpush.bf16.msra.mxu0 %v6408
    %7851 = vmatpush.bf16.msra.mxu0 %v6400
    %7852 = vmatmul.bf16.gmra.mxu0 %v3989
    %v7853 = vpop.f32.mrf.mxu0
    %v7854 = vadd.f32 %v7841, %v7853
    %v7855 = vpop.f32.mrf.mxu0
    %7856 = vdwg.mxu0
    %7857 = vmatpush.bf16.msra.mxu0 0
    %7858 = vmatpush.bf16.msra.mxu0 %v7036
    %7859 = vmatpush.bf16.msra.mxu0 %v6504
    %7860 = vmatpush.bf16.msra.mxu0 %v6496
    %7861 = vmatpush.bf16.msra.mxu0 %v6488
    %7862 = vmatpush.bf16.msra.mxu0 %v6480
    %7863 = vmatpush.bf16.msra.mxu0 %v6472
    %7864 = vmatpush.bf16.msra.mxu0 %v6464
    %7865 = vmatmul.bf16.gmra.mxu0 %v7011
    %v7866 = vpop.f32.mrf.mxu0
    %v7867 = vadd.f32 %v7854, %v7866
    %v7868 = vpop.f32.mrf.mxu0
    %7869 = vdwg.mxu0
    %v7870 = vmax.f32 %v7139, 0.0
    %v7871 = vmax.f32 %v7243, 0.0
    %v7872 = vmax.f32 %v7347, 0.0
    %v7873 = vmax.f32 %v7451, 0.0
    %v7874 = vmax.f32 %v7555, 0.0
    %v7875 = vmax.f32 %v7659, 0.0
    %v7876 = vmax.f32 %v7763, 0.0
    %v7877 = vmax.f32 %v7867, 0.0
    %v7878 = vpack.c.bf16 %v7870, %v7870
    %v7879 = vpack.c.bf16 %v7871, %v7871
    %v7880 = vpack.c.bf16 %v7872, %v7872
    %v7881 = vpack.c.bf16 %v7873, %v7873
    %v7882 = vpack.c.bf16 %v7874, %v7874
    %v7883 = vpack.c.bf16 %v7875, %v7875
    %v7884 = vpack.c.bf16 %v7876, %v7876
    %v7885 = vpack.c.bf16 %v7877, %v7877
    %v7886 = vld [vmem:[%s5] sm:$0xf]
    %v7887 = vld [vmem:[%s5 + $0x4] sm:$0xf]
    %v7888 = vld [vmem:[%s5 + $0x8] sm:$0xf]
    %v7889 = vld [vmem:[%s5 + $0xc] sm:$0xf]
    %v7890 = vld [vmem:[%s5 + $0x10] sm:$0xf]
    %v7891 = vld [vmem:[%s5 + $0x14] sm:$0xf]
    %v7892 = vld [vmem:[%s5 + $0x18] sm:$0xf]
    %v7893 = vld [vmem:[%s5 + $0x1c] sm:$0xf]
    %v7894 = vld [vmem:[%s5 + $0x20] sm:$0xf]
    %v7895 = vld [vmem:[%s5 + $0x24] sm:$0xf]
    %v7896 = vld [vmem:[%s5 + $0x28] sm:$0xf]
    %v7897 = vld [vmem:[%s5 + $0x2c] sm:$0xf]
    %v7898 = vld [vmem:[%s5 + $0x30] sm:$0xf]
    %v7899 = vld [vmem:[%s5 + $0x34] sm:$0xf]
    %v7900 = vld [vmem:[%s5 + $0x38] sm:$0xf]
    %v7901 = vld [vmem:[%s5 + $0x3c] sm:$0xf]
    %v7902 = vld [vmem:[%s5 + $0x40] sm:$0xf]
    %v7903 = vld [vmem:[%s5 + $0x44] sm:$0xf]
    %v7904 = vld [vmem:[%s5 + $0x48] sm:$0xf]
    %v7905 = vld [vmem:[%s5 + $0x4c] sm:$0xf]
    %v7906 = vld [vmem:[%s5 + $0x50] sm:$0xf]
    %v7907 = vld [vmem:[%s5 + $0x54] sm:$0xf]
    %v7908 = vld [vmem:[%s5 + $0x58] sm:$0xf]
    %v7909 = vld [vmem:[%s5 + $0x5c] sm:$0xf]
    %v7910 = vld [vmem:[%s5 + $0x60] sm:$0xf]
    %v7911 = vld [vmem:[%s5 + $0x64] sm:$0xf]
    %v7912 = vld [vmem:[%s5 + $0x68] sm:$0xf]
    %v7913 = vld [vmem:[%s5 + $0x6c] sm:$0xf]
    %v7914 = vld [vmem:[%s5 + $0x70] sm:$0xf]
    %v7915 = vld [vmem:[%s5 + $0x74] sm:$0xf]
    %v7916 = vld [vmem:[%s5 + $0x78] sm:$0xf]
    %v7917 = vld [vmem:[%s5 + $0x7c] sm:$0xf]
    %v7918 = vld [vmem:[%s5 + $0x80] sm:$0xf]
    %v7919 = vld [vmem:[%s5 + $0x84] sm:$0xf]
    %v7920 = vld [vmem:[%s5 + $0x88] sm:$0xf]
    %v7921 = vld [vmem:[%s5 + $0x8c] sm:$0xf]
    %v7922 = vld [vmem:[%s5 + $0x90] sm:$0xf]
    %v7923 = vld [vmem:[%s5 + $0x94] sm:$0xf]
    %v7924 = vld [vmem:[%s5 + $0x98] sm:$0xf]
    %v7925 = vld [vmem:[%s5 + $0x9c] sm:$0xf]
    %v7926 = vld [vmem:[%s5 + $0xa0] sm:$0xf]
    %v7927 = vld [vmem:[%s5 + $0xa4] sm:$0xf]
    %v7928 = vld [vmem:[%s5 + $0xa8] sm:$0xf]
    %v7929 = vld [vmem:[%s5 + $0xac] sm:$0xf]
    %v7930 = vld [vmem:[%s5 + $0xb0] sm:$0xf]
    %v7931 = vld [vmem:[%s5 + $0xb4] sm:$0xf]
    %v7932 = vld [vmem:[%s5 + $0xb8] sm:$0xf]
    %v7933 = vld [vmem:[%s5 + $0xbc] sm:$0xf]
    %v7934 = vld [vmem:[%s5 + $0xc0] sm:$0xf]
    %v7935 = vld [vmem:[%s5 + $0xc4] sm:$0xf]
    %v7936 = vld [vmem:[%s5 + $0xc8] sm:$0xf]
    %v7937 = vld [vmem:[%s5 + $0xcc] sm:$0xf]
    %v7938 = vld [vmem:[%s5 + $0xd0] sm:$0xf]
    %v7939 = vld [vmem:[%s5 + $0xd4] sm:$0xf]
    %v7940 = vld [vmem:[%s5 + $0xd8] sm:$0xf]
    %v7941 = vld [vmem:[%s5 + $0xdc] sm:$0xf]
    %v7942 = vld [vmem:[%s5 + $0xe0] sm:$0xf]
    %v7943 = vld [vmem:[%s5 + $0xe4] sm:$0xf]
    %v7944 = vld [vmem:[%s5 + $0xe8] sm:$0xf]
    %v7945 = vld [vmem:[%s5 + $0xec] sm:$0xf]
    %v7946 = vld [vmem:[%s5 + $0xf0] sm:$0xf]
    %v7947 = vld [vmem:[%s5 + $0xf4] sm:$0xf]
    %v7948 = vld [vmem:[%s5 + $0xf8] sm:$0xf]
    %v7949 = vld [vmem:[%s5 + $0xfc] sm:$0xf]
    %v7950 = vld [vmem:[%s5 + $0x100] sm:$0xf]
    %v7951 = vld [vmem:[%s5 + $0x104] sm:$0xf]
    %v7952 = vld [vmem:[%s5 + $0x108] sm:$0xf]
    %v7953 = vld [vmem:[%s5 + $0x10c] sm:$0xf]
    %v7954 = vld [vmem:[%s5 + $0x110] sm:$0xf]
    %v7955 = vld [vmem:[%s5 + $0x114] sm:$0xf]
    %v7956 = vld [vmem:[%s5 + $0x118] sm:$0xf]
    %v7957 = vld [vmem:[%s5 + $0x11c] sm:$0xf]
    %v7958 = vld [vmem:[%s5 + $0x120] sm:$0xf]
    %v7959 = vld [vmem:[%s5 + $0x124] sm:$0xf]
    %v7960 = vld [vmem:[%s5 + $0x128] sm:$0xf]
    %v7961 = vld [vmem:[%s5 + $0x12c] sm:$0xf]
    %v7962 = vld [vmem:[%s5 + $0x130] sm:$0xf]
    %v7963 = vld [vmem:[%s5 + $0x134] sm:$0xf]
    %v7964 = vld [vmem:[%s5 + $0x138] sm:$0xf]
    %v7965 = vld [vmem:[%s5 + $0x13c] sm:$0xf]
    %v7966 = vld [vmem:[%s5 + $0x140] sm:$0xf]
    %v7967 = vld [vmem:[%s5 + $0x144] sm:$0xf]
    %v7968 = vld [vmem:[%s5 + $0x148] sm:$0xf]
    %v7969 = vld [vmem:[%s5 + $0x14c] sm:$0xf]
    %v7970 = vld [vmem:[%s5 + $0x150] sm:$0xf]
    %v7971 = vld [vmem:[%s5 + $0x154] sm:$0xf]
    %v7972 = vld [vmem:[%s5 + $0x158] sm:$0xf]
    %v7973 = vld [vmem:[%s5 + $0x15c] sm:$0xf]
    %v7974 = vld [vmem:[%s5 + $0x160] sm:$0xf]
    %v7975 = vld [vmem:[%s5 + $0x164] sm:$0xf]
    %v7976 = vld [vmem:[%s5 + $0x168] sm:$0xf]
    %v7977 = vld [vmem:[%s5 + $0x16c] sm:$0xf]
    %v7978 = vld [vmem:[%s5 + $0x170] sm:$0xf]
    %v7979 = vld [vmem:[%s5 + $0x174] sm:$0xf]
    %v7980 = vld [vmem:[%s5 + $0x178] sm:$0xf]
    %v7981 = vld [vmem:[%s5 + $0x17c] sm:$0xf]
    %v7982 = vld [vmem:[%s5 + $0x180] sm:$0xf]
    %v7983 = vld [vmem:[%s5 + $0x184] sm:$0xf]
    %v7984 = vld [vmem:[%s5 + $0x188] sm:$0xf]
    %v7985 = vld [vmem:[%s5 + $0x18c] sm:$0xf]
    %v7986 = vld [vmem:[%s5 + $0x190] sm:$0xf]
    %v7987 = vld [vmem:[%s5 + $0x194] sm:$0xf]
    %v7988 = vld [vmem:[%s5 + $0x198] sm:$0xf]
    %v7989 = vld [vmem:[%s5 + $0x19c] sm:$0xf]
    %v7990 = vld [vmem:[%s5 + $0x1a0] sm:$0xf]
    %v7991 = vld [vmem:[%s5 + $0x1a4] sm:$0xf]
    %v7992 = vld [vmem:[%s5 + $0x1a8] sm:$0xf]
    %v7993 = vld [vmem:[%s5 + $0x1ac] sm:$0xf]
    %v7994 = vld [vmem:[%s5 + $0x1b0] sm:$0xf]
    %v7995 = vld [vmem:[%s5 + $0x1b4] sm:$0xf]
    %v7996 = vld [vmem:[%s5 + $0x1b8] sm:$0xf]
    %v7997 = vld [vmem:[%s5 + $0x1bc] sm:$0xf]
    %v7998 = vld [vmem:[%s5 + $0x1c0] sm:$0xf]
    %v7999 = vld [vmem:[%s5 + $0x1c4] sm:$0xf]
    %v8000 = vld [vmem:[%s5 + $0x1c8] sm:$0xf]
    %v8001 = vld [vmem:[%s5 + $0x1cc] sm:$0xf]
    %v8002 = vld [vmem:[%s5 + $0x1d0] sm:$0xf]
    %v8003 = vld [vmem:[%s5 + $0x1d4] sm:$0xf]
    %v8004 = vld [vmem:[%s5 + $0x1d8] sm:$0xf]
    %v8005 = vld [vmem:[%s5 + $0x1dc] sm:$0xf]
    %v8006 = vld [vmem:[%s5 + $0x1e0] sm:$0xf]
    %v8007 = vld [vmem:[%s5 + $0x1e4] sm:$0xf]
    %v8008 = vld [vmem:[%s5 + $0x1e8] sm:$0xf]
    %v8009 = vld [vmem:[%s5 + $0x1ec] sm:$0xf]
    %v8010 = vld [vmem:[%s5 + $0x1f0] sm:$0xf]
    %v8011 = vld [vmem:[%s6] sm:$0x1]
    %v8013 = vperm.slane %v8011, 0
    %v8140 = vunpack.c.l.b16 %v7886
    %v8141 = vunpack.c.l.b16 %v7887
    %v8142 = vunpack.c.l.b16 %v7888
    %v8143 = vunpack.c.l.b16 %v7889
    %v8144 = vunpack.c.l.b16 %v7890
    %v8145 = vunpack.c.l.b16 %v7891
    %v8146 = vunpack.c.l.b16 %v7892
    %v8147 = vunpack.c.l.b16 %v7893
    %v8148 = vunpack.c.l.b16 %v7894
    %v8149 = vunpack.c.l.b16 %v7895
    %v8150 = vunpack.c.l.b16 %v7896
    %v8151 = vunpack.c.l.b16 %v7897
    %v8152 = vunpack.c.l.b16 %v7898
    %v8153 = vunpack.c.l.b16 %v7899
    %v8154 = vunpack.c.l.b16 %v7900
    %v8155 = vunpack.c.l.b16 %v7901
    %v8156 = vunpack.c.l.b16 %v7902
    %v8157 = vunpack.c.l.b16 %v7903
    %v8158 = vunpack.c.l.b16 %v7904
    %v8159 = vunpack.c.l.b16 %v7905
    %v8160 = vunpack.c.l.b16 %v7906
    %v8161 = vunpack.c.l.b16 %v7907
    %v8162 = vunpack.c.l.b16 %v7908
    %v8163 = vunpack.c.l.b16 %v7909
    %v8164 = vunpack.c.l.b16 %v7910
    %v8165 = vunpack.c.l.b16 %v7911
    %v8166 = vunpack.c.l.b16 %v7912
    %v8167 = vunpack.c.l.b16 %v7913
    %v8168 = vunpack.c.l.b16 %v7914
    %v8169 = vunpack.c.l.b16 %v7915
    %v8170 = vunpack.c.l.b16 %v7916
    %v8171 = vunpack.c.l.b16 %v7917
    %v8172 = vunpack.c.l.b16 %v7918
    %v8173 = vunpack.c.l.b16 %v7919
    %v8174 = vunpack.c.l.b16 %v7920
    %v8175 = vunpack.c.l.b16 %v7921
    %v8176 = vunpack.c.l.b16 %v7922
    %v8177 = vunpack.c.l.b16 %v7923
    %v8178 = vunpack.c.l.b16 %v7924
    %v8179 = vunpack.c.l.b16 %v7925
    %v8180 = vunpack.c.l.b16 %v7926
    %v8181 = vunpack.c.l.b16 %v7927
    %v8182 = vunpack.c.l.b16 %v7928
    %v8183 = vunpack.c.l.b16 %v7929
    %v8184 = vunpack.c.l.b16 %v7930
    %v8185 = vunpack.c.l.b16 %v7931
    %v8186 = vunpack.c.l.b16 %v7932
    %v8187 = vunpack.c.l.b16 %v7933
    %v8188 = vunpack.c.l.b16 %v7934
    %v8189 = vunpack.c.l.b16 %v7935
    %v8190 = vunpack.c.l.b16 %v7936
    %v8191 = vunpack.c.l.b16 %v7937
    %v8192 = vunpack.c.l.b16 %v7938
    %v8193 = vunpack.c.l.b16 %v7939
    %v8194 = vunpack.c.l.b16 %v7940
    %v8195 = vunpack.c.l.b16 %v7941
    %v8196 = vunpack.c.l.b16 %v7942
    %v8197 = vunpack.c.l.b16 %v7943
    %v8198 = vunpack.c.l.b16 %v7944
    %v8199 = vunpack.c.l.b16 %v7945
    %v8200 = vunpack.c.l.b16 %v7946
    %v8201 = vunpack.c.l.b16 %v7947
    %v8202 = vunpack.c.l.b16 %v7948
    %v8203 = vunpack.c.l.b16 %v7949
    %v8204 = vunpack.c.l.b16 %v7950
    %v8205 = vunpack.c.l.b16 %v7951
    %v8206 = vunpack.c.l.b16 %v7952
    %v8207 = vunpack.c.l.b16 %v7953
    %v8208 = vunpack.c.l.b16 %v7954
    %v8209 = vunpack.c.l.b16 %v7955
    %v8210 = vunpack.c.l.b16 %v7956
    %v8211 = vunpack.c.l.b16 %v7957
    %v8212 = vunpack.c.l.b16 %v7958
    %v8213 = vunpack.c.l.b16 %v7959
    %v8214 = vunpack.c.l.b16 %v7960
    %v8215 = vunpack.c.l.b16 %v7961
    %v8216 = vunpack.c.l.b16 %v7962
    %v8217 = vunpack.c.l.b16 %v7963
    %v8218 = vunpack.c.l.b16 %v7964
    %v8219 = vunpack.c.l.b16 %v7965
    %v8220 = vunpack.c.l.b16 %v7966
    %v8221 = vunpack.c.l.b16 %v7967
    %v8222 = vunpack.c.l.b16 %v7968
    %v8223 = vunpack.c.l.b16 %v7969
    %v8224 = vunpack.c.l.b16 %v7970
    %v8225 = vunpack.c.l.b16 %v7971
    %v8226 = vunpack.c.l.b16 %v7972
    %v8227 = vunpack.c.l.b16 %v7973
    %v8228 = vunpack.c.l.b16 %v7974
    %v8229 = vunpack.c.l.b16 %v7975
    %v8230 = vunpack.c.l.b16 %v7976
    %v8231 = vunpack.c.l.b16 %v7977
    %v8232 = vunpack.c.l.b16 %v7978
    %v8233 = vunpack.c.l.b16 %v7979
    %v8234 = vunpack.c.l.b16 %v7980
    %v8235 = vunpack.c.l.b16 %v7981
    %v8236 = vunpack.c.l.b16 %v7982
    %v8237 = vunpack.c.l.b16 %v7983
    %v8238 = vunpack.c.l.b16 %v7984
    %v8239 = vunpack.c.l.b16 %v7985
    %v8240 = vunpack.c.l.b16 %v7986
    %v8241 = vunpack.c.l.b16 %v7987
    %v8242 = vunpack.c.l.b16 %v7988
    %v8243 = vunpack.c.l.b16 %v7989
    %v8244 = vunpack.c.l.b16 %v7990
    %v8245 = vunpack.c.l.b16 %v7991
    %v8246 = vunpack.c.l.b16 %v7992
    %v8247 = vunpack.c.l.b16 %v7993
    %v8248 = vunpack.c.l.b16 %v7994
    %v8249 = vunpack.c.l.b16 %v7995
    %v8250 = vunpack.c.l.b16 %v7996
    %v8251 = vunpack.c.l.b16 %v7997
    %v8252 = vunpack.c.l.b16 %v7998
    %v8253 = vunpack.c.l.b16 %v7999
    %v8254 = vunpack.c.l.b16 %v8000
    %v8255 = vunpack.c.l.b16 %v8001
    %v8256 = vunpack.c.l.b16 %v8002
    %v8257 = vunpack.c.l.b16 %v8003
    %v8258 = vunpack.c.l.b16 %v8004
    %v8259 = vunpack.c.l.b16 %v8005
    %v8260 = vunpack.c.l.b16 %v8006
    %v8261 = vunpack.c.l.b16 %v8007
    %v8262 = vunpack.c.l.b16 %v8008
    %v8263 = vunpack.c.l.b16 %v8009
    %v8264 = vunpack.c.l.b16 %v8010
    %v8265 = vpack.c.b16 %v8141, %v8140
    %v8266 = vpack.c.b16 %v8143, %v8142
    %v8267 = vpack.c.b16 %v8145, %v8144
    %v8268 = vpack.c.b16 %v8147, %v8146
    %v8269 = vpack.c.b16 %v8149, %v8148
    %v8270 = vpack.c.b16 %v8151, %v8150
    %v8271 = vpack.c.b16 %v8153, %v8152
    %v8272 = vpack.c.b16 %v8155, %v8154
    %v8273 = vpack.c.b16 %v8157, %v8156
    %v8274 = vpack.c.b16 %v8159, %v8158
    %v8275 = vpack.c.b16 %v8161, %v8160
    %v8276 = vpack.c.b16 %v8163, %v8162
    %v8277 = vpack.c.b16 %v8165, %v8164
    %v8278 = vpack.c.b16 %v8167, %v8166
    %v8279 = vpack.c.b16 %v8169, %v8168
    %v8280 = vpack.c.b16 %v8171, %v8170
    %v8281 = vpack.c.b16 %v8173, %v8172
    %v8282 = vpack.c.b16 %v8175, %v8174
    %v8283 = vpack.c.b16 %v8177, %v8176
    %v8284 = vpack.c.b16 %v8179, %v8178
    %v8285 = vpack.c.b16 %v8181, %v8180
    %v8286 = vpack.c.b16 %v8183, %v8182
    %v8287 = vpack.c.b16 %v8185, %v8184
    %v8288 = vpack.c.b16 %v8187, %v8186
    %v8289 = vpack.c.b16 %v8189, %v8188
    %v8290 = vpack.c.b16 %v8191, %v8190
    %v8291 = vpack.c.b16 %v8193, %v8192
    %v8292 = vpack.c.b16 %v8195, %v8194
    %v8293 = vpack.c.b16 %v8197, %v8196
    %v8294 = vpack.c.b16 %v8199, %v8198
    %v8295 = vpack.c.b16 %v8201, %v8200
    %v8296 = vpack.c.b16 %v8203, %v8202
    %v8297 = vpack.c.b16 %v8205, %v8204
    %v8298 = vpack.c.b16 %v8207, %v8206
    %v8299 = vpack.c.b16 %v8209, %v8208
    %v8300 = vpack.c.b16 %v8211, %v8210
    %v8301 = vpack.c.b16 %v8213, %v8212
    %v8302 = vpack.c.b16 %v8215, %v8214
    %v8303 = vpack.c.b16 %v8217, %v8216
    %v8304 = vpack.c.b16 %v8219, %v8218
    %v8305 = vpack.c.b16 %v8221, %v8220
    %v8306 = vpack.c.b16 %v8223, %v8222
    %v8307 = vpack.c.b16 %v8225, %v8224
    %v8308 = vpack.c.b16 %v8227, %v8226
    %v8309 = vpack.c.b16 %v8229, %v8228
    %v8310 = vpack.c.b16 %v8231, %v8230
    %v8311 = vpack.c.b16 %v8233, %v8232
    %v8312 = vpack.c.b16 %v8235, %v8234
    %v8313 = vpack.c.b16 %v8237, %v8236
    %v8314 = vpack.c.b16 %v8239, %v8238
    %v8315 = vpack.c.b16 %v8241, %v8240
    %v8316 = vpack.c.b16 %v8243, %v8242
    %v8317 = vpack.c.b16 %v8245, %v8244
    %v8318 = vpack.c.b16 %v8247, %v8246
    %v8319 = vpack.c.b16 %v8249, %v8248
    %v8320 = vpack.c.b16 %v8251, %v8250
    %v8321 = vpack.c.b16 %v8253, %v8252
    %v8322 = vpack.c.b16 %v8255, %v8254
    %v8323 = vpack.c.b16 %v8257, %v8256
    %v8324 = vpack.c.b16 %v8259, %v8258
    %v8325 = vpack.c.b16 %v8261, %v8260
    %v8326 = vpack.c.b16 %v8263, %v8262
    %v8327 = vpack.c.b16 %v8264, %v8264
    %v8391 = vsel %vm7009, %v7885, 0
    %v8394 = vsel %vm7013, %v8327, 0
    %8396 = vmatpush.bf16.msra.mxu0 %v8272
    %8397 = vmatpush.bf16.msra.mxu0 %v8271
    %8398 = vmatpush.bf16.msra.mxu0 %v8270
    %8399 = vmatpush.bf16.msra.mxu0 %v8269
    %8400 = vmatpush.bf16.msra.mxu0 %v8268
    %8401 = vmatpush.bf16.msra.mxu0 %v8267
    %8402 = vmatpush.bf16.msra.mxu0 %v8266
    %8403 = vmatpush.bf16.msra.mxu0 %v8265
    %8404 = vmatmul.bf16.gmra.mxu0 %v7878
    %v8405 = vpop.f32.mrf.mxu0
    %v8406 = vadd.f32 %v8013, %v8405
    %v8407 = vpop.f32.mrf.mxu0
    %8408 = vdwg.mxu0
    %8409 = vmatpush.bf16.msra.mxu0 %v8280
    %8410 = vmatpush.bf16.msra.mxu0 %v8279
    %8411 = vmatpush.bf16.msra.mxu0 %v8278
    %8412 = vmatpush.bf16.msra.mxu0 %v8277
    %8413 = vmatpush.bf16.msra.mxu0 %v8276
    %8414 = vmatpush.bf16.msra.mxu0 %v8275
    %8415 = vmatpush.bf16.msra.mxu0 %v8274
    %8416 = vmatpush.bf16.msra.mxu0 %v8273
    %8417 = vmatmul.bf16.gmra.mxu0 %v7879
    %v8418 = vpop.f32.mrf.mxu0
    %v8419 = vadd.f32 %v8406, %v8418
    %v8420 = vpop.f32.mrf.mxu0
    %8421 = vdwg.mxu0
    %8422 = vmatpush.bf16.msra.mxu0 %v8288
    %8423 = vmatpush.bf16.msra.mxu0 %v8287
    %8424 = vmatpush.bf16.msra.mxu0 %v8286
    %8425 = vmatpush.bf16.msra.mxu0 %v8285
    %8426 = vmatpush.bf16.msra.mxu0 %v8284
    %8427 = vmatpush.bf16.msra.mxu0 %v8283
    %8428 = vmatpush.bf16.msra.mxu0 %v8282
    %8429 = vmatpush.bf16.msra.mxu0 %v8281
    %8430 = vmatmul.bf16.gmra.mxu0 %v7880
    %v8431 = vpop.f32.mrf.mxu0
    %v8432 = vadd.f32 %v8419, %v8431
    %v8433 = vpop.f32.mrf.mxu0
    %8434 = vdwg.mxu0
    %8435 = vmatpush.bf16.msra.mxu0 %v8296
    %8436 = vmatpush.bf16.msra.mxu0 %v8295
    %8437 = vmatpush.bf16.msra.mxu0 %v8294
    %8438 = vmatpush.bf16.msra.mxu0 %v8293
    %8439 = vmatpush.bf16.msra.mxu0 %v8292
    %8440 = vmatpush.bf16.msra.mxu0 %v8291
    %8441 = vmatpush.bf16.msra.mxu0 %v8290
    %8442 = vmatpush.bf16.msra.mxu0 %v8289
    %8443 = vmatmul.bf16.gmra.mxu0 %v7881
    %v8444 = vpop.f32.mrf.mxu0
    %v8445 = vadd.f32 %v8432, %v8444
    %v8446 = vpop.f32.mrf.mxu0
    %8447 = vdwg.mxu0
    %8448 = vmatpush.bf16.msra.mxu0 %v8304
    %8449 = vmatpush.bf16.msra.mxu0 %v8303
    %8450 = vmatpush.bf16.msra.mxu0 %v8302
    %8451 = vmatpush.bf16.msra.mxu0 %v8301
    %8452 = vmatpush.bf16.msra.mxu0 %v8300
    %8453 = vmatpush.bf16.msra.mxu0 %v8299
    %8454 = vmatpush.bf16.msra.mxu0 %v8298
    %8455 = vmatpush.bf16.msra.mxu0 %v8297
    %8456 = vmatmul.bf16.gmra.mxu0 %v7882
    %v8457 = vpop.f32.mrf.mxu0
    %v8458 = vadd.f32 %v8445, %v8457
    %v8459 = vpop.f32.mrf.mxu0
    %8460 = vdwg.mxu0
    %8461 = vmatpush.bf16.msra.mxu0 %v8312
    %8462 = vmatpush.bf16.msra.mxu0 %v8311
    %8463 = vmatpush.bf16.msra.mxu0 %v8310
    %8464 = vmatpush.bf16.msra.mxu0 %v8309
    %8465 = vmatpush.bf16.msra.mxu0 %v8308
    %8466 = vmatpush.bf16.msra.mxu0 %v8307
    %8467 = vmatpush.bf16.msra.mxu0 %v8306
    %8468 = vmatpush.bf16.msra.mxu0 %v8305
    %8469 = vmatmul.bf16.gmra.mxu0 %v7883
    %v8470 = vpop.f32.mrf.mxu0
    %v8471 = vadd.f32 %v8458, %v8470
    %v8472 = vpop.f32.mrf.mxu0
    %8473 = vdwg.mxu0
    %8474 = vmatpush.bf16.msra.mxu0 %v8320
    %8475 = vmatpush.bf16.msra.mxu0 %v8319
    %8476 = vmatpush.bf16.msra.mxu0 %v8318
    %8477 = vmatpush.bf16.msra.mxu0 %v8317
    %8478 = vmatpush.bf16.msra.mxu0 %v8316
    %8479 = vmatpush.bf16.msra.mxu0 %v8315
    %8480 = vmatpush.bf16.msra.mxu0 %v8314
    %8481 = vmatpush.bf16.msra.mxu0 %v8313
    %8482 = vmatmul.bf16.gmra.mxu0 %v7884
    %v8483 = vpop.f32.mrf.mxu0
    %v8484 = vadd.f32 %v8471, %v8483
    %v8485 = vpop.f32.mrf.mxu0
    %8486 = vdwg.mxu0
    %8487 = vmatpush.bf16.msra.mxu0 0
    %8488 = vmatpush.bf16.msra.mxu0 %v8394
    %8489 = vmatpush.bf16.msra.mxu0 %v8326
    %8490 = vmatpush.bf16.msra.mxu0 %v8325
    %8491 = vmatpush.bf16.msra.mxu0 %v8324
    %8492 = vmatpush.bf16.msra.mxu0 %v8323
    %8493 = vmatpush.bf16.msra.mxu0 %v8322
    %8494 = vmatpush.bf16.msra.mxu0 %v8321
    %8495 = vmatmul.bf16.gmra.mxu0 %v8391
    %v8496 = vpop.f32.mrf.mxu0
    %v8497 = vadd.f32 %v8484, %v8496
    %v8498 = vpop.f32.mrf.mxu0
    %8499 = vdwg.mxu0
    %v8500 = vmul.f32 %v8497, 0.5
    %v8501 = vmul.f32 %v8500, 1.442695
    %v8502 = vpow.pop %v8501
    %v8503 = vld [vmem:[%s7] sm:$0x3]
    %8505 = vrot.lane.b32.xlu0 %v8503, 16
    %v8506 = vpop.permute.xlu0 %8505
    %v8508 = vmul.f32 %v8502, %v8506
    %8510 = vrot.lane.b32.xlu0 %v8508, 112
    %v8511 = vpop.permute.xlu0 %8510
    %v8513 = vadd.f32 %v8497, %v8511
    %vm8514 = vcmask 123904
    %8515 = vst.msk [vmem:[#allocation2] sm:$0x3] %vm8514, %v8513
    %v8516 = vmul.f32 %v8497, 1.442695
    %v8517 = vpow.pop %v8516
    %v8518 = vmul.f32 %v8497, %v8497
    %8520 = vrot.lane.b32.xlu0 %v8518, 16
    %v8521 = vpop.permute.xlu0 %8520
    %v8523 = vadd.f32 %v8517, %v8521
    %v8524 = vsub.f32 %v8523, %v8497
    %v8525 = vsub.f32 %v8524, 1.0
    %v8526 = vmul.f32 %v8525, 0.5
    %8528 = vrot.lane.b32.xlu0 %v8526, 112
    %v8529 = vpop.permute.xlu0 %8528
    %v8531 = vsel %vm8514, %v8529, 0.0
    %8532 = vadd.xlane.f32.xlu0 %v8531
    %v8533 = vpop.xlane.xlu0 %8532
    %v8534 = vrot.slane %v8533, 4
    %v8535 = vadd.f32 %v8533, %v8534
    %v8536 = vrot.slane %v8535, 2
    %v8537 = vadd.f32 %v8535, %v8536
    %v8538 = vrot.slane %v8537, 1
    %v8539 = vadd.f32 %v8537, %v8538
    %s8540 = vtos %v8539
    %s8541 = scalar_lea.smem [#allocation5], 0
    %8542 = sst [smem:[%s8541]] %s8540
    // Predicated region
    $region34: #{qmcifar_forward.7} parent=1 // pred_check
      _
    $region35: #{qmcifar_forward.7} parent=1 // pred_check_branch
      %8544 = sbr.rel (0) target = $region37
    $region36: #{qmcifar_forward.7} parent=1 // pred_region
      %8546 = vsyncadd [#allocation3], 0
      %s8548 = sshll.u32 [#allocation2], 4
      %s8549 = int_to_ptr.vmem [resolvable:$true] %s8548
      %s8550 = sshll.u32 %s8, 4
      %s8551 = int_to_ptr.hbm [resolvable:$true] %s8550
      %8553 = dma.vmem_to_hbm [thread:$0]  %s8549, 32, %s8551, [#allocation3]
    $region37: #{qmcifar_forward.7} parent=1 // pred_fallthru
      _
    // Predicated region
    $region38: #{qmcifar_forward.7} parent=1 // pred_check
      _
    $region39: #{qmcifar_forward.7} parent=1 // pred_check_branch
      %8555 = sbr.rel (0) target = $region41
    $region40: #{qmcifar_forward.7} parent=1 // pred_region
      %8557 = vsyncadd [#allocation4], 0
      %s8559 = sshll.u32 %s9, 4
      %s8560 = int_to_ptr.hbm [resolvable:$true] %s8559
      %8562 = dma.smem_to_hbm [#allocation5], 16, %s8560, [#allocation4]
    $region41: #{qmcifar_forward.7} parent=1 // pred_fallthru
      _
    // Predicated region
    $region42: #{qmcifar_forward.7} parent=1 // pred_check
      _
    $region43: #{qmcifar_forward.7} parent=1 // pred_check_branch
      %8564 = sbr.rel (0) target = $region45
    $region44: #{qmcifar_forward.7} parent=1 // pred_region
      %8566 = dma.done [#allocation3], 32
    $region45: #{qmcifar_forward.7} parent=1 // pred_fallthru
      _
    // Predicated region
    $region46: #{qmcifar_forward.7} parent=1 // pred_check
      _
    $region47: #{qmcifar_forward.7} parent=1 // pred_check_branch
      %8568 = sbr.rel (0) target = $region49
    $region48: #{qmcifar_forward.7} parent=1 // pred_region
      %8570 = dma.done [#allocation4], 16
    $region49: #{qmcifar_forward.7} parent=1 // pred_fallthru
      _
    %8571 = sfence
    %8572 = vsyncpa [#allocation3], 1
    %8573 = vsyncpa [#allocation4], 1

</llo_original>
